<compile_context>
chip_gen: v7x
topology: tpu7x:2x2x1
jax: 0.10.0
libtpu: 0.0.40
codegen_flags: <defaults>
</compile_context>

<pallas_src>
import numpy as np
import jax
import jax.numpy as jnp
from jax.experimental import pallas as pl
from jax.experimental.pallas import tpu as pltpu

# ----------------------------- synthetic algo_config --------------------------
B = 2                        # batch
T = 8                        # future_num_frames
STATE_DIM = 3                # (x, y, yaw)
IMG_C, IMG_H, IMG_W = 4, 16, 16       # modality_shapes['image'] (NCHW batch layout)
MAP_FEATURE_DIM = 32         # algo_config.map_feature_dim
GAN_LATENT = 8               # algo_config.gan.latent_dim
DEC_HIDDEN = (32, 32)        # algo_config.decoder hidden dims
RNN_HIDDEN = 16              # algo_config.traj_encoder.rnn_hidden_size
TRAJ_MLP_HIDDEN = 32         # algo_config.traj_encoder.mlp_layer_dims
TRAJ_FEAT_DIM = 16           # algo_config.traj_encoder.feature_dim
DISC_HIDDEN = (32, 32)       # algo_config.gan.disc_layer_dims

# map-encoder stand-in CNN (two 3x3/s2 convs + global-avg-pool + FC)
# TODO(synk): RasterizedMapEncoder's ResNet backbone is stood in by this small
# 2-conv CNN with the same interface (image -> map_feature_dim features).
CONV1_CH, CONV2_CH = 8, 16
CONV1_OHW = IMG_H // 2       # 8
CONV2_OHW = IMG_H // 4       # 4
N_TAPS = 9                   # 3x3 kernel taps
PATCH_DIM = 3 * 3 * IMG_C + 1        # 36 image values + validity flag (carries conv1 bias)
N_POS2 = CONV2_OHW * CONV2_OHW       # 16 conv2 output positions per image

GATE = 128                   # GRU gate lane-group stride (vreg aligned)
WIDE_COLS = 3 * GATE         # 384

OUT_SLAB = 128               # lane-dense packed output width
_N_OUT_VALS = T * STATE_DIM + 3      # 24 trajectory values + 3 scores

_VMEM = pl.BlockSpec(memory_space=pltpu.MemorySpace.VMEM)

# ------------------- packed const-slab layout (one f32 array) -----------------
NARROW_COLS = 32
_NARROW = {}
_cur = 0


def _place(name, rows, cols):
    global _cur
    _NARROW[name] = (_cur, rows, cols)
    _cur += ((rows + 7) // 8) * 8        # keep every matrix start 8-row aligned


_place('w1aug', PATCH_DIM, CONV1_CH)          # conv1 (36,8) + bias row
_place('w2', N_TAPS * CONV1_CH, CONV2_CH)     # conv2 (72,16)
_place('wfc', CONV2_CH, MAP_FEATURE_DIM)      # map FC 16->32
_place('pool', B, B * N_POS2)                 # global-average-pool matrix (2,32)
_place('d1a', MAP_FEATURE_DIM, DEC_HIDDEN[0])  # decoder layer1, map part
_place('d1b', GAN_LATENT, DEC_HIDDEN[0])       # decoder layer1, noise part
_place('d2', DEC_HIDDEN[0], DEC_HIDDEN[1])
_place('d3', DEC_HIDDEN[1], T * STATE_DIM)
_place('te1', RNN_HIDDEN, TRAJ_MLP_HIDDEN)    # traj-encoder MLP
_place('te2', TRAJ_MLP_HIDDEN, TRAJ_FEAT_DIM)
_place('g1m', MAP_FEATURE_DIM, DISC_HIDDEN[0])  # disc layer1, map part
_place('g1f', TRAJ_FEAT_DIM, DISC_HIDDEN[0])    # disc layer1, traj-feat part
_place('g2', DISC_HIDDEN[0], DISC_HIDDEN[1])
_place('g3', DISC_HIDDEN[1], 1)
_place('bias', 10, 32)   # rows: b2, bfc, d1, d2, d3, te1, te2, g1, g2, g3
NARROW_ROWS = _cur

# wide slab: GRU weights, gates r/z/n at lane groups 0/128/256
WIDE_ROWS = 24   # rows 0:3 W_ih, row 4 hoisted biases, row 5 b_hn, rows 8:24 W_hh


# ----------------------------- fused forward kernel ---------------------------
def _gan_forward_kernel(patches_ref, data_ref, wide_ref, nw_ref, out_ref, traj_sc):
    f32 = jnp.float32
    relu = lambda v: jnp.maximum(v, 0.0)
    dot = lambda a, b: jnp.dot(a, b, preferred_element_type=f32)

    def take(name):
        r0, rows, cols = _NARROW[name]
        return nw_ref[r0:r0 + rows, 0:cols]

    bb = take('bias')                                        # (10, 32)
    bias = lambda i, w: bb[i:i + 1, 0:w]

    # ---- map encoder: two 3x3/s2 convs as a 9-tap im2col accumulate, GAP, FC
    w1 = take('w1aug')                                       # (37, 8): rows 0:36 kernel, row 36 bias
    w2 = take('w2')                                          # (72, 16)
    h2pre = None
    for tau in range(N_TAPS):
        h1_tau = relu(dot(patches_ref[tau], w1))             # (B*16, 8) conv1 output at tap position
        c = dot(h1_tau, w2[tau * CONV1_CH:(tau + 1) * CONV1_CH, :])
        h2pre = c if h2pre is None else h2pre + c
    h2 = relu(h2pre + bias(0, CONV2_CH))                     # (B*16, 16) conv2 output
    pooled = dot(take('pool'), h2)                           # (B, 16) global average pool
    map_feat = dot(pooled, take('wfc')) + bias(1, MAP_FEATURE_DIM)        # (B, 32)

    # ---- generator: MLP trajectory decoder on [map_feat | noise] (split weights, no concat)
    noise = data_ref[:, 0:GAN_LATENT]                        # (B, 8)
    real_traj = data_ref[:, GAN_LATENT:GAN_LATENT + T * STATE_DIM]        # (B, 24)
    d = relu(dot(map_feat, take('d1a')) + dot(noise, take('d1b')) + bias(2, DEC_HIDDEN[0]))
    d = relu(dot(d, take('d2')) + bias(3, DEC_HIDDEN[1]))
    traj_flat = dot(d, take('d3')) + bias(4, T * STATE_DIM)  # (B, 24)

    # ---- stack pred / real trajectories through a VMEM scratch (no axis-0 concat)
    traj_sc[0:B, :] = traj_flat
    traj_sc[B:2 * B, :] = real_traj
    traj_both = traj_sc[...]                                 # (2B, 24)

    # ---- GRU trajectory encoder, pred+real in one 2B-row pass
    # gate layout: r/z/n occupy lanes 0:16 / 128:144 / 256:272 -> all per-step gate
    # slices on the serial chain are vreg-aligned views.
    wih = wide_ref[0:STATE_DIM, :]                           # (3, 384)
    bias_pre = wide_ref[4:5, :]                              # b_i* + b_hr/b_hz hoisted
    bhn = wide_ref[5:6, :]                                   # b_hn (stays inside the r-gate)
    whh = wide_ref[8:8 + RNN_HIDDEN, :]                      # (16, 384)
    gis = [dot(traj_both[:, 3 * t:3 * t + 3], wih) + bias_pre for t in range(T)]  # off the h-chain
    h = jnp.zeros((2 * B, RNN_HIDDEN), f32)
    for t in range(T):                                       # static unroll (T == 8)
        gh = dot(h, whh) + bhn                               # (2B, 384)
        a = gis[t] + gh
        r = jax.nn.sigmoid(a[:, 0:GATE])
        z = jax.nn.sigmoid(a[:, GATE:2 * GATE])
        n = jnp.tanh(gis[t][:, 2 * GATE:3 * GATE] + r * gh[:, 2 * GATE:3 * GATE])
        h = (1.0 - z[:, 0:RNN_HIDDEN]) * n[:, 0:RNN_HIDDEN] + z[:, 0:RNN_HIDDEN] * h
    tf = relu(dot(h, take('te1')) + bias(5, TRAJ_MLP_HIDDEN))
    feats = dot(tf, take('te2')) + bias(6, TRAJ_FEAT_DIM)    # (2B, 16)

    # ---- GAN discriminator: map part computed once, reused for pred & real halves
    map_g = dot(map_feat, take('g1m'))                       # (B, 32)
    g1f, g2w, g3w = take('g1f'), take('g2'), take('g3')
    b1d, b2d, b3d = bias(7, DISC_HIDDEN[0]), bias(8, DISC_HIDDEN[1]), bias(9, 1)

    def disc(fe):                                            # (B, 16) -> (B, 1)
        g = relu(map_g + dot(fe, g1f) + b1d)
        g = relu(dot(g, g2w) + b2d)
        return jax.nn.sigmoid(dot(g, g3w) + b3d)

    pred_score = disc(feats[0:B, :])     # gen_score == disc_pred_score (detach is a fwd no-op)
    real_score = disc(feats[B:2 * B, :])

    # ---- lane-dense output slab, built with slice stores (no lane concat / zeros pad array)
    out_ref[...] = jnp.zeros((B, OUT_SLAB), f32)
    out_ref[:, 0:T * STATE_DIM] = traj_flat
    out_ref[:, T * STATE_DIM:T * STATE_DIM + 1] = pred_score         # gen_score
    out_ref[:, T * STATE_DIM + 1:T * STATE_DIM + 2] = pred_score     # disc_pred_score
    out_ref[:, T * STATE_DIM + 2:T * STATE_DIM + 3] = real_score     # disc_real_score


# ----------------------------- parameter construction -------------------------
def init_params(seed=0):
    rng = np.random.default_rng(seed)
    rnd = lambda shape, s=0.1: (s * rng.standard_normal(shape)).astype(np.float32)

    narrow = np.zeros((NARROW_ROWS, NARROW_COLS), np.float32)

    def put(name, arr):
        r0, rows, cols = _NARROW[name]
        assert arr.shape == (rows, cols), (name, arr.shape)
        narrow[r0:r0 + rows, 0:cols] = arr

    # map encoder: conv1 3x3x4->8 (bias folded onto the validity-flag patch column),
    # conv2 3x3x8->16, GAP matrix, FC 16->32
    put('w1aug', np.concatenate([rnd((36, CONV1_CH)), rnd((1, CONV1_CH), 0.05)], axis=0))
    put('w2', rnd((N_TAPS * CONV1_CH, CONV2_CH)))
    put('wfc', rnd((CONV2_CH, MAP_FEATURE_DIM)))
    pool = np.zeros((B, B * N_POS2), np.float32)
    for b in range(B):
        pool[b, b * N_POS2:(b + 1) * N_POS2] = 1.0 / N_POS2
    put('pool', pool)
    # MLPTrajectoryDecoder (first layer split: map part + noise part)
    put('d1a', rnd((MAP_FEATURE_DIM, DEC_HIDDEN[0])))
    put('d1b', rnd((GAN_LATENT, DEC_HIDDEN[0])))
    put('d2', rnd((DEC_HIDDEN[0], DEC_HIDDEN[1])))
    put('d3', rnd((DEC_HIDDEN[1], T * STATE_DIM)))
    # RNNTrajectoryEncoder MLP head
    put('te1', rnd((RNN_HIDDEN, TRAJ_MLP_HIDDEN)))
    put('te2', rnd((TRAJ_MLP_HIDDEN, TRAJ_FEAT_DIM)))
    # GAN discriminator (first layer split: map part + traj-feature part)
    put('g1m', rnd((MAP_FEATURE_DIM, DISC_HIDDEN[0])))
    put('g1f', rnd((TRAJ_FEAT_DIM, DISC_HIDDEN[0])))
    put('g2', rnd((DISC_HIDDEN[0], DISC_HIDDEN[1])))
    put('g3', rnd((DISC_HIDDEN[1], 1)))
    bias_blk = np.zeros((10, 32), np.float32)
    widths = [CONV2_CH, MAP_FEATURE_DIM, DEC_HIDDEN[0], DEC_HIDDEN[1], T * STATE_DIM,
              TRAJ_MLP_HIDDEN, TRAJ_FEAT_DIM, DISC_HIDDEN[0], DISC_HIDDEN[1], 1]
    for i, w in enumerate(widths):
        bias_blk[i, :w] = rnd((w,), 0.05)
    put('bias', bias_blk)

    # GRU slab: gate columns at 128-lane group boundaries (r/z/n -> 0/128/256);
    # b_i* + b_hr + b_hz hoisted into row 4, b_hn kept separate in row 5.
    wide = np.zeros((WIDE_ROWS, WIDE_COLS), np.float32)
    w_ih = rnd((STATE_DIM, 3 * RNN_HIDDEN))
    w_hh = rnd((RNN_HIDDEN, 3 * RNN_HIDDEN))
    b_ih = rnd((3 * RNN_HIDDEN,), 0.05)
    b_hh = rnd((3 * RNN_HIDDEN,), 0.05)
    for g in range(3):
        src = slice(g * RNN_HIDDEN, (g + 1) * RNN_HIDDEN)
        dst = slice(g * GATE, g * GATE + RNN_HIDDEN)
        wide[0:STATE_DIM, dst] = w_ih[:, src]
        wide[8:8 + RNN_HIDDEN, dst] = w_hh[:, src]
    wide[4, 0:RNN_HIDDEN] = b_ih[0:RNN_HIDDEN] + b_hh[0:RNN_HIDDEN]                               # r
    wide[4, GATE:GATE + RNN_HIDDEN] = b_ih[RNN_HIDDEN:2 * RNN_HIDDEN] + b_hh[RNN_HIDDEN:2 * RNN_HIDDEN]  # z
    wide[4, 2 * GATE:2 * GATE + RNN_HIDDEN] = b_ih[2 * RNN_HIDDEN:]                               # n (input bias)
    wide[5, 2 * GATE:2 * GATE + RNN_HIDDEN] = b_hh[2 * RNN_HIDDEN:]                               # b_hn

    return {
        'narrow': jnp.asarray(narrow),        # (416, 32) f32 packed const slab
        'wide': jnp.asarray(wide),            # (24, 384) f32 GRU slab
        # non-trainable parameter; used only by the loss functions, not by forward()
        'weights_scaling': jnp.array([1.0, 1.0, 1.0], jnp.float32),
    }


# ----------------------------- input data preparation --------------------------
def _build_conv_patches(img_nhwc):
    """im2col of the INPUT image for the stand-in map-encoder CNN (data layout only).

    Returns (9, B*16, 37): for each conv2 output position q and 3x3 tap tau, the
    36-dim conv1 input patch at conv1 position (2*q + tau - 1), plus a validity flag
    that is 0 for conv2's zero padding (the flag also carries conv1's bias in-kernel).
    All conv FLOPs stay inside the kernel; this replaces the ~1 MiB Toeplitz weights.
    """
    img_pad = jnp.pad(img_nhwc, ((0, 0), (3, 3), (3, 3), (0, 0)))       # (B, 22, 22, C)
    # conv1 im2col over the extended conv1-position grid pi, pj in {-1..8} (10x10)
    cols = []
    for ki in range(3):
        for kj in range(3):
            cols.append(img_pad[:, ki:ki + 20:2, kj:kj + 20:2, :])      # (B, 10, 10, C)
    p1 = jnp.stack(cols, axis=3).reshape(B, 10, 10, 9 * IMG_C)
    valid = np.zeros((10, 10), np.float32)
    valid[1:9, 1:9] = 1.0                                               # pi, pj in 0..7 are real
    valid = jnp.asarray(valid)
    p1 = p1 * valid[None, :, :, None]
    p1 = jnp.concatenate(
        [p1, jnp.broadcast_to(valid[None, :, :, None], (B, 10, 10, 1))], axis=-1)
    # conv2 im2col: tap (ti, tj) of conv2 output (qi, qj) reads conv1 position
    # (2*qi + ti - 1, 2*qj + tj - 1) == extended-grid index (2*qi + ti, 2*qj + tj)
    taps = []
    for ti in range(3):
        for tj in range(3):
            taps.append(p1[:, ti:ti + 7:2, tj:tj + 7:2, :])             # (B, 4, 4, 37)
    return jnp.stack(taps, axis=0).reshape(N_TAPS, B * N_POS2, PATCH_DIM)


# ----------------------------- forward pass ------------------------------------
def forward(params, data_batch, noise_key):
    # TODO(synk): reference forward() uses self.map_encoder which is never defined in
    # __init__; following forward_generator/forward_discriminator we use one shared
    # map encoder for both the generator and the discriminator scores.
    img = jnp.transpose(data_batch['image'], (0, 2, 3, 1)).astype(jnp.float32)   # NCHW -> NHWC
    patches = _build_conv_patches(img)                                           # (9, 32, 37)
    target_traj = jnp.concatenate(
        [data_batch['target_positions'], data_batch['target_yaws']], axis=-1)    # (B, T, 3)
    real_flat = target_traj.reshape(B, T * STATE_DIM).astype(jnp.float32)
    gan_noise = jax.random.normal(noise_key, (B, GAN_LATENT), jnp.float32)       # torch.randn equivalent
    data_slab = jnp.concatenate([gan_noise, real_flat], axis=-1)                 # (B, 32): one small DMA
    # NOTE: target_availabilities / weights_scaling are loss-only (unused in forward).

    slab = pl.pallas_call(
        _gan_forward_kernel,
        out_shape=jax.ShapeDtypeStruct((B, OUT_SLAB), jnp.float32),
        in_specs=[_VMEM, _VMEM, _VMEM, _VMEM],
        out_specs=_VMEM,
        scratch_shapes=[pltpu.VMEM((2 * B, T * STATE_DIM), jnp.float32)],
    )(patches, data_slab, params['wide'], params['narrow'])

    traj = slab[:, :T * STATE_DIM].reshape(B, T, STATE_DIM)
    out = {
        'trajectories': traj,
        'predictions': {'positions': traj[..., :2], 'yaws': traj[..., 2:3]},
        'gen_score': slab[:, T * STATE_DIM],
        'disc_pred_score': slab[:, T * STATE_DIM + 1],
        'disc_real_score': slab[:, T * STATE_DIM + 2],
    }
    # traj_decoder.dyn is None -> no 'controls' output
    return out


# ----------------------------- main --------------------------------------------
if __name__ == "__main__":
    key = jax.random.PRNGKey(0)
    k_img, k_pos, k_yaw, k_noise = jax.random.split(key, 4)

    params = init_params(seed=0)
    data_batch = {
        'image': jax.random.normal(k_img, (B, IMG_C, IMG_H, IMG_W), jnp.float32),
        'target_positions': jax.random.normal(k_pos, (B, T, 2), jnp.float32),
        'target_yaws': 0.1 * jax.random.normal(k_yaw, (B, T, 1), jnp.float32),
        'target_availabilities': jnp.ones((B, T), jnp.float32),
    }

    outs = jax.jit(forward)(params, data_batch, k_noise)
    jax.block_until_ready(outs['trajectories'])

    assert outs['trajectories'].shape == (B, T, STATE_DIM)
    assert outs['predictions']['positions'].shape == (B, T, 2)
    assert outs['predictions']['yaws'].shape == (B, T, 1)
    assert outs['gen_score'].shape == (B,)
    assert outs['disc_pred_score'].shape == (B,)
    assert outs['disc_real_score'].shape == (B,)
    assert bool(jnp.all(jnp.isfinite(outs['trajectories'])))
    assert bool(jnp.all((outs['gen_score'] >= 0) & (outs['gen_score'] <= 1)))
    print("KERNEL_OK")
</pallas_src>

<mosaic_0001>
module attributes {stable_mosaic.version = 11 : i64} {
  func.func @_gan_forward_kernel(%arg0: memref<9x32x37xf32, #tpu.memory_space<vmem>>, %arg1: memref<2x32xf32, #tpu.memory_space<vmem>>, %arg2: memref<24x384xf32, #tpu.memory_space<vmem>>, %arg3: memref<416x32xf32, #tpu.memory_space<vmem>>, %arg4: memref<2x128xf32, #tpu.memory_space<vmem>>, %arg5: memref<4x24xf32, #tpu.memory_space<vmem>>) attributes {dimension_semantics = [], scalar_prefetch = 0 : i64, scratch_operands = 1 : i64, tpu.core_type = #tpu.core_type<tc>} {
    %c400 = arith.constant 400 : index
    %c0 = arith.constant 0 : index
    %0 = vector.load %arg3[%c400, %c0] : memref<416x32xf32, #tpu.memory_space<vmem>>, vector<10x32xf32>
    %c0_0 = arith.constant 0 : index
    %c0_1 = arith.constant 0 : index
    %1 = vector.load %arg3[%c0_0, %c0_1] : memref<416x32xf32, #tpu.memory_space<vmem>>, vector<37x8xf32>
    %c40 = arith.constant 40 : index
    %c0_2 = arith.constant 0 : index
    %2 = vector.load %arg3[%c40, %c0_2] : memref<416x32xf32, #tpu.memory_space<vmem>>, vector<72x16xf32>
    %c0_3 = arith.constant 0 : index
    %c0_4 = arith.constant 0 : index
    %c0_5 = arith.constant 0 : index
    %3 = vector.load %arg0[%c0_3, %c0_4, %c0_5] : memref<9x32x37xf32, #tpu.memory_space<vmem>>, vector<1x32x37xf32>
    %4 = vector.shape_cast %3 : vector<1x32x37xf32> to vector<32x37xf32>
    %cst = arith.constant dense<0.000000e+00> : vector<32x8xf32>
    %5 = tpu.matmul %4, %1, %cst {dimension_numbers = #tpu.dot_dimension_numbers<[1], [0], [0], [1], [0, 0, 1, 1], [], []>} : vector<32x37xf32>, vector<37x8xf32>, vector<32x8xf32> -> vector<32x8xf32>
    %cst_6 = arith.constant 0.000000e+00 : f32
    %6 = vector.broadcast %cst_6 : f32 to vector<32x8xf32>
    %7 = arith.maximumf %5, %6 : vector<32x8xf32>
    %8 = vector.extract_strided_slice %2 {offsets = [0, 0], sizes = [8, 16], strides = [1, 1]} : vector<72x16xf32> to vector<8x16xf32>
    %cst_7 = arith.constant dense<0.000000e+00> : vector<32x16xf32>
    %9 = tpu.matmul %7, %8, %cst_7 {dimension_numbers = #tpu.dot_dimension_numbers<[1], [0], [0], [1], [0, 0, 1, 1], [], []>} : vector<32x8xf32>, vector<8x16xf32>, vector<32x16xf32> -> vector<32x16xf32>
    %c1 = arith.constant 1 : index
    %c0_8 = arith.constant 0 : index
    %c0_9 = arith.constant 0 : index
    %10 = vector.load %arg0[%c1, %c0_8, %c0_9] : memref<9x32x37xf32, #tpu.memory_space<vmem>>, vector<1x32x37xf32>
    %11 = vector.shape_cast %10 : vector<1x32x37xf32> to vector<32x37xf32>
    %cst_10 = arith.constant dense<0.000000e+00> : vector<32x8xf32>
    %12 = tpu.matmul %11, %1, %cst_10 {dimension_numbers = #tpu.dot_dimension_numbers<[1], [0], [0], [1], [0, 0, 1, 1], [], []>} : vector<32x37xf32>, vector<37x8xf32>, vector<32x8xf32> -> vector<32x8xf32>
    %cst_11 = arith.constant 0.000000e+00 : f32
    %13 = vector.broadcast %cst_11 : f32 to vector<32x8xf32>
    %14 = arith.maximumf %12, %13 : vector<32x8xf32>
    %15 = vector.extract_strided_slice %2 {offsets = [8, 0], sizes = [8, 16], strides = [1, 1]} : vector<72x16xf32> to vector<8x16xf32>
    %cst_12 = arith.constant dense<0.000000e+00> : vector<32x16xf32>
    %16 = tpu.matmul %14, %15, %cst_12 {dimension_numbers = #tpu.dot_dimension_numbers<[1], [0], [0], [1], [0, 0, 1, 1], [], []>} : vector<32x8xf32>, vector<8x16xf32>, vector<32x16xf32> -> vector<32x16xf32>
    %17 = arith.addf %9, %16 : vector<32x16xf32>
    %c2 = arith.constant 2 : index
    %c0_13 = arith.constant 0 : index
    %c0_14 = arith.constant 0 : index
    %18 = vector.load %arg0[%c2, %c0_13, %c0_14] : memref<9x32x37xf32, #tpu.memory_space<vmem>>, vector<1x32x37xf32>
    %19 = vector.shape_cast %18 : vector<1x32x37xf32> to vector<32x37xf32>
    %cst_15 = arith.constant dense<0.000000e+00> : vector<32x8xf32>
    %20 = tpu.matmul %19, %1, %cst_15 {dimension_numbers = #tpu.dot_dimension_numbers<[1], [0], [0], [1], [0, 0, 1, 1], [], []>} : vector<32x37xf32>, vector<37x8xf32>, vector<32x8xf32> -> vector<32x8xf32>
    %cst_16 = arith.constant 0.000000e+00 : f32
    %21 = vector.broadcast %cst_16 : f32 to vector<32x8xf32>
    %22 = arith.maximumf %20, %21 : vector<32x8xf32>
    %23 = vector.extract_strided_slice %2 {offsets = [16, 0], sizes = [8, 16], strides = [1, 1]} : vector<72x16xf32> to vector<8x16xf32>
    %cst_17 = arith.constant dense<0.000000e+00> : vector<32x16xf32>
    %24 = tpu.matmul %22, %23, %cst_17 {dimension_numbers = #tpu.dot_dimension_numbers<[1], [0], [0], [1], [0, 0, 1, 1], [], []>} : vector<32x8xf32>, vector<8x16xf32>, vector<32x16xf32> -> vector<32x16xf32>
    %25 = arith.addf %17, %24 : vector<32x16xf32>
    %c3 = arith.constant 3 : index
    %c0_18 = arith.constant 0 : index
    %c0_19 = arith.constant 0 : index
    %26 = vector.load %arg0[%c3, %c0_18, %c0_19] : memref<9x32x37xf32, #tpu.memory_space<vmem>>, vector<1x32x37xf32>
    %27 = vector.shape_cast %26 : vector<1x32x37xf32> to vector<32x37xf32>
    %cst_20 = arith.constant dense<0.000000e+00> : vector<32x8xf32>
    %28 = tpu.matmul %27, %1, %cst_20 {dimension_numbers = #tpu.dot_dimension_numbers<[1], [0], [0], [1], [0, 0, 1, 1], [], []>} : vector<32x37xf32>, vector<37x8xf32>, vector<32x8xf32> -> vector<32x8xf32>
    %cst_21 = arith.constant 0.000000e+00 : f32
    %29 = vector.broadcast %cst_21 : f32 to vector<32x8xf32>
    %30 = arith.maximumf %28, %29 : vector<32x8xf32>
    %31 = vector.extract_strided_slice %2 {offsets = [24, 0], sizes = [8, 16], strides = [1, 1]} : vector<72x16xf32> to vector<8x16xf32>
    %cst_22 = arith.constant dense<0.000000e+00> : vector<32x16xf32>
    %32 = tpu.matmul %30, %31, %cst_22 {dimension_numbers = #tpu.dot_dimension_numbers<[1], [0], [0], [1], [0, 0, 1, 1], [], []>} : vector<32x8xf32>, vector<8x16xf32>, vector<32x16xf32> -> vector<32x16xf32>
    %33 = arith.addf %25, %32 : vector<32x16xf32>
    %c4 = arith.constant 4 : index
    %c0_23 = arith.constant 0 : index
    %c0_24 = arith.constant 0 : index
    %34 = vector.load %arg0[%c4, %c0_23, %c0_24] : memref<9x32x37xf32, #tpu.memory_space<vmem>>, vector<1x32x37xf32>
    %35 = vector.shape_cast %34 : vector<1x32x37xf32> to vector<32x37xf32>
    %cst_25 = arith.constant dense<0.000000e+00> : vector<32x8xf32>
    %36 = tpu.matmul %35, %1, %cst_25 {dimension_numbers = #tpu.dot_dimension_numbers<[1], [0], [0], [1], [0, 0, 1, 1], [], []>} : vector<32x37xf32>, vector<37x8xf32>, vector<32x8xf32> -> vector<32x8xf32>
    %cst_26 = arith.constant 0.000000e+00 : f32
    %37 = vector.broadcast %cst_26 : f32 to vector<32x8xf32>
    %38 = arith.maximumf %36, %37 : vector<32x8xf32>
    %39 = vector.extract_strided_slice %2 {offsets = [32, 0], sizes = [8, 16], strides = [1, 1]} : vector<72x16xf32> to vector<8x16xf32>
    %cst_27 = arith.constant dense<0.000000e+00> : vector<32x16xf32>
    %40 = tpu.matmul %38, %39, %cst_27 {dimension_numbers = #tpu.dot_dimension_numbers<[1], [0], [0], [1], [0, 0, 1, 1], [], []>} : vector<32x8xf32>, vector<8x16xf32>, vector<32x16xf32> -> vector<32x16xf32>
    %41 = arith.addf %33, %40 : vector<32x16xf32>
    %c5 = arith.constant 5 : index
    %c0_28 = arith.constant 0 : index
    %c0_29 = arith.constant 0 : index
    %42 = vector.load %arg0[%c5, %c0_28, %c0_29] : memref<9x32x37xf32, #tpu.memory_space<vmem>>, vector<1x32x37xf32>
    %43 = vector.shape_cast %42 : vector<1x32x37xf32> to vector<32x37xf32>
    %cst_30 = arith.constant dense<0.000000e+00> : vector<32x8xf32>
    %44 = tpu.matmul %43, %1, %cst_30 {dimension_numbers = #tpu.dot_dimension_numbers<[1], [0], [0], [1], [0, 0, 1, 1], [], []>} : vector<32x37xf32>, vector<37x8xf32>, vector<32x8xf32> -> vector<32x8xf32>
    %cst_31 = arith.constant 0.000000e+00 : f32
    %45 = vector.broadcast %cst_31 : f32 to vector<32x8xf32>
    %46 = arith.maximumf %44, %45 : vector<32x8xf32>
    %47 = vector.extract_strided_slice %2 {offsets = [40, 0], sizes = [8, 16], strides = [1, 1]} : vector<72x16xf32> to vector<8x16xf32>
    %cst_32 = arith.constant dense<0.000000e+00> : vector<32x16xf32>
    %48 = tpu.matmul %46, %47, %cst_32 {dimension_numbers = #tpu.dot_dimension_numbers<[1], [0], [0], [1], [0, 0, 1, 1], [], []>} : vector<32x8xf32>, vector<8x16xf32>, vector<32x16xf32> -> vector<32x16xf32>
    %49 = arith.addf %41, %48 : vector<32x16xf32>
    %c6 = arith.constant 6 : index
    %c0_33 = arith.constant 0 : index
    %c0_34 = arith.constant 0 : index
    %50 = vector.load %arg0[%c6, %c0_33, %c0_34] : memref<9x32x37xf32, #tpu.memory_space<vmem>>, vector<1x32x37xf32>
    %51 = vector.shape_cast %50 : vector<1x32x37xf32> to vector<32x37xf32>
    %cst_35 = arith.constant dense<0.000000e+00> : vector<32x8xf32>
    %52 = tpu.matmul %51, %1, %cst_35 {dimension_numbers = #tpu.dot_dimension_numbers<[1], [0], [0], [1], [0, 0, 1, 1], [], []>} : vector<32x37xf32>, vector<37x8xf32>, vector<32x8xf32> -> vector<32x8xf32>
    %cst_36 = arith.constant 0.000000e+00 : f32
    %53 = vector.broadcast %cst_36 : f32 to vector<32x8xf32>
    %54 = arith.maximumf %52, %53 : vector<32x8xf32>
    %55 = vector.extract_strided_slice %2 {offsets = [48, 0], sizes = [8, 16], strides = [1, 1]} : vector<72x16xf32> to vector<8x16xf32>
    %cst_37 = arith.constant dense<0.000000e+00> : vector<32x16xf32>
    %56 = tpu.matmul %54, %55, %cst_37 {dimension_numbers = #tpu.dot_dimension_numbers<[1], [0], [0], [1], [0, 0, 1, 1], [], []>} : vector<32x8xf32>, vector<8x16xf32>, vector<32x16xf32> -> vector<32x16xf32>
    %57 = arith.addf %49, %56 : vector<32x16xf32>
    %c7 = arith.constant 7 : index
    %c0_38 = arith.constant 0 : index
    %c0_39 = arith.constant 0 : index
    %58 = vector.load %arg0[%c7, %c0_38, %c0_39] : memref<9x32x37xf32, #tpu.memory_space<vmem>>, vector<1x32x37xf32>
    %59 = vector.shape_cast %58 : vector<1x32x37xf32> to vector<32x37xf32>
    %cst_40 = arith.constant dense<0.000000e+00> : vector<32x8xf32>
    %60 = tpu.matmul %59, %1, %cst_40 {dimension_numbers = #tpu.dot_dimension_numbers<[1], [0], [0], [1], [0, 0, 1, 1], [], []>} : vector<32x37xf32>, vector<37x8xf32>, vector<32x8xf32> -> vector<32x8xf32>
    %cst_41 = arith.constant 0.000000e+00 : f32
    %61 = vector.broadcast %cst_41 : f32 to vector<32x8xf32>
    %62 = arith.maximumf %60, %61 : vector<32x8xf32>
    %63 = vector.extract_strided_slice %2 {offsets = [56, 0], sizes = [8, 16], strides = [1, 1]} : vector<72x16xf32> to vector<8x16xf32>
    %cst_42 = arith.constant dense<0.000000e+00> : vector<32x16xf32>
    %64 = tpu.matmul %62, %63, %cst_42 {dimension_numbers = #tpu.dot_dimension_numbers<[1], [0], [0], [1], [0, 0, 1, 1], [], []>} : vector<32x8xf32>, vector<8x16xf32>, vector<32x16xf32> -> vector<32x16xf32>
    %65 = arith.addf %57, %64 : vector<32x16xf32>
    %c8 = arith.constant 8 : index
    %c0_43 = arith.constant 0 : index
    %c0_44 = arith.constant 0 : index
    %66 = vector.load %arg0[%c8, %c0_43, %c0_44] : memref<9x32x37xf32, #tpu.memory_space<vmem>>, vector<1x32x37xf32>
    %67 = vector.shape_cast %66 : vector<1x32x37xf32> to vector<32x37xf32>
    %cst_45 = arith.constant dense<0.000000e+00> : vector<32x8xf32>
    %68 = tpu.matmul %67, %1, %cst_45 {dimension_numbers = #tpu.dot_dimension_numbers<[1], [0], [0], [1], [0, 0, 1, 1], [], []>} : vector<32x37xf32>, vector<37x8xf32>, vector<32x8xf32> -> vector<32x8xf32>
    %cst_46 = arith.constant 0.000000e+00 : f32
    %69 = vector.broadcast %cst_46 : f32 to vector<32x8xf32>
    %70 = arith.maximumf %68, %69 : vector<32x8xf32>
    %71 = vector.extract_strided_slice %2 {offsets = [64, 0], sizes = [8, 16], strides = [1, 1]} : vector<72x16xf32> to vector<8x16xf32>
    %cst_47 = arith.constant dense<0.000000e+00> : vector<32x16xf32>
    %72 = tpu.matmul %70, %71, %cst_47 {dimension_numbers = #tpu.dot_dimension_numbers<[1], [0], [0], [1], [0, 0, 1, 1], [], []>} : vector<32x8xf32>, vector<8x16xf32>, vector<32x16xf32> -> vector<32x16xf32>
    %73 = arith.addf %65, %72 : vector<32x16xf32>
    %74 = vector.extract_strided_slice %0 {offsets = [0, 0], sizes = [1, 16], strides = [1, 1]} : vector<10x32xf32> to vector<1x16xf32>
    %75 = vector.broadcast %74 : vector<1x16xf32> to vector<32x16xf32>
    %76 = arith.addf %73, %75 : vector<32x16xf32>
    %cst_48 = arith.constant 0.000000e+00 : f32
    %77 = vector.broadcast %cst_48 : f32 to vector<32x16xf32>
    %78 = arith.maximumf %76, %77 : vector<32x16xf32>
    %c128 = arith.constant 128 : index
    %c0_49 = arith.constant 0 : index
    %79 = vector.load %arg3[%c128, %c0_49] : memref<416x32xf32, #tpu.memory_space<vmem>>, vector<2x32xf32>
    %cst_50 = arith.constant dense<0.000000e+00> : vector<2x16xf32>
    %80 = tpu.matmul %79, %78, %cst_50 {dimension_numbers = #tpu.dot_dimension_numbers<[1], [0], [0], [1], [0, 0, 1, 1], [], []>} : vector<2x32xf32>, vector<32x16xf32>, vector<2x16xf32> -> vector<2x16xf32>
    %c112 = arith.constant 112 : index
    %c0_51 = arith.constant 0 : index
    %81 = vector.load %arg3[%c112, %c0_51] : memref<416x32xf32, #tpu.memory_space<vmem>>, vector<16x32xf32>
    %cst_52 = arith.constant dense<0.000000e+00> : vector<2x32xf32>
    %82 = tpu.matmul %80, %81, %cst_52 {dimension_numbers = #tpu.dot_dimension_numbers<[1], [0], [0], [1], [0, 0, 1, 1], [], []>} : vector<2x16xf32>, vector<16x32xf32>, vector<2x32xf32> -> vector<2x32xf32>
    %83 = vector.extract_strided_slice %0 {offsets = [1, 0], sizes = [1, 32], strides = [1, 1]} : vector<10x32xf32> to vector<1x32xf32>
    %84 = vector.broadcast %83 : vector<1x32xf32> to vector<2x32xf32>
    %85 = arith.addf %82, %84 : vector<2x32xf32>
    %c0_53 = arith.constant 0 : index
    %c0_54 = arith.constant 0 : index
    %86 = vector.load %arg1[%c0_53, %c0_54] : memref<2x32xf32, #tpu.memory_space<vmem>>, vector<2x8xf32>
    %c0_55 = arith.constant 0 : index
    %c8_56 = arith.constant 8 : index
    %87 = vector.load %arg1[%c0_55, %c8_56] : memref<2x32xf32, #tpu.memory_space<vmem>>, vector<2x24xf32>
    %c136 = arith.constant 136 : index
    %c0_57 = arith.constant 0 : index
    %88 = vector.load %arg3[%c136, %c0_57] : memref<416x32xf32, #tpu.memory_space<vmem>>, vector<32x32xf32>
    %cst_58 = arith.constant dense<0.000000e+00> : vector<2x32xf32>
    %89 = tpu.matmul %85, %88, %cst_58 {dimension_numbers = #tpu.dot_dimension_numbers<[1], [0], [0], [1], [0, 0, 1, 1], [], []>} : vector<2x32xf32>, vector<32x32xf32>, vector<2x32xf32> -> vector<2x32xf32>
    %c168 = arith.constant 168 : index
    %c0_59 = arith.constant 0 : index
    %90 = vector.load %arg3[%c168, %c0_59] : memref<416x32xf32, #tpu.memory_space<vmem>>, vector<8x32xf32>
    %cst_60 = arith.constant dense<0.000000e+00> : vector<2x32xf32>
    %91 = tpu.matmul %86, %90, %cst_60 {dimension_numbers = #tpu.dot_dimension_numbers<[1], [0], [0], [1], [0, 0, 1, 1], [], []>} : vector<2x8xf32>, vector<8x32xf32>, vector<2x32xf32> -> vector<2x32xf32>
    %92 = arith.addf %89, %91 : vector<2x32xf32>
    %93 = vector.extract_strided_slice %0 {offsets = [2, 0], sizes = [1, 32], strides = [1, 1]} : vector<10x32xf32> to vector<1x32xf32>
    %94 = vector.broadcast %93 : vector<1x32xf32> to vector<2x32xf32>
    %95 = arith.addf %92, %94 : vector<2x32xf32>
    %cst_61 = arith.constant 0.000000e+00 : f32
    %96 = vector.broadcast %cst_61 : f32 to vector<2x32xf32>
    %97 = arith.maximumf %95, %96 : vector<2x32xf32>
    %c176 = arith.constant 176 : index
    %c0_62 = arith.constant 0 : index
    %98 = vector.load %arg3[%c176, %c0_62] : memref<416x32xf32, #tpu.memory_space<vmem>>, vector<32x32xf32>
    %cst_63 = arith.constant dense<0.000000e+00> : vector<2x32xf32>
    %99 = tpu.matmul %97, %98, %cst_63 {dimension_numbers = #tpu.dot_dimension_numbers<[1], [0], [0], [1], [0, 0, 1, 1], [], []>} : vector<2x32xf32>, vector<32x32xf32>, vector<2x32xf32> -> vector<2x32xf32>
    %100 = vector.extract_strided_slice %0 {offsets = [3, 0], sizes = [1, 32], strides = [1, 1]} : vector<10x32xf32> to vector<1x32xf32>
    %101 = vector.broadcast %100 : vector<1x32xf32> to vector<2x32xf32>
    %102 = arith.addf %99, %101 : vector<2x32xf32>
    %cst_64 = arith.constant 0.000000e+00 : f32
    %103 = vector.broadcast %cst_64 : f32 to vector<2x32xf32>
    %104 = arith.maximumf %102, %103 : vector<2x32xf32>
    %c208 = arith.constant 208 : index
    %c0_65 = arith.constant 0 : index
    %105 = vector.load %arg3[%c208, %c0_65] : memref<416x32xf32, #tpu.memory_space<vmem>>, vector<32x24xf32>
    %cst_66 = arith.constant dense<0.000000e+00> : vector<2x24xf32>
    %106 = tpu.matmul %104, %105, %cst_66 {dimension_numbers = #tpu.dot_dimension_numbers<[1], [0], [0], [1], [0, 0, 1, 1], [], []>} : vector<2x32xf32>, vector<32x24xf32>, vector<2x24xf32> -> vector<2x24xf32>
    %107 = vector.extract_strided_slice %0 {offsets = [4, 0], sizes = [1, 24], strides = [1, 1]} : vector<10x32xf32> to vector<1x24xf32>
    %108 = vector.broadcast %107 : vector<1x24xf32> to vector<2x24xf32>
    %109 = arith.addf %106, %108 : vector<2x24xf32>
    %c0_67 = arith.constant 0 : index
    %c0_68 = arith.constant 0 : index
    %110 = vector.load %arg5[%c0_67, %c0_68] : memref<4x24xf32, #tpu.memory_space<vmem>>, vector<2x24xf32>
    tpu.vector_store %arg5[%c0_67, %c0_68], %109 {strides = array<i32>} : memref<4x24xf32, #tpu.memory_space<vmem>>, vector<2x24xf32>,
    %c2_69 = arith.constant 2 : index
    %c0_70 = arith.constant 0 : index
    %111 = vector.load %arg5[%c2_69, %c0_70] : memref<4x24xf32, #tpu.memory_space<vmem>>, vector<2x24xf32>
    tpu.vector_store %arg5[%c2_69, %c0_70], %87 {strides = array<i32>} : memref<4x24xf32, #tpu.memory_space<vmem>>, vector<2x24xf32>,
    %c0_71 = arith.constant 0 : index
    %c0_72 = arith.constant 0 : index
    %112 = vector.load %arg5[%c0_71, %c0_72] : memref<4x24xf32, #tpu.memory_space<vmem>>, vector<4x24xf32>
    %c0_73 = arith.constant 0 : index
    %c0_74 = arith.constant 0 : index
    %113 = vector.load %arg2[%c0_73, %c0_74] : memref<24x384xf32, #tpu.memory_space<vmem>>, vector<3x384xf32>
    %c4_75 = arith.constant 4 : index
    %c0_76 = arith.constant 0 : index
    %114 = vector.load %arg2[%c4_75, %c0_76] : memref<24x384xf32, #tpu.memory_space<vmem>>, vector<1x384xf32>
    %c5_77 = arith.constant 5 : index
    %c0_78 = arith.constant 0 : index
    %115 = vector.load %arg2[%c5_77, %c0_78] : memref<24x384xf32, #tpu.memory_space<vmem>>, vector<1x384xf32>
    %c8_79 = arith.constant 8 : index
    %c0_80 = arith.constant 0 : index
    %116 = vector.load %arg2[%c8_79, %c0_80] : memref<24x384xf32, #tpu.memory_space<vmem>>, vector<16x384xf32>
    %117 = vector.extract_strided_slice %112 {offsets = [0, 0], sizes = [4, 3], strides = [1, 1]} : vector<4x24xf32> to vector<4x3xf32>
    %cst_81 = arith.constant dense<0.000000e+00> : vector<4x384xf32>
    %118 = tpu.matmul %117, %113, %cst_81 {dimension_numbers = #tpu.dot_dimension_numbers<[1], [0], [0], [1], [0, 0, 1, 1], [], []>} : vector<4x3xf32>, vector<3x384xf32>, vector<4x384xf32> -> vector<4x384xf32>
    %119 = vector.broadcast %114 : vector<1x384xf32> to vector<4x384xf32>
    %120 = arith.addf %118, %119 : vector<4x384xf32>
    %121 = vector.extract_strided_slice %112 {offsets = [0, 3], sizes = [4, 3], strides = [1, 1]} : vector<4x24xf32> to vector<4x3xf32>
    %cst_82 = arith.constant dense<0.000000e+00> : vector<4x384xf32>
    %122 = tpu.matmul %121, %113, %cst_82 {dimension_numbers = #tpu.dot_dimension_numbers<[1], [0], [0], [1], [0, 0, 1, 1], [], []>} : vector<4x3xf32>, vector<3x384xf32>, vector<4x384xf32> -> vector<4x384xf32>
    %123 = vector.broadcast %114 : vector<1x384xf32> to vector<4x384xf32>
    %124 = arith.addf %122, %123 : vector<4x384xf32>
    %125 = vector.extract_strided_slice %112 {offsets = [0, 6], sizes = [4, 3], strides = [1, 1]} : vector<4x24xf32> to vector<4x3xf32>
    %cst_83 = arith.constant dense<0.000000e+00> : vector<4x384xf32>
    %126 = tpu.matmul %125, %113, %cst_83 {dimension_numbers = #tpu.dot_dimension_numbers<[1], [0], [0], [1], [0, 0, 1, 1], [], []>} : vector<4x3xf32>, vector<3x384xf32>, vector<4x384xf32> -> vector<4x384xf32>
    %127 = vector.broadcast %114 : vector<1x384xf32> to vector<4x384xf32>
    %128 = arith.addf %126, %127 : vector<4x384xf32>
    %129 = vector.extract_strided_slice %112 {offsets = [0, 9], sizes = [4, 3], strides = [1, 1]} : vector<4x24xf32> to vector<4x3xf32>
    %cst_84 = arith.constant dense<0.000000e+00> : vector<4x384xf32>
    %130 = tpu.matmul %129, %113, %cst_84 {dimension_numbers = #tpu.dot_dimension_numbers<[1], [0], [0], [1], [0, 0, 1, 1], [], []>} : vector<4x3xf32>, vector<3x384xf32>, vector<4x384xf32> -> vector<4x384xf32>
    %131 = vector.broadcast %114 : vector<1x384xf32> to vector<4x384xf32>
    %132 = arith.addf %130, %131 : vector<4x384xf32>
    %133 = vector.extract_strided_slice %112 {offsets = [0, 12], sizes = [4, 3], strides = [1, 1]} : vector<4x24xf32> to vector<4x3xf32>
    %cst_85 = arith.constant dense<0.000000e+00> : vector<4x384xf32>
    %134 = tpu.matmul %133, %113, %cst_85 {dimension_numbers = #tpu.dot_dimension_numbers<[1], [0], [0], [1], [0, 0, 1, 1], [], []>} : vector<4x3xf32>, vector<3x384xf32>, vector<4x384xf32> -> vector<4x384xf32>
    %135 = vector.broadcast %114 : vector<1x384xf32> to vector<4x384xf32>
    %136 = arith.addf %134, %135 : vector<4x384xf32>
    %137 = vector.extract_strided_slice %112 {offsets = [0, 15], sizes = [4, 3], strides = [1, 1]} : vector<4x24xf32> to vector<4x3xf32>
    %cst_86 = arith.constant dense<0.000000e+00> : vector<4x384xf32>
    %138 = tpu.matmul %137, %113, %cst_86 {dimension_numbers = #tpu.dot_dimension_numbers<[1], [0], [0], [1], [0, 0, 1, 1], [], []>} : vector<4x3xf32>, vector<3x384xf32>, vector<4x384xf32> -> vector<4x384xf32>
    %139 = vector.broadcast %114 : vector<1x384xf32> to vector<4x384xf32>
    %140 = arith.addf %138, %139 : vector<4x384xf32>
    %141 = vector.extract_strided_slice %112 {offsets = [0, 18], sizes = [4, 3], strides = [1, 1]} : vector<4x24xf32> to vector<4x3xf32>
    %cst_87 = arith.constant dense<0.000000e+00> : vector<4x384xf32>
    %142 = tpu.matmul %141, %113, %cst_87 {dimension_numbers = #tpu.dot_dimension_numbers<[1], [0], [0], [1], [0, 0, 1, 1], [], []>} : vector<4x3xf32>, vector<3x384xf32>, vector<4x384xf32> -> vector<4x384xf32>
    %143 = vector.broadcast %114 : vector<1x384xf32> to vector<4x384xf32>
    %144 = arith.addf %142, %143 : vector<4x384xf32>
    %145 = vector.extract_strided_slice %112 {offsets = [0, 21], sizes = [4, 3], strides = [1, 1]} : vector<4x24xf32> to vector<4x3xf32>
    %cst_88 = arith.constant dense<0.000000e+00> : vector<4x384xf32>
    %146 = tpu.matmul %145, %113, %cst_88 {dimension_numbers = #tpu.dot_dimension_numbers<[1], [0], [0], [1], [0, 0, 1, 1], [], []>} : vector<4x3xf32>, vector<3x384xf32>, vector<4x384xf32> -> vector<4x384xf32>
    %147 = vector.broadcast %114 : vector<1x384xf32> to vector<4x384xf32>
    %148 = arith.addf %146, %147 : vector<4x384xf32>
    %cst_89 = arith.constant 0.000000e+00 : f32
    %149 = vector.broadcast %cst_89 : f32 to vector<4x16xf32>
    %cst_90 = arith.constant dense<0.000000e+00> : vector<4x384xf32>
    %150 = tpu.matmul %149, %116, %cst_90 {dimension_numbers = #tpu.dot_dimension_numbers<[1], [0], [0], [1], [0, 0, 1, 1], [], []>} : vector<4x16xf32>, vector<16x384xf32>, vector<4x384xf32> -> vector<4x384xf32>
    %151 = vector.broadcast %115 : vector<1x384xf32> to vector<4x384xf32>
    %152 = arith.addf %150, %151 : vector<4x384xf32>
    %153 = arith.addf %120, %152 : vector<4x384xf32>
    %154 = vector.extract_strided_slice %153 {offsets = [0, 0], sizes = [4, 128], strides = [1, 1]} : vector<4x384xf32> to vector<4x128xf32>
    %155 = arith.negf %154 : vector<4x128xf32>
    %156 = math.exp %155 : vector<4x128xf32>
    %cst_91 = arith.constant 1.000000e+00 : f32
    %157 = vector.broadcast %cst_91 : f32 to vector<4x128xf32>
    %158 = arith.addf %157, %156 : vector<4x128xf32>
    %159 = arith.divf %157, %158 : vector<4x128xf32>
    %160 = vector.extract_strided_slice %153 {offsets = [0, 128], sizes = [4, 128], strides = [1, 1]} : vector<4x384xf32> to vector<4x128xf32>
    %161 = arith.negf %160 : vector<4x128xf32>
    %162 = math.exp %161 : vector<4x128xf32>
    %cst_92 = arith.constant 1.000000e+00 : f32
    %163 = vector.broadcast %cst_92 : f32 to vector<4x128xf32>
    %164 = arith.addf %163, %162 : vector<4x128xf32>
    %165 = arith.divf %163, %164 : vector<4x128xf32>
    %166 = vector.extract_strided_slice %120 {offsets = [0, 256], sizes = [4, 128], strides = [1, 1]} : vector<4x384xf32> to vector<4x128xf32>
    %167 = vector.extract_strided_slice %152 {offsets = [0, 256], sizes = [4, 128], strides = [1, 1]} : vector<4x384xf32> to vector<4x128xf32>
    %168 = arith.mulf %159, %167 : vector<4x128xf32>
    %169 = arith.addf %166, %168 : vector<4x128xf32>
    %170 = math.tanh %169 : vector<4x128xf32>
    %171 = vector.extract_strided_slice %165 {offsets = [0, 0], sizes = [4, 16], strides = [1, 1]} : vector<4x128xf32> to vector<4x16xf32>
    %cst_93 = arith.constant 1.000000e+00 : f32
    %172 = vector.broadcast %cst_93 : f32 to vector<4x16xf32>
    %173 = arith.subf %172, %171 : vector<4x16xf32>
    %174 = vector.extract_strided_slice %170 {offsets = [0, 0], sizes = [4, 16], strides = [1, 1]} : vector<4x128xf32> to vector<4x16xf32>
    %175 = arith.mulf %173, %174 : vector<4x16xf32>
    %176 = vector.extract_strided_slice %165 {offsets = [0, 0], sizes = [4, 16], strides = [1, 1]} : vector<4x128xf32> to vector<4x16xf32>
    %177 = arith.mulf %176, %149 : vector<4x16xf32>
    %178 = arith.addf %175, %177 : vector<4x16xf32>
    %cst_94 = arith.constant dense<0.000000e+00> : vector<4x384xf32>
    %179 = tpu.matmul %178, %116, %cst_94 {dimension_numbers = #tpu.dot_dimension_numbers<[1], [0], [0], [1], [0, 0, 1, 1], [], []>} : vector<4x16xf32>, vector<16x384xf32>, vector<4x384xf32> -> vector<4x384xf32>
    %180 = vector.broadcast %115 : vector<1x384xf32> to vector<4x384xf32>
    %181 = arith.addf %179, %180 : vector<4x384xf32>
    %182 = arith.addf %124, %181 : vector<4x384xf32>
    %183 = vector.extract_strided_slice %182 {offsets = [0, 0], sizes = [4, 128], strides = [1, 1]} : vector<4x384xf32> to vector<4x128xf32>
    %184 = arith.negf %183 : vector<4x128xf32>
    %185 = math.exp %184 : vector<4x128xf32>
    %cst_95 = arith.constant 1.000000e+00 : f32
    %186 = vector.broadcast %cst_95 : f32 to vector<4x128xf32>
    %187 = arith.addf %186, %185 : vector<4x128xf32>
    %188 = arith.divf %186, %187 : vector<4x128xf32>
    %189 = vector.extract_strided_slice %182 {offsets = [0, 128], sizes = [4, 128], strides = [1, 1]} : vector<4x384xf32> to vector<4x128xf32>
    %190 = arith.negf %189 : vector<4x128xf32>
    %191 = math.exp %190 : vector<4x128xf32>
    %cst_96 = arith.constant 1.000000e+00 : f32
    %192 = vector.broadcast %cst_96 : f32 to vector<4x128xf32>
    %193 = arith.addf %192, %191 : vector<4x128xf32>
    %194 = arith.divf %192, %193 : vector<4x128xf32>
    %195 = vector.extract_strided_slice %124 {offsets = [0, 256], sizes = [4, 128], strides = [1, 1]} : vector<4x384xf32> to vector<4x128xf32>
    %196 = vector.extract_strided_slice %181 {offsets = [0, 256], sizes = [4, 128], strides = [1, 1]} : vector<4x384xf32> to vector<4x128xf32>
    %197 = arith.mulf %188, %196 : vector<4x128xf32>
    %198 = arith.addf %195, %197 : vector<4x128xf32>
    %199 = math.tanh %198 : vector<4x128xf32>
    %200 = vector.extract_strided_slice %194 {offsets = [0, 0], sizes = [4, 16], strides = [1, 1]} : vector<4x128xf32> to vector<4x16xf32>
    %cst_97 = arith.constant 1.000000e+00 : f32
    %201 = vector.broadcast %cst_97 : f32 to vector<4x16xf32>
    %202 = arith.subf %201, %200 : vector<4x16xf32>
    %203 = vector.extract_strided_slice %199 {offsets = [0, 0], sizes = [4, 16], strides = [1, 1]} : vector<4x128xf32> to vector<4x16xf32>
    %204 = arith.mulf %202, %203 : vector<4x16xf32>
    %205 = vector.extract_strided_slice %194 {offsets = [0, 0], sizes = [4, 16], strides = [1, 1]} : vector<4x128xf32> to vector<4x16xf32>
    %206 = arith.mulf %205, %178 : vector<4x16xf32>
    %207 = arith.addf %204, %206 : vector<4x16xf32>
    %cst_98 = arith.constant dense<0.000000e+00> : vector<4x384xf32>
    %208 = tpu.matmul %207, %116, %cst_98 {dimension_numbers = #tpu.dot_dimension_numbers<[1], [0], [0], [1], [0, 0, 1, 1], [], []>} : vector<4x16xf32>, vector<16x384xf32>, vector<4x384xf32> -> vector<4x384xf32>
    %209 = vector.broadcast %115 : vector<1x384xf32> to vector<4x384xf32>
    %210 = arith.addf %208, %209 : vector<4x384xf32>
    %211 = arith.addf %128, %210 : vector<4x384xf32>
    %212 = vector.extract_strided_slice %211 {offsets = [0, 0], sizes = [4, 128], strides = [1, 1]} : vector<4x384xf32> to vector<4x128xf32>
    %213 = arith.negf %212 : vector<4x128xf32>
    %214 = math.exp %213 : vector<4x128xf32>
    %cst_99 = arith.constant 1.000000e+00 : f32
    %215 = vector.broadcast %cst_99 : f32 to vector<4x128xf32>
    %216 = arith.addf %215, %214 : vector<4x128xf32>
    %217 = arith.divf %215, %216 : vector<4x128xf32>
    %218 = vector.extract_strided_slice %211 {offsets = [0, 128], sizes = [4, 128], strides = [1, 1]} : vector<4x384xf32> to vector<4x128xf32>
    %219 = arith.negf %218 : vector<4x128xf32>
    %220 = math.exp %219 : vector<4x128xf32>
    %cst_100 = arith.constant 1.000000e+00 : f32
    %221 = vector.broadcast %cst_100 : f32 to vector<4x128xf32>
    %222 = arith.addf %221, %220 : vector<4x128xf32>
    %223 = arith.divf %221, %222 : vector<4x128xf32>
    %224 = vector.extract_strided_slice %128 {offsets = [0, 256], sizes = [4, 128], strides = [1, 1]} : vector<4x384xf32> to vector<4x128xf32>
    %225 = vector.extract_strided_slice %210 {offsets = [0, 256], sizes = [4, 128], strides = [1, 1]} : vector<4x384xf32> to vector<4x128xf32>
    %226 = arith.mulf %217, %225 : vector<4x128xf32>
    %227 = arith.addf %224, %226 : vector<4x128xf32>
    %228 = math.tanh %227 : vector<4x128xf32>
    %229 = vector.extract_strided_slice %223 {offsets = [0, 0], sizes = [4, 16], strides = [1, 1]} : vector<4x128xf32> to vector<4x16xf32>
    %cst_101 = arith.constant 1.000000e+00 : f32
    %230 = vector.broadcast %cst_101 : f32 to vector<4x16xf32>
    %231 = arith.subf %230, %229 : vector<4x16xf32>
    %232 = vector.extract_strided_slice %228 {offsets = [0, 0], sizes = [4, 16], strides = [1, 1]} : vector<4x128xf32> to vector<4x16xf32>
    %233 = arith.mulf %231, %232 : vector<4x16xf32>
    %234 = vector.extract_strided_slice %223 {offsets = [0, 0], sizes = [4, 16], strides = [1, 1]} : vector<4x128xf32> to vector<4x16xf32>
    %235 = arith.mulf %234, %207 : vector<4x16xf32>
    %236 = arith.addf %233, %235 : vector<4x16xf32>
    %cst_102 = arith.constant dense<0.000000e+00> : vector<4x384xf32>
    %237 = tpu.matmul %236, %116, %cst_102 {dimension_numbers = #tpu.dot_dimension_numbers<[1], [0], [0], [1], [0, 0, 1, 1], [], []>} : vector<4x16xf32>, vector<16x384xf32>, vector<4x384xf32> -> vector<4x384xf32>
    %238 = vector.broadcast %115 : vector<1x384xf32> to vector<4x384xf32>
    %239 = arith.addf %237, %238 : vector<4x384xf32>
    %240 = arith.addf %132, %239 : vector<4x384xf32>
    %241 = vector.extract_strided_slice %240 {offsets = [0, 0], sizes = [4, 128], strides = [1, 1]} : vector<4x384xf32> to vector<4x128xf32>
    %242 = arith.negf %241 : vector<4x128xf32>
    %243 = math.exp %242 : vector<4x128xf32>
    %cst_103 = arith.constant 1.000000e+00 : f32
    %244 = vector.broadcast %cst_103 : f32 to vector<4x128xf32>
    %245 = arith.addf %244, %243 : vector<4x128xf32>
    %246 = arith.divf %244, %245 : vector<4x128xf32>
    %247 = vector.extract_strided_slice %240 {offsets = [0, 128], sizes = [4, 128], strides = [1, 1]} : vector<4x384xf32> to vector<4x128xf32>
    %248 = arith.negf %247 : vector<4x128xf32>
    %249 = math.exp %248 : vector<4x128xf32>
    %cst_104 = arith.constant 1.000000e+00 : f32
    %250 = vector.broadcast %cst_104 : f32 to vector<4x128xf32>
    %251 = arith.addf %250, %249 : vector<4x128xf32>
    %252 = arith.divf %250, %251 : vector<4x128xf32>
    %253 = vector.extract_strided_slice %132 {offsets = [0, 256], sizes = [4, 128], strides = [1, 1]} : vector<4x384xf32> to vector<4x128xf32>
    %254 = vector.extract_strided_slice %239 {offsets = [0, 256], sizes = [4, 128], strides = [1, 1]} : vector<4x384xf32> to vector<4x128xf32>
    %255 = arith.mulf %246, %254 : vector<4x128xf32>
    %256 = arith.addf %253, %255 : vector<4x128xf32>
    %257 = math.tanh %256 : vector<4x128xf32>
    %258 = vector.extract_strided_slice %252 {offsets = [0, 0], sizes = [4, 16], strides = [1, 1]} : vector<4x128xf32> to vector<4x16xf32>
    %cst_105 = arith.constant 1.000000e+00 : f32
    %259 = vector.broadcast %cst_105 : f32 to vector<4x16xf32>
    %260 = arith.subf %259, %258 : vector<4x16xf32>
    %261 = vector.extract_strided_slice %257 {offsets = [0, 0], sizes = [4, 16], strides = [1, 1]} : vector<4x128xf32> to vector<4x16xf32>
    %262 = arith.mulf %260, %261 : vector<4x16xf32>
    %263 = vector.extract_strided_slice %252 {offsets = [0, 0], sizes = [4, 16], strides = [1, 1]} : vector<4x128xf32> to vector<4x16xf32>
    %264 = arith.mulf %263, %236 : vector<4x16xf32>
    %265 = arith.addf %262, %264 : vector<4x16xf32>
    %cst_106 = arith.constant dense<0.000000e+00> : vector<4x384xf32>
    %266 = tpu.matmul %265, %116, %cst_106 {dimension_numbers = #tpu.dot_dimension_numbers<[1], [0], [0], [1], [0, 0, 1, 1], [], []>} : vector<4x16xf32>, vector<16x384xf32>, vector<4x384xf32> -> vector<4x384xf32>
    %267 = vector.broadcast %115 : vector<1x384xf32> to vector<4x384xf32>
    %268 = arith.addf %266, %267 : vector<4x384xf32>
    %269 = arith.addf %136, %268 : vector<4x384xf32>
    %270 = vector.extract_strided_slice %269 {offsets = [0, 0], sizes = [4, 128], strides = [1, 1]} : vector<4x384xf32> to vector<4x128xf32>
    %271 = arith.negf %270 : vector<4x128xf32>
    %272 = math.exp %271 : vector<4x128xf32>
    %cst_107 = arith.constant 1.000000e+00 : f32
    %273 = vector.broadcast %cst_107 : f32 to vector<4x128xf32>
    %274 = arith.addf %273, %272 : vector<4x128xf32>
    %275 = arith.divf %273, %274 : vector<4x128xf32>
    %276 = vector.extract_strided_slice %269 {offsets = [0, 128], sizes = [4, 128], strides = [1, 1]} : vector<4x384xf32> to vector<4x128xf32>
    %277 = arith.negf %276 : vector<4x128xf32>
    %278 = math.exp %277 : vector<4x128xf32>
    %cst_108 = arith.constant 1.000000e+00 : f32
    %279 = vector.broadcast %cst_108 : f32 to vector<4x128xf32>
    %280 = arith.addf %279, %278 : vector<4x128xf32>
    %281 = arith.divf %279, %280 : vector<4x128xf32>
    %282 = vector.extract_strided_slice %136 {offsets = [0, 256], sizes = [4, 128], strides = [1, 1]} : vector<4x384xf32> to vector<4x128xf32>
    %283 = vector.extract_strided_slice %268 {offsets = [0, 256], sizes = [4, 128], strides = [1, 1]} : vector<4x384xf32> to vector<4x128xf32>
    %284 = arith.mulf %275, %283 : vector<4x128xf32>
    %285 = arith.addf %282, %284 : vector<4x128xf32>
    %286 = math.tanh %285 : vector<4x128xf32>
    %287 = vector.extract_strided_slice %281 {offsets = [0, 0], sizes = [4, 16], strides = [1, 1]} : vector<4x128xf32> to vector<4x16xf32>
    %cst_109 = arith.constant 1.000000e+00 : f32
    %288 = vector.broadcast %cst_109 : f32 to vector<4x16xf32>
    %289 = arith.subf %288, %287 : vector<4x16xf32>
    %290 = vector.extract_strided_slice %286 {offsets = [0, 0], sizes = [4, 16], strides = [1, 1]} : vector<4x128xf32> to vector<4x16xf32>
    %291 = arith.mulf %289, %290 : vector<4x16xf32>
    %292 = vector.extract_strided_slice %281 {offsets = [0, 0], sizes = [4, 16], strides = [1, 1]} : vector<4x128xf32> to vector<4x16xf32>
    %293 = arith.mulf %292, %265 : vector<4x16xf32>
    %294 = arith.addf %291, %293 : vector<4x16xf32>
    %cst_110 = arith.constant dense<0.000000e+00> : vector<4x384xf32>
    %295 = tpu.matmul %294, %116, %cst_110 {dimension_numbers = #tpu.dot_dimension_numbers<[1], [0], [0], [1], [0, 0, 1, 1], [], []>} : vector<4x16xf32>, vector<16x384xf32>, vector<4x384xf32> -> vector<4x384xf32>
    %296 = vector.broadcast %115 : vector<1x384xf32> to vector<4x384xf32>
    %297 = arith.addf %295, %296 : vector<4x384xf32>
    %298 = arith.addf %140, %297 : vector<4x384xf32>
    %299 = vector.extract_strided_slice %298 {offsets = [0, 0], sizes = [4, 128], strides = [1, 1]} : vector<4x384xf32> to vector<4x128xf32>
    %300 = arith.negf %299 : vector<4x128xf32>
    %301 = math.exp %300 : vector<4x128xf32>
    %cst_111 = arith.constant 1.000000e+00 : f32
    %302 = vector.broadcast %cst_111 : f32 to vector<4x128xf32>
    %303 = arith.addf %302, %301 : vector<4x128xf32>
    %304 = arith.divf %302, %303 : vector<4x128xf32>
    %305 = vector.extract_strided_slice %298 {offsets = [0, 128], sizes = [4, 128], strides = [1, 1]} : vector<4x384xf32> to vector<4x128xf32>
    %306 = arith.negf %305 : vector<4x128xf32>
    %307 = math.exp %306 : vector<4x128xf32>
    %cst_112 = arith.constant 1.000000e+00 : f32
    %308 = vector.broadcast %cst_112 : f32 to vector<4x128xf32>
    %309 = arith.addf %308, %307 : vector<4x128xf32>
    %310 = arith.divf %308, %309 : vector<4x128xf32>
    %311 = vector.extract_strided_slice %140 {offsets = [0, 256], sizes = [4, 128], strides = [1, 1]} : vector<4x384xf32> to vector<4x128xf32>
    %312 = vector.extract_strided_slice %297 {offsets = [0, 256], sizes = [4, 128], strides = [1, 1]} : vector<4x384xf32> to vector<4x128xf32>
    %313 = arith.mulf %304, %312 : vector<4x128xf32>
    %314 = arith.addf %311, %313 : vector<4x128xf32>
    %315 = math.tanh %314 : vector<4x128xf32>
    %316 = vector.extract_strided_slice %310 {offsets = [0, 0], sizes = [4, 16], strides = [1, 1]} : vector<4x128xf32> to vector<4x16xf32>
    %cst_113 = arith.constant 1.000000e+00 : f32
    %317 = vector.broadcast %cst_113 : f32 to vector<4x16xf32>
    %318 = arith.subf %317, %316 : vector<4x16xf32>
    %319 = vector.extract_strided_slice %315 {offsets = [0, 0], sizes = [4, 16], strides = [1, 1]} : vector<4x128xf32> to vector<4x16xf32>
    %320 = arith.mulf %318, %319 : vector<4x16xf32>
    %321 = vector.extract_strided_slice %310 {offsets = [0, 0], sizes = [4, 16], strides = [1, 1]} : vector<4x128xf32> to vector<4x16xf32>
    %322 = arith.mulf %321, %294 : vector<4x16xf32>
    %323 = arith.addf %320, %322 : vector<4x16xf32>
    %cst_114 = arith.constant dense<0.000000e+00> : vector<4x384xf32>
    %324 = tpu.matmul %323, %116, %cst_114 {dimension_numbers = #tpu.dot_dimension_numbers<[1], [0], [0], [1], [0, 0, 1, 1], [], []>} : vector<4x16xf32>, vector<16x384xf32>, vector<4x384xf32> -> vector<4x384xf32>
    %325 = vector.broadcast %115 : vector<1x384xf32> to vector<4x384xf32>
    %326 = arith.addf %324, %325 : vector<4x384xf32>
    %327 = arith.addf %144, %326 : vector<4x384xf32>
    %328 = vector.extract_strided_slice %327 {offsets = [0, 0], sizes = [4, 128], strides = [1, 1]} : vector<4x384xf32> to vector<4x128xf32>
    %329 = arith.negf %328 : vector<4x128xf32>
    %330 = math.exp %329 : vector<4x128xf32>
    %cst_115 = arith.constant 1.000000e+00 : f32
    %331 = vector.broadcast %cst_115 : f32 to vector<4x128xf32>
    %332 = arith.addf %331, %330 : vector<4x128xf32>
    %333 = arith.divf %331, %332 : vector<4x128xf32>
    %334 = vector.extract_strided_slice %327 {offsets = [0, 128], sizes = [4, 128], strides = [1, 1]} : vector<4x384xf32> to vector<4x128xf32>
    %335 = arith.negf %334 : vector<4x128xf32>
    %336 = math.exp %335 : vector<4x128xf32>
    %cst_116 = arith.constant 1.000000e+00 : f32
    %337 = vector.broadcast %cst_116 : f32 to vector<4x128xf32>
    %338 = arith.addf %337, %336 : vector<4x128xf32>
    %339 = arith.divf %337, %338 : vector<4x128xf32>
    %340 = vector.extract_strided_slice %144 {offsets = [0, 256], sizes = [4, 128], strides = [1, 1]} : vector<4x384xf32> to vector<4x128xf32>
    %341 = vector.extract_strided_slice %326 {offsets = [0, 256], sizes = [4, 128], strides = [1, 1]} : vector<4x384xf32> to vector<4x128xf32>
    %342 = arith.mulf %333, %341 : vector<4x128xf32>
    %343 = arith.addf %340, %342 : vector<4x128xf32>
    %344 = math.tanh %343 : vector<4x128xf32>
    %345 = vector.extract_strided_slice %339 {offsets = [0, 0], sizes = [4, 16], strides = [1, 1]} : vector<4x128xf32> to vector<4x16xf32>
    %cst_117 = arith.constant 1.000000e+00 : f32
    %346 = vector.broadcast %cst_117 : f32 to vector<4x16xf32>
    %347 = arith.subf %346, %345 : vector<4x16xf32>
    %348 = vector.extract_strided_slice %344 {offsets = [0, 0], sizes = [4, 16], strides = [1, 1]} : vector<4x128xf32> to vector<4x16xf32>
    %349 = arith.mulf %347, %348 : vector<4x16xf32>
    %350 = vector.extract_strided_slice %339 {offsets = [0, 0], sizes = [4, 16], strides = [1, 1]} : vector<4x128xf32> to vector<4x16xf32>
    %351 = arith.mulf %350, %323 : vector<4x16xf32>
    %352 = arith.addf %349, %351 : vector<4x16xf32>
    %cst_118 = arith.constant dense<0.000000e+00> : vector<4x384xf32>
    %353 = tpu.matmul %352, %116, %cst_118 {dimension_numbers = #tpu.dot_dimension_numbers<[1], [0], [0], [1], [0, 0, 1, 1], [], []>} : vector<4x16xf32>, vector<16x384xf32>, vector<4x384xf32> -> vector<4x384xf32>
    %354 = vector.broadcast %115 : vector<1x384xf32> to vector<4x384xf32>
    %355 = arith.addf %353, %354 : vector<4x384xf32>
    %356 = arith.addf %148, %355 : vector<4x384xf32>
    %357 = vector.extract_strided_slice %356 {offsets = [0, 0], sizes = [4, 128], strides = [1, 1]} : vector<4x384xf32> to vector<4x128xf32>
    %358 = arith.negf %357 : vector<4x128xf32>
    %359 = math.exp %358 : vector<4x128xf32>
    %cst_119 = arith.constant 1.000000e+00 : f32
    %360 = vector.broadcast %cst_119 : f32 to vector<4x128xf32>
    %361 = arith.addf %360, %359 : vector<4x128xf32>
    %362 = arith.divf %360, %361 : vector<4x128xf32>
    %363 = vector.extract_strided_slice %356 {offsets = [0, 128], sizes = [4, 128], strides = [1, 1]} : vector<4x384xf32> to vector<4x128xf32>
    %364 = arith.negf %363 : vector<4x128xf32>
    %365 = math.exp %364 : vector<4x128xf32>
    %cst_120 = arith.constant 1.000000e+00 : f32
    %366 = vector.broadcast %cst_120 : f32 to vector<4x128xf32>
    %367 = arith.addf %366, %365 : vector<4x128xf32>
    %368 = arith.divf %366, %367 : vector<4x128xf32>
    %369 = vector.extract_strided_slice %148 {offsets = [0, 256], sizes = [4, 128], strides = [1, 1]} : vector<4x384xf32> to vector<4x128xf32>
    %370 = vector.extract_strided_slice %355 {offsets = [0, 256], sizes = [4, 128], strides = [1, 1]} : vector<4x384xf32> to vector<4x128xf32>
    %371 = arith.mulf %362, %370 : vector<4x128xf32>
    %372 = arith.addf %369, %371 : vector<4x128xf32>
    %373 = math.tanh %372 : vector<4x128xf32>
    %374 = vector.extract_strided_slice %368 {offsets = [0, 0], sizes = [4, 16], strides = [1, 1]} : vector<4x128xf32> to vector<4x16xf32>
    %cst_121 = arith.constant 1.000000e+00 : f32
    %375 = vector.broadcast %cst_121 : f32 to vector<4x16xf32>
    %376 = arith.subf %375, %374 : vector<4x16xf32>
    %377 = vector.extract_strided_slice %373 {offsets = [0, 0], sizes = [4, 16], strides = [1, 1]} : vector<4x128xf32> to vector<4x16xf32>
    %378 = arith.mulf %376, %377 : vector<4x16xf32>
    %379 = vector.extract_strided_slice %368 {offsets = [0, 0], sizes = [4, 16], strides = [1, 1]} : vector<4x128xf32> to vector<4x16xf32>
    %380 = arith.mulf %379, %352 : vector<4x16xf32>
    %381 = arith.addf %378, %380 : vector<4x16xf32>
    %c240 = arith.constant 240 : index
    %c0_122 = arith.constant 0 : index
    %382 = vector.load %arg3[%c240, %c0_122] : memref<416x32xf32, #tpu.memory_space<vmem>>, vector<16x32xf32>
    %cst_123 = arith.constant dense<0.000000e+00> : vector<4x32xf32>
    %383 = tpu.matmul %381, %382, %cst_123 {dimension_numbers = #tpu.dot_dimension_numbers<[1], [0], [0], [1], [0, 0, 1, 1], [], []>} : vector<4x16xf32>, vector<16x32xf32>, vector<4x32xf32> -> vector<4x32xf32>
    %384 = vector.extract_strided_slice %0 {offsets = [5, 0], sizes = [1, 32], strides = [1, 1]} : vector<10x32xf32> to vector<1x32xf32>
    %385 = vector.broadcast %384 : vector<1x32xf32> to vector<4x32xf32>
    %386 = arith.addf %383, %385 : vector<4x32xf32>
    %cst_124 = arith.constant 0.000000e+00 : f32
    %387 = vector.broadcast %cst_124 : f32 to vector<4x32xf32>
    %388 = arith.maximumf %386, %387 : vector<4x32xf32>
    %c256 = arith.constant 256 : index
    %c0_125 = arith.constant 0 : index
    %389 = vector.load %arg3[%c256, %c0_125] : memref<416x32xf32, #tpu.memory_space<vmem>>, vector<32x16xf32>
    %cst_126 = arith.constant dense<0.000000e+00> : vector<4x16xf32>
    %390 = tpu.matmul %388, %389, %cst_126 {dimension_numbers = #tpu.dot_dimension_numbers<[1], [0], [0], [1], [0, 0, 1, 1], [], []>} : vector<4x32xf32>, vector<32x16xf32>, vector<4x16xf32> -> vector<4x16xf32>
    %391 = vector.extract_strided_slice %0 {offsets = [6, 0], sizes = [1, 16], strides = [1, 1]} : vector<10x32xf32> to vector<1x16xf32>
    %392 = vector.broadcast %391 : vector<1x16xf32> to vector<4x16xf32>
    %393 = arith.addf %390, %392 : vector<4x16xf32>
    %c288 = arith.constant 288 : index
    %c0_127 = arith.constant 0 : index
    %394 = vector.load %arg3[%c288, %c0_127] : memref<416x32xf32, #tpu.memory_space<vmem>>, vector<32x32xf32>
    %cst_128 = arith.constant dense<0.000000e+00> : vector<2x32xf32>
    %395 = tpu.matmul %85, %394, %cst_128 {dimension_numbers = #tpu.dot_dimension_numbers<[1], [0], [0], [1], [0, 0, 1, 1], [], []>} : vector<2x32xf32>, vector<32x32xf32>, vector<2x32xf32> -> vector<2x32xf32>
    %c320 = arith.constant 320 : index
    %c0_129 = arith.constant 0 : index
    %396 = vector.load %arg3[%c320, %c0_129] : memref<416x32xf32, #tpu.memory_space<vmem>>, vector<16x32xf32>
    %c336 = arith.constant 336 : index
    %c0_130 = arith.constant 0 : index
    %397 = vector.load %arg3[%c336, %c0_130] : memref<416x32xf32, #tpu.memory_space<vmem>>, vector<32x32xf32>
    %c368 = arith.constant 368 : index
    %c0_131 = arith.constant 0 : index
    %398 = vector.load %arg3[%c368, %c0_131] : memref<416x32xf32, #tpu.memory_space<vmem>>, vector<32x1xf32>
    %399 = vector.extract_strided_slice %0 {offsets = [7, 0], sizes = [1, 32], strides = [1, 1]} : vector<10x32xf32> to vector<1x32xf32>
    %400 = vector.extract_strided_slice %0 {offsets = [8, 0], sizes = [1, 32], strides = [1, 1]} : vector<10x32xf32> to vector<1x32xf32>
    %401 = vector.extract_strided_slice %0 {offsets = [9, 0], sizes = [1, 1], strides = [1, 1]} : vector<10x32xf32> to vector<1x1xf32>
    %402 = vector.extract_strided_slice %393 {offsets = [0, 0], sizes = [2, 16], strides = [1, 1]} : vector<4x16xf32> to vector<2x16xf32>
    %cst_132 = arith.constant dense<0.000000e+00> : vector<2x32xf32>
    %403 = tpu.matmul %402, %396, %cst_132 {dimension_numbers = #tpu.dot_dimension_numbers<[1], [0], [0], [1], [0, 0, 1, 1], [], []>} : vector<2x16xf32>, vector<16x32xf32>, vector<2x32xf32> -> vector<2x32xf32>
    %404 = arith.addf %395, %403 : vector<2x32xf32>
    %405 = vector.broadcast %399 : vector<1x32xf32> to vector<2x32xf32>
    %406 = arith.addf %404, %405 : vector<2x32xf32>
    %cst_133 = arith.constant 0.000000e+00 : f32
    %407 = vector.broadcast %cst_133 : f32 to vector<2x32xf32>
    %408 = arith.maximumf %406, %407 : vector<2x32xf32>
    %cst_134 = arith.constant dense<0.000000e+00> : vector<2x32xf32>
    %409 = tpu.matmul %408, %397, %cst_134 {dimension_numbers = #tpu.dot_dimension_numbers<[1], [0], [0], [1], [0, 0, 1, 1], [], []>} : vector<2x32xf32>, vector<32x32xf32>, vector<2x32xf32> -> vector<2x32xf32>
    %410 = vector.broadcast %400 : vector<1x32xf32> to vector<2x32xf32>
    %411 = arith.addf %409, %410 : vector<2x32xf32>
    %cst_135 = arith.constant 0.000000e+00 : f32
    %412 = vector.broadcast %cst_135 : f32 to vector<2x32xf32>
    %413 = arith.maximumf %411, %412 : vector<2x32xf32>
    %cst_136 = arith.constant dense<0.000000e+00> : vector<2x1xf32>
    %414 = tpu.matmul %413, %398, %cst_136 {dimension_numbers = #tpu.dot_dimension_numbers<[1], [0], [0], [1], [0, 0, 1, 1], [], []>} : vector<2x32xf32>, vector<32x1xf32>, vector<2x1xf32> -> vector<2x1xf32>
    %415 = vector.broadcast %401 : vector<1x1xf32> to vector<2x1xf32>
    %416 = arith.addf %414, %415 : vector<2x1xf32>
    %417 = arith.negf %416 : vector<2x1xf32>
    %418 = math.exp %417 : vector<2x1xf32>
    %cst_137 = arith.constant 1.000000e+00 : f32
    %419 = vector.broadcast %cst_137 : f32 to vector<2x1xf32>
    %420 = arith.addf %419, %418 : vector<2x1xf32>
    %421 = arith.divf %419, %420 : vector<2x1xf32>
    %422 = vector.extract_strided_slice %393 {offsets = [2, 0], sizes = [2, 16], strides = [1, 1]} : vector<4x16xf32> to vector<2x16xf32>
    %cst_138 = arith.constant dense<0.000000e+00> : vector<2x32xf32>
    %423 = tpu.matmul %422, %396, %cst_138 {dimension_numbers = #tpu.dot_dimension_numbers<[1], [0], [0], [1], [0, 0, 1, 1], [], []>} : vector<2x16xf32>, vector<16x32xf32>, vector<2x32xf32> -> vector<2x32xf32>
    %424 = arith.addf %395, %423 : vector<2x32xf32>
    %425 = vector.broadcast %399 : vector<1x32xf32> to vector<2x32xf32>
    %426 = arith.addf %424, %425 : vector<2x32xf32>
    %cst_139 = arith.constant 0.000000e+00 : f32
    %427 = vector.broadcast %cst_139 : f32 to vector<2x32xf32>
    %428 = arith.maximumf %426, %427 : vector<2x32xf32>
    %cst_140 = arith.constant dense<0.000000e+00> : vector<2x32xf32>
    %429 = tpu.matmul %428, %397, %cst_140 {dimension_numbers = #tpu.dot_dimension_numbers<[1], [0], [0], [1], [0, 0, 1, 1], [], []>} : vector<2x32xf32>, vector<32x32xf32>, vector<2x32xf32> -> vector<2x32xf32>
    %430 = vector.broadcast %400 : vector<1x32xf32> to vector<2x32xf32>
    %431 = arith.addf %429, %430 : vector<2x32xf32>
    %cst_141 = arith.constant 0.000000e+00 : f32
    %432 = vector.broadcast %cst_141 : f32 to vector<2x32xf32>
    %433 = arith.maximumf %431, %432 : vector<2x32xf32>
    %cst_142 = arith.constant dense<0.000000e+00> : vector<2x1xf32>
    %434 = tpu.matmul %433, %398, %cst_142 {dimension_numbers = #tpu.dot_dimension_numbers<[1], [0], [0], [1], [0, 0, 1, 1], [], []>} : vector<2x32xf32>, vector<32x1xf32>, vector<2x1xf32> -> vector<2x1xf32>
    %435 = vector.broadcast %401 : vector<1x1xf32> to vector<2x1xf32>
    %436 = arith.addf %434, %435 : vector<2x1xf32>
    %437 = arith.negf %436 : vector<2x1xf32>
    %438 = math.exp %437 : vector<2x1xf32>
    %cst_143 = arith.constant 1.000000e+00 : f32
    %439 = vector.broadcast %cst_143 : f32 to vector<2x1xf32>
    %440 = arith.addf %439, %438 : vector<2x1xf32>
    %441 = arith.divf %439, %440 : vector<2x1xf32>
    %cst_144 = arith.constant 0.000000e+00 : f32
    %442 = vector.broadcast %cst_144 : f32 to vector<2x128xf32>
    %c0_145 = arith.constant 0 : index
    %c0_146 = arith.constant 0 : index
    %443 = vector.load %arg4[%c0_145, %c0_146] : memref<2x128xf32, #tpu.memory_space<vmem>>, vector<2x128xf32>
    tpu.vector_store %arg4[%c0_145, %c0_146], %442 {strides = array<i32>} : memref<2x128xf32, #tpu.memory_space<vmem>>, vector<2x128xf32>,
    %c0_147 = arith.constant 0 : index
    %c0_148 = arith.constant 0 : index
    %444 = vector.load %arg4[%c0_147, %c0_148] : memref<2x128xf32, #tpu.memory_space<vmem>>, vector<2x24xf32>
    tpu.vector_store %arg4[%c0_147, %c0_148], %109 {strides = array<i32>} : memref<2x128xf32, #tpu.memory_space<vmem>>, vector<2x24xf32>,
    %c0_149 = arith.constant 0 : index
    %c24 = arith.constant 24 : index
    %445 = vector.load %arg4[%c0_149, %c24] : memref<2x128xf32, #tpu.memory_space<vmem>>, vector<2x1xf32>
    tpu.vector_store %arg4[%c0_149, %c24], %421 {strides = array<i32>} : memref<2x128xf32, #tpu.memory_space<vmem>>, vector<2x1xf32>,
    %c0_150 = arith.constant 0 : index
    %c25 = arith.constant 25 : index
    %446 = vector.load %arg4[%c0_150, %c25] : memref<2x128xf32, #tpu.memory_space<vmem>>, vector<2x1xf32>
    tpu.vector_store %arg4[%c0_150, %c25], %421 {strides = array<i32>} : memref<2x128xf32, #tpu.memory_space<vmem>>, vector<2x1xf32>,
    %c0_151 = arith.constant 0 : index
    %c26 = arith.constant 26 : index
    %447 = vector.load %arg4[%c0_151, %c26] : memref<2x128xf32, #tpu.memory_space<vmem>>, vector<2x1xf32>
    tpu.vector_store %arg4[%c0_151, %c26], %441 {strides = array<i32>} : memref<2x128xf32, #tpu.memory_space<vmem>>, vector<2x1xf32>,
    return
  }
}

</mosaic_0001>

<llo_original>
// kernel: forward.1
$region0: #{forward.1}
  #allocation0 [shape = 'u32[]', space=smem, size = 0x4, offset = 0x4, fixed_abs, tag = 'smem constant byte address 0x4 - core index']
  #allocation1 [shape = 'u32[144,128]{1,0:T(1,128)}', space=vmem, size = 0x12000, scoped, tag = 'internal scratch']
  #allocation2 [shape = 'f32[4,24]{1,0:T(4,128)}', space=vmem, size = 0x800, scoped, tag = 'scratch operand']
  %s0 = inlined_call_operand.vmem [shape: f32[9,32,37], index: 0, kind: input, shape index: {}]
  %s1 = inlined_call_operand.vmem [shape: f32[2,32], index: 1, kind: input, shape index: {}]
  %s2 = inlined_call_operand.vmem [shape: f32[24,384], index: 2, kind: input, shape index: {}]
  %s3 = inlined_call_operand.vmem [shape: f32[416,32], index: 3, kind: input, shape index: {}]
  %s4 = inlined_call_operand.vmem [shape: f32[2,128], index: 4, kind: output, shape index: {}]
  %s5 = sld [smem:[#allocation0]]
  $region26: #{forward.1} parent=0
    _
  %s7 = ssub.s32 1, %s5
  %s8 = scalar_select 0, %s7, %s5
  // Predicated region
  $region2: #{forward.1} parent=0 // pred_check
    _
  $region3: #{forward.1} parent=0 // pred_check_branch
    %10 = sbr.rel (0) target = $region5
  $region4: #{forward.1} parent=0 // pred_region
    _
  $region5: #{forward.1} parent=0 // pred_fallthru
    _
  // Predicated region
  $region6: #{forward.1} parent=0 // pred_check
    _
  $region7: #{forward.1} parent=0 // pred_check_branch
    %12 = sbr.rel (0) target = $region9
  $region8: #{forward.1} parent=0 // pred_region
    _
  $region9: #{forward.1} parent=0 // pred_fallthru
    _
  // Predicated region
  $region10: #{forward.1} parent=0 // pred_check
    _
  $region11: #{forward.1} parent=0 // pred_check_branch
    %14 = sbr.rel (0) target = $region13
  $region12: #{forward.1} parent=0 // pred_region
    _
  $region13: #{forward.1} parent=0 // pred_fallthru
    _
  // Predicated region
  $region14: #{forward.1} parent=0 // pred_check
    _
  $region15: #{forward.1} parent=0 // pred_check_branch
    %16 = sbr.rel (0) target = $region17
  $region16: #{forward.1} parent=0 // pred_region
    _
  $region17: #{forward.1} parent=0 // pred_fallthru
    _
  %v17 = vld [vmem:[%s3 + $0x190] sm:$0xff]
  %v18 = vld [vmem:[%s3 + $0x198] sm:$0x3]
  %v19 = vld [vmem:[%s3] sm:$0xff]
  %v20 = vld [vmem:[%s3 + $0x8] sm:$0xff]
  %v21 = vld [vmem:[%s3 + $0x10] sm:$0xff]
  %v22 = vld [vmem:[%s3 + $0x18] sm:$0xff]
  %v23 = vld [vmem:[%s3 + $0x20] sm:$0x1f]
  %v24 = vld [vmem:[%s3 + $0x28] sm:$0xff]
  %v25 = vld [vmem:[%s3 + $0x30] sm:$0xff]
  %v26 = vld [vmem:[%s3 + $0x38] sm:$0xff]
  %v27 = vld [vmem:[%s3 + $0x40] sm:$0xff]
  %v28 = vld [vmem:[%s3 + $0x48] sm:$0xff]
  %v29 = vld [vmem:[%s3 + $0x50] sm:$0xff]
  %v30 = vld [vmem:[%s3 + $0x58] sm:$0xff]
  %v31 = vld [vmem:[%s3 + $0x60] sm:$0xff]
  %v32 = vld [vmem:[%s3 + $0x68] sm:$0xff]
  %v33 = vld [vmem:[%s0] sm:$0xff]
  %v34 = vld [vmem:[%s0 + $0x8] sm:$0xff]
  %v35 = vld [vmem:[%s0 + $0x10] sm:$0xff]
  %v36 = vld [vmem:[%s0 + $0x18] sm:$0xff]
  %vm37 = vcmask 302080
  %v39 = vsel %vm37, %v33, 0
  %v42 = vsel %vm37, %v34, 0
  %v45 = vsel %vm37, %v35, 0
  %v48 = vsel %vm37, %v36, 0
  %vm50 = vcmask 1044480
  %v52 = vsel %vm50, %v23, 0
  %54 = vmatprep.subr.mxu0 0.0
  %55 = vmatpush1.msra.mxu0 %v19
  %56 = vmatprep.subr.mxu0 0.0
  %57 = vmatpush1.msra.mxu0 %v20
  %58 = vmatprep.subr.mxu0 0.0
  %59 = vmatpush1.msra.mxu0 %v21
  %60 = vmatprep.subr.mxu0 0.0
  %61 = vmatpush1.msra.mxu0 %v22
  %62 = vmatprep.subr.mxu0 0.0
  %63 = vmatpush1.msra.mxu0 %v52
  %64 = vmatprep.subr.mxu0 0.0
  %65 = vmatpush1.msra.mxu0 0.0
  %66 = vmatprep.subr.mxu0 0.0
  %67 = vmatpush1.msra.mxu0 0.0
  %68 = vmatprep.subr.mxu0 0.0
  %69 = vmatpush1.msra.mxu0 0.0
  %70 = vmatprep.subr.mxu0 0.0
  %71 = vmatpush1.msra.mxu0 0.0
  %72 = vmatprep.subr.mxu0 0.0
  %73 = vmatpush1.msra.mxu0 0.0
  %74 = vmatprep.subr.mxu0 0.0
  %75 = vmatpush1.msra.mxu0 0.0
  %76 = vmatprep.subr.mxu0 0.0
  %77 = vmatpush1.msra.mxu0 0.0
  %78 = vmatprep.subr.mxu0 0.0
  %79 = vmatpush1.msra.mxu0 0.0
  %80 = vmatprep.subr.mxu0 0.0
  %81 = vmatpush1.msra.mxu0 0.0
  %82 = vmatprep.subr.mxu0 0.0
  %83 = vmatpush1.msra.mxu0 0.0
  %84 = vmatprep.subr.mxu0 0.0
  %85 = vmatpush1.msra.mxu0 0.0
  %86 = vmatprep.subr.mxu0 0.0
  %87 = vmatpush1.msra.mxu0 0.0
  %88 = vmatprep.subr.mxu0 0.0
  %89 = vmatpush1.msra.mxu0 0.0
  %90 = vmatprep.subr.mxu0 0.0
  %91 = vmatpush1.msra.mxu0 0.0
  %92 = vmatprep.subr.mxu0 0.0
  %93 = vmatpush1.msra.mxu0 0.0
  %94 = vmatprep.subr.mxu0 0.0
  %95 = vmatpush1.msra.mxu0 0.0
  %96 = vmatprep.subr.mxu0 0.0
  %97 = vmatpush1.msra.mxu0 0.0
  %98 = vmatprep.subr.mxu0 0.0
  %99 = vmatpush1.msra.mxu0 0.0
  %100 = vmatprep.subr.mxu0 0.0
  %101 = vmatpush1.msra.mxu0 0.0
  %102 = vmatprep.subr.mxu0 0.0
  %103 = vmatpush1.msra.mxu0 0.0
  %104 = vmatprep.subr.mxu0 0.0
  %105 = vmatpush1.msra.mxu0 0.0
  %106 = vmatprep.subr.mxu0 0.0
  %107 = vmatpush1.msra.mxu0 0.0
  %108 = vmatprep.subr.mxu0 0.0
  %109 = vmatpush1.msra.mxu0 0.0
  %110 = vmatprep.subr.mxu0 0.0
  %111 = vmatpush1.msra.mxu0 0.0
  %112 = vmatprep.subr.mxu0 0.0
  %113 = vmatpush1.msra.mxu0 0.0
  %114 = vmatprep.subr.mxu0 0.0
  %115 = vmatpush1.msra.mxu0 0.0
  %116 = vmatprep.subr.mxu0 0.0
  %117 = vmatpush1.msra.mxu0 0.0
  %118 = vmatprep.mubr.f32.mxu0 0.0
  %119 = vmatmul.mubr.f32.gmra.mrb[0].mxu0 %v39
  %v120 = vpop.f32.mrb[0].mxu0
  %v121 = vadd.f32 0.0, %v120
  %v122 = vpop.f32.mrb[0].mxu0
  %123 = vmatprep.mubr.f32.mxu0 0.0
  %124 = vmatmul.mubr.f32.gmra.mrb[0].mxu0 %v42
  %v125 = vpop.f32.mrb[0].mxu0
  %v126 = vadd.f32 0.0, %v125
  %v127 = vpop.f32.mrb[0].mxu0
  %128 = vmatprep.mubr.f32.mxu0 0.0
  %129 = vmatmul.mubr.f32.gmra.mrb[0].mxu0 %v45
  %v130 = vpop.f32.mrb[0].mxu0
  %v131 = vadd.f32 0.0, %v130
  %v132 = vpop.f32.mrb[0].mxu0
  %133 = vmatprep.mubr.f32.mxu0 0.0
  %134 = vmatmul.mubr.f32.gmra.mrb[0].mxu0 %v48
  %v135 = vpop.f32.mrb[0].mxu0
  %v136 = vadd.f32 0.0, %v135
  %v137 = vpop.f32.mrb[0].mxu0
  %138 = vdwg.mxu0
  %v139 = vmax.f32 %v121, 0.0
  %v140 = vmax.f32 %v126, 0.0
  %v141 = vmax.f32 %v131, 0.0
  %v142 = vmax.f32 %v136, 0.0
  %s143 = scalar_lea.vmem %s0, 32
  %v144 = vld [vmem:[%s143] sm:$0xff]
  %v145 = vld [vmem:[%s143 + $0x8] sm:$0xff]
  %v146 = vld [vmem:[%s143 + $0x10] sm:$0xff]
  %v147 = vld [vmem:[%s143 + $0x18] sm:$0xff]
  %v149 = vsel %vm37, %v144, 0
  %v152 = vsel %vm37, %v145, 0
  %v155 = vsel %vm37, %v146, 0
  %v158 = vsel %vm37, %v147, 0
  %160 = vmatprep.subr.mxu0 0.0
  %161 = vmatpush1.msra.mxu0 %v19
  %162 = vmatprep.subr.mxu0 0.0
  %163 = vmatpush1.msra.mxu0 %v20
  %164 = vmatprep.subr.mxu0 0.0
  %165 = vmatpush1.msra.mxu0 %v21
  %166 = vmatprep.subr.mxu0 0.0
  %167 = vmatpush1.msra.mxu0 %v22
  %168 = vmatprep.subr.mxu0 0.0
  %169 = vmatpush1.msra.mxu0 %v52
  %170 = vmatprep.subr.mxu0 0.0
  %171 = vmatpush1.msra.mxu0 0.0
  %172 = vmatprep.subr.mxu0 0.0
  %173 = vmatpush1.msra.mxu0 0.0
  %174 = vmatprep.subr.mxu0 0.0
  %175 = vmatpush1.msra.mxu0 0.0
  %176 = vmatprep.subr.mxu0 0.0
  %177 = vmatpush1.msra.mxu0 0.0
  %178 = vmatprep.subr.mxu0 0.0
  %179 = vmatpush1.msra.mxu0 0.0
  %180 = vmatprep.subr.mxu0 0.0
  %181 = vmatpush1.msra.mxu0 0.0
  %182 = vmatprep.subr.mxu0 0.0
  %183 = vmatpush1.msra.mxu0 0.0
  %184 = vmatprep.subr.mxu0 0.0
  %185 = vmatpush1.msra.mxu0 0.0
  %186 = vmatprep.subr.mxu0 0.0
  %187 = vmatpush1.msra.mxu0 0.0
  %188 = vmatprep.subr.mxu0 0.0
  %189 = vmatpush1.msra.mxu0 0.0
  %190 = vmatprep.subr.mxu0 0.0
  %191 = vmatpush1.msra.mxu0 0.0
  %192 = vmatprep.subr.mxu0 0.0
  %193 = vmatpush1.msra.mxu0 0.0
  %194 = vmatprep.subr.mxu0 0.0
  %195 = vmatpush1.msra.mxu0 0.0
  %196 = vmatprep.subr.mxu0 0.0
  %197 = vmatpush1.msra.mxu0 0.0
  %198 = vmatprep.subr.mxu0 0.0
  %199 = vmatpush1.msra.mxu0 0.0
  %200 = vmatprep.subr.mxu0 0.0
  %201 = vmatpush1.msra.mxu0 0.0
  %202 = vmatprep.subr.mxu0 0.0
  %203 = vmatpush1.msra.mxu0 0.0
  %204 = vmatprep.subr.mxu0 0.0
  %205 = vmatpush1.msra.mxu0 0.0
  %206 = vmatprep.subr.mxu0 0.0
  %207 = vmatpush1.msra.mxu0 0.0
  %208 = vmatprep.subr.mxu0 0.0
  %209 = vmatpush1.msra.mxu0 0.0
  %210 = vmatprep.subr.mxu0 0.0
  %211 = vmatpush1.msra.mxu0 0.0
  %212 = vmatprep.subr.mxu0 0.0
  %213 = vmatpush1.msra.mxu0 0.0
  %214 = vmatprep.subr.mxu0 0.0
  %215 = vmatpush1.msra.mxu0 0.0
  %216 = vmatprep.subr.mxu0 0.0
  %217 = vmatpush1.msra.mxu0 0.0
  %218 = vmatprep.subr.mxu0 0.0
  %219 = vmatpush1.msra.mxu0 0.0
  %220 = vmatprep.subr.mxu0 0.0
  %221 = vmatpush1.msra.mxu0 0.0
  %222 = vmatprep.subr.mxu0 0.0
  %223 = vmatpush1.msra.mxu0 0.0
  %224 = vmatprep.mubr.f32.mxu0 0.0
  %225 = vmatmul.mubr.f32.gmra.mrb[0].mxu0 %v149
  %v226 = vpop.f32.mrb[0].mxu0
  %v227 = vadd.f32 0.0, %v226
  %v228 = vpop.f32.mrb[0].mxu0
  %229 = vmatprep.mubr.f32.mxu0 0.0
  %230 = vmatmul.mubr.f32.gmra.mrb[0].mxu0 %v152
  %v231 = vpop.f32.mrb[0].mxu0
  %v232 = vadd.f32 0.0, %v231
  %v233 = vpop.f32.mrb[0].mxu0
  %234 = vmatprep.mubr.f32.mxu0 0.0
  %235 = vmatmul.mubr.f32.gmra.mrb[0].mxu0 %v155
  %v236 = vpop.f32.mrb[0].mxu0
  %v237 = vadd.f32 0.0, %v236
  %v238 = vpop.f32.mrb[0].mxu0
  %239 = vmatprep.mubr.f32.mxu0 0.0
  %240 = vmatmul.mubr.f32.gmra.mrb[0].mxu0 %v158
  %v241 = vpop.f32.mrb[0].mxu0
  %v242 = vadd.f32 0.0, %v241
  %v243 = vpop.f32.mrb[0].mxu0
  %244 = vdwg.mxu0
  %v245 = vmax.f32 %v227, 0.0
  %v246 = vmax.f32 %v232, 0.0
  %v247 = vmax.f32 %v237, 0.0
  %v248 = vmax.f32 %v242, 0.0
  %vm249 = vcmask 64512
  %v251 = vsel %vm249, %v245, 0
  %v254 = vsel %vm249, %v246, 0
  %v257 = vsel %vm249, %v247, 0
  %v260 = vsel %vm249, %v248, 0
  %262 = vmatprep.subr.mxu0 0.0
  %263 = vmatpush1.msra.mxu0 %v25
  %264 = vmatprep.subr.mxu0 0.0
  %265 = vmatpush1.msra.mxu0 0.0
  %266 = vmatprep.subr.mxu0 0.0
  %267 = vmatpush1.msra.mxu0 0.0
  %268 = vmatprep.subr.mxu0 0.0
  %269 = vmatpush1.msra.mxu0 0.0
  %270 = vmatprep.subr.mxu0 0.0
  %271 = vmatpush1.msra.mxu0 0.0
  %272 = vmatprep.subr.mxu0 0.0
  %273 = vmatpush1.msra.mxu0 0.0
  %274 = vmatprep.subr.mxu0 0.0
  %275 = vmatpush1.msra.mxu0 0.0
  %276 = vmatprep.subr.mxu0 0.0
  %277 = vmatpush1.msra.mxu0 0.0
  %278 = vmatprep.subr.mxu0 0.0
  %279 = vmatpush1.msra.mxu0 0.0
  %280 = vmatprep.subr.mxu0 0.0
  %281 = vmatpush1.msra.mxu0 0.0
  %282 = vmatprep.subr.mxu0 0.0
  %283 = vmatpush1.msra.mxu0 0.0
  %284 = vmatprep.subr.mxu0 0.0
  %285 = vmatpush1.msra.mxu0 0.0
  %286 = vmatprep.subr.mxu0 0.0
  %287 = vmatpush1.msra.mxu0 0.0
  %288 = vmatprep.subr.mxu0 0.0
  %289 = vmatpush1.msra.mxu0 0.0
  %290 = vmatprep.subr.mxu0 0.0
  %291 = vmatpush1.msra.mxu0 0.0
  %292 = vmatprep.subr.mxu0 0.0
  %293 = vmatpush1.msra.mxu0 0.0
  %294 = vmatprep.subr.mxu0 0.0
  %295 = vmatpush1.msra.mxu0 0.0
  %296 = vmatprep.subr.mxu0 0.0
  %297 = vmatpush1.msra.mxu0 0.0
  %298 = vmatprep.subr.mxu0 0.0
  %299 = vmatpush1.msra.mxu0 0.0
  %300 = vmatprep.subr.mxu0 0.0
  %301 = vmatpush1.msra.mxu0 0.0
  %302 = vmatprep.subr.mxu0 0.0
  %303 = vmatpush1.msra.mxu0 0.0
  %304 = vmatprep.subr.mxu0 0.0
  %305 = vmatpush1.msra.mxu0 0.0
  %306 = vmatprep.subr.mxu0 0.0
  %307 = vmatpush1.msra.mxu0 0.0
  %308 = vmatprep.subr.mxu0 0.0
  %309 = vmatpush1.msra.mxu0 0.0
  %310 = vmatprep.subr.mxu0 0.0
  %311 = vmatpush1.msra.mxu0 0.0
  %312 = vmatprep.subr.mxu0 0.0
  %313 = vmatpush1.msra.mxu0 0.0
  %314 = vmatprep.subr.mxu0 0.0
  %315 = vmatpush1.msra.mxu0 0.0
  %316 = vmatprep.subr.mxu0 0.0
  %317 = vmatpush1.msra.mxu0 0.0
  %318 = vmatprep.subr.mxu0 0.0
  %319 = vmatpush1.msra.mxu0 0.0
  %320 = vmatprep.subr.mxu0 0.0
  %321 = vmatpush1.msra.mxu0 0.0
  %322 = vmatprep.subr.mxu0 0.0
  %323 = vmatpush1.msra.mxu0 0.0
  %324 = vmatprep.subr.mxu0 0.0
  %325 = vmatpush1.msra.mxu0 0.0
  %326 = vmatprep.mubr.f32.mxu0 0.0
  %327 = vmatmul.mubr.f32.gmra.mrb[0].mxu0 %v251
  %v328 = vpop.f32.mrb[0].mxu0
  %v329 = vadd.f32 0.0, %v328
  %v330 = vpop.f32.mrb[0].mxu0
  %331 = vmatprep.mubr.f32.mxu0 0.0
  %332 = vmatmul.mubr.f32.gmra.mrb[0].mxu0 %v254
  %v333 = vpop.f32.mrb[0].mxu0
  %v334 = vadd.f32 0.0, %v333
  %v335 = vpop.f32.mrb[0].mxu0
  %336 = vmatprep.mubr.f32.mxu0 0.0
  %337 = vmatmul.mubr.f32.gmra.mrb[0].mxu0 %v257
  %v338 = vpop.f32.mrb[0].mxu0
  %v339 = vadd.f32 0.0, %v338
  %v340 = vpop.f32.mrb[0].mxu0
  %341 = vmatprep.mubr.f32.mxu0 0.0
  %342 = vmatmul.mubr.f32.gmra.mrb[0].mxu0 %v260
  %v343 = vpop.f32.mrb[0].mxu0
  %v344 = vadd.f32 0.0, %v343
  %v345 = vpop.f32.mrb[0].mxu0
  %346 = vdwg.mxu0
  %v348 = vsel %vm249, %v139, 0
  %v351 = vsel %vm249, %v140, 0
  %v354 = vsel %vm249, %v141, 0
  %v357 = vsel %vm249, %v142, 0
  %359 = vmatprep.subr.mxu0 0.0
  %360 = vmatpush1.msra.mxu0 %v24
  %361 = vmatprep.subr.mxu0 0.0
  %362 = vmatpush1.msra.mxu0 0.0
  %363 = vmatprep.subr.mxu0 0.0
  %364 = vmatpush1.msra.mxu0 0.0
  %365 = vmatprep.subr.mxu0 0.0
  %366 = vmatpush1.msra.mxu0 0.0
  %367 = vmatprep.subr.mxu0 0.0
  %368 = vmatpush1.msra.mxu0 0.0
  %369 = vmatprep.subr.mxu0 0.0
  %370 = vmatpush1.msra.mxu0 0.0
  %371 = vmatprep.subr.mxu0 0.0
  %372 = vmatpush1.msra.mxu0 0.0
  %373 = vmatprep.subr.mxu0 0.0
  %374 = vmatpush1.msra.mxu0 0.0
  %375 = vmatprep.subr.mxu0 0.0
  %376 = vmatpush1.msra.mxu0 0.0
  %377 = vmatprep.subr.mxu0 0.0
  %378 = vmatpush1.msra.mxu0 0.0
  %379 = vmatprep.subr.mxu0 0.0
  %380 = vmatpush1.msra.mxu0 0.0
  %381 = vmatprep.subr.mxu0 0.0
  %382 = vmatpush1.msra.mxu0 0.0
  %383 = vmatprep.subr.mxu0 0.0
  %384 = vmatpush1.msra.mxu0 0.0
  %385 = vmatprep.subr.mxu0 0.0
  %386 = vmatpush1.msra.mxu0 0.0
  %387 = vmatprep.subr.mxu0 0.0
  %388 = vmatpush1.msra.mxu0 0.0
  %389 = vmatprep.subr.mxu0 0.0
  %390 = vmatpush1.msra.mxu0 0.0
  %391 = vmatprep.subr.mxu0 0.0
  %392 = vmatpush1.msra.mxu0 0.0
  %393 = vmatprep.subr.mxu0 0.0
  %394 = vmatpush1.msra.mxu0 0.0
  %395 = vmatprep.subr.mxu0 0.0
  %396 = vmatpush1.msra.mxu0 0.0
  %397 = vmatprep.subr.mxu0 0.0
  %398 = vmatpush1.msra.mxu0 0.0
  %399 = vmatprep.subr.mxu0 0.0
  %400 = vmatpush1.msra.mxu0 0.0
  %401 = vmatprep.subr.mxu0 0.0
  %402 = vmatpush1.msra.mxu0 0.0
  %403 = vmatprep.subr.mxu0 0.0
  %404 = vmatpush1.msra.mxu0 0.0
  %405 = vmatprep.subr.mxu0 0.0
  %406 = vmatpush1.msra.mxu0 0.0
  %407 = vmatprep.subr.mxu0 0.0
  %408 = vmatpush1.msra.mxu0 0.0
  %409 = vmatprep.subr.mxu0 0.0
  %410 = vmatpush1.msra.mxu0 0.0
  %411 = vmatprep.subr.mxu0 0.0
  %412 = vmatpush1.msra.mxu0 0.0
  %413 = vmatprep.subr.mxu0 0.0
  %414 = vmatpush1.msra.mxu0 0.0
  %415 = vmatprep.subr.mxu0 0.0
  %416 = vmatpush1.msra.mxu0 0.0
  %417 = vmatprep.subr.mxu0 0.0
  %418 = vmatpush1.msra.mxu0 0.0
  %419 = vmatprep.subr.mxu0 0.0
  %420 = vmatpush1.msra.mxu0 0.0
  %421 = vmatprep.subr.mxu0 0.0
  %422 = vmatpush1.msra.mxu0 0.0
  %423 = vmatprep.mubr.f32.mxu0 0.0
  %424 = vmatmul.mubr.f32.gmra.mrb[0].mxu0 %v348
  %v425 = vpop.f32.mrb[0].mxu0
  %v426 = vadd.f32 %v329, %v425
  %v427 = vpop.f32.mrb[0].mxu0
  %428 = vmatprep.mubr.f32.mxu0 0.0
  %429 = vmatmul.mubr.f32.gmra.mrb[0].mxu0 %v351
  %v430 = vpop.f32.mrb[0].mxu0
  %v431 = vadd.f32 %v334, %v430
  %v432 = vpop.f32.mrb[0].mxu0
  %433 = vmatprep.mubr.f32.mxu0 0.0
  %434 = vmatmul.mubr.f32.gmra.mrb[0].mxu0 %v354
  %v435 = vpop.f32.mrb[0].mxu0
  %v436 = vadd.f32 %v339, %v435
  %v437 = vpop.f32.mrb[0].mxu0
  %438 = vmatprep.mubr.f32.mxu0 0.0
  %439 = vmatmul.mubr.f32.gmra.mrb[0].mxu0 %v357
  %v440 = vpop.f32.mrb[0].mxu0
  %v441 = vadd.f32 %v344, %v440
  %v442 = vpop.f32.mrb[0].mxu0
  %443 = vdwg.mxu0
  %s444 = scalar_lea.vmem %s0, 64
  %v445 = vld [vmem:[%s444] sm:$0xff]
  %v446 = vld [vmem:[%s444 + $0x8] sm:$0xff]
  %v447 = vld [vmem:[%s444 + $0x10] sm:$0xff]
  %v448 = vld [vmem:[%s444 + $0x18] sm:$0xff]
  %v450 = vsel %vm37, %v445, 0
  %v453 = vsel %vm37, %v446, 0
  %v456 = vsel %vm37, %v447, 0
  %v459 = vsel %vm37, %v448, 0
  %461 = vmatprep.subr.mxu0 0.0
  %462 = vmatpush1.msra.mxu0 %v19
  %463 = vmatprep.subr.mxu0 0.0
  %464 = vmatpush1.msra.mxu0 %v20
  %465 = vmatprep.subr.mxu0 0.0
  %466 = vmatpush1.msra.mxu0 %v21
  %467 = vmatprep.subr.mxu0 0.0
  %468 = vmatpush1.msra.mxu0 %v22
  %469 = vmatprep.subr.mxu0 0.0
  %470 = vmatpush1.msra.mxu0 %v52
  %471 = vmatprep.subr.mxu0 0.0
  %472 = vmatpush1.msra.mxu0 0.0
  %473 = vmatprep.subr.mxu0 0.0
  %474 = vmatpush1.msra.mxu0 0.0
  %475 = vmatprep.subr.mxu0 0.0
  %476 = vmatpush1.msra.mxu0 0.0
  %477 = vmatprep.subr.mxu0 0.0
  %478 = vmatpush1.msra.mxu0 0.0
  %479 = vmatprep.subr.mxu0 0.0
  %480 = vmatpush1.msra.mxu0 0.0
  %481 = vmatprep.subr.mxu0 0.0
  %482 = vmatpush1.msra.mxu0 0.0
  %483 = vmatprep.subr.mxu0 0.0
  %484 = vmatpush1.msra.mxu0 0.0
  %485 = vmatprep.subr.mxu0 0.0
  %486 = vmatpush1.msra.mxu0 0.0
  %487 = vmatprep.subr.mxu0 0.0
  %488 = vmatpush1.msra.mxu0 0.0
  %489 = vmatprep.subr.mxu0 0.0
  %490 = vmatpush1.msra.mxu0 0.0
  %491 = vmatprep.subr.mxu0 0.0
  %492 = vmatpush1.msra.mxu0 0.0
  %493 = vmatprep.subr.mxu0 0.0
  %494 = vmatpush1.msra.mxu0 0.0
  %495 = vmatprep.subr.mxu0 0.0
  %496 = vmatpush1.msra.mxu0 0.0
  %497 = vmatprep.subr.mxu0 0.0
  %498 = vmatpush1.msra.mxu0 0.0
  %499 = vmatprep.subr.mxu0 0.0
  %500 = vmatpush1.msra.mxu0 0.0
  %501 = vmatprep.subr.mxu0 0.0
  %502 = vmatpush1.msra.mxu0 0.0
  %503 = vmatprep.subr.mxu0 0.0
  %504 = vmatpush1.msra.mxu0 0.0
  %505 = vmatprep.subr.mxu0 0.0
  %506 = vmatpush1.msra.mxu0 0.0
  %507 = vmatprep.subr.mxu0 0.0
  %508 = vmatpush1.msra.mxu0 0.0
  %509 = vmatprep.subr.mxu0 0.0
  %510 = vmatpush1.msra.mxu0 0.0
  %511 = vmatprep.subr.mxu0 0.0
  %512 = vmatpush1.msra.mxu0 0.0
  %513 = vmatprep.subr.mxu0 0.0
  %514 = vmatpush1.msra.mxu0 0.0
  %515 = vmatprep.subr.mxu0 0.0
  %516 = vmatpush1.msra.mxu0 0.0
  %517 = vmatprep.subr.mxu0 0.0
  %518 = vmatpush1.msra.mxu0 0.0
  %519 = vmatprep.subr.mxu0 0.0
  %520 = vmatpush1.msra.mxu0 0.0
  %521 = vmatprep.subr.mxu0 0.0
  %522 = vmatpush1.msra.mxu0 0.0
  %523 = vmatprep.subr.mxu0 0.0
  %524 = vmatpush1.msra.mxu0 0.0
  %525 = vmatprep.mubr.f32.mxu0 0.0
  %526 = vmatmul.mubr.f32.gmra.mrb[0].mxu0 %v450
  %v527 = vpop.f32.mrb[0].mxu0
  %v528 = vadd.f32 0.0, %v527
  %v529 = vpop.f32.mrb[0].mxu0
  %530 = vmatprep.mubr.f32.mxu0 0.0
  %531 = vmatmul.mubr.f32.gmra.mrb[0].mxu0 %v453
  %v532 = vpop.f32.mrb[0].mxu0
  %v533 = vadd.f32 0.0, %v532
  %v534 = vpop.f32.mrb[0].mxu0
  %535 = vmatprep.mubr.f32.mxu0 0.0
  %536 = vmatmul.mubr.f32.gmra.mrb[0].mxu0 %v456
  %v537 = vpop.f32.mrb[0].mxu0
  %v538 = vadd.f32 0.0, %v537
  %v539 = vpop.f32.mrb[0].mxu0
  %540 = vmatprep.mubr.f32.mxu0 0.0
  %541 = vmatmul.mubr.f32.gmra.mrb[0].mxu0 %v459
  %v542 = vpop.f32.mrb[0].mxu0
  %v543 = vadd.f32 0.0, %v542
  %v544 = vpop.f32.mrb[0].mxu0
  %545 = vdwg.mxu0
  %v546 = vmax.f32 %v528, 0.0
  %v547 = vmax.f32 %v533, 0.0
  %v548 = vmax.f32 %v538, 0.0
  %v549 = vmax.f32 %v543, 0.0
  %v551 = vsel %vm249, %v546, 0
  %v554 = vsel %vm249, %v547, 0
  %v557 = vsel %vm249, %v548, 0
  %v560 = vsel %vm249, %v549, 0
  %562 = vmatprep.subr.mxu0 0.0
  %563 = vmatpush1.msra.mxu0 %v26
  %564 = vmatprep.subr.mxu0 0.0
  %565 = vmatpush1.msra.mxu0 0.0
  %566 = vmatprep.subr.mxu0 0.0
  %567 = vmatpush1.msra.mxu0 0.0
  %568 = vmatprep.subr.mxu0 0.0
  %569 = vmatpush1.msra.mxu0 0.0
  %570 = vmatprep.subr.mxu0 0.0
  %571 = vmatpush1.msra.mxu0 0.0
  %572 = vmatprep.subr.mxu0 0.0
  %573 = vmatpush1.msra.mxu0 0.0
  %574 = vmatprep.subr.mxu0 0.0
  %575 = vmatpush1.msra.mxu0 0.0
  %576 = vmatprep.subr.mxu0 0.0
  %577 = vmatpush1.msra.mxu0 0.0
  %578 = vmatprep.subr.mxu0 0.0
  %579 = vmatpush1.msra.mxu0 0.0
  %580 = vmatprep.subr.mxu0 0.0
  %581 = vmatpush1.msra.mxu0 0.0
  %582 = vmatprep.subr.mxu0 0.0
  %583 = vmatpush1.msra.mxu0 0.0
  %584 = vmatprep.subr.mxu0 0.0
  %585 = vmatpush1.msra.mxu0 0.0
  %586 = vmatprep.subr.mxu0 0.0
  %587 = vmatpush1.msra.mxu0 0.0
  %588 = vmatprep.subr.mxu0 0.0
  %589 = vmatpush1.msra.mxu0 0.0
  %590 = vmatprep.subr.mxu0 0.0
  %591 = vmatpush1.msra.mxu0 0.0
  %592 = vmatprep.subr.mxu0 0.0
  %593 = vmatpush1.msra.mxu0 0.0
  %594 = vmatprep.subr.mxu0 0.0
  %595 = vmatpush1.msra.mxu0 0.0
  %596 = vmatprep.subr.mxu0 0.0
  %597 = vmatpush1.msra.mxu0 0.0
  %598 = vmatprep.subr.mxu0 0.0
  %599 = vmatpush1.msra.mxu0 0.0
  %600 = vmatprep.subr.mxu0 0.0
  %601 = vmatpush1.msra.mxu0 0.0
  %602 = vmatprep.subr.mxu0 0.0
  %603 = vmatpush1.msra.mxu0 0.0
  %604 = vmatprep.subr.mxu0 0.0
  %605 = vmatpush1.msra.mxu0 0.0
  %606 = vmatprep.subr.mxu0 0.0
  %607 = vmatpush1.msra.mxu0 0.0
  %608 = vmatprep.subr.mxu0 0.0
  %609 = vmatpush1.msra.mxu0 0.0
  %610 = vmatprep.subr.mxu0 0.0
  %611 = vmatpush1.msra.mxu0 0.0
  %612 = vmatprep.subr.mxu0 0.0
  %613 = vmatpush1.msra.mxu0 0.0
  %614 = vmatprep.subr.mxu0 0.0
  %615 = vmatpush1.msra.mxu0 0.0
  %616 = vmatprep.subr.mxu0 0.0
  %617 = vmatpush1.msra.mxu0 0.0
  %618 = vmatprep.subr.mxu0 0.0
  %619 = vmatpush1.msra.mxu0 0.0
  %620 = vmatprep.subr.mxu0 0.0
  %621 = vmatpush1.msra.mxu0 0.0
  %622 = vmatprep.subr.mxu0 0.0
  %623 = vmatpush1.msra.mxu0 0.0
  %624 = vmatprep.subr.mxu0 0.0
  %625 = vmatpush1.msra.mxu0 0.0
  %626 = vmatprep.mubr.f32.mxu0 0.0
  %627 = vmatmul.mubr.f32.gmra.mrb[0].mxu0 %v551
  %v628 = vpop.f32.mrb[0].mxu0
  %v629 = vadd.f32 0.0, %v628
  %v630 = vpop.f32.mrb[0].mxu0
  %631 = vmatprep.mubr.f32.mxu0 0.0
  %632 = vmatmul.mubr.f32.gmra.mrb[0].mxu0 %v554
  %v633 = vpop.f32.mrb[0].mxu0
  %v634 = vadd.f32 0.0, %v633
  %v635 = vpop.f32.mrb[0].mxu0
  %636 = vmatprep.mubr.f32.mxu0 0.0
  %637 = vmatmul.mubr.f32.gmra.mrb[0].mxu0 %v557
  %v638 = vpop.f32.mrb[0].mxu0
  %v639 = vadd.f32 0.0, %v638
  %v640 = vpop.f32.mrb[0].mxu0
  %641 = vmatprep.mubr.f32.mxu0 0.0
  %642 = vmatmul.mubr.f32.gmra.mrb[0].mxu0 %v560
  %v643 = vpop.f32.mrb[0].mxu0
  %v644 = vadd.f32 0.0, %v643
  %v645 = vpop.f32.mrb[0].mxu0
  %646 = vdwg.mxu0
  %v647 = vadd.f32 %v426, %v629
  %v648 = vadd.f32 %v431, %v634
  %v649 = vadd.f32 %v436, %v639
  %v650 = vadd.f32 %v441, %v644
  %s651 = scalar_lea.vmem %s0, 96
  %v652 = vld [vmem:[%s651] sm:$0xff]
  %v653 = vld [vmem:[%s651 + $0x8] sm:$0xff]
  %v654 = vld [vmem:[%s651 + $0x10] sm:$0xff]
  %v655 = vld [vmem:[%s651 + $0x18] sm:$0xff]
  %v657 = vsel %vm37, %v652, 0
  %v660 = vsel %vm37, %v653, 0
  %v663 = vsel %vm37, %v654, 0
  %v666 = vsel %vm37, %v655, 0
  %668 = vmatprep.subr.mxu0 0.0
  %669 = vmatpush1.msra.mxu0 %v19
  %670 = vmatprep.subr.mxu0 0.0
  %671 = vmatpush1.msra.mxu0 %v20
  %672 = vmatprep.subr.mxu0 0.0
  %673 = vmatpush1.msra.mxu0 %v21
  %674 = vmatprep.subr.mxu0 0.0
  %675 = vmatpush1.msra.mxu0 %v22
  %676 = vmatprep.subr.mxu0 0.0
  %677 = vmatpush1.msra.mxu0 %v52
  %678 = vmatprep.subr.mxu0 0.0
  %679 = vmatpush1.msra.mxu0 0.0
  %680 = vmatprep.subr.mxu0 0.0
  %681 = vmatpush1.msra.mxu0 0.0
  %682 = vmatprep.subr.mxu0 0.0
  %683 = vmatpush1.msra.mxu0 0.0
  %684 = vmatprep.subr.mxu0 0.0
  %685 = vmatpush1.msra.mxu0 0.0
  %686 = vmatprep.subr.mxu0 0.0
  %687 = vmatpush1.msra.mxu0 0.0
  %688 = vmatprep.subr.mxu0 0.0
  %689 = vmatpush1.msra.mxu0 0.0
  %690 = vmatprep.subr.mxu0 0.0
  %691 = vmatpush1.msra.mxu0 0.0
  %692 = vmatprep.subr.mxu0 0.0
  %693 = vmatpush1.msra.mxu0 0.0
  %694 = vmatprep.subr.mxu0 0.0
  %695 = vmatpush1.msra.mxu0 0.0
  %696 = vmatprep.subr.mxu0 0.0
  %697 = vmatpush1.msra.mxu0 0.0
  %698 = vmatprep.subr.mxu0 0.0
  %699 = vmatpush1.msra.mxu0 0.0
  %700 = vmatprep.subr.mxu0 0.0
  %701 = vmatpush1.msra.mxu0 0.0
  %702 = vmatprep.subr.mxu0 0.0
  %703 = vmatpush1.msra.mxu0 0.0
  %704 = vmatprep.subr.mxu0 0.0
  %705 = vmatpush1.msra.mxu0 0.0
  %706 = vmatprep.subr.mxu0 0.0
  %707 = vmatpush1.msra.mxu0 0.0
  %708 = vmatprep.subr.mxu0 0.0
  %709 = vmatpush1.msra.mxu0 0.0
  %710 = vmatprep.subr.mxu0 0.0
  %711 = vmatpush1.msra.mxu0 0.0
  %712 = vmatprep.subr.mxu0 0.0
  %713 = vmatpush1.msra.mxu0 0.0
  %714 = vmatprep.subr.mxu0 0.0
  %715 = vmatpush1.msra.mxu0 0.0
  %716 = vmatprep.subr.mxu0 0.0
  %717 = vmatpush1.msra.mxu0 0.0
  %718 = vmatprep.subr.mxu0 0.0
  %719 = vmatpush1.msra.mxu0 0.0
  %720 = vmatprep.subr.mxu0 0.0
  %721 = vmatpush1.msra.mxu0 0.0
  %722 = vmatprep.subr.mxu0 0.0
  %723 = vmatpush1.msra.mxu0 0.0
  %724 = vmatprep.subr.mxu0 0.0
  %725 = vmatpush1.msra.mxu0 0.0
  %726 = vmatprep.subr.mxu0 0.0
  %727 = vmatpush1.msra.mxu0 0.0
  %728 = vmatprep.subr.mxu0 0.0
  %729 = vmatpush1.msra.mxu0 0.0
  %730 = vmatprep.subr.mxu0 0.0
  %731 = vmatpush1.msra.mxu0 0.0
  %732 = vmatprep.mubr.f32.mxu0 0.0
  %733 = vmatmul.mubr.f32.gmra.mrb[0].mxu0 %v657
  %v734 = vpop.f32.mrb[0].mxu0
  %v735 = vadd.f32 0.0, %v734
  %v736 = vpop.f32.mrb[0].mxu0
  %737 = vmatprep.mubr.f32.mxu0 0.0
  %738 = vmatmul.mubr.f32.gmra.mrb[0].mxu0 %v660
  %v739 = vpop.f32.mrb[0].mxu0
  %v740 = vadd.f32 0.0, %v739
  %v741 = vpop.f32.mrb[0].mxu0
  %742 = vmatprep.mubr.f32.mxu0 0.0
  %743 = vmatmul.mubr.f32.gmra.mrb[0].mxu0 %v663
  %v744 = vpop.f32.mrb[0].mxu0
  %v745 = vadd.f32 0.0, %v744
  %v746 = vpop.f32.mrb[0].mxu0
  %747 = vmatprep.mubr.f32.mxu0 0.0
  %748 = vmatmul.mubr.f32.gmra.mrb[0].mxu0 %v666
  %v749 = vpop.f32.mrb[0].mxu0
  %v750 = vadd.f32 0.0, %v749
  %v751 = vpop.f32.mrb[0].mxu0
  %752 = vdwg.mxu0
  %v753 = vmax.f32 %v735, 0.0
  %v754 = vmax.f32 %v740, 0.0
  %v755 = vmax.f32 %v745, 0.0
  %v756 = vmax.f32 %v750, 0.0
  %v758 = vsel %vm249, %v753, 0
  %v761 = vsel %vm249, %v754, 0
  %v764 = vsel %vm249, %v755, 0
  %v767 = vsel %vm249, %v756, 0
  %769 = vmatprep.subr.mxu0 0.0
  %770 = vmatpush1.msra.mxu0 %v27
  %771 = vmatprep.subr.mxu0 0.0
  %772 = vmatpush1.msra.mxu0 0.0
  %773 = vmatprep.subr.mxu0 0.0
  %774 = vmatpush1.msra.mxu0 0.0
  %775 = vmatprep.subr.mxu0 0.0
  %776 = vmatpush1.msra.mxu0 0.0
  %777 = vmatprep.subr.mxu0 0.0
  %778 = vmatpush1.msra.mxu0 0.0
  %779 = vmatprep.subr.mxu0 0.0
  %780 = vmatpush1.msra.mxu0 0.0
  %781 = vmatprep.subr.mxu0 0.0
  %782 = vmatpush1.msra.mxu0 0.0
  %783 = vmatprep.subr.mxu0 0.0
  %784 = vmatpush1.msra.mxu0 0.0
  %785 = vmatprep.subr.mxu0 0.0
  %786 = vmatpush1.msra.mxu0 0.0
  %787 = vmatprep.subr.mxu0 0.0
  %788 = vmatpush1.msra.mxu0 0.0
  %789 = vmatprep.subr.mxu0 0.0
  %790 = vmatpush1.msra.mxu0 0.0
  %791 = vmatprep.subr.mxu0 0.0
  %792 = vmatpush1.msra.mxu0 0.0
  %793 = vmatprep.subr.mxu0 0.0
  %794 = vmatpush1.msra.mxu0 0.0
  %795 = vmatprep.subr.mxu0 0.0
  %796 = vmatpush1.msra.mxu0 0.0
  %797 = vmatprep.subr.mxu0 0.0
  %798 = vmatpush1.msra.mxu0 0.0
  %799 = vmatprep.subr.mxu0 0.0
  %800 = vmatpush1.msra.mxu0 0.0
  %801 = vmatprep.subr.mxu0 0.0
  %802 = vmatpush1.msra.mxu0 0.0
  %803 = vmatprep.subr.mxu0 0.0
  %804 = vmatpush1.msra.mxu0 0.0
  %805 = vmatprep.subr.mxu0 0.0
  %806 = vmatpush1.msra.mxu0 0.0
  %807 = vmatprep.subr.mxu0 0.0
  %808 = vmatpush1.msra.mxu0 0.0
  %809 = vmatprep.subr.mxu0 0.0
  %810 = vmatpush1.msra.mxu0 0.0
  %811 = vmatprep.subr.mxu0 0.0
  %812 = vmatpush1.msra.mxu0 0.0
  %813 = vmatprep.subr.mxu0 0.0
  %814 = vmatpush1.msra.mxu0 0.0
  %815 = vmatprep.subr.mxu0 0.0
  %816 = vmatpush1.msra.mxu0 0.0
  %817 = vmatprep.subr.mxu0 0.0
  %818 = vmatpush1.msra.mxu0 0.0
  %819 = vmatprep.subr.mxu0 0.0
  %820 = vmatpush1.msra.mxu0 0.0
  %821 = vmatprep.subr.mxu0 0.0
  %822 = vmatpush1.msra.mxu0 0.0
  %823 = vmatprep.subr.mxu0 0.0
  %824 = vmatpush1.msra.mxu0 0.0
  %825 = vmatprep.subr.mxu0 0.0
  %826 = vmatpush1.msra.mxu0 0.0
  %827 = vmatprep.subr.mxu0 0.0
  %828 = vmatpush1.msra.mxu0 0.0
  %829 = vmatprep.subr.mxu0 0.0
  %830 = vmatpush1.msra.mxu0 0.0
  %831 = vmatprep.subr.mxu0 0.0
  %832 = vmatpush1.msra.mxu0 0.0
  %833 = vmatprep.mubr.f32.mxu0 0.0
  %834 = vmatmul.mubr.f32.gmra.mrb[0].mxu0 %v758
  %v835 = vpop.f32.mrb[0].mxu0
  %v836 = vadd.f32 0.0, %v835
  %v837 = vpop.f32.mrb[0].mxu0
  %838 = vmatprep.mubr.f32.mxu0 0.0
  %839 = vmatmul.mubr.f32.gmra.mrb[0].mxu0 %v761
  %v840 = vpop.f32.mrb[0].mxu0
  %v841 = vadd.f32 0.0, %v840
  %v842 = vpop.f32.mrb[0].mxu0
  %843 = vmatprep.mubr.f32.mxu0 0.0
  %844 = vmatmul.mubr.f32.gmra.mrb[0].mxu0 %v764
  %v845 = vpop.f32.mrb[0].mxu0
  %v846 = vadd.f32 0.0, %v845
  %v847 = vpop.f32.mrb[0].mxu0
  %848 = vmatprep.mubr.f32.mxu0 0.0
  %849 = vmatmul.mubr.f32.gmra.mrb[0].mxu0 %v767
  %v850 = vpop.f32.mrb[0].mxu0
  %v851 = vadd.f32 0.0, %v850
  %v852 = vpop.f32.mrb[0].mxu0
  %853 = vdwg.mxu0
  %v854 = vadd.f32 %v647, %v836
  %v855 = vadd.f32 %v648, %v841
  %v856 = vadd.f32 %v649, %v846
  %v857 = vadd.f32 %v650, %v851
  %s858 = scalar_lea.vmem %s0, 128
  %v859 = vld [vmem:[%s858] sm:$0xff]
  %v860 = vld [vmem:[%s858 + $0x8] sm:$0xff]
  %v861 = vld [vmem:[%s858 + $0x10] sm:$0xff]
  %v862 = vld [vmem:[%s858 + $0x18] sm:$0xff]
  %v864 = vsel %vm37, %v859, 0
  %v867 = vsel %vm37, %v860, 0
  %v870 = vsel %vm37, %v861, 0
  %v873 = vsel %vm37, %v862, 0
  %875 = vmatprep.subr.mxu0 0.0
  %876 = vmatpush1.msra.mxu0 %v19
  %877 = vmatprep.subr.mxu0 0.0
  %878 = vmatpush1.msra.mxu0 %v20
  %879 = vmatprep.subr.mxu0 0.0
  %880 = vmatpush1.msra.mxu0 %v21
  %881 = vmatprep.subr.mxu0 0.0
  %882 = vmatpush1.msra.mxu0 %v22
  %883 = vmatprep.subr.mxu0 0.0
  %884 = vmatpush1.msra.mxu0 %v52
  %885 = vmatprep.subr.mxu0 0.0
  %886 = vmatpush1.msra.mxu0 0.0
  %887 = vmatprep.subr.mxu0 0.0
  %888 = vmatpush1.msra.mxu0 0.0
  %889 = vmatprep.subr.mxu0 0.0
  %890 = vmatpush1.msra.mxu0 0.0
  %891 = vmatprep.subr.mxu0 0.0
  %892 = vmatpush1.msra.mxu0 0.0
  %893 = vmatprep.subr.mxu0 0.0
  %894 = vmatpush1.msra.mxu0 0.0
  %895 = vmatprep.subr.mxu0 0.0
  %896 = vmatpush1.msra.mxu0 0.0
  %897 = vmatprep.subr.mxu0 0.0
  %898 = vmatpush1.msra.mxu0 0.0
  %899 = vmatprep.subr.mxu0 0.0
  %900 = vmatpush1.msra.mxu0 0.0
  %901 = vmatprep.subr.mxu0 0.0
  %902 = vmatpush1.msra.mxu0 0.0
  %903 = vmatprep.subr.mxu0 0.0
  %904 = vmatpush1.msra.mxu0 0.0
  %905 = vmatprep.subr.mxu0 0.0
  %906 = vmatpush1.msra.mxu0 0.0
  %907 = vmatprep.subr.mxu0 0.0
  %908 = vmatpush1.msra.mxu0 0.0
  %909 = vmatprep.subr.mxu0 0.0
  %910 = vmatpush1.msra.mxu0 0.0
  %911 = vmatprep.subr.mxu0 0.0
  %912 = vmatpush1.msra.mxu0 0.0
  %913 = vmatprep.subr.mxu0 0.0
  %914 = vmatpush1.msra.mxu0 0.0
  %915 = vmatprep.subr.mxu0 0.0
  %916 = vmatpush1.msra.mxu0 0.0
  %917 = vmatprep.subr.mxu0 0.0
  %918 = vmatpush1.msra.mxu0 0.0
  %919 = vmatprep.subr.mxu0 0.0
  %920 = vmatpush1.msra.mxu0 0.0
  %921 = vmatprep.subr.mxu0 0.0
  %922 = vmatpush1.msra.mxu0 0.0
  %923 = vmatprep.subr.mxu0 0.0
  %924 = vmatpush1.msra.mxu0 0.0
  %925 = vmatprep.subr.mxu0 0.0
  %926 = vmatpush1.msra.mxu0 0.0
  %927 = vmatprep.subr.mxu0 0.0
  %928 = vmatpush1.msra.mxu0 0.0
  %929 = vmatprep.subr.mxu0 0.0
  %930 = vmatpush1.msra.mxu0 0.0
  %931 = vmatprep.subr.mxu0 0.0
  %932 = vmatpush1.msra.mxu0 0.0
  %933 = vmatprep.subr.mxu0 0.0
  %934 = vmatpush1.msra.mxu0 0.0
  %935 = vmatprep.subr.mxu0 0.0
  %936 = vmatpush1.msra.mxu0 0.0
  %937 = vmatprep.subr.mxu0 0.0
  %938 = vmatpush1.msra.mxu0 0.0
  %939 = vmatprep.mubr.f32.mxu0 0.0
  %940 = vmatmul.mubr.f32.gmra.mrb[0].mxu0 %v864
  %v941 = vpop.f32.mrb[0].mxu0
  %v942 = vadd.f32 0.0, %v941
  %v943 = vpop.f32.mrb[0].mxu0
  %944 = vmatprep.mubr.f32.mxu0 0.0
  %945 = vmatmul.mubr.f32.gmra.mrb[0].mxu0 %v867
  %v946 = vpop.f32.mrb[0].mxu0
  %v947 = vadd.f32 0.0, %v946
  %v948 = vpop.f32.mrb[0].mxu0
  %949 = vmatprep.mubr.f32.mxu0 0.0
  %950 = vmatmul.mubr.f32.gmra.mrb[0].mxu0 %v870
  %v951 = vpop.f32.mrb[0].mxu0
  %v952 = vadd.f32 0.0, %v951
  %v953 = vpop.f32.mrb[0].mxu0
  %954 = vmatprep.mubr.f32.mxu0 0.0
  %955 = vmatmul.mubr.f32.gmra.mrb[0].mxu0 %v873
  %v956 = vpop.f32.mrb[0].mxu0
  %v957 = vadd.f32 0.0, %v956
  %v958 = vpop.f32.mrb[0].mxu0
  %959 = vdwg.mxu0
  %v960 = vmax.f32 %v942, 0.0
  %v961 = vmax.f32 %v947, 0.0
  %v962 = vmax.f32 %v952, 0.0
  %v963 = vmax.f32 %v957, 0.0
  %v965 = vsel %vm249, %v960, 0
  %v968 = vsel %vm249, %v961, 0
  %v971 = vsel %vm249, %v962, 0
  %v974 = vsel %vm249, %v963, 0
  %976 = vmatprep.subr.mxu0 0.0
  %977 = vmatpush1.msra.mxu0 %v28
  %978 = vmatprep.subr.mxu0 0.0
  %979 = vmatpush1.msra.mxu0 0.0
  %980 = vmatprep.subr.mxu0 0.0
  %981 = vmatpush1.msra.mxu0 0.0
  %982 = vmatprep.subr.mxu0 0.0
  %983 = vmatpush1.msra.mxu0 0.0
  %984 = vmatprep.subr.mxu0 0.0
  %985 = vmatpush1.msra.mxu0 0.0
  %986 = vmatprep.subr.mxu0 0.0
  %987 = vmatpush1.msra.mxu0 0.0
  %988 = vmatprep.subr.mxu0 0.0
  %989 = vmatpush1.msra.mxu0 0.0
  %990 = vmatprep.subr.mxu0 0.0
  %991 = vmatpush1.msra.mxu0 0.0
  %992 = vmatprep.subr.mxu0 0.0
  %993 = vmatpush1.msra.mxu0 0.0
  %994 = vmatprep.subr.mxu0 0.0
  %995 = vmatpush1.msra.mxu0 0.0
  %996 = vmatprep.subr.mxu0 0.0
  %997 = vmatpush1.msra.mxu0 0.0
  %998 = vmatprep.subr.mxu0 0.0
  %999 = vmatpush1.msra.mxu0 0.0
  %1000 = vmatprep.subr.mxu0 0.0
  %1001 = vmatpush1.msra.mxu0 0.0
  %1002 = vmatprep.subr.mxu0 0.0
  %1003 = vmatpush1.msra.mxu0 0.0
  %1004 = vmatprep.subr.mxu0 0.0
  %1005 = vmatpush1.msra.mxu0 0.0
  %1006 = vmatprep.subr.mxu0 0.0
  %1007 = vmatpush1.msra.mxu0 0.0
  %1008 = vmatprep.subr.mxu0 0.0
  %1009 = vmatpush1.msra.mxu0 0.0
  %1010 = vmatprep.subr.mxu0 0.0
  %1011 = vmatpush1.msra.mxu0 0.0
  %1012 = vmatprep.subr.mxu0 0.0
  %1013 = vmatpush1.msra.mxu0 0.0
  %1014 = vmatprep.subr.mxu0 0.0
  %1015 = vmatpush1.msra.mxu0 0.0
  %1016 = vmatprep.subr.mxu0 0.0
  %1017 = vmatpush1.msra.mxu0 0.0
  %1018 = vmatprep.subr.mxu0 0.0
  %1019 = vmatpush1.msra.mxu0 0.0
  %1020 = vmatprep.subr.mxu0 0.0
  %1021 = vmatpush1.msra.mxu0 0.0
  %1022 = vmatprep.subr.mxu0 0.0
  %1023 = vmatpush1.msra.mxu0 0.0
  %1024 = vmatprep.subr.mxu0 0.0
  %1025 = vmatpush1.msra.mxu0 0.0
  %1026 = vmatprep.subr.mxu0 0.0
  %1027 = vmatpush1.msra.mxu0 0.0
  %1028 = vmatprep.subr.mxu0 0.0
  %1029 = vmatpush1.msra.mxu0 0.0
  %1030 = vmatprep.subr.mxu0 0.0
  %1031 = vmatpush1.msra.mxu0 0.0
  %1032 = vmatprep.subr.mxu0 0.0
  %1033 = vmatpush1.msra.mxu0 0.0
  %1034 = vmatprep.subr.mxu0 0.0
  %1035 = vmatpush1.msra.mxu0 0.0
  %1036 = vmatprep.subr.mxu0 0.0
  %1037 = vmatpush1.msra.mxu0 0.0
  %1038 = vmatprep.subr.mxu0 0.0
  %1039 = vmatpush1.msra.mxu0 0.0
  %1040 = vmatprep.mubr.f32.mxu0 0.0
  %1041 = vmatmul.mubr.f32.gmra.mrb[0].mxu0 %v965
  %v1042 = vpop.f32.mrb[0].mxu0
  %v1043 = vadd.f32 0.0, %v1042
  %v1044 = vpop.f32.mrb[0].mxu0
  %1045 = vmatprep.mubr.f32.mxu0 0.0
  %1046 = vmatmul.mubr.f32.gmra.mrb[0].mxu0 %v968
  %v1047 = vpop.f32.mrb[0].mxu0
  %v1048 = vadd.f32 0.0, %v1047
  %v1049 = vpop.f32.mrb[0].mxu0
  %1050 = vmatprep.mubr.f32.mxu0 0.0
  %1051 = vmatmul.mubr.f32.gmra.mrb[0].mxu0 %v971
  %v1052 = vpop.f32.mrb[0].mxu0
  %v1053 = vadd.f32 0.0, %v1052
  %v1054 = vpop.f32.mrb[0].mxu0
  %1055 = vmatprep.mubr.f32.mxu0 0.0
  %1056 = vmatmul.mubr.f32.gmra.mrb[0].mxu0 %v974
  %v1057 = vpop.f32.mrb[0].mxu0
  %v1058 = vadd.f32 0.0, %v1057
  %v1059 = vpop.f32.mrb[0].mxu0
  %1060 = vdwg.mxu0
  %v1061 = vadd.f32 %v854, %v1043
  %v1062 = vadd.f32 %v855, %v1048
  %v1063 = vadd.f32 %v856, %v1053
  %v1064 = vadd.f32 %v857, %v1058
  %s1065 = scalar_lea.vmem %s0, 160
  %v1066 = vld [vmem:[%s1065] sm:$0xff]
  %v1067 = vld [vmem:[%s1065 + $0x8] sm:$0xff]
  %v1068 = vld [vmem:[%s1065 + $0x10] sm:$0xff]
  %v1069 = vld [vmem:[%s1065 + $0x18] sm:$0xff]
  %v1071 = vsel %vm37, %v1066, 0
  %v1074 = vsel %vm37, %v1067, 0
  %v1077 = vsel %vm37, %v1068, 0
  %v1080 = vsel %vm37, %v1069, 0
  %1082 = vmatprep.subr.mxu0 0.0
  %1083 = vmatpush1.msra.mxu0 %v19
  %1084 = vmatprep.subr.mxu0 0.0
  %1085 = vmatpush1.msra.mxu0 %v20
  %1086 = vmatprep.subr.mxu0 0.0
  %1087 = vmatpush1.msra.mxu0 %v21
  %1088 = vmatprep.subr.mxu0 0.0
  %1089 = vmatpush1.msra.mxu0 %v22
  %1090 = vmatprep.subr.mxu0 0.0
  %1091 = vmatpush1.msra.mxu0 %v52
  %1092 = vmatprep.subr.mxu0 0.0
  %1093 = vmatpush1.msra.mxu0 0.0
  %1094 = vmatprep.subr.mxu0 0.0
  %1095 = vmatpush1.msra.mxu0 0.0
  %1096 = vmatprep.subr.mxu0 0.0
  %1097 = vmatpush1.msra.mxu0 0.0
  %1098 = vmatprep.subr.mxu0 0.0
  %1099 = vmatpush1.msra.mxu0 0.0
  %1100 = vmatprep.subr.mxu0 0.0
  %1101 = vmatpush1.msra.mxu0 0.0
  %1102 = vmatprep.subr.mxu0 0.0
  %1103 = vmatpush1.msra.mxu0 0.0
  %1104 = vmatprep.subr.mxu0 0.0
  %1105 = vmatpush1.msra.mxu0 0.0
  %1106 = vmatprep.subr.mxu0 0.0
  %1107 = vmatpush1.msra.mxu0 0.0
  %1108 = vmatprep.subr.mxu0 0.0
  %1109 = vmatpush1.msra.mxu0 0.0
  %1110 = vmatprep.subr.mxu0 0.0
  %1111 = vmatpush1.msra.mxu0 0.0
  %1112 = vmatprep.subr.mxu0 0.0
  %1113 = vmatpush1.msra.mxu0 0.0
  %1114 = vmatprep.subr.mxu0 0.0
  %1115 = vmatpush1.msra.mxu0 0.0
  %1116 = vmatprep.subr.mxu0 0.0
  %1117 = vmatpush1.msra.mxu0 0.0
  %1118 = vmatprep.subr.mxu0 0.0
  %1119 = vmatpush1.msra.mxu0 0.0
  %1120 = vmatprep.subr.mxu0 0.0
  %1121 = vmatpush1.msra.mxu0 0.0
  %1122 = vmatprep.subr.mxu0 0.0
  %1123 = vmatpush1.msra.mxu0 0.0
  %1124 = vmatprep.subr.mxu0 0.0
  %1125 = vmatpush1.msra.mxu0 0.0
  %1126 = vmatprep.subr.mxu0 0.0
  %1127 = vmatpush1.msra.mxu0 0.0
  %1128 = vmatprep.subr.mxu0 0.0
  %1129 = vmatpush1.msra.mxu0 0.0
  %1130 = vmatprep.subr.mxu0 0.0
  %1131 = vmatpush1.msra.mxu0 0.0
  %1132 = vmatprep.subr.mxu0 0.0
  %1133 = vmatpush1.msra.mxu0 0.0
  %1134 = vmatprep.subr.mxu0 0.0
  %1135 = vmatpush1.msra.mxu0 0.0
  %1136 = vmatprep.subr.mxu0 0.0
  %1137 = vmatpush1.msra.mxu0 0.0
  %1138 = vmatprep.subr.mxu0 0.0
  %1139 = vmatpush1.msra.mxu0 0.0
  %1140 = vmatprep.subr.mxu0 0.0
  %1141 = vmatpush1.msra.mxu0 0.0
  %1142 = vmatprep.subr.mxu0 0.0
  %1143 = vmatpush1.msra.mxu0 0.0
  %1144 = vmatprep.subr.mxu0 0.0
  %1145 = vmatpush1.msra.mxu0 0.0
  %1146 = vmatprep.mubr.f32.mxu0 0.0
  %1147 = vmatmul.mubr.f32.gmra.mrb[0].mxu0 %v1071
  %v1148 = vpop.f32.mrb[0].mxu0
  %v1149 = vadd.f32 0.0, %v1148
  %v1150 = vpop.f32.mrb[0].mxu0
  %1151 = vmatprep.mubr.f32.mxu0 0.0
  %1152 = vmatmul.mubr.f32.gmra.mrb[0].mxu0 %v1074
  %v1153 = vpop.f32.mrb[0].mxu0
  %v1154 = vadd.f32 0.0, %v1153
  %v1155 = vpop.f32.mrb[0].mxu0
  %1156 = vmatprep.mubr.f32.mxu0 0.0
  %1157 = vmatmul.mubr.f32.gmra.mrb[0].mxu0 %v1077
  %v1158 = vpop.f32.mrb[0].mxu0
  %v1159 = vadd.f32 0.0, %v1158
  %v1160 = vpop.f32.mrb[0].mxu0
  %1161 = vmatprep.mubr.f32.mxu0 0.0
  %1162 = vmatmul.mubr.f32.gmra.mrb[0].mxu0 %v1080
  %v1163 = vpop.f32.mrb[0].mxu0
  %v1164 = vadd.f32 0.0, %v1163
  %v1165 = vpop.f32.mrb[0].mxu0
  %1166 = vdwg.mxu0
  %v1167 = vmax.f32 %v1149, 0.0
  %v1168 = vmax.f32 %v1154, 0.0
  %v1169 = vmax.f32 %v1159, 0.0
  %v1170 = vmax.f32 %v1164, 0.0
  %v1172 = vsel %vm249, %v1167, 0
  %v1175 = vsel %vm249, %v1168, 0
  %v1178 = vsel %vm249, %v1169, 0
  %v1181 = vsel %vm249, %v1170, 0
  %1183 = vmatprep.subr.mxu0 0.0
  %1184 = vmatpush1.msra.mxu0 %v29
  %1185 = vmatprep.subr.mxu0 0.0
  %1186 = vmatpush1.msra.mxu0 0.0
  %1187 = vmatprep.subr.mxu0 0.0
  %1188 = vmatpush1.msra.mxu0 0.0
  %1189 = vmatprep.subr.mxu0 0.0
  %1190 = vmatpush1.msra.mxu0 0.0
  %1191 = vmatprep.subr.mxu0 0.0
  %1192 = vmatpush1.msra.mxu0 0.0
  %1193 = vmatprep.subr.mxu0 0.0
  %1194 = vmatpush1.msra.mxu0 0.0
  %1195 = vmatprep.subr.mxu0 0.0
  %1196 = vmatpush1.msra.mxu0 0.0
  %1197 = vmatprep.subr.mxu0 0.0
  %1198 = vmatpush1.msra.mxu0 0.0
  %1199 = vmatprep.subr.mxu0 0.0
  %1200 = vmatpush1.msra.mxu0 0.0
  %1201 = vmatprep.subr.mxu0 0.0
  %1202 = vmatpush1.msra.mxu0 0.0
  %1203 = vmatprep.subr.mxu0 0.0
  %1204 = vmatpush1.msra.mxu0 0.0
  %1205 = vmatprep.subr.mxu0 0.0
  %1206 = vmatpush1.msra.mxu0 0.0
  %1207 = vmatprep.subr.mxu0 0.0
  %1208 = vmatpush1.msra.mxu0 0.0
  %1209 = vmatprep.subr.mxu0 0.0
  %1210 = vmatpush1.msra.mxu0 0.0
  %1211 = vmatprep.subr.mxu0 0.0
  %1212 = vmatpush1.msra.mxu0 0.0
  %1213 = vmatprep.subr.mxu0 0.0
  %1214 = vmatpush1.msra.mxu0 0.0
  %1215 = vmatprep.subr.mxu0 0.0
  %1216 = vmatpush1.msra.mxu0 0.0
  %1217 = vmatprep.subr.mxu0 0.0
  %1218 = vmatpush1.msra.mxu0 0.0
  %1219 = vmatprep.subr.mxu0 0.0
  %1220 = vmatpush1.msra.mxu0 0.0
  %1221 = vmatprep.subr.mxu0 0.0
  %1222 = vmatpush1.msra.mxu0 0.0
  %1223 = vmatprep.subr.mxu0 0.0
  %1224 = vmatpush1.msra.mxu0 0.0
  %1225 = vmatprep.subr.mxu0 0.0
  %1226 = vmatpush1.msra.mxu0 0.0
  %1227 = vmatprep.subr.mxu0 0.0
  %1228 = vmatpush1.msra.mxu0 0.0
  %1229 = vmatprep.subr.mxu0 0.0
  %1230 = vmatpush1.msra.mxu0 0.0
  %1231 = vmatprep.subr.mxu0 0.0
  %1232 = vmatpush1.msra.mxu0 0.0
  %1233 = vmatprep.subr.mxu0 0.0
  %1234 = vmatpush1.msra.mxu0 0.0
  %1235 = vmatprep.subr.mxu0 0.0
  %1236 = vmatpush1.msra.mxu0 0.0
  %1237 = vmatprep.subr.mxu0 0.0
  %1238 = vmatpush1.msra.mxu0 0.0
  %1239 = vmatprep.subr.mxu0 0.0
  %1240 = vmatpush1.msra.mxu0 0.0
  %1241 = vmatprep.subr.mxu0 0.0
  %1242 = vmatpush1.msra.mxu0 0.0
  %1243 = vmatprep.subr.mxu0 0.0
  %1244 = vmatpush1.msra.mxu0 0.0
  %1245 = vmatprep.subr.mxu0 0.0
  %1246 = vmatpush1.msra.mxu0 0.0
  %1247 = vmatprep.mubr.f32.mxu0 0.0
  %1248 = vmatmul.mubr.f32.gmra.mrb[0].mxu0 %v1172
  %v1249 = vpop.f32.mrb[0].mxu0
  %v1250 = vadd.f32 0.0, %v1249
  %v1251 = vpop.f32.mrb[0].mxu0
  %1252 = vmatprep.mubr.f32.mxu0 0.0
  %1253 = vmatmul.mubr.f32.gmra.mrb[0].mxu0 %v1175
  %v1254 = vpop.f32.mrb[0].mxu0
  %v1255 = vadd.f32 0.0, %v1254
  %v1256 = vpop.f32.mrb[0].mxu0
  %1257 = vmatprep.mubr.f32.mxu0 0.0
  %1258 = vmatmul.mubr.f32.gmra.mrb[0].mxu0 %v1178
  %v1259 = vpop.f32.mrb[0].mxu0
  %v1260 = vadd.f32 0.0, %v1259
  %v1261 = vpop.f32.mrb[0].mxu0
  %1262 = vmatprep.mubr.f32.mxu0 0.0
  %1263 = vmatmul.mubr.f32.gmra.mrb[0].mxu0 %v1181
  %v1264 = vpop.f32.mrb[0].mxu0
  %v1265 = vadd.f32 0.0, %v1264
  %v1266 = vpop.f32.mrb[0].mxu0
  %1267 = vdwg.mxu0
  %v1268 = vadd.f32 %v1061, %v1250
  %v1269 = vadd.f32 %v1062, %v1255
  %v1270 = vadd.f32 %v1063, %v1260
  %v1271 = vadd.f32 %v1064, %v1265
  %s1272 = scalar_lea.vmem %s0, 192
  %v1273 = vld [vmem:[%s1272] sm:$0xff]
  %v1274 = vld [vmem:[%s1272 + $0x8] sm:$0xff]
  %v1275 = vld [vmem:[%s1272 + $0x10] sm:$0xff]
  %v1276 = vld [vmem:[%s1272 + $0x18] sm:$0xff]
  %v1278 = vsel %vm37, %v1273, 0
  %v1281 = vsel %vm37, %v1274, 0
  %v1284 = vsel %vm37, %v1275, 0
  %v1287 = vsel %vm37, %v1276, 0
  %1289 = vmatprep.subr.mxu0 0.0
  %1290 = vmatpush1.msra.mxu0 %v19
  %1291 = vmatprep.subr.mxu0 0.0
  %1292 = vmatpush1.msra.mxu0 %v20
  %1293 = vmatprep.subr.mxu0 0.0
  %1294 = vmatpush1.msra.mxu0 %v21
  %1295 = vmatprep.subr.mxu0 0.0
  %1296 = vmatpush1.msra.mxu0 %v22
  %1297 = vmatprep.subr.mxu0 0.0
  %1298 = vmatpush1.msra.mxu0 %v52
  %1299 = vmatprep.subr.mxu0 0.0
  %1300 = vmatpush1.msra.mxu0 0.0
  %1301 = vmatprep.subr.mxu0 0.0
  %1302 = vmatpush1.msra.mxu0 0.0
  %1303 = vmatprep.subr.mxu0 0.0
  %1304 = vmatpush1.msra.mxu0 0.0
  %1305 = vmatprep.subr.mxu0 0.0
  %1306 = vmatpush1.msra.mxu0 0.0
  %1307 = vmatprep.subr.mxu0 0.0
  %1308 = vmatpush1.msra.mxu0 0.0
  %1309 = vmatprep.subr.mxu0 0.0
  %1310 = vmatpush1.msra.mxu0 0.0
  %1311 = vmatprep.subr.mxu0 0.0
  %1312 = vmatpush1.msra.mxu0 0.0
  %1313 = vmatprep.subr.mxu0 0.0
  %1314 = vmatpush1.msra.mxu0 0.0
  %1315 = vmatprep.subr.mxu0 0.0
  %1316 = vmatpush1.msra.mxu0 0.0
  %1317 = vmatprep.subr.mxu0 0.0
  %1318 = vmatpush1.msra.mxu0 0.0
  %1319 = vmatprep.subr.mxu0 0.0
  %1320 = vmatpush1.msra.mxu0 0.0
  %1321 = vmatprep.subr.mxu0 0.0
  %1322 = vmatpush1.msra.mxu0 0.0
  %1323 = vmatprep.subr.mxu0 0.0
  %1324 = vmatpush1.msra.mxu0 0.0
  %1325 = vmatprep.subr.mxu0 0.0
  %1326 = vmatpush1.msra.mxu0 0.0
  %1327 = vmatprep.subr.mxu0 0.0
  %1328 = vmatpush1.msra.mxu0 0.0
  %1329 = vmatprep.subr.mxu0 0.0
  %1330 = vmatpush1.msra.mxu0 0.0
  %1331 = vmatprep.subr.mxu0 0.0
  %1332 = vmatpush1.msra.mxu0 0.0
  %1333 = vmatprep.subr.mxu0 0.0
  %1334 = vmatpush1.msra.mxu0 0.0
  %1335 = vmatprep.subr.mxu0 0.0
  %1336 = vmatpush1.msra.mxu0 0.0
  %1337 = vmatprep.subr.mxu0 0.0
  %1338 = vmatpush1.msra.mxu0 0.0
  %1339 = vmatprep.subr.mxu0 0.0
  %1340 = vmatpush1.msra.mxu0 0.0
  %1341 = vmatprep.subr.mxu0 0.0
  %1342 = vmatpush1.msra.mxu0 0.0
  %1343 = vmatprep.subr.mxu0 0.0
  %1344 = vmatpush1.msra.mxu0 0.0
  %1345 = vmatprep.subr.mxu0 0.0
  %1346 = vmatpush1.msra.mxu0 0.0
  %1347 = vmatprep.subr.mxu0 0.0
  %1348 = vmatpush1.msra.mxu0 0.0
  %1349 = vmatprep.subr.mxu0 0.0
  %1350 = vmatpush1.msra.mxu0 0.0
  %1351 = vmatprep.subr.mxu0 0.0
  %1352 = vmatpush1.msra.mxu0 0.0
  %1353 = vmatprep.mubr.f32.mxu0 0.0
  %1354 = vmatmul.mubr.f32.gmra.mrb[0].mxu0 %v1278
  %v1355 = vpop.f32.mrb[0].mxu0
  %v1356 = vadd.f32 0.0, %v1355
  %v1357 = vpop.f32.mrb[0].mxu0
  %1358 = vmatprep.mubr.f32.mxu0 0.0
  %1359 = vmatmul.mubr.f32.gmra.mrb[0].mxu0 %v1281
  %v1360 = vpop.f32.mrb[0].mxu0
  %v1361 = vadd.f32 0.0, %v1360
  %v1362 = vpop.f32.mrb[0].mxu0
  %1363 = vmatprep.mubr.f32.mxu0 0.0
  %1364 = vmatmul.mubr.f32.gmra.mrb[0].mxu0 %v1284
  %v1365 = vpop.f32.mrb[0].mxu0
  %v1366 = vadd.f32 0.0, %v1365
  %v1367 = vpop.f32.mrb[0].mxu0
  %1368 = vmatprep.mubr.f32.mxu0 0.0
  %1369 = vmatmul.mubr.f32.gmra.mrb[0].mxu0 %v1287
  %v1370 = vpop.f32.mrb[0].mxu0
  %v1371 = vadd.f32 0.0, %v1370
  %v1372 = vpop.f32.mrb[0].mxu0
  %1373 = vdwg.mxu0
  %v1374 = vmax.f32 %v1356, 0.0
  %v1375 = vmax.f32 %v1361, 0.0
  %v1376 = vmax.f32 %v1366, 0.0
  %v1377 = vmax.f32 %v1371, 0.0
  %v1379 = vsel %vm249, %v1374, 0
  %v1382 = vsel %vm249, %v1375, 0
  %v1385 = vsel %vm249, %v1376, 0
  %v1388 = vsel %vm249, %v1377, 0
  %1390 = vmatprep.subr.mxu0 0.0
  %1391 = vmatpush1.msra.mxu0 %v30
  %1392 = vmatprep.subr.mxu0 0.0
  %1393 = vmatpush1.msra.mxu0 0.0
  %1394 = vmatprep.subr.mxu0 0.0
  %1395 = vmatpush1.msra.mxu0 0.0
  %1396 = vmatprep.subr.mxu0 0.0
  %1397 = vmatpush1.msra.mxu0 0.0
  %1398 = vmatprep.subr.mxu0 0.0
  %1399 = vmatpush1.msra.mxu0 0.0
  %1400 = vmatprep.subr.mxu0 0.0
  %1401 = vmatpush1.msra.mxu0 0.0
  %1402 = vmatprep.subr.mxu0 0.0
  %1403 = vmatpush1.msra.mxu0 0.0
  %1404 = vmatprep.subr.mxu0 0.0
  %1405 = vmatpush1.msra.mxu0 0.0
  %1406 = vmatprep.subr.mxu0 0.0
  %1407 = vmatpush1.msra.mxu0 0.0
  %1408 = vmatprep.subr.mxu0 0.0
  %1409 = vmatpush1.msra.mxu0 0.0
  %1410 = vmatprep.subr.mxu0 0.0
  %1411 = vmatpush1.msra.mxu0 0.0
  %1412 = vmatprep.subr.mxu0 0.0
  %1413 = vmatpush1.msra.mxu0 0.0
  %1414 = vmatprep.subr.mxu0 0.0
  %1415 = vmatpush1.msra.mxu0 0.0
  %1416 = vmatprep.subr.mxu0 0.0
  %1417 = vmatpush1.msra.mxu0 0.0
  %1418 = vmatprep.subr.mxu0 0.0
  %1419 = vmatpush1.msra.mxu0 0.0
  %1420 = vmatprep.subr.mxu0 0.0
  %1421 = vmatpush1.msra.mxu0 0.0
  %1422 = vmatprep.subr.mxu0 0.0
  %1423 = vmatpush1.msra.mxu0 0.0
  %1424 = vmatprep.subr.mxu0 0.0
  %1425 = vmatpush1.msra.mxu0 0.0
  %1426 = vmatprep.subr.mxu0 0.0
  %1427 = vmatpush1.msra.mxu0 0.0
  %1428 = vmatprep.subr.mxu0 0.0
  %1429 = vmatpush1.msra.mxu0 0.0
  %1430 = vmatprep.subr.mxu0 0.0
  %1431 = vmatpush1.msra.mxu0 0.0
  %1432 = vmatprep.subr.mxu0 0.0
  %1433 = vmatpush1.msra.mxu0 0.0
  %1434 = vmatprep.subr.mxu0 0.0
  %1435 = vmatpush1.msra.mxu0 0.0
  %1436 = vmatprep.subr.mxu0 0.0
  %1437 = vmatpush1.msra.mxu0 0.0
  %1438 = vmatprep.subr.mxu0 0.0
  %1439 = vmatpush1.msra.mxu0 0.0
  %1440 = vmatprep.subr.mxu0 0.0
  %1441 = vmatpush1.msra.mxu0 0.0
  %1442 = vmatprep.subr.mxu0 0.0
  %1443 = vmatpush1.msra.mxu0 0.0
  %1444 = vmatprep.subr.mxu0 0.0
  %1445 = vmatpush1.msra.mxu0 0.0
  %1446 = vmatprep.subr.mxu0 0.0
  %1447 = vmatpush1.msra.mxu0 0.0
  %1448 = vmatprep.subr.mxu0 0.0
  %1449 = vmatpush1.msra.mxu0 0.0
  %1450 = vmatprep.subr.mxu0 0.0
  %1451 = vmatpush1.msra.mxu0 0.0
  %1452 = vmatprep.subr.mxu0 0.0
  %1453 = vmatpush1.msra.mxu0 0.0
  %1454 = vmatprep.mubr.f32.mxu0 0.0
  %1455 = vmatmul.mubr.f32.gmra.mrb[0].mxu0 %v1379
  %v1456 = vpop.f32.mrb[0].mxu0
  %v1457 = vadd.f32 0.0, %v1456
  %v1458 = vpop.f32.mrb[0].mxu0
  %1459 = vmatprep.mubr.f32.mxu0 0.0
  %1460 = vmatmul.mubr.f32.gmra.mrb[0].mxu0 %v1382
  %v1461 = vpop.f32.mrb[0].mxu0
  %v1462 = vadd.f32 0.0, %v1461
  %v1463 = vpop.f32.mrb[0].mxu0
  %1464 = vmatprep.mubr.f32.mxu0 0.0
  %1465 = vmatmul.mubr.f32.gmra.mrb[0].mxu0 %v1385
  %v1466 = vpop.f32.mrb[0].mxu0
  %v1467 = vadd.f32 0.0, %v1466
  %v1468 = vpop.f32.mrb[0].mxu0
  %1469 = vmatprep.mubr.f32.mxu0 0.0
  %1470 = vmatmul.mubr.f32.gmra.mrb[0].mxu0 %v1388
  %v1471 = vpop.f32.mrb[0].mxu0
  %v1472 = vadd.f32 0.0, %v1471
  %v1473 = vpop.f32.mrb[0].mxu0
  %1474 = vdwg.mxu0
  %v1475 = vadd.f32 %v1268, %v1457
  %v1476 = vadd.f32 %v1269, %v1462
  %v1477 = vadd.f32 %v1270, %v1467
  %v1478 = vadd.f32 %v1271, %v1472
  %s1479 = scalar_lea.vmem %s0, 224
  %v1480 = vld [vmem:[%s1479] sm:$0xff]
  %v1481 = vld [vmem:[%s1479 + $0x8] sm:$0xff]
  %v1482 = vld [vmem:[%s1479 + $0x10] sm:$0xff]
  %v1483 = vld [vmem:[%s1479 + $0x18] sm:$0xff]
  %v1485 = vsel %vm37, %v1480, 0
  %v1488 = vsel %vm37, %v1481, 0
  %v1491 = vsel %vm37, %v1482, 0
  %v1494 = vsel %vm37, %v1483, 0
  %1496 = vmatprep.subr.mxu0 0.0
  %1497 = vmatpush1.msra.mxu0 %v19
  %1498 = vmatprep.subr.mxu0 0.0
  %1499 = vmatpush1.msra.mxu0 %v20
  %1500 = vmatprep.subr.mxu0 0.0
  %1501 = vmatpush1.msra.mxu0 %v21
  %1502 = vmatprep.subr.mxu0 0.0
  %1503 = vmatpush1.msra.mxu0 %v22
  %1504 = vmatprep.subr.mxu0 0.0
  %1505 = vmatpush1.msra.mxu0 %v52
  %1506 = vmatprep.subr.mxu0 0.0
  %1507 = vmatpush1.msra.mxu0 0.0
  %1508 = vmatprep.subr.mxu0 0.0
  %1509 = vmatpush1.msra.mxu0 0.0
  %1510 = vmatprep.subr.mxu0 0.0
  %1511 = vmatpush1.msra.mxu0 0.0
  %1512 = vmatprep.subr.mxu0 0.0
  %1513 = vmatpush1.msra.mxu0 0.0
  %1514 = vmatprep.subr.mxu0 0.0
  %1515 = vmatpush1.msra.mxu0 0.0
  %1516 = vmatprep.subr.mxu0 0.0
  %1517 = vmatpush1.msra.mxu0 0.0
  %1518 = vmatprep.subr.mxu0 0.0
  %1519 = vmatpush1.msra.mxu0 0.0
  %1520 = vmatprep.subr.mxu0 0.0
  %1521 = vmatpush1.msra.mxu0 0.0
  %1522 = vmatprep.subr.mxu0 0.0
  %1523 = vmatpush1.msra.mxu0 0.0
  %1524 = vmatprep.subr.mxu0 0.0
  %1525 = vmatpush1.msra.mxu0 0.0
  %1526 = vmatprep.subr.mxu0 0.0
  %1527 = vmatpush1.msra.mxu0 0.0
  %1528 = vmatprep.subr.mxu0 0.0
  %1529 = vmatpush1.msra.mxu0 0.0
  %1530 = vmatprep.subr.mxu0 0.0
  %1531 = vmatpush1.msra.mxu0 0.0
  %1532 = vmatprep.subr.mxu0 0.0
  %1533 = vmatpush1.msra.mxu0 0.0
  %1534 = vmatprep.subr.mxu0 0.0
  %1535 = vmatpush1.msra.mxu0 0.0
  %1536 = vmatprep.subr.mxu0 0.0
  %1537 = vmatpush1.msra.mxu0 0.0
  %1538 = vmatprep.subr.mxu0 0.0
  %1539 = vmatpush1.msra.mxu0 0.0
  %1540 = vmatprep.subr.mxu0 0.0
  %1541 = vmatpush1.msra.mxu0 0.0
  %1542 = vmatprep.subr.mxu0 0.0
  %1543 = vmatpush1.msra.mxu0 0.0
  %1544 = vmatprep.subr.mxu0 0.0
  %1545 = vmatpush1.msra.mxu0 0.0
  %1546 = vmatprep.subr.mxu0 0.0
  %1547 = vmatpush1.msra.mxu0 0.0
  %1548 = vmatprep.subr.mxu0 0.0
  %1549 = vmatpush1.msra.mxu0 0.0
  %1550 = vmatprep.subr.mxu0 0.0
  %1551 = vmatpush1.msra.mxu0 0.0
  %1552 = vmatprep.subr.mxu0 0.0
  %1553 = vmatpush1.msra.mxu0 0.0
  %1554 = vmatprep.subr.mxu0 0.0
  %1555 = vmatpush1.msra.mxu0 0.0
  %1556 = vmatprep.subr.mxu0 0.0
  %1557 = vmatpush1.msra.mxu0 0.0
  %1558 = vmatprep.subr.mxu0 0.0
  %1559 = vmatpush1.msra.mxu0 0.0
  %1560 = vmatprep.mubr.f32.mxu0 0.0
  %1561 = vmatmul.mubr.f32.gmra.mrb[0].mxu0 %v1485
  %v1562 = vpop.f32.mrb[0].mxu0
  %v1563 = vadd.f32 0.0, %v1562
  %v1564 = vpop.f32.mrb[0].mxu0
  %1565 = vmatprep.mubr.f32.mxu0 0.0
  %1566 = vmatmul.mubr.f32.gmra.mrb[0].mxu0 %v1488
  %v1567 = vpop.f32.mrb[0].mxu0
  %v1568 = vadd.f32 0.0, %v1567
  %v1569 = vpop.f32.mrb[0].mxu0
  %1570 = vmatprep.mubr.f32.mxu0 0.0
  %1571 = vmatmul.mubr.f32.gmra.mrb[0].mxu0 %v1491
  %v1572 = vpop.f32.mrb[0].mxu0
  %v1573 = vadd.f32 0.0, %v1572
  %v1574 = vpop.f32.mrb[0].mxu0
  %1575 = vmatprep.mubr.f32.mxu0 0.0
  %1576 = vmatmul.mubr.f32.gmra.mrb[0].mxu0 %v1494
  %v1577 = vpop.f32.mrb[0].mxu0
  %v1578 = vadd.f32 0.0, %v1577
  %v1579 = vpop.f32.mrb[0].mxu0
  %1580 = vdwg.mxu0
  %v1581 = vmax.f32 %v1563, 0.0
  %v1582 = vmax.f32 %v1568, 0.0
  %v1583 = vmax.f32 %v1573, 0.0
  %v1584 = vmax.f32 %v1578, 0.0
  %v1586 = vsel %vm249, %v1581, 0
  %v1589 = vsel %vm249, %v1582, 0
  %v1592 = vsel %vm249, %v1583, 0
  %v1595 = vsel %vm249, %v1584, 0
  %1597 = vmatprep.subr.mxu0 0.0
  %1598 = vmatpush1.msra.mxu0 %v31
  %1599 = vmatprep.subr.mxu0 0.0
  %1600 = vmatpush1.msra.mxu0 0.0
  %1601 = vmatprep.subr.mxu0 0.0
  %1602 = vmatpush1.msra.mxu0 0.0
  %1603 = vmatprep.subr.mxu0 0.0
  %1604 = vmatpush1.msra.mxu0 0.0
  %1605 = vmatprep.subr.mxu0 0.0
  %1606 = vmatpush1.msra.mxu0 0.0
  %1607 = vmatprep.subr.mxu0 0.0
  %1608 = vmatpush1.msra.mxu0 0.0
  %1609 = vmatprep.subr.mxu0 0.0
  %1610 = vmatpush1.msra.mxu0 0.0
  %1611 = vmatprep.subr.mxu0 0.0
  %1612 = vmatpush1.msra.mxu0 0.0
  %1613 = vmatprep.subr.mxu0 0.0
  %1614 = vmatpush1.msra.mxu0 0.0
  %1615 = vmatprep.subr.mxu0 0.0
  %1616 = vmatpush1.msra.mxu0 0.0
  %1617 = vmatprep.subr.mxu0 0.0
  %1618 = vmatpush1.msra.mxu0 0.0
  %1619 = vmatprep.subr.mxu0 0.0
  %1620 = vmatpush1.msra.mxu0 0.0
  %1621 = vmatprep.subr.mxu0 0.0
  %1622 = vmatpush1.msra.mxu0 0.0
  %1623 = vmatprep.subr.mxu0 0.0
  %1624 = vmatpush1.msra.mxu0 0.0
  %1625 = vmatprep.subr.mxu0 0.0
  %1626 = vmatpush1.msra.mxu0 0.0
  %1627 = vmatprep.subr.mxu0 0.0
  %1628 = vmatpush1.msra.mxu0 0.0
  %1629 = vmatprep.subr.mxu0 0.0
  %1630 = vmatpush1.msra.mxu0 0.0
  %1631 = vmatprep.subr.mxu0 0.0
  %1632 = vmatpush1.msra.mxu0 0.0
  %1633 = vmatprep.subr.mxu0 0.0
  %1634 = vmatpush1.msra.mxu0 0.0
  %1635 = vmatprep.subr.mxu0 0.0
  %1636 = vmatpush1.msra.mxu0 0.0
  %1637 = vmatprep.subr.mxu0 0.0
  %1638 = vmatpush1.msra.mxu0 0.0
  %1639 = vmatprep.subr.mxu0 0.0
  %1640 = vmatpush1.msra.mxu0 0.0
  %1641 = vmatprep.subr.mxu0 0.0
  %1642 = vmatpush1.msra.mxu0 0.0
  %1643 = vmatprep.subr.mxu0 0.0
  %1644 = vmatpush1.msra.mxu0 0.0
  %1645 = vmatprep.subr.mxu0 0.0
  %1646 = vmatpush1.msra.mxu0 0.0
  %1647 = vmatprep.subr.mxu0 0.0
  %1648 = vmatpush1.msra.mxu0 0.0
  %1649 = vmatprep.subr.mxu0 0.0
  %1650 = vmatpush1.msra.mxu0 0.0
  %1651 = vmatprep.subr.mxu0 0.0
  %1652 = vmatpush1.msra.mxu0 0.0
  %1653 = vmatprep.subr.mxu0 0.0
  %1654 = vmatpush1.msra.mxu0 0.0
  %1655 = vmatprep.subr.mxu0 0.0
  %1656 = vmatpush1.msra.mxu0 0.0
  %1657 = vmatprep.subr.mxu0 0.0
  %1658 = vmatpush1.msra.mxu0 0.0
  %1659 = vmatprep.subr.mxu0 0.0
  %1660 = vmatpush1.msra.mxu0 0.0
  %1661 = vmatprep.mubr.f32.mxu0 0.0
  %1662 = vmatmul.mubr.f32.gmra.mrb[0].mxu0 %v1586
  %v1663 = vpop.f32.mrb[0].mxu0
  %v1664 = vadd.f32 0.0, %v1663
  %v1665 = vpop.f32.mrb[0].mxu0
  %1666 = vmatprep.mubr.f32.mxu0 0.0
  %1667 = vmatmul.mubr.f32.gmra.mrb[0].mxu0 %v1589
  %v1668 = vpop.f32.mrb[0].mxu0
  %v1669 = vadd.f32 0.0, %v1668
  %v1670 = vpop.f32.mrb[0].mxu0
  %1671 = vmatprep.mubr.f32.mxu0 0.0
  %1672 = vmatmul.mubr.f32.gmra.mrb[0].mxu0 %v1592
  %v1673 = vpop.f32.mrb[0].mxu0
  %v1674 = vadd.f32 0.0, %v1673
  %v1675 = vpop.f32.mrb[0].mxu0
  %1676 = vmatprep.mubr.f32.mxu0 0.0
  %1677 = vmatmul.mubr.f32.gmra.mrb[0].mxu0 %v1595
  %v1678 = vpop.f32.mrb[0].mxu0
  %v1679 = vadd.f32 0.0, %v1678
  %v1680 = vpop.f32.mrb[0].mxu0
  %1681 = vdwg.mxu0
  %v1682 = vadd.f32 %v1475, %v1664
  %v1683 = vadd.f32 %v1476, %v1669
  %v1684 = vadd.f32 %v1477, %v1674
  %v1685 = vadd.f32 %v1478, %v1679
  %s1686 = scalar_lea.vmem %s0, 256
  %v1687 = vld [vmem:[%s1686] sm:$0xff]
  %v1688 = vld [vmem:[%s1686 + $0x8] sm:$0xff]
  %v1689 = vld [vmem:[%s1686 + $0x10] sm:$0xff]
  %v1690 = vld [vmem:[%s1686 + $0x18] sm:$0xff]
  %v1692 = vsel %vm37, %v1687, 0
  %v1695 = vsel %vm37, %v1688, 0
  %v1698 = vsel %vm37, %v1689, 0
  %v1701 = vsel %vm37, %v1690, 0
  %1703 = vmatprep.subr.mxu0 0.0
  %1704 = vmatpush1.msra.mxu0 %v19
  %1705 = vmatprep.subr.mxu0 0.0
  %1706 = vmatpush1.msra.mxu0 %v20
  %1707 = vmatprep.subr.mxu0 0.0
  %1708 = vmatpush1.msra.mxu0 %v21
  %1709 = vmatprep.subr.mxu0 0.0
  %1710 = vmatpush1.msra.mxu0 %v22
  %1711 = vmatprep.subr.mxu0 0.0
  %1712 = vmatpush1.msra.mxu0 %v52
  %1713 = vmatprep.subr.mxu0 0.0
  %1714 = vmatpush1.msra.mxu0 0.0
  %1715 = vmatprep.subr.mxu0 0.0
  %1716 = vmatpush1.msra.mxu0 0.0
  %1717 = vmatprep.subr.mxu0 0.0
  %1718 = vmatpush1.msra.mxu0 0.0
  %1719 = vmatprep.subr.mxu0 0.0
  %1720 = vmatpush1.msra.mxu0 0.0
  %1721 = vmatprep.subr.mxu0 0.0
  %1722 = vmatpush1.msra.mxu0 0.0
  %1723 = vmatprep.subr.mxu0 0.0
  %1724 = vmatpush1.msra.mxu0 0.0
  %1725 = vmatprep.subr.mxu0 0.0
  %1726 = vmatpush1.msra.mxu0 0.0
  %1727 = vmatprep.subr.mxu0 0.0
  %1728 = vmatpush1.msra.mxu0 0.0
  %1729 = vmatprep.subr.mxu0 0.0
  %1730 = vmatpush1.msra.mxu0 0.0
  %1731 = vmatprep.subr.mxu0 0.0
  %1732 = vmatpush1.msra.mxu0 0.0
  %1733 = vmatprep.subr.mxu0 0.0
  %1734 = vmatpush1.msra.mxu0 0.0
  %1735 = vmatprep.subr.mxu0 0.0
  %1736 = vmatpush1.msra.mxu0 0.0
  %1737 = vmatprep.subr.mxu0 0.0
  %1738 = vmatpush1.msra.mxu0 0.0
  %1739 = vmatprep.subr.mxu0 0.0
  %1740 = vmatpush1.msra.mxu0 0.0
  %1741 = vmatprep.subr.mxu0 0.0
  %1742 = vmatpush1.msra.mxu0 0.0
  %1743 = vmatprep.subr.mxu0 0.0
  %1744 = vmatpush1.msra.mxu0 0.0
  %1745 = vmatprep.subr.mxu0 0.0
  %1746 = vmatpush1.msra.mxu0 0.0
  %1747 = vmatprep.subr.mxu0 0.0
  %1748 = vmatpush1.msra.mxu0 0.0
  %1749 = vmatprep.subr.mxu0 0.0
  %1750 = vmatpush1.msra.mxu0 0.0
  %1751 = vmatprep.subr.mxu0 0.0
  %1752 = vmatpush1.msra.mxu0 0.0
  %1753 = vmatprep.subr.mxu0 0.0
  %1754 = vmatpush1.msra.mxu0 0.0
  %1755 = vmatprep.subr.mxu0 0.0
  %1756 = vmatpush1.msra.mxu0 0.0
  %1757 = vmatprep.subr.mxu0 0.0
  %1758 = vmatpush1.msra.mxu0 0.0
  %1759 = vmatprep.subr.mxu0 0.0
  %1760 = vmatpush1.msra.mxu0 0.0
  %1761 = vmatprep.subr.mxu0 0.0
  %1762 = vmatpush1.msra.mxu0 0.0
  %1763 = vmatprep.subr.mxu0 0.0
  %1764 = vmatpush1.msra.mxu0 0.0
  %1765 = vmatprep.subr.mxu0 0.0
  %1766 = vmatpush1.msra.mxu0 0.0
  %1767 = vmatprep.mubr.f32.mxu0 0.0
  %1768 = vmatmul.mubr.f32.gmra.mrb[0].mxu0 %v1692
  %v1769 = vpop.f32.mrb[0].mxu0
  %v1770 = vadd.f32 0.0, %v1769
  %v1771 = vpop.f32.mrb[0].mxu0
  %1772 = vmatprep.mubr.f32.mxu0 0.0
  %1773 = vmatmul.mubr.f32.gmra.mrb[0].mxu0 %v1695
  %v1774 = vpop.f32.mrb[0].mxu0
  %v1775 = vadd.f32 0.0, %v1774
  %v1776 = vpop.f32.mrb[0].mxu0
  %1777 = vmatprep.mubr.f32.mxu0 0.0
  %1778 = vmatmul.mubr.f32.gmra.mrb[0].mxu0 %v1698
  %v1779 = vpop.f32.mrb[0].mxu0
  %v1780 = vadd.f32 0.0, %v1779
  %v1781 = vpop.f32.mrb[0].mxu0
  %1782 = vmatprep.mubr.f32.mxu0 0.0
  %1783 = vmatmul.mubr.f32.gmra.mrb[0].mxu0 %v1701
  %v1784 = vpop.f32.mrb[0].mxu0
  %v1785 = vadd.f32 0.0, %v1784
  %v1786 = vpop.f32.mrb[0].mxu0
  %1787 = vdwg.mxu0
  %v1788 = vmax.f32 %v1770, 0.0
  %v1789 = vmax.f32 %v1775, 0.0
  %v1790 = vmax.f32 %v1780, 0.0
  %v1791 = vmax.f32 %v1785, 0.0
  %v1793 = vsel %vm249, %v1788, 0
  %v1796 = vsel %vm249, %v1789, 0
  %v1799 = vsel %vm249, %v1790, 0
  %v1802 = vsel %vm249, %v1791, 0
  %1804 = vmatprep.subr.mxu0 0.0
  %1805 = vmatpush1.msra.mxu0 %v32
  %1806 = vmatprep.subr.mxu0 0.0
  %1807 = vmatpush1.msra.mxu0 0.0
  %1808 = vmatprep.subr.mxu0 0.0
  %1809 = vmatpush1.msra.mxu0 0.0
  %1810 = vmatprep.subr.mxu0 0.0
  %1811 = vmatpush1.msra.mxu0 0.0
  %1812 = vmatprep.subr.mxu0 0.0
  %1813 = vmatpush1.msra.mxu0 0.0
  %1814 = vmatprep.subr.mxu0 0.0
  %1815 = vmatpush1.msra.mxu0 0.0
  %1816 = vmatprep.subr.mxu0 0.0
  %1817 = vmatpush1.msra.mxu0 0.0
  %1818 = vmatprep.subr.mxu0 0.0
  %1819 = vmatpush1.msra.mxu0 0.0
  %1820 = vmatprep.subr.mxu0 0.0
  %1821 = vmatpush1.msra.mxu0 0.0
  %1822 = vmatprep.subr.mxu0 0.0
  %1823 = vmatpush1.msra.mxu0 0.0
  %1824 = vmatprep.subr.mxu0 0.0
  %1825 = vmatpush1.msra.mxu0 0.0
  %1826 = vmatprep.subr.mxu0 0.0
  %1827 = vmatpush1.msra.mxu0 0.0
  %1828 = vmatprep.subr.mxu0 0.0
  %1829 = vmatpush1.msra.mxu0 0.0
  %1830 = vmatprep.subr.mxu0 0.0
  %1831 = vmatpush1.msra.mxu0 0.0
  %1832 = vmatprep.subr.mxu0 0.0
  %1833 = vmatpush1.msra.mxu0 0.0
  %1834 = vmatprep.subr.mxu0 0.0
  %1835 = vmatpush1.msra.mxu0 0.0
  %1836 = vmatprep.subr.mxu0 0.0
  %1837 = vmatpush1.msra.mxu0 0.0
  %1838 = vmatprep.subr.mxu0 0.0
  %1839 = vmatpush1.msra.mxu0 0.0
  %1840 = vmatprep.subr.mxu0 0.0
  %1841 = vmatpush1.msra.mxu0 0.0
  %1842 = vmatprep.subr.mxu0 0.0
  %1843 = vmatpush1.msra.mxu0 0.0
  %1844 = vmatprep.subr.mxu0 0.0
  %1845 = vmatpush1.msra.mxu0 0.0
  %1846 = vmatprep.subr.mxu0 0.0
  %1847 = vmatpush1.msra.mxu0 0.0
  %1848 = vmatprep.subr.mxu0 0.0
  %1849 = vmatpush1.msra.mxu0 0.0
  %1850 = vmatprep.subr.mxu0 0.0
  %1851 = vmatpush1.msra.mxu0 0.0
  %1852 = vmatprep.subr.mxu0 0.0
  %1853 = vmatpush1.msra.mxu0 0.0
  %1854 = vmatprep.subr.mxu0 0.0
  %1855 = vmatpush1.msra.mxu0 0.0
  %1856 = vmatprep.subr.mxu0 0.0
  %1857 = vmatpush1.msra.mxu0 0.0
  %1858 = vmatprep.subr.mxu0 0.0
  %1859 = vmatpush1.msra.mxu0 0.0
  %1860 = vmatprep.subr.mxu0 0.0
  %1861 = vmatpush1.msra.mxu0 0.0
  %1862 = vmatprep.subr.mxu0 0.0
  %1863 = vmatpush1.msra.mxu0 0.0
  %1864 = vmatprep.subr.mxu0 0.0
  %1865 = vmatpush1.msra.mxu0 0.0
  %1866 = vmatprep.subr.mxu0 0.0
  %1867 = vmatpush1.msra.mxu0 0.0
  %1868 = vmatprep.mubr.f32.mxu0 0.0
  %1869 = vmatmul.mubr.f32.gmra.mrb[0].mxu0 %v1793
  %v1870 = vpop.f32.mrb[0].mxu0
  %v1871 = vadd.f32 0.0, %v1870
  %v1872 = vpop.f32.mrb[0].mxu0
  %1873 = vmatprep.mubr.f32.mxu0 0.0
  %1874 = vmatmul.mubr.f32.gmra.mrb[0].mxu0 %v1796
  %v1875 = vpop.f32.mrb[0].mxu0
  %v1876 = vadd.f32 0.0, %v1875
  %v1877 = vpop.f32.mrb[0].mxu0
  %1878 = vmatprep.mubr.f32.mxu0 0.0
  %1879 = vmatmul.mubr.f32.gmra.mrb[0].mxu0 %v1799
  %v1880 = vpop.f32.mrb[0].mxu0
  %v1881 = vadd.f32 0.0, %v1880
  %v1882 = vpop.f32.mrb[0].mxu0
  %1883 = vmatprep.mubr.f32.mxu0 0.0
  %1884 = vmatmul.mubr.f32.gmra.mrb[0].mxu0 %v1802
  %v1885 = vpop.f32.mrb[0].mxu0
  %v1886 = vadd.f32 0.0, %v1885
  %v1887 = vpop.f32.mrb[0].mxu0
  %1888 = vdwg.mxu0
  %v1889 = vadd.f32 %v1682, %v1871
  %v1890 = vadd.f32 %v1683, %v1876
  %v1891 = vadd.f32 %v1684, %v1881
  %v1892 = vadd.f32 %v1685, %v1886
  %v1893 = vlaneseq
  %v1894 = vshrl.u32 %v1893, 7
  %v1895 = vsub.s32 0, %v1894
  %v1896 = vrot.slane %v17, %v1895
  %v1897 = vadd.f32 %v1889, %v1896
  %v1898 = vadd.f32 %v1890, %v1896
  %v1899 = vadd.f32 %v1891, %v1896
  %v1900 = vadd.f32 %v1892, %v1896
  %v1901 = vmax.f32 %v1897, 0.0
  %v1902 = vmax.f32 %v1898, 0.0
  %v1903 = vmax.f32 %v1899, 0.0
  %v1904 = vmax.f32 %v1900, 0.0
  %v1905 = vld [vmem:[%s3 + $0x80] sm:$0x3]
  %vm1906 = vcmask 261120
  %v1908 = vsel %vm1906, %v1905, 0
  %1910 = vmatprep.subr.mxu0 0.0
  %1911 = vmatpush1.msra.mxu0 %v1901
  %1912 = vmatprep.subr.mxu0 0.0
  %1913 = vmatpush1.msra.mxu0 %v1902
  %1914 = vmatprep.subr.mxu0 0.0
  %1915 = vmatpush1.msra.mxu0 %v1903
  %1916 = vmatprep.subr.mxu0 0.0
  %1917 = vmatpush1.msra.mxu0 %v1904
  %1918 = vmatprep.subr.mxu0 0.0
  %1919 = vmatpush1.msra.mxu0 0.0
  %1920 = vmatprep.subr.mxu0 0.0
  %1921 = vmatpush1.msra.mxu0 0.0
  %1922 = vmatprep.subr.mxu0 0.0
  %1923 = vmatpush1.msra.mxu0 0.0
  %1924 = vmatprep.subr.mxu0 0.0
  %1925 = vmatpush1.msra.mxu0 0.0
  %1926 = vmatprep.subr.mxu0 0.0
  %1927 = vmatpush1.msra.mxu0 0.0
  %1928 = vmatprep.subr.mxu0 0.0
  %1929 = vmatpush1.msra.mxu0 0.0
  %1930 = vmatprep.subr.mxu0 0.0
  %1931 = vmatpush1.msra.mxu0 0.0
  %1932 = vmatprep.subr.mxu0 0.0
  %1933 = vmatpush1.msra.mxu0 0.0
  %1934 = vmatprep.subr.mxu0 0.0
  %1935 = vmatpush1.msra.mxu0 0.0
  %1936 = vmatprep.subr.mxu0 0.0
  %1937 = vmatpush1.msra.mxu0 0.0
  %1938 = vmatprep.subr.mxu0 0.0
  %1939 = vmatpush1.msra.mxu0 0.0
  %1940 = vmatprep.subr.mxu0 0.0
  %1941 = vmatpush1.msra.mxu0 0.0
  %1942 = vmatprep.subr.mxu0 0.0
  %1943 = vmatpush1.msra.mxu0 0.0
  %1944 = vmatprep.subr.mxu0 0.0
  %1945 = vmatpush1.msra.mxu0 0.0
  %1946 = vmatprep.subr.mxu0 0.0
  %1947 = vmatpush1.msra.mxu0 0.0
  %1948 = vmatprep.subr.mxu0 0.0
  %1949 = vmatpush1.msra.mxu0 0.0
  %1950 = vmatprep.subr.mxu0 0.0
  %1951 = vmatpush1.msra.mxu0 0.0
  %1952 = vmatprep.subr.mxu0 0.0
  %1953 = vmatpush1.msra.mxu0 0.0
  %1954 = vmatprep.subr.mxu0 0.0
  %1955 = vmatpush1.msra.mxu0 0.0
  %1956 = vmatprep.subr.mxu0 0.0
  %1957 = vmatpush1.msra.mxu0 0.0
  %1958 = vmatprep.subr.mxu0 0.0
  %1959 = vmatpush1.msra.mxu0 0.0
  %1960 = vmatprep.subr.mxu0 0.0
  %1961 = vmatpush1.msra.mxu0 0.0
  %1962 = vmatprep.subr.mxu0 0.0
  %1963 = vmatpush1.msra.mxu0 0.0
  %1964 = vmatprep.subr.mxu0 0.0
  %1965 = vmatpush1.msra.mxu0 0.0
  %1966 = vmatprep.subr.mxu0 0.0
  %1967 = vmatpush1.msra.mxu0 0.0
  %1968 = vmatprep.subr.mxu0 0.0
  %1969 = vmatpush1.msra.mxu0 0.0
  %1970 = vmatprep.subr.mxu0 0.0
  %1971 = vmatpush1.msra.mxu0 0.0
  %1972 = vmatprep.subr.mxu0 0.0
  %1973 = vmatpush1.msra.mxu0 0.0
  %1974 = vmatprep.mubr.f32.mxu0 0.0
  %1975 = vmatmul.mubr.f32.gmra.mrb[0].mxu0 %v1908
  %v1976 = vpop.f32.mrb[0].mxu0
  %v1977 = vadd.f32 0.0, %v1976
  %v1978 = vpop.f32.mrb[0].mxu0
  %1979 = vdwg.mxu0
  %v1980 = vld [vmem:[%s3 + $0x70] sm:$0xff]
  %v1981 = vld [vmem:[%s3 + $0x78] sm:$0xff]
  %v1982 = vlaneseq
  %v1983 = vshrl.u32 %v1982, 7
  %v1984 = vsub.s32 1, %v1983
  %v1985 = vrot.slane %v17, %v1984
  %vm1986 = vcmask 130048
  %v1988 = vsel %vm1986, %v1977, 0
  %1990 = vmatprep.subr.mxu0 0.0
  %1991 = vmatpush1.msra.mxu0 %v1980
  %1992 = vmatprep.subr.mxu0 0.0
  %1993 = vmatpush1.msra.mxu0 %v1981
  %1994 = vmatprep.subr.mxu0 0.0
  %1995 = vmatpush1.msra.mxu0 0.0
  %1996 = vmatprep.subr.mxu0 0.0
  %1997 = vmatpush1.msra.mxu0 0.0
  %1998 = vmatprep.subr.mxu0 0.0
  %1999 = vmatpush1.msra.mxu0 0.0
  %2000 = vmatprep.subr.mxu0 0.0
  %2001 = vmatpush1.msra.mxu0 0.0
  %2002 = vmatprep.subr.mxu0 0.0
  %2003 = vmatpush1.msra.mxu0 0.0
  %2004 = vmatprep.subr.mxu0 0.0
  %2005 = vmatpush1.msra.mxu0 0.0
  %2006 = vmatprep.subr.mxu0 0.0
  %2007 = vmatpush1.msra.mxu0 0.0
  %2008 = vmatprep.subr.mxu0 0.0
  %2009 = vmatpush1.msra.mxu0 0.0
  %2010 = vmatprep.subr.mxu0 0.0
  %2011 = vmatpush1.msra.mxu0 0.0
  %2012 = vmatprep.subr.mxu0 0.0
  %2013 = vmatpush1.msra.mxu0 0.0
  %2014 = vmatprep.subr.mxu0 0.0
  %2015 = vmatpush1.msra.mxu0 0.0
  %2016 = vmatprep.subr.mxu0 0.0
  %2017 = vmatpush1.msra.mxu0 0.0
  %2018 = vmatprep.subr.mxu0 0.0
  %2019 = vmatpush1.msra.mxu0 0.0
  %2020 = vmatprep.subr.mxu0 0.0
  %2021 = vmatpush1.msra.mxu0 0.0
  %2022 = vmatprep.subr.mxu0 0.0
  %2023 = vmatpush1.msra.mxu0 0.0
  %2024 = vmatprep.subr.mxu0 0.0
  %2025 = vmatpush1.msra.mxu0 0.0
  %2026 = vmatprep.subr.mxu0 0.0
  %2027 = vmatpush1.msra.mxu0 0.0
  %2028 = vmatprep.subr.mxu0 0.0
  %2029 = vmatpush1.msra.mxu0 0.0
  %2030 = vmatprep.subr.mxu0 0.0
  %2031 = vmatpush1.msra.mxu0 0.0
  %2032 = vmatprep.subr.mxu0 0.0
  %2033 = vmatpush1.msra.mxu0 0.0
  %2034 = vmatprep.subr.mxu0 0.0
  %2035 = vmatpush1.msra.mxu0 0.0
  %2036 = vmatprep.subr.mxu0 0.0
  %2037 = vmatpush1.msra.mxu0 0.0
  %2038 = vmatprep.subr.mxu0 0.0
  %2039 = vmatpush1.msra.mxu0 0.0
  %2040 = vmatprep.subr.mxu0 0.0
  %2041 = vmatpush1.msra.mxu0 0.0
  %2042 = vmatprep.subr.mxu0 0.0
  %2043 = vmatpush1.msra.mxu0 0.0
  %2044 = vmatprep.subr.mxu0 0.0
  %2045 = vmatpush1.msra.mxu0 0.0
  %2046 = vmatprep.subr.mxu0 0.0
  %2047 = vmatpush1.msra.mxu0 0.0
  %2048 = vmatprep.subr.mxu0 0.0
  %2049 = vmatpush1.msra.mxu0 0.0
  %2050 = vmatprep.subr.mxu0 0.0
  %2051 = vmatpush1.msra.mxu0 0.0
  %2052 = vmatprep.subr.mxu0 0.0
  %2053 = vmatpush1.msra.mxu0 0.0
  %2054 = vmatprep.mubr.f32.mxu0 0.0
  %2055 = vmatmul.mubr.f32.gmra.mrb[0].mxu0 %v1988
  %v2056 = vpop.f32.mrb[0].mxu0
  %v2057 = vadd.f32 %v1985, %v2056
  %v2058 = vpop.f32.mrb[0].mxu0
  %2059 = vdwg.mxu0
  %v2060 = vld [vmem:[%s1] sm:$0x3]
  %v2061 = vld [vmem:[%s3 + $0x88] sm:$0xff]
  %v2062 = vld [vmem:[%s3 + $0x90] sm:$0xff]
  %v2063 = vld [vmem:[%s3 + $0x98] sm:$0xff]
  %v2064 = vld [vmem:[%s3 + $0xa0] sm:$0xff]
  %v2065 = vld [vmem:[%s3 + $0xa8] sm:$0xff]
  %v2067 = vsel %vm249, %v2060, 0
  %2069 = vmatprep.subr.mxu0 0.0
  %2070 = vmatpush1.msra.mxu0 %v2065
  %2071 = vmatprep.subr.mxu0 0.0
  %2072 = vmatpush1.msra.mxu0 0.0
  %2073 = vmatprep.subr.mxu0 0.0
  %2074 = vmatpush1.msra.mxu0 0.0
  %2075 = vmatprep.subr.mxu0 0.0
  %2076 = vmatpush1.msra.mxu0 0.0
  %2077 = vmatprep.subr.mxu0 0.0
  %2078 = vmatpush1.msra.mxu0 0.0
  %2079 = vmatprep.subr.mxu0 0.0
  %2080 = vmatpush1.msra.mxu0 0.0
  %2081 = vmatprep.subr.mxu0 0.0
  %2082 = vmatpush1.msra.mxu0 0.0
  %2083 = vmatprep.subr.mxu0 0.0
  %2084 = vmatpush1.msra.mxu0 0.0
  %2085 = vmatprep.subr.mxu0 0.0
  %2086 = vmatpush1.msra.mxu0 0.0
  %2087 = vmatprep.subr.mxu0 0.0
  %2088 = vmatpush1.msra.mxu0 0.0
  %2089 = vmatprep.subr.mxu0 0.0
  %2090 = vmatpush1.msra.mxu0 0.0
  %2091 = vmatprep.subr.mxu0 0.0
  %2092 = vmatpush1.msra.mxu0 0.0
  %2093 = vmatprep.subr.mxu0 0.0
  %2094 = vmatpush1.msra.mxu0 0.0
  %2095 = vmatprep.subr.mxu0 0.0
  %2096 = vmatpush1.msra.mxu0 0.0
  %2097 = vmatprep.subr.mxu0 0.0
  %2098 = vmatpush1.msra.mxu0 0.0
  %2099 = vmatprep.subr.mxu0 0.0
  %2100 = vmatpush1.msra.mxu0 0.0
  %2101 = vmatprep.subr.mxu0 0.0
  %2102 = vmatpush1.msra.mxu0 0.0
  %2103 = vmatprep.subr.mxu0 0.0
  %2104 = vmatpush1.msra.mxu0 0.0
  %2105 = vmatprep.subr.mxu0 0.0
  %2106 = vmatpush1.msra.mxu0 0.0
  %2107 = vmatprep.subr.mxu0 0.0
  %2108 = vmatpush1.msra.mxu0 0.0
  %2109 = vmatprep.subr.mxu0 0.0
  %2110 = vmatpush1.msra.mxu0 0.0
  %2111 = vmatprep.subr.mxu0 0.0
  %2112 = vmatpush1.msra.mxu0 0.0
  %2113 = vmatprep.subr.mxu0 0.0
  %2114 = vmatpush1.msra.mxu0 0.0
  %2115 = vmatprep.subr.mxu0 0.0
  %2116 = vmatpush1.msra.mxu0 0.0
  %2117 = vmatprep.subr.mxu0 0.0
  %2118 = vmatpush1.msra.mxu0 0.0
  %2119 = vmatprep.subr.mxu0 0.0
  %2120 = vmatpush1.msra.mxu0 0.0
  %2121 = vmatprep.subr.mxu0 0.0
  %2122 = vmatpush1.msra.mxu0 0.0
  %2123 = vmatprep.subr.mxu0 0.0
  %2124 = vmatpush1.msra.mxu0 0.0
  %2125 = vmatprep.subr.mxu0 0.0
  %2126 = vmatpush1.msra.mxu0 0.0
  %2127 = vmatprep.subr.mxu0 0.0
  %2128 = vmatpush1.msra.mxu0 0.0
  %2129 = vmatprep.subr.mxu0 0.0
  %2130 = vmatpush1.msra.mxu0 0.0
  %2131 = vmatprep.subr.mxu0 0.0
  %2132 = vmatpush1.msra.mxu0 0.0
  %2133 = vmatprep.mubr.f32.mxu0 0.0
  %2134 = vmatmul.mubr.f32.gmra.mrb[0].mxu0 %v2067
  %v2135 = vpop.f32.mrb[0].mxu0
  %v2136 = vadd.f32 0.0, %v2135
  %v2137 = vpop.f32.mrb[0].mxu0
  %2138 = vdwg.mxu0
  %v2140 = vsel %vm1906, %v2057, 0
  %2142 = vmatprep.subr.mxu0 0.0
  %2143 = vmatpush1.msra.mxu0 %v2061
  %2144 = vmatprep.subr.mxu0 0.0
  %2145 = vmatpush1.msra.mxu0 %v2062
  %2146 = vmatprep.subr.mxu0 0.0
  %2147 = vmatpush1.msra.mxu0 %v2063
  %2148 = vmatprep.subr.mxu0 0.0
  %2149 = vmatpush1.msra.mxu0 %v2064
  %2150 = vmatprep.subr.mxu0 0.0
  %2151 = vmatpush1.msra.mxu0 0.0
  %2152 = vmatprep.subr.mxu0 0.0
  %2153 = vmatpush1.msra.mxu0 0.0
  %2154 = vmatprep.subr.mxu0 0.0
  %2155 = vmatpush1.msra.mxu0 0.0
  %2156 = vmatprep.subr.mxu0 0.0
  %2157 = vmatpush1.msra.mxu0 0.0
  %2158 = vmatprep.subr.mxu0 0.0
  %2159 = vmatpush1.msra.mxu0 0.0
  %2160 = vmatprep.subr.mxu0 0.0
  %2161 = vmatpush1.msra.mxu0 0.0
  %2162 = vmatprep.subr.mxu0 0.0
  %2163 = vmatpush1.msra.mxu0 0.0
  %2164 = vmatprep.subr.mxu0 0.0
  %2165 = vmatpush1.msra.mxu0 0.0
  %2166 = vmatprep.subr.mxu0 0.0
  %2167 = vmatpush1.msra.mxu0 0.0
  %2168 = vmatprep.subr.mxu0 0.0
  %2169 = vmatpush1.msra.mxu0 0.0
  %2170 = vmatprep.subr.mxu0 0.0
  %2171 = vmatpush1.msra.mxu0 0.0
  %2172 = vmatprep.subr.mxu0 0.0
  %2173 = vmatpush1.msra.mxu0 0.0
  %2174 = vmatprep.subr.mxu0 0.0
  %2175 = vmatpush1.msra.mxu0 0.0
  %2176 = vmatprep.subr.mxu0 0.0
  %2177 = vmatpush1.msra.mxu0 0.0
  %2178 = vmatprep.subr.mxu0 0.0
  %2179 = vmatpush1.msra.mxu0 0.0
  %2180 = vmatprep.subr.mxu0 0.0
  %2181 = vmatpush1.msra.mxu0 0.0
  %2182 = vmatprep.subr.mxu0 0.0
  %2183 = vmatpush1.msra.mxu0 0.0
  %2184 = vmatprep.subr.mxu0 0.0
  %2185 = vmatpush1.msra.mxu0 0.0
  %2186 = vmatprep.subr.mxu0 0.0
  %2187 = vmatpush1.msra.mxu0 0.0
  %2188 = vmatprep.subr.mxu0 0.0
  %2189 = vmatpush1.msra.mxu0 0.0
  %2190 = vmatprep.subr.mxu0 0.0
  %2191 = vmatpush1.msra.mxu0 0.0
  %2192 = vmatprep.subr.mxu0 0.0
  %2193 = vmatpush1.msra.mxu0 0.0
  %2194 = vmatprep.subr.mxu0 0.0
  %2195 = vmatpush1.msra.mxu0 0.0
  %2196 = vmatprep.subr.mxu0 0.0
  %2197 = vmatpush1.msra.mxu0 0.0
  %2198 = vmatprep.subr.mxu0 0.0
  %2199 = vmatpush1.msra.mxu0 0.0
  %2200 = vmatprep.subr.mxu0 0.0
  %2201 = vmatpush1.msra.mxu0 0.0
  %2202 = vmatprep.subr.mxu0 0.0
  %2203 = vmatpush1.msra.mxu0 0.0
  %2204 = vmatprep.subr.mxu0 0.0
  %2205 = vmatpush1.msra.mxu0 0.0
  %2206 = vmatprep.mubr.f32.mxu0 0.0
  %2207 = vmatmul.mubr.f32.gmra.mrb[0].mxu0 %v2140
  %v2208 = vpop.f32.mrb[0].mxu0
  %v2209 = vadd.f32 %v2136, %v2208
  %v2210 = vpop.f32.mrb[0].mxu0
  %2211 = vdwg.mxu0
  %v2212 = vlaneseq
  %v2213 = vshrl.u32 %v2212, 7
  %v2214 = vsub.s32 2, %v2213
  %v2215 = vrot.slane %v17, %v2214
  %v2216 = vadd.f32 %v2209, %v2215
  %v2217 = vmax.f32 %v2216, 0.0
  %v2218 = vld [vmem:[%s3 + $0xb0] sm:$0xff]
  %v2219 = vld [vmem:[%s3 + $0xb8] sm:$0xff]
  %v2220 = vld [vmem:[%s3 + $0xc0] sm:$0xff]
  %v2221 = vld [vmem:[%s3 + $0xc8] sm:$0xff]
  %v2222 = vlaneseq
  %v2223 = vshrl.u32 %v2222, 7
  %v2224 = vsub.s32 3, %v2223
  %v2225 = vrot.slane %v17, %v2224
  %v2227 = vsel %vm1906, %v2217, 0
  %2229 = vmatprep.subr.mxu0 0.0
  %2230 = vmatpush1.msra.mxu0 %v2218
  %2231 = vmatprep.subr.mxu0 0.0
  %2232 = vmatpush1.msra.mxu0 %v2219
  %2233 = vmatprep.subr.mxu0 0.0
  %2234 = vmatpush1.msra.mxu0 %v2220
  %2235 = vmatprep.subr.mxu0 0.0
  %2236 = vmatpush1.msra.mxu0 %v2221
  %2237 = vmatprep.subr.mxu0 0.0
  %2238 = vmatpush1.msra.mxu0 0.0
  %2239 = vmatprep.subr.mxu0 0.0
  %2240 = vmatpush1.msra.mxu0 0.0
  %2241 = vmatprep.subr.mxu0 0.0
  %2242 = vmatpush1.msra.mxu0 0.0
  %2243 = vmatprep.subr.mxu0 0.0
  %2244 = vmatpush1.msra.mxu0 0.0
  %2245 = vmatprep.subr.mxu0 0.0
  %2246 = vmatpush1.msra.mxu0 0.0
  %2247 = vmatprep.subr.mxu0 0.0
  %2248 = vmatpush1.msra.mxu0 0.0
  %2249 = vmatprep.subr.mxu0 0.0
  %2250 = vmatpush1.msra.mxu0 0.0
  %2251 = vmatprep.subr.mxu0 0.0
  %2252 = vmatpush1.msra.mxu0 0.0
  %2253 = vmatprep.subr.mxu0 0.0
  %2254 = vmatpush1.msra.mxu0 0.0
  %2255 = vmatprep.subr.mxu0 0.0
  %2256 = vmatpush1.msra.mxu0 0.0
  %2257 = vmatprep.subr.mxu0 0.0
  %2258 = vmatpush1.msra.mxu0 0.0
  %2259 = vmatprep.subr.mxu0 0.0
  %2260 = vmatpush1.msra.mxu0 0.0
  %2261 = vmatprep.subr.mxu0 0.0
  %2262 = vmatpush1.msra.mxu0 0.0
  %2263 = vmatprep.subr.mxu0 0.0
  %2264 = vmatpush1.msra.mxu0 0.0
  %2265 = vmatprep.subr.mxu0 0.0
  %2266 = vmatpush1.msra.mxu0 0.0
  %2267 = vmatprep.subr.mxu0 0.0
  %2268 = vmatpush1.msra.mxu0 0.0
  %2269 = vmatprep.subr.mxu0 0.0
  %2270 = vmatpush1.msra.mxu0 0.0
  %2271 = vmatprep.subr.mxu0 0.0
  %2272 = vmatpush1.msra.mxu0 0.0
  %2273 = vmatprep.subr.mxu0 0.0
  %2274 = vmatpush1.msra.mxu0 0.0
  %2275 = vmatprep.subr.mxu0 0.0
  %2276 = vmatpush1.msra.mxu0 0.0
  %2277 = vmatprep.subr.mxu0 0.0
  %2278 = vmatpush1.msra.mxu0 0.0
  %2279 = vmatprep.subr.mxu0 0.0
  %2280 = vmatpush1.msra.mxu0 0.0
  %2281 = vmatprep.subr.mxu0 0.0
  %2282 = vmatpush1.msra.mxu0 0.0
  %2283 = vmatprep.subr.mxu0 0.0
  %2284 = vmatpush1.msra.mxu0 0.0
  %2285 = vmatprep.subr.mxu0 0.0
  %2286 = vmatpush1.msra.mxu0 0.0
  %2287 = vmatprep.subr.mxu0 0.0
  %2288 = vmatpush1.msra.mxu0 0.0
  %2289 = vmatprep.subr.mxu0 0.0
  %2290 = vmatpush1.msra.mxu0 0.0
  %2291 = vmatprep.subr.mxu0 0.0
  %2292 = vmatpush1.msra.mxu0 0.0
  %2293 = vmatprep.mubr.f32.mxu0 0.0
  %2294 = vmatmul.mubr.f32.gmra.mrb[0].mxu0 %v2227
  %v2295 = vpop.f32.mrb[0].mxu0
  %v2296 = vadd.f32 %v2225, %v2295
  %v2297 = vpop.f32.mrb[0].mxu0
  %2298 = vdwg.mxu0
  %v2299 = vmax.f32 %v2296, 0.0
  %v2300 = vld [vmem:[%s3 + $0xd0] sm:$0xff]
  %v2301 = vld [vmem:[%s3 + $0xd8] sm:$0xff]
  %v2302 = vld [vmem:[%s3 + $0xe0] sm:$0xff]
  %v2303 = vld [vmem:[%s3 + $0xe8] sm:$0xff]
  %v2304 = vlaneseq
  %v2305 = vshrl.u32 %v2304, 7
  %v2306 = vsub.s32 4, %v2305
  %v2307 = vrot.slane %v17, %v2306
  %v2309 = vsel %vm1906, %v2299, 0
  %2311 = vmatprep.subr.mxu0 0.0
  %2312 = vmatpush1.msra.mxu0 %v2300
  %2313 = vmatprep.subr.mxu0 0.0
  %2314 = vmatpush1.msra.mxu0 %v2301
  %2315 = vmatprep.subr.mxu0 0.0
  %2316 = vmatpush1.msra.mxu0 %v2302
  %2317 = vmatprep.subr.mxu0 0.0
  %2318 = vmatpush1.msra.mxu0 %v2303
  %2319 = vmatprep.subr.mxu0 0.0
  %2320 = vmatpush1.msra.mxu0 0.0
  %2321 = vmatprep.subr.mxu0 0.0
  %2322 = vmatpush1.msra.mxu0 0.0
  %2323 = vmatprep.subr.mxu0 0.0
  %2324 = vmatpush1.msra.mxu0 0.0
  %2325 = vmatprep.subr.mxu0 0.0
  %2326 = vmatpush1.msra.mxu0 0.0
  %2327 = vmatprep.subr.mxu0 0.0
  %2328 = vmatpush1.msra.mxu0 0.0
  %2329 = vmatprep.subr.mxu0 0.0
  %2330 = vmatpush1.msra.mxu0 0.0
  %2331 = vmatprep.subr.mxu0 0.0
  %2332 = vmatpush1.msra.mxu0 0.0
  %2333 = vmatprep.subr.mxu0 0.0
  %2334 = vmatpush1.msra.mxu0 0.0
  %2335 = vmatprep.subr.mxu0 0.0
  %2336 = vmatpush1.msra.mxu0 0.0
  %2337 = vmatprep.subr.mxu0 0.0
  %2338 = vmatpush1.msra.mxu0 0.0
  %2339 = vmatprep.subr.mxu0 0.0
  %2340 = vmatpush1.msra.mxu0 0.0
  %2341 = vmatprep.subr.mxu0 0.0
  %2342 = vmatpush1.msra.mxu0 0.0
  %2343 = vmatprep.subr.mxu0 0.0
  %2344 = vmatpush1.msra.mxu0 0.0
  %2345 = vmatprep.subr.mxu0 0.0
  %2346 = vmatpush1.msra.mxu0 0.0
  %2347 = vmatprep.subr.mxu0 0.0
  %2348 = vmatpush1.msra.mxu0 0.0
  %2349 = vmatprep.subr.mxu0 0.0
  %2350 = vmatpush1.msra.mxu0 0.0
  %2351 = vmatprep.subr.mxu0 0.0
  %2352 = vmatpush1.msra.mxu0 0.0
  %2353 = vmatprep.subr.mxu0 0.0
  %2354 = vmatpush1.msra.mxu0 0.0
  %2355 = vmatprep.subr.mxu0 0.0
  %2356 = vmatpush1.msra.mxu0 0.0
  %2357 = vmatprep.subr.mxu0 0.0
  %2358 = vmatpush1.msra.mxu0 0.0
  %2359 = vmatprep.subr.mxu0 0.0
  %2360 = vmatpush1.msra.mxu0 0.0
  %2361 = vmatprep.subr.mxu0 0.0
  %2362 = vmatpush1.msra.mxu0 0.0
  %2363 = vmatprep.subr.mxu0 0.0
  %2364 = vmatpush1.msra.mxu0 0.0
  %2365 = vmatprep.subr.mxu0 0.0
  %2366 = vmatpush1.msra.mxu0 0.0
  %2367 = vmatprep.subr.mxu0 0.0
  %2368 = vmatpush1.msra.mxu0 0.0
  %2369 = vmatprep.subr.mxu0 0.0
  %2370 = vmatpush1.msra.mxu0 0.0
  %2371 = vmatprep.subr.mxu0 0.0
  %2372 = vmatpush1.msra.mxu0 0.0
  %2373 = vmatprep.subr.mxu0 0.0
  %2374 = vmatpush1.msra.mxu0 0.0
  %2375 = vmatprep.mubr.f32.mxu0 0.0
  %2376 = vmatmul.mubr.f32.gmra.mrb[0].mxu0 %v2309
  %v2377 = vpop.f32.mrb[0].mxu0
  %v2378 = vadd.f32 %v2307, %v2377
  %v2379 = vpop.f32.mrb[0].mxu0
  %2380 = vdwg.mxu0
  %vm2381 = vcmask 189440
  %2382 = vst.msk [vmem:[#allocation2] sm:$0x3] %vm2381, %v2378
  %2383 = vrot.lane.b32.xlu0 %v2060, 120
  %v2384 = vpop.permute.xlu0 %2383
  %2386 = vst.msk [vmem:[#allocation2 + $0x2] sm:$0x3] %vm2381, %v2384
  %v2387 = vld [vmem:[#allocation2] sm:$0xf]
  %v2388 = vld [vmem:[%s2] sm:$0x7]
  %v2389 = vld [vmem:[%s2 + $0x8] sm:$0x7]
  %v2390 = vld [vmem:[%s2 + $0x10] sm:$0x7]
  %s2391 = scalar_lea.vmem %s2, 4
  %v2392 = vld [vmem:[%s2391] ss:$8 sm:$0x7]
  %s2393 = scalar_lea.vmem %s2, 5
  %v2394 = vld [vmem:[%s2393] ss:$8 sm:$0x7]
  %v2395 = vld [vmem:[%s2 + $0x18] sm:$0xff]
  %v2396 = vld [vmem:[%s2 + $0x20] sm:$0xff]
  %v2397 = vld [vmem:[%s2 + $0x28] sm:$0xff]
  %v2398 = vld [vmem:[%s2 + $0x30] sm:$0xff]
  %v2399 = vld [vmem:[%s2 + $0x38] sm:$0xff]
  %v2400 = vld [vmem:[%s2 + $0x40] sm:$0xff]
  %v2402 = vlaneseq
  %v2403 = vshrl.u32 %v2402, 7
  %v2404 = vsub.s32 0, %v2403
  %v2405 = vrot.slane %v2392, %v2404
  %v2406 = vlaneseq
  %v2407 = vshrl.u32 %v2406, 7
  %v2408 = vsub.s32 1, %v2407
  %v2409 = vrot.slane %v2392, %v2408
  %v2410 = vlaneseq
  %v2411 = vshrl.u32 %v2410, 7
  %v2412 = vsub.s32 2, %v2411
  %v2413 = vrot.slane %v2392, %v2412
  %vm2417 = vcmask 23552
  %v2419 = vsel %vm2417, %v2387, 0
  %vm2421 = vcmask 1042432
  %v2423 = vsel %vm2421, %v2388, 0
  %v2426 = vsel %vm2421, %v2389, 0
  %v2429 = vsel %vm2421, %v2390, 0
  %2431 = vmatprep.subr.mxu0 %v2426
  %2432 = vmatpush1.msra.mxu0 %v2423
  %2433 = vmatprep.subr.mxu0 0.0
  %2434 = vmatpush1.msra.mxu0 0.0
  %2435 = vmatprep.subr.mxu0 0.0
  %2436 = vmatpush1.msra.mxu0 0.0
  %2437 = vmatprep.subr.mxu0 0.0
  %2438 = vmatpush1.msra.mxu0 0.0
  %2439 = vmatprep.subr.mxu0 0.0
  %2440 = vmatpush1.msra.mxu0 0.0
  %2441 = vmatprep.subr.mxu0 0.0
  %2442 = vmatpush1.msra.mxu0 0.0
  %2443 = vmatprep.subr.mxu0 0.0
  %2444 = vmatpush1.msra.mxu0 0.0
  %2445 = vmatprep.subr.mxu0 0.0
  %2446 = vmatpush1.msra.mxu0 0.0
  %2447 = vmatprep.subr.mxu0 0.0
  %2448 = vmatpush1.msra.mxu0 0.0
  %2449 = vmatprep.subr.mxu0 0.0
  %2450 = vmatpush1.msra.mxu0 0.0
  %2451 = vmatprep.subr.mxu0 0.0
  %2452 = vmatpush1.msra.mxu0 0.0
  %2453 = vmatprep.subr.mxu0 0.0
  %2454 = vmatpush1.msra.mxu0 0.0
  %2455 = vmatprep.subr.mxu0 0.0
  %2456 = vmatpush1.msra.mxu0 0.0
  %2457 = vmatprep.subr.mxu0 0.0
  %2458 = vmatpush1.msra.mxu0 0.0
  %2459 = vmatprep.subr.mxu0 0.0
  %2460 = vmatpush1.msra.mxu0 0.0
  %2461 = vmatprep.subr.mxu0 0.0
  %2462 = vmatpush1.msra.mxu0 0.0
  %2463 = vmatprep.subr.mxu0 0.0
  %2464 = vmatpush1.msra.mxu0 0.0
  %2465 = vmatprep.subr.mxu0 0.0
  %2466 = vmatpush1.msra.mxu0 0.0
  %2467 = vmatprep.subr.mxu0 0.0
  %2468 = vmatpush1.msra.mxu0 0.0
  %2469 = vmatprep.subr.mxu0 0.0
  %2470 = vmatpush1.msra.mxu0 0.0
  %2471 = vmatprep.subr.mxu0 0.0
  %2472 = vmatpush1.msra.mxu0 0.0
  %2473 = vmatprep.subr.mxu0 0.0
  %2474 = vmatpush1.msra.mxu0 0.0
  %2475 = vmatprep.subr.mxu0 0.0
  %2476 = vmatpush1.msra.mxu0 0.0
  %2477 = vmatprep.subr.mxu0 0.0
  %2478 = vmatpush1.msra.mxu0 0.0
  %2479 = vmatprep.subr.mxu0 0.0
  %2480 = vmatpush1.msra.mxu0 0.0
  %2481 = vmatprep.subr.mxu0 0.0
  %2482 = vmatpush1.msra.mxu0 0.0
  %2483 = vmatprep.subr.mxu0 0.0
  %2484 = vmatpush1.msra.mxu0 0.0
  %2485 = vmatprep.subr.mxu0 0.0
  %2486 = vmatpush1.msra.mxu0 0.0
  %2487 = vmatprep.subr.mxu0 0.0
  %2488 = vmatpush1.msra.mxu0 0.0
  %2489 = vmatprep.subr.mxu0 0.0
  %2490 = vmatpush1.msra.mxu0 0.0
  %2491 = vmatprep.subr.mxu0 0.0
  %2492 = vmatpush1.msra.mxu0 0.0
  %2493 = vmatprep.subr.mxu0 0.0
  %2494 = vmatpush1.msra.mxu0 0.0
  %2495 = vmatprep.mubr.f32.mxu0 0.0
  %2496 = vmatmul.mubr.f32.gmra.mrb[0].mxu0 %v2419
  %v2497 = vpop.f32.mrb[0].mxu0
  %v2498 = vadd.f32 %v2405, %v2497
  %v2499 = vpop.f32.mrb[0].mxu0
  %v2500 = vadd.f32 %v2409, %v2499
  %2501 = vdwg.mxu0
  %2502 = vmatprep.subr.mxu0 0.0
  %2503 = vmatpush1.msra.mxu0 %v2429
  %2504 = vmatprep.subr.mxu0 0.0
  %2505 = vmatpush1.msra.mxu0 0.0
  %2506 = vmatprep.subr.mxu0 0.0
  %2507 = vmatpush1.msra.mxu0 0.0
  %2508 = vmatprep.subr.mxu0 0.0
  %2509 = vmatpush1.msra.mxu0 0.0
  %2510 = vmatprep.subr.mxu0 0.0
  %2511 = vmatpush1.msra.mxu0 0.0
  %2512 = vmatprep.subr.mxu0 0.0
  %2513 = vmatpush1.msra.mxu0 0.0
  %2514 = vmatprep.subr.mxu0 0.0
  %2515 = vmatpush1.msra.mxu0 0.0
  %2516 = vmatprep.subr.mxu0 0.0
  %2517 = vmatpush1.msra.mxu0 0.0
  %2518 = vmatprep.subr.mxu0 0.0
  %2519 = vmatpush1.msra.mxu0 0.0
  %2520 = vmatprep.subr.mxu0 0.0
  %2521 = vmatpush1.msra.mxu0 0.0
  %2522 = vmatprep.subr.mxu0 0.0
  %2523 = vmatpush1.msra.mxu0 0.0
  %2524 = vmatprep.subr.mxu0 0.0
  %2525 = vmatpush1.msra.mxu0 0.0
  %2526 = vmatprep.subr.mxu0 0.0
  %2527 = vmatpush1.msra.mxu0 0.0
  %2528 = vmatprep.subr.mxu0 0.0
  %2529 = vmatpush1.msra.mxu0 0.0
  %2530 = vmatprep.subr.mxu0 0.0
  %2531 = vmatpush1.msra.mxu0 0.0
  %2532 = vmatprep.subr.mxu0 0.0
  %2533 = vmatpush1.msra.mxu0 0.0
  %2534 = vmatprep.subr.mxu0 0.0
  %2535 = vmatpush1.msra.mxu0 0.0
  %2536 = vmatprep.subr.mxu0 0.0
  %2537 = vmatpush1.msra.mxu0 0.0
  %2538 = vmatprep.subr.mxu0 0.0
  %2539 = vmatpush1.msra.mxu0 0.0
  %2540 = vmatprep.subr.mxu0 0.0
  %2541 = vmatpush1.msra.mxu0 0.0
  %2542 = vmatprep.subr.mxu0 0.0
  %2543 = vmatpush1.msra.mxu0 0.0
  %2544 = vmatprep.subr.mxu0 0.0
  %2545 = vmatpush1.msra.mxu0 0.0
  %2546 = vmatprep.subr.mxu0 0.0
  %2547 = vmatpush1.msra.mxu0 0.0
  %2548 = vmatprep.subr.mxu0 0.0
  %2549 = vmatpush1.msra.mxu0 0.0
  %2550 = vmatprep.subr.mxu0 0.0
  %2551 = vmatpush1.msra.mxu0 0.0
  %2552 = vmatprep.subr.mxu0 0.0
  %2553 = vmatpush1.msra.mxu0 0.0
  %2554 = vmatprep.subr.mxu0 0.0
  %2555 = vmatpush1.msra.mxu0 0.0
  %2556 = vmatprep.subr.mxu0 0.0
  %2557 = vmatpush1.msra.mxu0 0.0
  %2558 = vmatprep.subr.mxu0 0.0
  %2559 = vmatpush1.msra.mxu0 0.0
  %2560 = vmatprep.subr.mxu0 0.0
  %2561 = vmatpush1.msra.mxu0 0.0
  %2562 = vmatprep.subr.mxu0 0.0
  %2563 = vmatpush1.msra.mxu0 0.0
  %2564 = vmatprep.subr.mxu0 0.0
  %2565 = vmatpush1.msra.mxu0 0.0
  %2566 = vmatprep.mubr.f32.mxu0 0.0
  %2567 = vmatmul.mubr.f32.gmra.mrb[0].mxu0 %v2419
  %v2568 = vpop.f32.mrb[0].mxu0
  %v2569 = vadd.f32 %v2413, %v2568
  %v2570 = vpop.f32.mrb[0].mxu0
  %2571 = vdwg.mxu0
  %2572 = vrot.lane.b32.xlu0 %v2387, 125
  %v2573 = vpop.permute.xlu0 %2572
  %v2574 = vsel %vm2417, %v2573, 0
  %2576 = vmatprep.subr.mxu0 %v2426
  %2577 = vmatpush1.msra.mxu0 %v2423
  %2578 = vmatprep.subr.mxu0 0.0
  %2579 = vmatpush1.msra.mxu0 0.0
  %2580 = vmatprep.subr.mxu0 0.0
  %2581 = vmatpush1.msra.mxu0 0.0
  %2582 = vmatprep.subr.mxu0 0.0
  %2583 = vmatpush1.msra.mxu0 0.0
  %2584 = vmatprep.subr.mxu0 0.0
  %2585 = vmatpush1.msra.mxu0 0.0
  %2586 = vmatprep.subr.mxu0 0.0
  %2587 = vmatpush1.msra.mxu0 0.0
  %2588 = vmatprep.subr.mxu0 0.0
  %2589 = vmatpush1.msra.mxu0 0.0
  %2590 = vmatprep.subr.mxu0 0.0
  %2591 = vmatpush1.msra.mxu0 0.0
  %2592 = vmatprep.subr.mxu0 0.0
  %2593 = vmatpush1.msra.mxu0 0.0
  %2594 = vmatprep.subr.mxu0 0.0
  %2595 = vmatpush1.msra.mxu0 0.0
  %2596 = vmatprep.subr.mxu0 0.0
  %2597 = vmatpush1.msra.mxu0 0.0
  %2598 = vmatprep.subr.mxu0 0.0
  %2599 = vmatpush1.msra.mxu0 0.0
  %2600 = vmatprep.subr.mxu0 0.0
  %2601 = vmatpush1.msra.mxu0 0.0
  %2602 = vmatprep.subr.mxu0 0.0
  %2603 = vmatpush1.msra.mxu0 0.0
  %2604 = vmatprep.subr.mxu0 0.0
  %2605 = vmatpush1.msra.mxu0 0.0
  %2606 = vmatprep.subr.mxu0 0.0
  %2607 = vmatpush1.msra.mxu0 0.0
  %2608 = vmatprep.subr.mxu0 0.0
  %2609 = vmatpush1.msra.mxu0 0.0
  %2610 = vmatprep.subr.mxu0 0.0
  %2611 = vmatpush1.msra.mxu0 0.0
  %2612 = vmatprep.subr.mxu0 0.0
  %2613 = vmatpush1.msra.mxu0 0.0
  %2614 = vmatprep.subr.mxu0 0.0
  %2615 = vmatpush1.msra.mxu0 0.0
  %2616 = vmatprep.subr.mxu0 0.0
  %2617 = vmatpush1.msra.mxu0 0.0
  %2618 = vmatprep.subr.mxu0 0.0
  %2619 = vmatpush1.msra.mxu0 0.0
  %2620 = vmatprep.subr.mxu0 0.0
  %2621 = vmatpush1.msra.mxu0 0.0
  %2622 = vmatprep.subr.mxu0 0.0
  %2623 = vmatpush1.msra.mxu0 0.0
  %2624 = vmatprep.subr.mxu0 0.0
  %2625 = vmatpush1.msra.mxu0 0.0
  %2626 = vmatprep.subr.mxu0 0.0
  %2627 = vmatpush1.msra.mxu0 0.0
  %2628 = vmatprep.subr.mxu0 0.0
  %2629 = vmatpush1.msra.mxu0 0.0
  %2630 = vmatprep.subr.mxu0 0.0
  %2631 = vmatpush1.msra.mxu0 0.0
  %2632 = vmatprep.subr.mxu0 0.0
  %2633 = vmatpush1.msra.mxu0 0.0
  %2634 = vmatprep.subr.mxu0 0.0
  %2635 = vmatpush1.msra.mxu0 0.0
  %2636 = vmatprep.subr.mxu0 0.0
  %2637 = vmatpush1.msra.mxu0 0.0
  %2638 = vmatprep.subr.mxu0 0.0
  %2639 = vmatpush1.msra.mxu0 0.0
  %2640 = vmatprep.mubr.f32.mxu0 0.0
  %2641 = vmatmul.mubr.f32.gmra.mrb[0].mxu0 %v2574
  %v2642 = vpop.f32.mrb[0].mxu0
  %v2643 = vadd.f32 %v2405, %v2642
  %v2644 = vpop.f32.mrb[0].mxu0
  %v2645 = vadd.f32 %v2409, %v2644
  %2646 = vdwg.mxu0
  %2647 = vmatprep.subr.mxu0 0.0
  %2648 = vmatpush1.msra.mxu0 %v2429
  %2649 = vmatprep.subr.mxu0 0.0
  %2650 = vmatpush1.msra.mxu0 0.0
  %2651 = vmatprep.subr.mxu0 0.0
  %2652 = vmatpush1.msra.mxu0 0.0
  %2653 = vmatprep.subr.mxu0 0.0
  %2654 = vmatpush1.msra.mxu0 0.0
  %2655 = vmatprep.subr.mxu0 0.0
  %2656 = vmatpush1.msra.mxu0 0.0
  %2657 = vmatprep.subr.mxu0 0.0
  %2658 = vmatpush1.msra.mxu0 0.0
  %2659 = vmatprep.subr.mxu0 0.0
  %2660 = vmatpush1.msra.mxu0 0.0
  %2661 = vmatprep.subr.mxu0 0.0
  %2662 = vmatpush1.msra.mxu0 0.0
  %2663 = vmatprep.subr.mxu0 0.0
  %2664 = vmatpush1.msra.mxu0 0.0
  %2665 = vmatprep.subr.mxu0 0.0
  %2666 = vmatpush1.msra.mxu0 0.0
  %2667 = vmatprep.subr.mxu0 0.0
  %2668 = vmatpush1.msra.mxu0 0.0
  %2669 = vmatprep.subr.mxu0 0.0
  %2670 = vmatpush1.msra.mxu0 0.0
  %2671 = vmatprep.subr.mxu0 0.0
  %2672 = vmatpush1.msra.mxu0 0.0
  %2673 = vmatprep.subr.mxu0 0.0
  %2674 = vmatpush1.msra.mxu0 0.0
  %2675 = vmatprep.subr.mxu0 0.0
  %2676 = vmatpush1.msra.mxu0 0.0
  %2677 = vmatprep.subr.mxu0 0.0
  %2678 = vmatpush1.msra.mxu0 0.0
  %2679 = vmatprep.subr.mxu0 0.0
  %2680 = vmatpush1.msra.mxu0 0.0
  %2681 = vmatprep.subr.mxu0 0.0
  %2682 = vmatpush1.msra.mxu0 0.0
  %2683 = vmatprep.subr.mxu0 0.0
  %2684 = vmatpush1.msra.mxu0 0.0
  %2685 = vmatprep.subr.mxu0 0.0
  %2686 = vmatpush1.msra.mxu0 0.0
  %2687 = vmatprep.subr.mxu0 0.0
  %2688 = vmatpush1.msra.mxu0 0.0
  %2689 = vmatprep.subr.mxu0 0.0
  %2690 = vmatpush1.msra.mxu0 0.0
  %2691 = vmatprep.subr.mxu0 0.0
  %2692 = vmatpush1.msra.mxu0 0.0
  %2693 = vmatprep.subr.mxu0 0.0
  %2694 = vmatpush1.msra.mxu0 0.0
  %2695 = vmatprep.subr.mxu0 0.0
  %2696 = vmatpush1.msra.mxu0 0.0
  %2697 = vmatprep.subr.mxu0 0.0
  %2698 = vmatpush1.msra.mxu0 0.0
  %2699 = vmatprep.subr.mxu0 0.0
  %2700 = vmatpush1.msra.mxu0 0.0
  %2701 = vmatprep.subr.mxu0 0.0
  %2702 = vmatpush1.msra.mxu0 0.0
  %2703 = vmatprep.subr.mxu0 0.0
  %2704 = vmatpush1.msra.mxu0 0.0
  %2705 = vmatprep.subr.mxu0 0.0
  %2706 = vmatpush1.msra.mxu0 0.0
  %2707 = vmatprep.subr.mxu0 0.0
  %2708 = vmatpush1.msra.mxu0 0.0
  %2709 = vmatprep.subr.mxu0 0.0
  %2710 = vmatpush1.msra.mxu0 0.0
  %2711 = vmatprep.mubr.f32.mxu0 0.0
  %2712 = vmatmul.mubr.f32.gmra.mrb[0].mxu0 %v2574
  %v2713 = vpop.f32.mrb[0].mxu0
  %v2714 = vadd.f32 %v2413, %v2713
  %v2715 = vpop.f32.mrb[0].mxu0
  %2716 = vdwg.mxu0
  %2717 = vrot.lane.b32.xlu0 %v2387, 122
  %v2718 = vpop.permute.xlu0 %2717
  %v2719 = vsel %vm2417, %v2718, 0
  %2721 = vmatprep.subr.mxu0 %v2426
  %2722 = vmatpush1.msra.mxu0 %v2423
  %2723 = vmatprep.subr.mxu0 0.0
  %2724 = vmatpush1.msra.mxu0 0.0
  %2725 = vmatprep.subr.mxu0 0.0
  %2726 = vmatpush1.msra.mxu0 0.0
  %2727 = vmatprep.subr.mxu0 0.0
  %2728 = vmatpush1.msra.mxu0 0.0
  %2729 = vmatprep.subr.mxu0 0.0
  %2730 = vmatpush1.msra.mxu0 0.0
  %2731 = vmatprep.subr.mxu0 0.0
  %2732 = vmatpush1.msra.mxu0 0.0
  %2733 = vmatprep.subr.mxu0 0.0
  %2734 = vmatpush1.msra.mxu0 0.0
  %2735 = vmatprep.subr.mxu0 0.0
  %2736 = vmatpush1.msra.mxu0 0.0
  %2737 = vmatprep.subr.mxu0 0.0
  %2738 = vmatpush1.msra.mxu0 0.0
  %2739 = vmatprep.subr.mxu0 0.0
  %2740 = vmatpush1.msra.mxu0 0.0
  %2741 = vmatprep.subr.mxu0 0.0
  %2742 = vmatpush1.msra.mxu0 0.0
  %2743 = vmatprep.subr.mxu0 0.0
  %2744 = vmatpush1.msra.mxu0 0.0
  %2745 = vmatprep.subr.mxu0 0.0
  %2746 = vmatpush1.msra.mxu0 0.0
  %2747 = vmatprep.subr.mxu0 0.0
  %2748 = vmatpush1.msra.mxu0 0.0
  %2749 = vmatprep.subr.mxu0 0.0
  %2750 = vmatpush1.msra.mxu0 0.0
  %2751 = vmatprep.subr.mxu0 0.0
  %2752 = vmatpush1.msra.mxu0 0.0
  %2753 = vmatprep.subr.mxu0 0.0
  %2754 = vmatpush1.msra.mxu0 0.0
  %2755 = vmatprep.subr.mxu0 0.0
  %2756 = vmatpush1.msra.mxu0 0.0
  %2757 = vmatprep.subr.mxu0 0.0
  %2758 = vmatpush1.msra.mxu0 0.0
  %2759 = vmatprep.subr.mxu0 0.0
  %2760 = vmatpush1.msra.mxu0 0.0
  %2761 = vmatprep.subr.mxu0 0.0
  %2762 = vmatpush1.msra.mxu0 0.0
  %2763 = vmatprep.subr.mxu0 0.0
  %2764 = vmatpush1.msra.mxu0 0.0
  %2765 = vmatprep.subr.mxu0 0.0
  %2766 = vmatpush1.msra.mxu0 0.0
  %2767 = vmatprep.subr.mxu0 0.0
  %2768 = vmatpush1.msra.mxu0 0.0
  %2769 = vmatprep.subr.mxu0 0.0
  %2770 = vmatpush1.msra.mxu0 0.0
  %2771 = vmatprep.subr.mxu0 0.0
  %2772 = vmatpush1.msra.mxu0 0.0
  %2773 = vmatprep.subr.mxu0 0.0
  %2774 = vmatpush1.msra.mxu0 0.0
  %2775 = vmatprep.subr.mxu0 0.0
  %2776 = vmatpush1.msra.mxu0 0.0
  %2777 = vmatprep.subr.mxu0 0.0
  %2778 = vmatpush1.msra.mxu0 0.0
  %2779 = vmatprep.subr.mxu0 0.0
  %2780 = vmatpush1.msra.mxu0 0.0
  %2781 = vmatprep.subr.mxu0 0.0
  %2782 = vmatpush1.msra.mxu0 0.0
  %2783 = vmatprep.subr.mxu0 0.0
  %2784 = vmatpush1.msra.mxu0 0.0
  %2785 = vmatprep.mubr.f32.mxu0 0.0
  %2786 = vmatmul.mubr.f32.gmra.mrb[0].mxu0 %v2719
  %v2787 = vpop.f32.mrb[0].mxu0
  %v2788 = vadd.f32 %v2405, %v2787
  %v2789 = vpop.f32.mrb[0].mxu0
  %v2790 = vadd.f32 %v2409, %v2789
  %2791 = vdwg.mxu0
  %2792 = vmatprep.subr.mxu0 0.0
  %2793 = vmatpush1.msra.mxu0 %v2429
  %2794 = vmatprep.subr.mxu0 0.0
  %2795 = vmatpush1.msra.mxu0 0.0
  %2796 = vmatprep.subr.mxu0 0.0
  %2797 = vmatpush1.msra.mxu0 0.0
  %2798 = vmatprep.subr.mxu0 0.0
  %2799 = vmatpush1.msra.mxu0 0.0
  %2800 = vmatprep.subr.mxu0 0.0
  %2801 = vmatpush1.msra.mxu0 0.0
  %2802 = vmatprep.subr.mxu0 0.0
  %2803 = vmatpush1.msra.mxu0 0.0
  %2804 = vmatprep.subr.mxu0 0.0
  %2805 = vmatpush1.msra.mxu0 0.0
  %2806 = vmatprep.subr.mxu0 0.0
  %2807 = vmatpush1.msra.mxu0 0.0
  %2808 = vmatprep.subr.mxu0 0.0
  %2809 = vmatpush1.msra.mxu0 0.0
  %2810 = vmatprep.subr.mxu0 0.0
  %2811 = vmatpush1.msra.mxu0 0.0
  %2812 = vmatprep.subr.mxu0 0.0
  %2813 = vmatpush1.msra.mxu0 0.0
  %2814 = vmatprep.subr.mxu0 0.0
  %2815 = vmatpush1.msra.mxu0 0.0
  %2816 = vmatprep.subr.mxu0 0.0
  %2817 = vmatpush1.msra.mxu0 0.0
  %2818 = vmatprep.subr.mxu0 0.0
  %2819 = vmatpush1.msra.mxu0 0.0
  %2820 = vmatprep.subr.mxu0 0.0
  %2821 = vmatpush1.msra.mxu0 0.0
  %2822 = vmatprep.subr.mxu0 0.0
  %2823 = vmatpush1.msra.mxu0 0.0
  %2824 = vmatprep.subr.mxu0 0.0
  %2825 = vmatpush1.msra.mxu0 0.0
  %2826 = vmatprep.subr.mxu0 0.0
  %2827 = vmatpush1.msra.mxu0 0.0
  %2828 = vmatprep.subr.mxu0 0.0
  %2829 = vmatpush1.msra.mxu0 0.0
  %2830 = vmatprep.subr.mxu0 0.0
  %2831 = vmatpush1.msra.mxu0 0.0
  %2832 = vmatprep.subr.mxu0 0.0
  %2833 = vmatpush1.msra.mxu0 0.0
  %2834 = vmatprep.subr.mxu0 0.0
  %2835 = vmatpush1.msra.mxu0 0.0
  %2836 = vmatprep.subr.mxu0 0.0
  %2837 = vmatpush1.msra.mxu0 0.0
  %2838 = vmatprep.subr.mxu0 0.0
  %2839 = vmatpush1.msra.mxu0 0.0
  %2840 = vmatprep.subr.mxu0 0.0
  %2841 = vmatpush1.msra.mxu0 0.0
  %2842 = vmatprep.subr.mxu0 0.0
  %2843 = vmatpush1.msra.mxu0 0.0
  %2844 = vmatprep.subr.mxu0 0.0
  %2845 = vmatpush1.msra.mxu0 0.0
  %2846 = vmatprep.subr.mxu0 0.0
  %2847 = vmatpush1.msra.mxu0 0.0
  %2848 = vmatprep.subr.mxu0 0.0
  %2849 = vmatpush1.msra.mxu0 0.0
  %2850 = vmatprep.subr.mxu0 0.0
  %2851 = vmatpush1.msra.mxu0 0.0
  %2852 = vmatprep.subr.mxu0 0.0
  %2853 = vmatpush1.msra.mxu0 0.0
  %2854 = vmatprep.subr.mxu0 0.0
  %2855 = vmatpush1.msra.mxu0 0.0
  %2856 = vmatprep.mubr.f32.mxu0 0.0
  %2857 = vmatmul.mubr.f32.gmra.mrb[0].mxu0 %v2719
  %v2858 = vpop.f32.mrb[0].mxu0
  %v2859 = vadd.f32 %v2413, %v2858
  %v2860 = vpop.f32.mrb[0].mxu0
  %2861 = vdwg.mxu0
  %2862 = vrot.lane.b32.xlu0 %v2387, 119
  %v2863 = vpop.permute.xlu0 %2862
  %v2864 = vsel %vm2417, %v2863, 0
  %2866 = vmatprep.subr.mxu0 %v2426
  %2867 = vmatpush1.msra.mxu0 %v2423
  %2868 = vmatprep.subr.mxu0 0.0
  %2869 = vmatpush1.msra.mxu0 0.0
  %2870 = vmatprep.subr.mxu0 0.0
  %2871 = vmatpush1.msra.mxu0 0.0
  %2872 = vmatprep.subr.mxu0 0.0
  %2873 = vmatpush1.msra.mxu0 0.0
  %2874 = vmatprep.subr.mxu0 0.0
  %2875 = vmatpush1.msra.mxu0 0.0
  %2876 = vmatprep.subr.mxu0 0.0
  %2877 = vmatpush1.msra.mxu0 0.0
  %2878 = vmatprep.subr.mxu0 0.0
  %2879 = vmatpush1.msra.mxu0 0.0
  %2880 = vmatprep.subr.mxu0 0.0
  %2881 = vmatpush1.msra.mxu0 0.0
  %2882 = vmatprep.subr.mxu0 0.0
  %2883 = vmatpush1.msra.mxu0 0.0
  %2884 = vmatprep.subr.mxu0 0.0
  %2885 = vmatpush1.msra.mxu0 0.0
  %2886 = vmatprep.subr.mxu0 0.0
  %2887 = vmatpush1.msra.mxu0 0.0
  %2888 = vmatprep.subr.mxu0 0.0
  %2889 = vmatpush1.msra.mxu0 0.0
  %2890 = vmatprep.subr.mxu0 0.0
  %2891 = vmatpush1.msra.mxu0 0.0
  %2892 = vmatprep.subr.mxu0 0.0
  %2893 = vmatpush1.msra.mxu0 0.0
  %2894 = vmatprep.subr.mxu0 0.0
  %2895 = vmatpush1.msra.mxu0 0.0
  %2896 = vmatprep.subr.mxu0 0.0
  %2897 = vmatpush1.msra.mxu0 0.0
  %2898 = vmatprep.subr.mxu0 0.0
  %2899 = vmatpush1.msra.mxu0 0.0
  %2900 = vmatprep.subr.mxu0 0.0
  %2901 = vmatpush1.msra.mxu0 0.0
  %2902 = vmatprep.subr.mxu0 0.0
  %2903 = vmatpush1.msra.mxu0 0.0
  %2904 = vmatprep.subr.mxu0 0.0
  %2905 = vmatpush1.msra.mxu0 0.0
  %2906 = vmatprep.subr.mxu0 0.0
  %2907 = vmatpush1.msra.mxu0 0.0
  %2908 = vmatprep.subr.mxu0 0.0
  %2909 = vmatpush1.msra.mxu0 0.0
  %2910 = vmatprep.subr.mxu0 0.0
  %2911 = vmatpush1.msra.mxu0 0.0
  %2912 = vmatprep.subr.mxu0 0.0
  %2913 = vmatpush1.msra.mxu0 0.0
  %2914 = vmatprep.subr.mxu0 0.0
  %2915 = vmatpush1.msra.mxu0 0.0
  %2916 = vmatprep.subr.mxu0 0.0
  %2917 = vmatpush1.msra.mxu0 0.0
  %2918 = vmatprep.subr.mxu0 0.0
  %2919 = vmatpush1.msra.mxu0 0.0
  %2920 = vmatprep.subr.mxu0 0.0
  %2921 = vmatpush1.msra.mxu0 0.0
  %2922 = vmatprep.subr.mxu0 0.0
  %2923 = vmatpush1.msra.mxu0 0.0
  %2924 = vmatprep.subr.mxu0 0.0
  %2925 = vmatpush1.msra.mxu0 0.0
  %2926 = vmatprep.subr.mxu0 0.0
  %2927 = vmatpush1.msra.mxu0 0.0
  %2928 = vmatprep.subr.mxu0 0.0
  %2929 = vmatpush1.msra.mxu0 0.0
  %2930 = vmatprep.mubr.f32.mxu0 0.0
  %2931 = vmatmul.mubr.f32.gmra.mrb[0].mxu0 %v2864
  %v2932 = vpop.f32.mrb[0].mxu0
  %v2933 = vadd.f32 %v2405, %v2932
  %v2934 = vpop.f32.mrb[0].mxu0
  %v2935 = vadd.f32 %v2409, %v2934
  %2936 = vdwg.mxu0
  %2937 = vmatprep.subr.mxu0 0.0
  %2938 = vmatpush1.msra.mxu0 %v2429
  %2939 = vmatprep.subr.mxu0 0.0
  %2940 = vmatpush1.msra.mxu0 0.0
  %2941 = vmatprep.subr.mxu0 0.0
  %2942 = vmatpush1.msra.mxu0 0.0
  %2943 = vmatprep.subr.mxu0 0.0
  %2944 = vmatpush1.msra.mxu0 0.0
  %2945 = vmatprep.subr.mxu0 0.0
  %2946 = vmatpush1.msra.mxu0 0.0
  %2947 = vmatprep.subr.mxu0 0.0
  %2948 = vmatpush1.msra.mxu0 0.0
  %2949 = vmatprep.subr.mxu0 0.0
  %2950 = vmatpush1.msra.mxu0 0.0
  %2951 = vmatprep.subr.mxu0 0.0
  %2952 = vmatpush1.msra.mxu0 0.0
  %2953 = vmatprep.subr.mxu0 0.0
  %2954 = vmatpush1.msra.mxu0 0.0
  %2955 = vmatprep.subr.mxu0 0.0
  %2956 = vmatpush1.msra.mxu0 0.0
  %2957 = vmatprep.subr.mxu0 0.0
  %2958 = vmatpush1.msra.mxu0 0.0
  %2959 = vmatprep.subr.mxu0 0.0
  %2960 = vmatpush1.msra.mxu0 0.0
  %2961 = vmatprep.subr.mxu0 0.0
  %2962 = vmatpush1.msra.mxu0 0.0
  %2963 = vmatprep.subr.mxu0 0.0
  %2964 = vmatpush1.msra.mxu0 0.0
  %2965 = vmatprep.subr.mxu0 0.0
  %2966 = vmatpush1.msra.mxu0 0.0
  %2967 = vmatprep.subr.mxu0 0.0
  %2968 = vmatpush1.msra.mxu0 0.0
  %2969 = vmatprep.subr.mxu0 0.0
  %2970 = vmatpush1.msra.mxu0 0.0
  %2971 = vmatprep.subr.mxu0 0.0
  %2972 = vmatpush1.msra.mxu0 0.0
  %2973 = vmatprep.subr.mxu0 0.0
  %2974 = vmatpush1.msra.mxu0 0.0
  %2975 = vmatprep.subr.mxu0 0.0
  %2976 = vmatpush1.msra.mxu0 0.0
  %2977 = vmatprep.subr.mxu0 0.0
  %2978 = vmatpush1.msra.mxu0 0.0
  %2979 = vmatprep.subr.mxu0 0.0
  %2980 = vmatpush1.msra.mxu0 0.0
  %2981 = vmatprep.subr.mxu0 0.0
  %2982 = vmatpush1.msra.mxu0 0.0
  %2983 = vmatprep.subr.mxu0 0.0
  %2984 = vmatpush1.msra.mxu0 0.0
  %2985 = vmatprep.subr.mxu0 0.0
  %2986 = vmatpush1.msra.mxu0 0.0
  %2987 = vmatprep.subr.mxu0 0.0
  %2988 = vmatpush1.msra.mxu0 0.0
  %2989 = vmatprep.subr.mxu0 0.0
  %2990 = vmatpush1.msra.mxu0 0.0
  %2991 = vmatprep.subr.mxu0 0.0
  %2992 = vmatpush1.msra.mxu0 0.0
  %2993 = vmatprep.subr.mxu0 0.0
  %2994 = vmatpush1.msra.mxu0 0.0
  %2995 = vmatprep.subr.mxu0 0.0
  %2996 = vmatpush1.msra.mxu0 0.0
  %2997 = vmatprep.subr.mxu0 0.0
  %2998 = vmatpush1.msra.mxu0 0.0
  %2999 = vmatprep.subr.mxu0 0.0
  %3000 = vmatpush1.msra.mxu0 0.0
  %3001 = vmatprep.mubr.f32.mxu0 0.0
  %3002 = vmatmul.mubr.f32.gmra.mrb[0].mxu0 %v2864
  %v3003 = vpop.f32.mrb[0].mxu0
  %v3004 = vadd.f32 %v2413, %v3003
  %v3005 = vpop.f32.mrb[0].mxu0
  %3006 = vdwg.mxu0
  %3007 = vrot.lane.b32.xlu0 %v2387, 116
  %v3008 = vpop.permute.xlu0 %3007
  %v3009 = vsel %vm2417, %v3008, 0
  %3011 = vmatprep.subr.mxu0 %v2426
  %3012 = vmatpush1.msra.mxu0 %v2423
  %3013 = vmatprep.subr.mxu0 0.0
  %3014 = vmatpush1.msra.mxu0 0.0
  %3015 = vmatprep.subr.mxu0 0.0
  %3016 = vmatpush1.msra.mxu0 0.0
  %3017 = vmatprep.subr.mxu0 0.0
  %3018 = vmatpush1.msra.mxu0 0.0
  %3019 = vmatprep.subr.mxu0 0.0
  %3020 = vmatpush1.msra.mxu0 0.0
  %3021 = vmatprep.subr.mxu0 0.0
  %3022 = vmatpush1.msra.mxu0 0.0
  %3023 = vmatprep.subr.mxu0 0.0
  %3024 = vmatpush1.msra.mxu0 0.0
  %3025 = vmatprep.subr.mxu0 0.0
  %3026 = vmatpush1.msra.mxu0 0.0
  %3027 = vmatprep.subr.mxu0 0.0
  %3028 = vmatpush1.msra.mxu0 0.0
  %3029 = vmatprep.subr.mxu0 0.0
  %3030 = vmatpush1.msra.mxu0 0.0
  %3031 = vmatprep.subr.mxu0 0.0
  %3032 = vmatpush1.msra.mxu0 0.0
  %3033 = vmatprep.subr.mxu0 0.0
  %3034 = vmatpush1.msra.mxu0 0.0
  %3035 = vmatprep.subr.mxu0 0.0
  %3036 = vmatpush1.msra.mxu0 0.0
  %3037 = vmatprep.subr.mxu0 0.0
  %3038 = vmatpush1.msra.mxu0 0.0
  %3039 = vmatprep.subr.mxu0 0.0
  %3040 = vmatpush1.msra.mxu0 0.0
  %3041 = vmatprep.subr.mxu0 0.0
  %3042 = vmatpush1.msra.mxu0 0.0
  %3043 = vmatprep.subr.mxu0 0.0
  %3044 = vmatpush1.msra.mxu0 0.0
  %3045 = vmatprep.subr.mxu0 0.0
  %3046 = vmatpush1.msra.mxu0 0.0
  %3047 = vmatprep.subr.mxu0 0.0
  %3048 = vmatpush1.msra.mxu0 0.0
  %3049 = vmatprep.subr.mxu0 0.0
  %3050 = vmatpush1.msra.mxu0 0.0
  %3051 = vmatprep.subr.mxu0 0.0
  %3052 = vmatpush1.msra.mxu0 0.0
  %3053 = vmatprep.subr.mxu0 0.0
  %3054 = vmatpush1.msra.mxu0 0.0
  %3055 = vmatprep.subr.mxu0 0.0
  %3056 = vmatpush1.msra.mxu0 0.0
  %3057 = vmatprep.subr.mxu0 0.0
  %3058 = vmatpush1.msra.mxu0 0.0
  %3059 = vmatprep.subr.mxu0 0.0
  %3060 = vmatpush1.msra.mxu0 0.0
  %3061 = vmatprep.subr.mxu0 0.0
  %3062 = vmatpush1.msra.mxu0 0.0
  %3063 = vmatprep.subr.mxu0 0.0
  %3064 = vmatpush1.msra.mxu0 0.0
  %3065 = vmatprep.subr.mxu0 0.0
  %3066 = vmatpush1.msra.mxu0 0.0
  %3067 = vmatprep.subr.mxu0 0.0
  %3068 = vmatpush1.msra.mxu0 0.0
  %3069 = vmatprep.subr.mxu0 0.0
  %3070 = vmatpush1.msra.mxu0 0.0
  %3071 = vmatprep.subr.mxu0 0.0
  %3072 = vmatpush1.msra.mxu0 0.0
  %3073 = vmatprep.subr.mxu0 0.0
  %3074 = vmatpush1.msra.mxu0 0.0
  %3075 = vmatprep.mubr.f32.mxu0 0.0
  %3076 = vmatmul.mubr.f32.gmra.mrb[0].mxu0 %v3009
  %v3077 = vpop.f32.mrb[0].mxu0
  %v3078 = vadd.f32 %v2405, %v3077
  %v3079 = vpop.f32.mrb[0].mxu0
  %v3080 = vadd.f32 %v2409, %v3079
  %3081 = vdwg.mxu0
  %3082 = vmatprep.subr.mxu0 0.0
  %3083 = vmatpush1.msra.mxu0 %v2429
  %3084 = vmatprep.subr.mxu0 0.0
  %3085 = vmatpush1.msra.mxu0 0.0
  %3086 = vmatprep.subr.mxu0 0.0
  %3087 = vmatpush1.msra.mxu0 0.0
  %3088 = vmatprep.subr.mxu0 0.0
  %3089 = vmatpush1.msra.mxu0 0.0
  %3090 = vmatprep.subr.mxu0 0.0
  %3091 = vmatpush1.msra.mxu0 0.0
  %3092 = vmatprep.subr.mxu0 0.0
  %3093 = vmatpush1.msra.mxu0 0.0
  %3094 = vmatprep.subr.mxu0 0.0
  %3095 = vmatpush1.msra.mxu0 0.0
  %3096 = vmatprep.subr.mxu0 0.0
  %3097 = vmatpush1.msra.mxu0 0.0
  %3098 = vmatprep.subr.mxu0 0.0
  %3099 = vmatpush1.msra.mxu0 0.0
  %3100 = vmatprep.subr.mxu0 0.0
  %3101 = vmatpush1.msra.mxu0 0.0
  %3102 = vmatprep.subr.mxu0 0.0
  %3103 = vmatpush1.msra.mxu0 0.0
  %3104 = vmatprep.subr.mxu0 0.0
  %3105 = vmatpush1.msra.mxu0 0.0
  %3106 = vmatprep.subr.mxu0 0.0
  %3107 = vmatpush1.msra.mxu0 0.0
  %3108 = vmatprep.subr.mxu0 0.0
  %3109 = vmatpush1.msra.mxu0 0.0
  %3110 = vmatprep.subr.mxu0 0.0
  %3111 = vmatpush1.msra.mxu0 0.0
  %3112 = vmatprep.subr.mxu0 0.0
  %3113 = vmatpush1.msra.mxu0 0.0
  %3114 = vmatprep.subr.mxu0 0.0
  %3115 = vmatpush1.msra.mxu0 0.0
  %3116 = vmatprep.subr.mxu0 0.0
  %3117 = vmatpush1.msra.mxu0 0.0
  %3118 = vmatprep.subr.mxu0 0.0
  %3119 = vmatpush1.msra.mxu0 0.0
  %3120 = vmatprep.subr.mxu0 0.0
  %3121 = vmatpush1.msra.mxu0 0.0
  %3122 = vmatprep.subr.mxu0 0.0
  %3123 = vmatpush1.msra.mxu0 0.0
  %3124 = vmatprep.subr.mxu0 0.0
  %3125 = vmatpush1.msra.mxu0 0.0
  %3126 = vmatprep.subr.mxu0 0.0
  %3127 = vmatpush1.msra.mxu0 0.0
  %3128 = vmatprep.subr.mxu0 0.0
  %3129 = vmatpush1.msra.mxu0 0.0
  %3130 = vmatprep.subr.mxu0 0.0
  %3131 = vmatpush1.msra.mxu0 0.0
  %3132 = vmatprep.subr.mxu0 0.0
  %3133 = vmatpush1.msra.mxu0 0.0
  %3134 = vmatprep.subr.mxu0 0.0
  %3135 = vmatpush1.msra.mxu0 0.0
  %3136 = vmatprep.subr.mxu0 0.0
  %3137 = vmatpush1.msra.mxu0 0.0
  %3138 = vmatprep.subr.mxu0 0.0
  %3139 = vmatpush1.msra.mxu0 0.0
  %3140 = vmatprep.subr.mxu0 0.0
  %3141 = vmatpush1.msra.mxu0 0.0
  %3142 = vmatprep.subr.mxu0 0.0
  %3143 = vmatpush1.msra.mxu0 0.0
  %3144 = vmatprep.subr.mxu0 0.0
  %3145 = vmatpush1.msra.mxu0 0.0
  %3146 = vmatprep.mubr.f32.mxu0 0.0
  %3147 = vmatmul.mubr.f32.gmra.mrb[0].mxu0 %v3009
  %v3148 = vpop.f32.mrb[0].mxu0
  %v3149 = vadd.f32 %v2413, %v3148
  %v3150 = vpop.f32.mrb[0].mxu0
  %3151 = vdwg.mxu0
  %3152 = vrot.lane.b32.xlu0 %v2387, 113
  %v3153 = vpop.permute.xlu0 %3152
  %v3154 = vsel %vm2417, %v3153, 0
  %3156 = vmatprep.subr.mxu0 %v2426
  %3157 = vmatpush1.msra.mxu0 %v2423
  %3158 = vmatprep.subr.mxu0 0.0
  %3159 = vmatpush1.msra.mxu0 0.0
  %3160 = vmatprep.subr.mxu0 0.0
  %3161 = vmatpush1.msra.mxu0 0.0
  %3162 = vmatprep.subr.mxu0 0.0
  %3163 = vmatpush1.msra.mxu0 0.0
  %3164 = vmatprep.subr.mxu0 0.0
  %3165 = vmatpush1.msra.mxu0 0.0
  %3166 = vmatprep.subr.mxu0 0.0
  %3167 = vmatpush1.msra.mxu0 0.0
  %3168 = vmatprep.subr.mxu0 0.0
  %3169 = vmatpush1.msra.mxu0 0.0
  %3170 = vmatprep.subr.mxu0 0.0
  %3171 = vmatpush1.msra.mxu0 0.0
  %3172 = vmatprep.subr.mxu0 0.0
  %3173 = vmatpush1.msra.mxu0 0.0
  %3174 = vmatprep.subr.mxu0 0.0
  %3175 = vmatpush1.msra.mxu0 0.0
  %3176 = vmatprep.subr.mxu0 0.0
  %3177 = vmatpush1.msra.mxu0 0.0
  %3178 = vmatprep.subr.mxu0 0.0
  %3179 = vmatpush1.msra.mxu0 0.0
  %3180 = vmatprep.subr.mxu0 0.0
  %3181 = vmatpush1.msra.mxu0 0.0
  %3182 = vmatprep.subr.mxu0 0.0
  %3183 = vmatpush1.msra.mxu0 0.0
  %3184 = vmatprep.subr.mxu0 0.0
  %3185 = vmatpush1.msra.mxu0 0.0
  %3186 = vmatprep.subr.mxu0 0.0
  %3187 = vmatpush1.msra.mxu0 0.0
  %3188 = vmatprep.subr.mxu0 0.0
  %3189 = vmatpush1.msra.mxu0 0.0
  %3190 = vmatprep.subr.mxu0 0.0
  %3191 = vmatpush1.msra.mxu0 0.0
  %3192 = vmatprep.subr.mxu0 0.0
  %3193 = vmatpush1.msra.mxu0 0.0
  %3194 = vmatprep.subr.mxu0 0.0
  %3195 = vmatpush1.msra.mxu0 0.0
  %3196 = vmatprep.subr.mxu0 0.0
  %3197 = vmatpush1.msra.mxu0 0.0
  %3198 = vmatprep.subr.mxu0 0.0
  %3199 = vmatpush1.msra.mxu0 0.0
  %3200 = vmatprep.subr.mxu0 0.0
  %3201 = vmatpush1.msra.mxu0 0.0
  %3202 = vmatprep.subr.mxu0 0.0
  %3203 = vmatpush1.msra.mxu0 0.0
  %3204 = vmatprep.subr.mxu0 0.0
  %3205 = vmatpush1.msra.mxu0 0.0
  %3206 = vmatprep.subr.mxu0 0.0
  %3207 = vmatpush1.msra.mxu0 0.0
  %3208 = vmatprep.subr.mxu0 0.0
  %3209 = vmatpush1.msra.mxu0 0.0
  %3210 = vmatprep.subr.mxu0 0.0
  %3211 = vmatpush1.msra.mxu0 0.0
  %3212 = vmatprep.subr.mxu0 0.0
  %3213 = vmatpush1.msra.mxu0 0.0
  %3214 = vmatprep.subr.mxu0 0.0
  %3215 = vmatpush1.msra.mxu0 0.0
  %3216 = vmatprep.subr.mxu0 0.0
  %3217 = vmatpush1.msra.mxu0 0.0
  %3218 = vmatprep.subr.mxu0 0.0
  %3219 = vmatpush1.msra.mxu0 0.0
  %3220 = vmatprep.mubr.f32.mxu0 0.0
  %3221 = vmatmul.mubr.f32.gmra.mrb[0].mxu0 %v3154
  %v3222 = vpop.f32.mrb[0].mxu0
  %v3223 = vadd.f32 %v2405, %v3222
  %v3224 = vpop.f32.mrb[0].mxu0
  %v3225 = vadd.f32 %v2409, %v3224
  %3226 = vdwg.mxu0
  %3227 = vmatprep.subr.mxu0 0.0
  %3228 = vmatpush1.msra.mxu0 %v2429
  %3229 = vmatprep.subr.mxu0 0.0
  %3230 = vmatpush1.msra.mxu0 0.0
  %3231 = vmatprep.subr.mxu0 0.0
  %3232 = vmatpush1.msra.mxu0 0.0
  %3233 = vmatprep.subr.mxu0 0.0
  %3234 = vmatpush1.msra.mxu0 0.0
  %3235 = vmatprep.subr.mxu0 0.0
  %3236 = vmatpush1.msra.mxu0 0.0
  %3237 = vmatprep.subr.mxu0 0.0
  %3238 = vmatpush1.msra.mxu0 0.0
  %3239 = vmatprep.subr.mxu0 0.0
  %3240 = vmatpush1.msra.mxu0 0.0
  %3241 = vmatprep.subr.mxu0 0.0
  %3242 = vmatpush1.msra.mxu0 0.0
  %3243 = vmatprep.subr.mxu0 0.0
  %3244 = vmatpush1.msra.mxu0 0.0
  %3245 = vmatprep.subr.mxu0 0.0
  %3246 = vmatpush1.msra.mxu0 0.0
  %3247 = vmatprep.subr.mxu0 0.0
  %3248 = vmatpush1.msra.mxu0 0.0
  %3249 = vmatprep.subr.mxu0 0.0
  %3250 = vmatpush1.msra.mxu0 0.0
  %3251 = vmatprep.subr.mxu0 0.0
  %3252 = vmatpush1.msra.mxu0 0.0
  %3253 = vmatprep.subr.mxu0 0.0
  %3254 = vmatpush1.msra.mxu0 0.0
  %3255 = vmatprep.subr.mxu0 0.0
  %3256 = vmatpush1.msra.mxu0 0.0
  %3257 = vmatprep.subr.mxu0 0.0
  %3258 = vmatpush1.msra.mxu0 0.0
  %3259 = vmatprep.subr.mxu0 0.0
  %3260 = vmatpush1.msra.mxu0 0.0
  %3261 = vmatprep.subr.mxu0 0.0
  %3262 = vmatpush1.msra.mxu0 0.0
  %3263 = vmatprep.subr.mxu0 0.0
  %3264 = vmatpush1.msra.mxu0 0.0
  %3265 = vmatprep.subr.mxu0 0.0
  %3266 = vmatpush1.msra.mxu0 0.0
  %3267 = vmatprep.subr.mxu0 0.0
  %3268 = vmatpush1.msra.mxu0 0.0
  %3269 = vmatprep.subr.mxu0 0.0
  %3270 = vmatpush1.msra.mxu0 0.0
  %3271 = vmatprep.subr.mxu0 0.0
  %3272 = vmatpush1.msra.mxu0 0.0
  %3273 = vmatprep.subr.mxu0 0.0
  %3274 = vmatpush1.msra.mxu0 0.0
  %3275 = vmatprep.subr.mxu0 0.0
  %3276 = vmatpush1.msra.mxu0 0.0
  %3277 = vmatprep.subr.mxu0 0.0
  %3278 = vmatpush1.msra.mxu0 0.0
  %3279 = vmatprep.subr.mxu0 0.0
  %3280 = vmatpush1.msra.mxu0 0.0
  %3281 = vmatprep.subr.mxu0 0.0
  %3282 = vmatpush1.msra.mxu0 0.0
  %3283 = vmatprep.subr.mxu0 0.0
  %3284 = vmatpush1.msra.mxu0 0.0
  %3285 = vmatprep.subr.mxu0 0.0
  %3286 = vmatpush1.msra.mxu0 0.0
  %3287 = vmatprep.subr.mxu0 0.0
  %3288 = vmatpush1.msra.mxu0 0.0
  %3289 = vmatprep.subr.mxu0 0.0
  %3290 = vmatpush1.msra.mxu0 0.0
  %3291 = vmatprep.mubr.f32.mxu0 0.0
  %3292 = vmatmul.mubr.f32.gmra.mrb[0].mxu0 %v3154
  %v3293 = vpop.f32.mrb[0].mxu0
  %v3294 = vadd.f32 %v2413, %v3293
  %v3295 = vpop.f32.mrb[0].mxu0
  %3296 = vdwg.mxu0
  %3297 = vrot.lane.b32.xlu0 %v2387, 110
  %v3298 = vpop.permute.xlu0 %3297
  %v3299 = vsel %vm2417, %v3298, 0
  %3301 = vmatprep.subr.mxu0 %v2426
  %3302 = vmatpush1.msra.mxu0 %v2423
  %3303 = vmatprep.subr.mxu0 0.0
  %3304 = vmatpush1.msra.mxu0 0.0
  %3305 = vmatprep.subr.mxu0 0.0
  %3306 = vmatpush1.msra.mxu0 0.0
  %3307 = vmatprep.subr.mxu0 0.0
  %3308 = vmatpush1.msra.mxu0 0.0
  %3309 = vmatprep.subr.mxu0 0.0
  %3310 = vmatpush1.msra.mxu0 0.0
  %3311 = vmatprep.subr.mxu0 0.0
  %3312 = vmatpush1.msra.mxu0 0.0
  %3313 = vmatprep.subr.mxu0 0.0
  %3314 = vmatpush1.msra.mxu0 0.0
  %3315 = vmatprep.subr.mxu0 0.0
  %3316 = vmatpush1.msra.mxu0 0.0
  %3317 = vmatprep.subr.mxu0 0.0
  %3318 = vmatpush1.msra.mxu0 0.0
  %3319 = vmatprep.subr.mxu0 0.0
  %3320 = vmatpush1.msra.mxu0 0.0
  %3321 = vmatprep.subr.mxu0 0.0
  %3322 = vmatpush1.msra.mxu0 0.0
  %3323 = vmatprep.subr.mxu0 0.0
  %3324 = vmatpush1.msra.mxu0 0.0
  %3325 = vmatprep.subr.mxu0 0.0
  %3326 = vmatpush1.msra.mxu0 0.0
  %3327 = vmatprep.subr.mxu0 0.0
  %3328 = vmatpush1.msra.mxu0 0.0
  %3329 = vmatprep.subr.mxu0 0.0
  %3330 = vmatpush1.msra.mxu0 0.0
  %3331 = vmatprep.subr.mxu0 0.0
  %3332 = vmatpush1.msra.mxu0 0.0
  %3333 = vmatprep.subr.mxu0 0.0
  %3334 = vmatpush1.msra.mxu0 0.0
  %3335 = vmatprep.subr.mxu0 0.0
  %3336 = vmatpush1.msra.mxu0 0.0
  %3337 = vmatprep.subr.mxu0 0.0
  %3338 = vmatpush1.msra.mxu0 0.0
  %3339 = vmatprep.subr.mxu0 0.0
  %3340 = vmatpush1.msra.mxu0 0.0
  %3341 = vmatprep.subr.mxu0 0.0
  %3342 = vmatpush1.msra.mxu0 0.0
  %3343 = vmatprep.subr.mxu0 0.0
  %3344 = vmatpush1.msra.mxu0 0.0
  %3345 = vmatprep.subr.mxu0 0.0
  %3346 = vmatpush1.msra.mxu0 0.0
  %3347 = vmatprep.subr.mxu0 0.0
  %3348 = vmatpush1.msra.mxu0 0.0
  %3349 = vmatprep.subr.mxu0 0.0
  %3350 = vmatpush1.msra.mxu0 0.0
  %3351 = vmatprep.subr.mxu0 0.0
  %3352 = vmatpush1.msra.mxu0 0.0
  %3353 = vmatprep.subr.mxu0 0.0
  %3354 = vmatpush1.msra.mxu0 0.0
  %3355 = vmatprep.subr.mxu0 0.0
  %3356 = vmatpush1.msra.mxu0 0.0
  %3357 = vmatprep.subr.mxu0 0.0
  %3358 = vmatpush1.msra.mxu0 0.0
  %3359 = vmatprep.subr.mxu0 0.0
  %3360 = vmatpush1.msra.mxu0 0.0
  %3361 = vmatprep.subr.mxu0 0.0
  %3362 = vmatpush1.msra.mxu0 0.0
  %3363 = vmatprep.subr.mxu0 0.0
  %3364 = vmatpush1.msra.mxu0 0.0
  %3365 = vmatprep.mubr.f32.mxu0 0.0
  %3366 = vmatmul.mubr.f32.gmra.mrb[0].mxu0 %v3299
  %v3367 = vpop.f32.mrb[0].mxu0
  %v3368 = vadd.f32 %v2405, %v3367
  %v3369 = vpop.f32.mrb[0].mxu0
  %v3370 = vadd.f32 %v2409, %v3369
  %3371 = vdwg.mxu0
  %3372 = vmatprep.subr.mxu0 0.0
  %3373 = vmatpush1.msra.mxu0 %v2429
  %3374 = vmatprep.subr.mxu0 0.0
  %3375 = vmatpush1.msra.mxu0 0.0
  %3376 = vmatprep.subr.mxu0 0.0
  %3377 = vmatpush1.msra.mxu0 0.0
  %3378 = vmatprep.subr.mxu0 0.0
  %3379 = vmatpush1.msra.mxu0 0.0
  %3380 = vmatprep.subr.mxu0 0.0
  %3381 = vmatpush1.msra.mxu0 0.0
  %3382 = vmatprep.subr.mxu0 0.0
  %3383 = vmatpush1.msra.mxu0 0.0
  %3384 = vmatprep.subr.mxu0 0.0
  %3385 = vmatpush1.msra.mxu0 0.0
  %3386 = vmatprep.subr.mxu0 0.0
  %3387 = vmatpush1.msra.mxu0 0.0
  %3388 = vmatprep.subr.mxu0 0.0
  %3389 = vmatpush1.msra.mxu0 0.0
  %3390 = vmatprep.subr.mxu0 0.0
  %3391 = vmatpush1.msra.mxu0 0.0
  %3392 = vmatprep.subr.mxu0 0.0
  %3393 = vmatpush1.msra.mxu0 0.0
  %3394 = vmatprep.subr.mxu0 0.0
  %3395 = vmatpush1.msra.mxu0 0.0
  %3396 = vmatprep.subr.mxu0 0.0
  %3397 = vmatpush1.msra.mxu0 0.0
  %3398 = vmatprep.subr.mxu0 0.0
  %3399 = vmatpush1.msra.mxu0 0.0
  %3400 = vmatprep.subr.mxu0 0.0
  %3401 = vmatpush1.msra.mxu0 0.0
  %3402 = vmatprep.subr.mxu0 0.0
  %3403 = vmatpush1.msra.mxu0 0.0
  %3404 = vmatprep.subr.mxu0 0.0
  %3405 = vmatpush1.msra.mxu0 0.0
  %3406 = vmatprep.subr.mxu0 0.0
  %3407 = vmatpush1.msra.mxu0 0.0
  %3408 = vmatprep.subr.mxu0 0.0
  %3409 = vmatpush1.msra.mxu0 0.0
  %3410 = vmatprep.subr.mxu0 0.0
  %3411 = vmatpush1.msra.mxu0 0.0
  %3412 = vmatprep.subr.mxu0 0.0
  %3413 = vmatpush1.msra.mxu0 0.0
  %3414 = vmatprep.subr.mxu0 0.0
  %3415 = vmatpush1.msra.mxu0 0.0
  %3416 = vmatprep.subr.mxu0 0.0
  %3417 = vmatpush1.msra.mxu0 0.0
  %3418 = vmatprep.subr.mxu0 0.0
  %3419 = vmatpush1.msra.mxu0 0.0
  %3420 = vmatprep.subr.mxu0 0.0
  %3421 = vmatpush1.msra.mxu0 0.0
  %3422 = vmatprep.subr.mxu0 0.0
  %3423 = vmatpush1.msra.mxu0 0.0
  %3424 = vmatprep.subr.mxu0 0.0
  %3425 = vmatpush1.msra.mxu0 0.0
  %3426 = vmatprep.subr.mxu0 0.0
  %3427 = vmatpush1.msra.mxu0 0.0
  %3428 = vmatprep.subr.mxu0 0.0
  %3429 = vmatpush1.msra.mxu0 0.0
  %3430 = vmatprep.subr.mxu0 0.0
  %3431 = vmatpush1.msra.mxu0 0.0
  %3432 = vmatprep.subr.mxu0 0.0
  %3433 = vmatpush1.msra.mxu0 0.0
  %3434 = vmatprep.subr.mxu0 0.0
  %3435 = vmatpush1.msra.mxu0 0.0
  %3436 = vmatprep.mubr.f32.mxu0 0.0
  %3437 = vmatmul.mubr.f32.gmra.mrb[0].mxu0 %v3299
  %v3438 = vpop.f32.mrb[0].mxu0
  %v3439 = vadd.f32 %v2413, %v3438
  %v3440 = vpop.f32.mrb[0].mxu0
  %3441 = vdwg.mxu0
  %3442 = vrot.lane.b32.xlu0 %v2387, 107
  %v3443 = vpop.permute.xlu0 %3442
  %v3444 = vsel %vm2417, %v3443, 0
  %3446 = vmatprep.subr.mxu0 %v2426
  %3447 = vmatpush1.msra.mxu0 %v2423
  %3448 = vmatprep.subr.mxu0 0.0
  %3449 = vmatpush1.msra.mxu0 0.0
  %3450 = vmatprep.subr.mxu0 0.0
  %3451 = vmatpush1.msra.mxu0 0.0
  %3452 = vmatprep.subr.mxu0 0.0
  %3453 = vmatpush1.msra.mxu0 0.0
  %3454 = vmatprep.subr.mxu0 0.0
  %3455 = vmatpush1.msra.mxu0 0.0
  %3456 = vmatprep.subr.mxu0 0.0
  %3457 = vmatpush1.msra.mxu0 0.0
  %3458 = vmatprep.subr.mxu0 0.0
  %3459 = vmatpush1.msra.mxu0 0.0
  %3460 = vmatprep.subr.mxu0 0.0
  %3461 = vmatpush1.msra.mxu0 0.0
  %3462 = vmatprep.subr.mxu0 0.0
  %3463 = vmatpush1.msra.mxu0 0.0
  %3464 = vmatprep.subr.mxu0 0.0
  %3465 = vmatpush1.msra.mxu0 0.0
  %3466 = vmatprep.subr.mxu0 0.0
  %3467 = vmatpush1.msra.mxu0 0.0
  %3468 = vmatprep.subr.mxu0 0.0
  %3469 = vmatpush1.msra.mxu0 0.0
  %3470 = vmatprep.subr.mxu0 0.0
  %3471 = vmatpush1.msra.mxu0 0.0
  %3472 = vmatprep.subr.mxu0 0.0
  %3473 = vmatpush1.msra.mxu0 0.0
  %3474 = vmatprep.subr.mxu0 0.0
  %3475 = vmatpush1.msra.mxu0 0.0
  %3476 = vmatprep.subr.mxu0 0.0
  %3477 = vmatpush1.msra.mxu0 0.0
  %3478 = vmatprep.subr.mxu0 0.0
  %3479 = vmatpush1.msra.mxu0 0.0
  %3480 = vmatprep.subr.mxu0 0.0
  %3481 = vmatpush1.msra.mxu0 0.0
  %3482 = vmatprep.subr.mxu0 0.0
  %3483 = vmatpush1.msra.mxu0 0.0
  %3484 = vmatprep.subr.mxu0 0.0
  %3485 = vmatpush1.msra.mxu0 0.0
  %3486 = vmatprep.subr.mxu0 0.0
  %3487 = vmatpush1.msra.mxu0 0.0
  %3488 = vmatprep.subr.mxu0 0.0
  %3489 = vmatpush1.msra.mxu0 0.0
  %3490 = vmatprep.subr.mxu0 0.0
  %3491 = vmatpush1.msra.mxu0 0.0
  %3492 = vmatprep.subr.mxu0 0.0
  %3493 = vmatpush1.msra.mxu0 0.0
  %3494 = vmatprep.subr.mxu0 0.0
  %3495 = vmatpush1.msra.mxu0 0.0
  %3496 = vmatprep.subr.mxu0 0.0
  %3497 = vmatpush1.msra.mxu0 0.0
  %3498 = vmatprep.subr.mxu0 0.0
  %3499 = vmatpush1.msra.mxu0 0.0
  %3500 = vmatprep.subr.mxu0 0.0
  %3501 = vmatpush1.msra.mxu0 0.0
  %3502 = vmatprep.subr.mxu0 0.0
  %3503 = vmatpush1.msra.mxu0 0.0
  %3504 = vmatprep.subr.mxu0 0.0
  %3505 = vmatpush1.msra.mxu0 0.0
  %3506 = vmatprep.subr.mxu0 0.0
  %3507 = vmatpush1.msra.mxu0 0.0
  %3508 = vmatprep.subr.mxu0 0.0
  %3509 = vmatpush1.msra.mxu0 0.0
  %3510 = vmatprep.mubr.f32.mxu0 0.0
  %3511 = vmatmul.mubr.f32.gmra.mrb[0].mxu0 %v3444
  %v3512 = vpop.f32.mrb[0].mxu0
  %v3513 = vadd.f32 %v2405, %v3512
  %v3514 = vpop.f32.mrb[0].mxu0
  %v3515 = vadd.f32 %v2409, %v3514
  %3516 = vdwg.mxu0
  %3517 = vmatprep.subr.mxu0 0.0
  %3518 = vmatpush1.msra.mxu0 %v2429
  %3519 = vmatprep.subr.mxu0 0.0
  %3520 = vmatpush1.msra.mxu0 0.0
  %3521 = vmatprep.subr.mxu0 0.0
  %3522 = vmatpush1.msra.mxu0 0.0
  %3523 = vmatprep.subr.mxu0 0.0
  %3524 = vmatpush1.msra.mxu0 0.0
  %3525 = vmatprep.subr.mxu0 0.0
  %3526 = vmatpush1.msra.mxu0 0.0
  %3527 = vmatprep.subr.mxu0 0.0
  %3528 = vmatpush1.msra.mxu0 0.0
  %3529 = vmatprep.subr.mxu0 0.0
  %3530 = vmatpush1.msra.mxu0 0.0
  %3531 = vmatprep.subr.mxu0 0.0
  %3532 = vmatpush1.msra.mxu0 0.0
  %3533 = vmatprep.subr.mxu0 0.0
  %3534 = vmatpush1.msra.mxu0 0.0
  %3535 = vmatprep.subr.mxu0 0.0
  %3536 = vmatpush1.msra.mxu0 0.0
  %3537 = vmatprep.subr.mxu0 0.0
  %3538 = vmatpush1.msra.mxu0 0.0
  %3539 = vmatprep.subr.mxu0 0.0
  %3540 = vmatpush1.msra.mxu0 0.0
  %3541 = vmatprep.subr.mxu0 0.0
  %3542 = vmatpush1.msra.mxu0 0.0
  %3543 = vmatprep.subr.mxu0 0.0
  %3544 = vmatpush1.msra.mxu0 0.0
  %3545 = vmatprep.subr.mxu0 0.0
  %3546 = vmatpush1.msra.mxu0 0.0
  %3547 = vmatprep.subr.mxu0 0.0
  %3548 = vmatpush1.msra.mxu0 0.0
  %3549 = vmatprep.subr.mxu0 0.0
  %3550 = vmatpush1.msra.mxu0 0.0
  %3551 = vmatprep.subr.mxu0 0.0
  %3552 = vmatpush1.msra.mxu0 0.0
  %3553 = vmatprep.subr.mxu0 0.0
  %3554 = vmatpush1.msra.mxu0 0.0
  %3555 = vmatprep.subr.mxu0 0.0
  %3556 = vmatpush1.msra.mxu0 0.0
  %3557 = vmatprep.subr.mxu0 0.0
  %3558 = vmatpush1.msra.mxu0 0.0
  %3559 = vmatprep.subr.mxu0 0.0
  %3560 = vmatpush1.msra.mxu0 0.0
  %3561 = vmatprep.subr.mxu0 0.0
  %3562 = vmatpush1.msra.mxu0 0.0
  %3563 = vmatprep.subr.mxu0 0.0
  %3564 = vmatpush1.msra.mxu0 0.0
  %3565 = vmatprep.subr.mxu0 0.0
  %3566 = vmatpush1.msra.mxu0 0.0
  %3567 = vmatprep.subr.mxu0 0.0
  %3568 = vmatpush1.msra.mxu0 0.0
  %3569 = vmatprep.subr.mxu0 0.0
  %3570 = vmatpush1.msra.mxu0 0.0
  %3571 = vmatprep.subr.mxu0 0.0
  %3572 = vmatpush1.msra.mxu0 0.0
  %3573 = vmatprep.subr.mxu0 0.0
  %3574 = vmatpush1.msra.mxu0 0.0
  %3575 = vmatprep.subr.mxu0 0.0
  %3576 = vmatpush1.msra.mxu0 0.0
  %3577 = vmatprep.subr.mxu0 0.0
  %3578 = vmatpush1.msra.mxu0 0.0
  %3579 = vmatprep.subr.mxu0 0.0
  %3580 = vmatpush1.msra.mxu0 0.0
  %3581 = vmatprep.mubr.f32.mxu0 0.0
  %3582 = vmatmul.mubr.f32.gmra.mrb[0].mxu0 %v3444
  %v3583 = vpop.f32.mrb[0].mxu0
  %v3584 = vadd.f32 %v2413, %v3583
  %v3585 = vpop.f32.mrb[0].mxu0
  %3586 = vdwg.mxu0
  %v3588 = vlaneseq
  %v3589 = vshrl.u32 %v3588, 7
  %v3590 = vsub.s32 0, %v3589
  %v3591 = vrot.slane %v2394, %v3590
  %v3592 = vlaneseq
  %v3593 = vshrl.u32 %v3592, 7
  %v3594 = vsub.s32 1, %v3593
  %v3595 = vrot.slane %v2394, %v3594
  %v3596 = vlaneseq
  %v3597 = vshrl.u32 %v3596, 7
  %v3598 = vsub.s32 2, %v3597
  %v3599 = vrot.slane %v2394, %v3598
  %v3604 = vsel %vm1986, 0.0, 0
  %3606 = vmatprep.subr.mxu0 %v2396
  %3607 = vmatpush1.msra.mxu0 %v2395
  %3608 = vmatprep.subr.mxu0 %v2399
  %3609 = vmatpush1.msra.mxu0 %v2398
  %3610 = vmatprep.subr.mxu0 0.0
  %3611 = vmatpush1.msra.mxu0 0.0
  %3612 = vmatprep.subr.mxu0 0.0
  %3613 = vmatpush1.msra.mxu0 0.0
  %3614 = vmatprep.subr.mxu0 0.0
  %3615 = vmatpush1.msra.mxu0 0.0
  %3616 = vmatprep.subr.mxu0 0.0
  %3617 = vmatpush1.msra.mxu0 0.0
  %3618 = vmatprep.subr.mxu0 0.0
  %3619 = vmatpush1.msra.mxu0 0.0
  %3620 = vmatprep.subr.mxu0 0.0
  %3621 = vmatpush1.msra.mxu0 0.0
  %3622 = vmatprep.subr.mxu0 0.0
  %3623 = vmatpush1.msra.mxu0 0.0
  %3624 = vmatprep.subr.mxu0 0.0
  %3625 = vmatpush1.msra.mxu0 0.0
  %3626 = vmatprep.subr.mxu0 0.0
  %3627 = vmatpush1.msra.mxu0 0.0
  %3628 = vmatprep.subr.mxu0 0.0
  %3629 = vmatpush1.msra.mxu0 0.0
  %3630 = vmatprep.subr.mxu0 0.0
  %3631 = vmatpush1.msra.mxu0 0.0
  %3632 = vmatprep.subr.mxu0 0.0
  %3633 = vmatpush1.msra.mxu0 0.0
  %3634 = vmatprep.subr.mxu0 0.0
  %3635 = vmatpush1.msra.mxu0 0.0
  %3636 = vmatprep.subr.mxu0 0.0
  %3637 = vmatpush1.msra.mxu0 0.0
  %3638 = vmatprep.subr.mxu0 0.0
  %3639 = vmatpush1.msra.mxu0 0.0
  %3640 = vmatprep.subr.mxu0 0.0
  %3641 = vmatpush1.msra.mxu0 0.0
  %3642 = vmatprep.subr.mxu0 0.0
  %3643 = vmatpush1.msra.mxu0 0.0
  %3644 = vmatprep.subr.mxu0 0.0
  %3645 = vmatpush1.msra.mxu0 0.0
  %3646 = vmatprep.subr.mxu0 0.0
  %3647 = vmatpush1.msra.mxu0 0.0
  %3648 = vmatprep.subr.mxu0 0.0
  %3649 = vmatpush1.msra.mxu0 0.0
  %3650 = vmatprep.subr.mxu0 0.0
  %3651 = vmatpush1.msra.mxu0 0.0
  %3652 = vmatprep.subr.mxu0 0.0
  %3653 = vmatpush1.msra.mxu0 0.0
  %3654 = vmatprep.subr.mxu0 0.0
  %3655 = vmatpush1.msra.mxu0 0.0
  %3656 = vmatprep.subr.mxu0 0.0
  %3657 = vmatpush1.msra.mxu0 0.0
  %3658 = vmatprep.subr.mxu0 0.0
  %3659 = vmatpush1.msra.mxu0 0.0
  %3660 = vmatprep.subr.mxu0 0.0
  %3661 = vmatpush1.msra.mxu0 0.0
  %3662 = vmatprep.subr.mxu0 0.0
  %3663 = vmatpush1.msra.mxu0 0.0
  %3664 = vmatprep.subr.mxu0 0.0
  %3665 = vmatpush1.msra.mxu0 0.0
  %3666 = vmatprep.subr.mxu0 0.0
  %3667 = vmatpush1.msra.mxu0 0.0
  %3668 = vmatprep.subr.mxu0 0.0
  %3669 = vmatpush1.msra.mxu0 0.0
  %3670 = vmatprep.mubr.f32.mxu0 0.0
  %3671 = vmatmul.mubr.f32.gmra.mrb[0].mxu0 %v3604
  %v3672 = vpop.f32.mrb[0].mxu0
  %v3673 = vadd.f32 %v3591, %v3672
  %v3674 = vpop.f32.mrb[0].mxu0
  %v3675 = vadd.f32 %v3595, %v3674
  %3676 = vdwg.mxu0
  %3677 = vmatprep.subr.mxu0 0.0
  %3678 = vmatpush1.msra.mxu0 %v2397
  %3679 = vmatprep.subr.mxu0 0.0
  %3680 = vmatpush1.msra.mxu0 %v2400
  %3681 = vmatprep.subr.mxu0 0.0
  %3682 = vmatpush1.msra.mxu0 0.0
  %3683 = vmatprep.subr.mxu0 0.0
  %3684 = vmatpush1.msra.mxu0 0.0
  %3685 = vmatprep.subr.mxu0 0.0
  %3686 = vmatpush1.msra.mxu0 0.0
  %3687 = vmatprep.subr.mxu0 0.0
  %3688 = vmatpush1.msra.mxu0 0.0
  %3689 = vmatprep.subr.mxu0 0.0
  %3690 = vmatpush1.msra.mxu0 0.0
  %3691 = vmatprep.subr.mxu0 0.0
  %3692 = vmatpush1.msra.mxu0 0.0
  %3693 = vmatprep.subr.mxu0 0.0
  %3694 = vmatpush1.msra.mxu0 0.0
  %3695 = vmatprep.subr.mxu0 0.0
  %3696 = vmatpush1.msra.mxu0 0.0
  %3697 = vmatprep.subr.mxu0 0.0
  %3698 = vmatpush1.msra.mxu0 0.0
  %3699 = vmatprep.subr.mxu0 0.0
  %3700 = vmatpush1.msra.mxu0 0.0
  %3701 = vmatprep.subr.mxu0 0.0
  %3702 = vmatpush1.msra.mxu0 0.0
  %3703 = vmatprep.subr.mxu0 0.0
  %3704 = vmatpush1.msra.mxu0 0.0
  %3705 = vmatprep.subr.mxu0 0.0
  %3706 = vmatpush1.msra.mxu0 0.0
  %3707 = vmatprep.subr.mxu0 0.0
  %3708 = vmatpush1.msra.mxu0 0.0
  %3709 = vmatprep.subr.mxu0 0.0
  %3710 = vmatpush1.msra.mxu0 0.0
  %3711 = vmatprep.subr.mxu0 0.0
  %3712 = vmatpush1.msra.mxu0 0.0
  %3713 = vmatprep.subr.mxu0 0.0
  %3714 = vmatpush1.msra.mxu0 0.0
  %3715 = vmatprep.subr.mxu0 0.0
  %3716 = vmatpush1.msra.mxu0 0.0
  %3717 = vmatprep.subr.mxu0 0.0
  %3718 = vmatpush1.msra.mxu0 0.0
  %3719 = vmatprep.subr.mxu0 0.0
  %3720 = vmatpush1.msra.mxu0 0.0
  %3721 = vmatprep.subr.mxu0 0.0
  %3722 = vmatpush1.msra.mxu0 0.0
  %3723 = vmatprep.subr.mxu0 0.0
  %3724 = vmatpush1.msra.mxu0 0.0
  %3725 = vmatprep.subr.mxu0 0.0
  %3726 = vmatpush1.msra.mxu0 0.0
  %3727 = vmatprep.subr.mxu0 0.0
  %3728 = vmatpush1.msra.mxu0 0.0
  %3729 = vmatprep.subr.mxu0 0.0
  %3730 = vmatpush1.msra.mxu0 0.0
  %3731 = vmatprep.subr.mxu0 0.0
  %3732 = vmatpush1.msra.mxu0 0.0
  %3733 = vmatprep.subr.mxu0 0.0
  %3734 = vmatpush1.msra.mxu0 0.0
  %3735 = vmatprep.subr.mxu0 0.0
  %3736 = vmatpush1.msra.mxu0 0.0
  %3737 = vmatprep.subr.mxu0 0.0
  %3738 = vmatpush1.msra.mxu0 0.0
  %3739 = vmatprep.subr.mxu0 0.0
  %3740 = vmatpush1.msra.mxu0 0.0
  %3741 = vmatprep.mubr.f32.mxu0 0.0
  %3742 = vmatmul.mubr.f32.gmra.mrb[0].mxu0 %v3604
  %v3743 = vpop.f32.mrb[0].mxu0
  %v3744 = vadd.f32 %v3599, %v3743
  %v3745 = vpop.f32.mrb[0].mxu0
  %3746 = vdwg.mxu0
  %v3747 = vadd.f32 %v2498, %v3673
  %v3748 = vadd.f32 %v2500, %v3675
  %v3749 = vxor.u32 %v3747, 2147483648
  %v3750 = vmul.f32 %v3749, 1.442695
  %v3751 = vpow.pop %v3750
  %v3752 = vadd.f32 %v3751, 1.0
  %v3753 = vrcp.pop %v3752
  %v3754 = vmul.f32 1.0, %v3753
  %v3755 = vxor.u32 %v3748, 2147483648
  %v3756 = vmul.f32 %v3755, 1.442695
  %v3757 = vpow.pop %v3756
  %v3758 = vadd.f32 %v3757, 1.0
  %v3759 = vrcp.pop %v3758
  %v3760 = vmul.f32 1.0, %v3759
  %v3761 = vmul.f32 %v3754, %v3744
  %v3762 = vadd.f32 %v2569, %v3761
  %v3763 = vtanh.pop %v3762
  %v3764 = vsub.f32 1.0, %v3760
  %v3765 = vmul.f32 %v3764, %v3763
  %v3766 = vmul.f32 %v3760, 0.0
  %v3767 = vadd.f32 %v3765, %v3766
  %v3769 = vsel %vm1986, %v3767, 0
  %3771 = vmatprep.subr.mxu0 %v2396
  %3772 = vmatpush1.msra.mxu0 %v2395
  %3773 = vmatprep.subr.mxu0 %v2399
  %3774 = vmatpush1.msra.mxu0 %v2398
  %3775 = vmatprep.subr.mxu0 0.0
  %3776 = vmatpush1.msra.mxu0 0.0
  %3777 = vmatprep.subr.mxu0 0.0
  %3778 = vmatpush1.msra.mxu0 0.0
  %3779 = vmatprep.subr.mxu0 0.0
  %3780 = vmatpush1.msra.mxu0 0.0
  %3781 = vmatprep.subr.mxu0 0.0
  %3782 = vmatpush1.msra.mxu0 0.0
  %3783 = vmatprep.subr.mxu0 0.0
  %3784 = vmatpush1.msra.mxu0 0.0
  %3785 = vmatprep.subr.mxu0 0.0
  %3786 = vmatpush1.msra.mxu0 0.0
  %3787 = vmatprep.subr.mxu0 0.0
  %3788 = vmatpush1.msra.mxu0 0.0
  %3789 = vmatprep.subr.mxu0 0.0
  %3790 = vmatpush1.msra.mxu0 0.0
  %3791 = vmatprep.subr.mxu0 0.0
  %3792 = vmatpush1.msra.mxu0 0.0
  %3793 = vmatprep.subr.mxu0 0.0
  %3794 = vmatpush1.msra.mxu0 0.0
  %3795 = vmatprep.subr.mxu0 0.0
  %3796 = vmatpush1.msra.mxu0 0.0
  %3797 = vmatprep.subr.mxu0 0.0
  %3798 = vmatpush1.msra.mxu0 0.0
  %3799 = vmatprep.subr.mxu0 0.0
  %3800 = vmatpush1.msra.mxu0 0.0
  %3801 = vmatprep.subr.mxu0 0.0
  %3802 = vmatpush1.msra.mxu0 0.0
  %3803 = vmatprep.subr.mxu0 0.0
  %3804 = vmatpush1.msra.mxu0 0.0
  %3805 = vmatprep.subr.mxu0 0.0
  %3806 = vmatpush1.msra.mxu0 0.0
  %3807 = vmatprep.subr.mxu0 0.0
  %3808 = vmatpush1.msra.mxu0 0.0
  %3809 = vmatprep.subr.mxu0 0.0
  %3810 = vmatpush1.msra.mxu0 0.0
  %3811 = vmatprep.subr.mxu0 0.0
  %3812 = vmatpush1.msra.mxu0 0.0
  %3813 = vmatprep.subr.mxu0 0.0
  %3814 = vmatpush1.msra.mxu0 0.0
  %3815 = vmatprep.subr.mxu0 0.0
  %3816 = vmatpush1.msra.mxu0 0.0
  %3817 = vmatprep.subr.mxu0 0.0
  %3818 = vmatpush1.msra.mxu0 0.0
  %3819 = vmatprep.subr.mxu0 0.0
  %3820 = vmatpush1.msra.mxu0 0.0
  %3821 = vmatprep.subr.mxu0 0.0
  %3822 = vmatpush1.msra.mxu0 0.0
  %3823 = vmatprep.subr.mxu0 0.0
  %3824 = vmatpush1.msra.mxu0 0.0
  %3825 = vmatprep.subr.mxu0 0.0
  %3826 = vmatpush1.msra.mxu0 0.0
  %3827 = vmatprep.subr.mxu0 0.0
  %3828 = vmatpush1.msra.mxu0 0.0
  %3829 = vmatprep.subr.mxu0 0.0
  %3830 = vmatpush1.msra.mxu0 0.0
  %3831 = vmatprep.subr.mxu0 0.0
  %3832 = vmatpush1.msra.mxu0 0.0
  %3833 = vmatprep.subr.mxu0 0.0
  %3834 = vmatpush1.msra.mxu0 0.0
  %3835 = vmatprep.mubr.f32.mxu0 0.0
  %3836 = vmatmul.mubr.f32.gmra.mrb[0].mxu0 %v3769
  %v3837 = vpop.f32.mrb[0].mxu0
  %v3838 = vadd.f32 %v3591, %v3837
  %v3839 = vpop.f32.mrb[0].mxu0
  %v3840 = vadd.f32 %v3595, %v3839
  %3841 = vdwg.mxu0
  %3842 = vmatprep.subr.mxu0 0.0
  %3843 = vmatpush1.msra.mxu0 %v2397
  %3844 = vmatprep.subr.mxu0 0.0
  %3845 = vmatpush1.msra.mxu0 %v2400
  %3846 = vmatprep.subr.mxu0 0.0
  %3847 = vmatpush1.msra.mxu0 0.0
  %3848 = vmatprep.subr.mxu0 0.0
  %3849 = vmatpush1.msra.mxu0 0.0
  %3850 = vmatprep.subr.mxu0 0.0
  %3851 = vmatpush1.msra.mxu0 0.0
  %3852 = vmatprep.subr.mxu0 0.0
  %3853 = vmatpush1.msra.mxu0 0.0
  %3854 = vmatprep.subr.mxu0 0.0
  %3855 = vmatpush1.msra.mxu0 0.0
  %3856 = vmatprep.subr.mxu0 0.0
  %3857 = vmatpush1.msra.mxu0 0.0
  %3858 = vmatprep.subr.mxu0 0.0
  %3859 = vmatpush1.msra.mxu0 0.0
  %3860 = vmatprep.subr.mxu0 0.0
  %3861 = vmatpush1.msra.mxu0 0.0
  %3862 = vmatprep.subr.mxu0 0.0
  %3863 = vmatpush1.msra.mxu0 0.0
  %3864 = vmatprep.subr.mxu0 0.0
  %3865 = vmatpush1.msra.mxu0 0.0
  %3866 = vmatprep.subr.mxu0 0.0
  %3867 = vmatpush1.msra.mxu0 0.0
  %3868 = vmatprep.subr.mxu0 0.0
  %3869 = vmatpush1.msra.mxu0 0.0
  %3870 = vmatprep.subr.mxu0 0.0
  %3871 = vmatpush1.msra.mxu0 0.0
  %3872 = vmatprep.subr.mxu0 0.0
  %3873 = vmatpush1.msra.mxu0 0.0
  %3874 = vmatprep.subr.mxu0 0.0
  %3875 = vmatpush1.msra.mxu0 0.0
  %3876 = vmatprep.subr.mxu0 0.0
  %3877 = vmatpush1.msra.mxu0 0.0
  %3878 = vmatprep.subr.mxu0 0.0
  %3879 = vmatpush1.msra.mxu0 0.0
  %3880 = vmatprep.subr.mxu0 0.0
  %3881 = vmatpush1.msra.mxu0 0.0
  %3882 = vmatprep.subr.mxu0 0.0
  %3883 = vmatpush1.msra.mxu0 0.0
  %3884 = vmatprep.subr.mxu0 0.0
  %3885 = vmatpush1.msra.mxu0 0.0
  %3886 = vmatprep.subr.mxu0 0.0
  %3887 = vmatpush1.msra.mxu0 0.0
  %3888 = vmatprep.subr.mxu0 0.0
  %3889 = vmatpush1.msra.mxu0 0.0
  %3890 = vmatprep.subr.mxu0 0.0
  %3891 = vmatpush1.msra.mxu0 0.0
  %3892 = vmatprep.subr.mxu0 0.0
  %3893 = vmatpush1.msra.mxu0 0.0
  %3894 = vmatprep.subr.mxu0 0.0
  %3895 = vmatpush1.msra.mxu0 0.0
  %3896 = vmatprep.subr.mxu0 0.0
  %3897 = vmatpush1.msra.mxu0 0.0
  %3898 = vmatprep.subr.mxu0 0.0
  %3899 = vmatpush1.msra.mxu0 0.0
  %3900 = vmatprep.subr.mxu0 0.0
  %3901 = vmatpush1.msra.mxu0 0.0
  %3902 = vmatprep.subr.mxu0 0.0
  %3903 = vmatpush1.msra.mxu0 0.0
  %3904 = vmatprep.subr.mxu0 0.0
  %3905 = vmatpush1.msra.mxu0 0.0
  %3906 = vmatprep.mubr.f32.mxu0 0.0
  %3907 = vmatmul.mubr.f32.gmra.mrb[0].mxu0 %v3769
  %v3908 = vpop.f32.mrb[0].mxu0
  %v3909 = vadd.f32 %v3599, %v3908
  %v3910 = vpop.f32.mrb[0].mxu0
  %3911 = vdwg.mxu0
  %v3912 = vadd.f32 %v2643, %v3838
  %v3913 = vadd.f32 %v2645, %v3840
  %v3914 = vxor.u32 %v3912, 2147483648
  %v3915 = vmul.f32 %v3914, 1.442695
  %v3916 = vpow.pop %v3915
  %v3917 = vadd.f32 %v3916, 1.0
  %v3918 = vrcp.pop %v3917
  %v3919 = vmul.f32 1.0, %v3918
  %v3920 = vxor.u32 %v3913, 2147483648
  %v3921 = vmul.f32 %v3920, 1.442695
  %v3922 = vpow.pop %v3921
  %v3923 = vadd.f32 %v3922, 1.0
  %v3924 = vrcp.pop %v3923
  %v3925 = vmul.f32 1.0, %v3924
  %v3926 = vmul.f32 %v3919, %v3909
  %v3927 = vadd.f32 %v2714, %v3926
  %v3928 = vtanh.pop %v3927
  %v3929 = vsub.f32 1.0, %v3925
  %v3930 = vmul.f32 %v3929, %v3928
  %v3931 = vmul.f32 %v3925, %v3767
  %v3932 = vadd.f32 %v3930, %v3931
  %v3934 = vsel %vm1986, %v3932, 0
  %3936 = vmatprep.subr.mxu0 %v2396
  %3937 = vmatpush1.msra.mxu0 %v2395
  %3938 = vmatprep.subr.mxu0 %v2399
  %3939 = vmatpush1.msra.mxu0 %v2398
  %3940 = vmatprep.subr.mxu0 0.0
  %3941 = vmatpush1.msra.mxu0 0.0
  %3942 = vmatprep.subr.mxu0 0.0
  %3943 = vmatpush1.msra.mxu0 0.0
  %3944 = vmatprep.subr.mxu0 0.0
  %3945 = vmatpush1.msra.mxu0 0.0
  %3946 = vmatprep.subr.mxu0 0.0
  %3947 = vmatpush1.msra.mxu0 0.0
  %3948 = vmatprep.subr.mxu0 0.0
  %3949 = vmatpush1.msra.mxu0 0.0
  %3950 = vmatprep.subr.mxu0 0.0
  %3951 = vmatpush1.msra.mxu0 0.0
  %3952 = vmatprep.subr.mxu0 0.0
  %3953 = vmatpush1.msra.mxu0 0.0
  %3954 = vmatprep.subr.mxu0 0.0
  %3955 = vmatpush1.msra.mxu0 0.0
  %3956 = vmatprep.subr.mxu0 0.0
  %3957 = vmatpush1.msra.mxu0 0.0
  %3958 = vmatprep.subr.mxu0 0.0
  %3959 = vmatpush1.msra.mxu0 0.0
  %3960 = vmatprep.subr.mxu0 0.0
  %3961 = vmatpush1.msra.mxu0 0.0
  %3962 = vmatprep.subr.mxu0 0.0
  %3963 = vmatpush1.msra.mxu0 0.0
  %3964 = vmatprep.subr.mxu0 0.0
  %3965 = vmatpush1.msra.mxu0 0.0
  %3966 = vmatprep.subr.mxu0 0.0
  %3967 = vmatpush1.msra.mxu0 0.0
  %3968 = vmatprep.subr.mxu0 0.0
  %3969 = vmatpush1.msra.mxu0 0.0
  %3970 = vmatprep.subr.mxu0 0.0
  %3971 = vmatpush1.msra.mxu0 0.0
  %3972 = vmatprep.subr.mxu0 0.0
  %3973 = vmatpush1.msra.mxu0 0.0
  %3974 = vmatprep.subr.mxu0 0.0
  %3975 = vmatpush1.msra.mxu0 0.0
  %3976 = vmatprep.subr.mxu0 0.0
  %3977 = vmatpush1.msra.mxu0 0.0
  %3978 = vmatprep.subr.mxu0 0.0
  %3979 = vmatpush1.msra.mxu0 0.0
  %3980 = vmatprep.subr.mxu0 0.0
  %3981 = vmatpush1.msra.mxu0 0.0
  %3982 = vmatprep.subr.mxu0 0.0
  %3983 = vmatpush1.msra.mxu0 0.0
  %3984 = vmatprep.subr.mxu0 0.0
  %3985 = vmatpush1.msra.mxu0 0.0
  %3986 = vmatprep.subr.mxu0 0.0
  %3987 = vmatpush1.msra.mxu0 0.0
  %3988 = vmatprep.subr.mxu0 0.0
  %3989 = vmatpush1.msra.mxu0 0.0
  %3990 = vmatprep.subr.mxu0 0.0
  %3991 = vmatpush1.msra.mxu0 0.0
  %3992 = vmatprep.subr.mxu0 0.0
  %3993 = vmatpush1.msra.mxu0 0.0
  %3994 = vmatprep.subr.mxu0 0.0
  %3995 = vmatpush1.msra.mxu0 0.0
  %3996 = vmatprep.subr.mxu0 0.0
  %3997 = vmatpush1.msra.mxu0 0.0
  %3998 = vmatprep.subr.mxu0 0.0
  %3999 = vmatpush1.msra.mxu0 0.0
  %4000 = vmatprep.mubr.f32.mxu0 0.0
  %4001 = vmatmul.mubr.f32.gmra.mrb[0].mxu0 %v3934
  %v4002 = vpop.f32.mrb[0].mxu0
  %v4003 = vadd.f32 %v3591, %v4002
  %v4004 = vpop.f32.mrb[0].mxu0
  %v4005 = vadd.f32 %v3595, %v4004
  %4006 = vdwg.mxu0
  %4007 = vmatprep.subr.mxu0 0.0
  %4008 = vmatpush1.msra.mxu0 %v2397
  %4009 = vmatprep.subr.mxu0 0.0
  %4010 = vmatpush1.msra.mxu0 %v2400
  %4011 = vmatprep.subr.mxu0 0.0
  %4012 = vmatpush1.msra.mxu0 0.0
  %4013 = vmatprep.subr.mxu0 0.0
  %4014 = vmatpush1.msra.mxu0 0.0
  %4015 = vmatprep.subr.mxu0 0.0
  %4016 = vmatpush1.msra.mxu0 0.0
  %4017 = vmatprep.subr.mxu0 0.0
  %4018 = vmatpush1.msra.mxu0 0.0
  %4019 = vmatprep.subr.mxu0 0.0
  %4020 = vmatpush1.msra.mxu0 0.0
  %4021 = vmatprep.subr.mxu0 0.0
  %4022 = vmatpush1.msra.mxu0 0.0
  %4023 = vmatprep.subr.mxu0 0.0
  %4024 = vmatpush1.msra.mxu0 0.0
  %4025 = vmatprep.subr.mxu0 0.0
  %4026 = vmatpush1.msra.mxu0 0.0
  %4027 = vmatprep.subr.mxu0 0.0
  %4028 = vmatpush1.msra.mxu0 0.0
  %4029 = vmatprep.subr.mxu0 0.0
  %4030 = vmatpush1.msra.mxu0 0.0
  %4031 = vmatprep.subr.mxu0 0.0
  %4032 = vmatpush1.msra.mxu0 0.0
  %4033 = vmatprep.subr.mxu0 0.0
  %4034 = vmatpush1.msra.mxu0 0.0
  %4035 = vmatprep.subr.mxu0 0.0
  %4036 = vmatpush1.msra.mxu0 0.0
  %4037 = vmatprep.subr.mxu0 0.0
  %4038 = vmatpush1.msra.mxu0 0.0
  %4039 = vmatprep.subr.mxu0 0.0
  %4040 = vmatpush1.msra.mxu0 0.0
  %4041 = vmatprep.subr.mxu0 0.0
  %4042 = vmatpush1.msra.mxu0 0.0
  %4043 = vmatprep.subr.mxu0 0.0
  %4044 = vmatpush1.msra.mxu0 0.0
  %4045 = vmatprep.subr.mxu0 0.0
  %4046 = vmatpush1.msra.mxu0 0.0
  %4047 = vmatprep.subr.mxu0 0.0
  %4048 = vmatpush1.msra.mxu0 0.0
  %4049 = vmatprep.subr.mxu0 0.0
  %4050 = vmatpush1.msra.mxu0 0.0
  %4051 = vmatprep.subr.mxu0 0.0
  %4052 = vmatpush1.msra.mxu0 0.0
  %4053 = vmatprep.subr.mxu0 0.0
  %4054 = vmatpush1.msra.mxu0 0.0
  %4055 = vmatprep.subr.mxu0 0.0
  %4056 = vmatpush1.msra.mxu0 0.0
  %4057 = vmatprep.subr.mxu0 0.0
  %4058 = vmatpush1.msra.mxu0 0.0
  %4059 = vmatprep.subr.mxu0 0.0
  %4060 = vmatpush1.msra.mxu0 0.0
  %4061 = vmatprep.subr.mxu0 0.0
  %4062 = vmatpush1.msra.mxu0 0.0
  %4063 = vmatprep.subr.mxu0 0.0
  %4064 = vmatpush1.msra.mxu0 0.0
  %4065 = vmatprep.subr.mxu0 0.0
  %4066 = vmatpush1.msra.mxu0 0.0
  %4067 = vmatprep.subr.mxu0 0.0
  %4068 = vmatpush1.msra.mxu0 0.0
  %4069 = vmatprep.subr.mxu0 0.0
  %4070 = vmatpush1.msra.mxu0 0.0
  %4071 = vmatprep.mubr.f32.mxu0 0.0
  %4072 = vmatmul.mubr.f32.gmra.mrb[0].mxu0 %v3934
  %v4073 = vpop.f32.mrb[0].mxu0
  %v4074 = vadd.f32 %v3599, %v4073
  %v4075 = vpop.f32.mrb[0].mxu0
  %4076 = vdwg.mxu0
  %v4077 = vadd.f32 %v2788, %v4003
  %v4078 = vadd.f32 %v2790, %v4005
  %v4079 = vxor.u32 %v4077, 2147483648
  %v4080 = vmul.f32 %v4079, 1.442695
  %v4081 = vpow.pop %v4080
  %v4082 = vadd.f32 %v4081, 1.0
  %v4083 = vrcp.pop %v4082
  %v4084 = vmul.f32 1.0, %v4083
  %v4085 = vxor.u32 %v4078, 2147483648
  %v4086 = vmul.f32 %v4085, 1.442695
  %v4087 = vpow.pop %v4086
  %v4088 = vadd.f32 %v4087, 1.0
  %v4089 = vrcp.pop %v4088
  %v4090 = vmul.f32 1.0, %v4089
  %v4091 = vmul.f32 %v4084, %v4074
  %v4092 = vadd.f32 %v2859, %v4091
  %v4093 = vtanh.pop %v4092
  %v4094 = vsub.f32 1.0, %v4090
  %v4095 = vmul.f32 %v4094, %v4093
  %v4096 = vmul.f32 %v4090, %v3932
  %v4097 = vadd.f32 %v4095, %v4096
  %v4099 = vsel %vm1986, %v4097, 0
  %4101 = vmatprep.subr.mxu0 %v2396
  %4102 = vmatpush1.msra.mxu0 %v2395
  %4103 = vmatprep.subr.mxu0 %v2399
  %4104 = vmatpush1.msra.mxu0 %v2398
  %4105 = vmatprep.subr.mxu0 0.0
  %4106 = vmatpush1.msra.mxu0 0.0
  %4107 = vmatprep.subr.mxu0 0.0
  %4108 = vmatpush1.msra.mxu0 0.0
  %4109 = vmatprep.subr.mxu0 0.0
  %4110 = vmatpush1.msra.mxu0 0.0
  %4111 = vmatprep.subr.mxu0 0.0
  %4112 = vmatpush1.msra.mxu0 0.0
  %4113 = vmatprep.subr.mxu0 0.0
  %4114 = vmatpush1.msra.mxu0 0.0
  %4115 = vmatprep.subr.mxu0 0.0
  %4116 = vmatpush1.msra.mxu0 0.0
  %4117 = vmatprep.subr.mxu0 0.0
  %4118 = vmatpush1.msra.mxu0 0.0
  %4119 = vmatprep.subr.mxu0 0.0
  %4120 = vmatpush1.msra.mxu0 0.0
  %4121 = vmatprep.subr.mxu0 0.0
  %4122 = vmatpush1.msra.mxu0 0.0
  %4123 = vmatprep.subr.mxu0 0.0
  %4124 = vmatpush1.msra.mxu0 0.0
  %4125 = vmatprep.subr.mxu0 0.0
  %4126 = vmatpush1.msra.mxu0 0.0
  %4127 = vmatprep.subr.mxu0 0.0
  %4128 = vmatpush1.msra.mxu0 0.0
  %4129 = vmatprep.subr.mxu0 0.0
  %4130 = vmatpush1.msra.mxu0 0.0
  %4131 = vmatprep.subr.mxu0 0.0
  %4132 = vmatpush1.msra.mxu0 0.0
  %4133 = vmatprep.subr.mxu0 0.0
  %4134 = vmatpush1.msra.mxu0 0.0
  %4135 = vmatprep.subr.mxu0 0.0
  %4136 = vmatpush1.msra.mxu0 0.0
  %4137 = vmatprep.subr.mxu0 0.0
  %4138 = vmatpush1.msra.mxu0 0.0
  %4139 = vmatprep.subr.mxu0 0.0
  %4140 = vmatpush1.msra.mxu0 0.0
  %4141 = vmatprep.subr.mxu0 0.0
  %4142 = vmatpush1.msra.mxu0 0.0
  %4143 = vmatprep.subr.mxu0 0.0
  %4144 = vmatpush1.msra.mxu0 0.0
  %4145 = vmatprep.subr.mxu0 0.0
  %4146 = vmatpush1.msra.mxu0 0.0
  %4147 = vmatprep.subr.mxu0 0.0
  %4148 = vmatpush1.msra.mxu0 0.0
  %4149 = vmatprep.subr.mxu0 0.0
  %4150 = vmatpush1.msra.mxu0 0.0
  %4151 = vmatprep.subr.mxu0 0.0
  %4152 = vmatpush1.msra.mxu0 0.0
  %4153 = vmatprep.subr.mxu0 0.0
  %4154 = vmatpush1.msra.mxu0 0.0
  %4155 = vmatprep.subr.mxu0 0.0
  %4156 = vmatpush1.msra.mxu0 0.0
  %4157 = vmatprep.subr.mxu0 0.0
  %4158 = vmatpush1.msra.mxu0 0.0
  %4159 = vmatprep.subr.mxu0 0.0
  %4160 = vmatpush1.msra.mxu0 0.0
  %4161 = vmatprep.subr.mxu0 0.0
  %4162 = vmatpush1.msra.mxu0 0.0
  %4163 = vmatprep.subr.mxu0 0.0
  %4164 = vmatpush1.msra.mxu0 0.0
  %4165 = vmatprep.mubr.f32.mxu0 0.0
  %4166 = vmatmul.mubr.f32.gmra.mrb[0].mxu0 %v4099
  %v4167 = vpop.f32.mrb[0].mxu0
  %v4168 = vadd.f32 %v3591, %v4167
  %v4169 = vpop.f32.mrb[0].mxu0
  %v4170 = vadd.f32 %v3595, %v4169
  %4171 = vdwg.mxu0
  %4172 = vmatprep.subr.mxu0 0.0
  %4173 = vmatpush1.msra.mxu0 %v2397
  %4174 = vmatprep.subr.mxu0 0.0
  %4175 = vmatpush1.msra.mxu0 %v2400
  %4176 = vmatprep.subr.mxu0 0.0
  %4177 = vmatpush1.msra.mxu0 0.0
  %4178 = vmatprep.subr.mxu0 0.0
  %4179 = vmatpush1.msra.mxu0 0.0
  %4180 = vmatprep.subr.mxu0 0.0
  %4181 = vmatpush1.msra.mxu0 0.0
  %4182 = vmatprep.subr.mxu0 0.0
  %4183 = vmatpush1.msra.mxu0 0.0
  %4184 = vmatprep.subr.mxu0 0.0
  %4185 = vmatpush1.msra.mxu0 0.0
  %4186 = vmatprep.subr.mxu0 0.0
  %4187 = vmatpush1.msra.mxu0 0.0
  %4188 = vmatprep.subr.mxu0 0.0
  %4189 = vmatpush1.msra.mxu0 0.0
  %4190 = vmatprep.subr.mxu0 0.0
  %4191 = vmatpush1.msra.mxu0 0.0
  %4192 = vmatprep.subr.mxu0 0.0
  %4193 = vmatpush1.msra.mxu0 0.0
  %4194 = vmatprep.subr.mxu0 0.0
  %4195 = vmatpush1.msra.mxu0 0.0
  %4196 = vmatprep.subr.mxu0 0.0
  %4197 = vmatpush1.msra.mxu0 0.0
  %4198 = vmatprep.subr.mxu0 0.0
  %4199 = vmatpush1.msra.mxu0 0.0
  %4200 = vmatprep.subr.mxu0 0.0
  %4201 = vmatpush1.msra.mxu0 0.0
  %4202 = vmatprep.subr.mxu0 0.0
  %4203 = vmatpush1.msra.mxu0 0.0
  %4204 = vmatprep.subr.mxu0 0.0
  %4205 = vmatpush1.msra.mxu0 0.0
  %4206 = vmatprep.subr.mxu0 0.0
  %4207 = vmatpush1.msra.mxu0 0.0
  %4208 = vmatprep.subr.mxu0 0.0
  %4209 = vmatpush1.msra.mxu0 0.0
  %4210 = vmatprep.subr.mxu0 0.0
  %4211 = vmatpush1.msra.mxu0 0.0
  %4212 = vmatprep.subr.mxu0 0.0
  %4213 = vmatpush1.msra.mxu0 0.0
  %4214 = vmatprep.subr.mxu0 0.0
  %4215 = vmatpush1.msra.mxu0 0.0
  %4216 = vmatprep.subr.mxu0 0.0
  %4217 = vmatpush1.msra.mxu0 0.0
  %4218 = vmatprep.subr.mxu0 0.0
  %4219 = vmatpush1.msra.mxu0 0.0
  %4220 = vmatprep.subr.mxu0 0.0
  %4221 = vmatpush1.msra.mxu0 0.0
  %4222 = vmatprep.subr.mxu0 0.0
  %4223 = vmatpush1.msra.mxu0 0.0
  %4224 = vmatprep.subr.mxu0 0.0
  %4225 = vmatpush1.msra.mxu0 0.0
  %4226 = vmatprep.subr.mxu0 0.0
  %4227 = vmatpush1.msra.mxu0 0.0
  %4228 = vmatprep.subr.mxu0 0.0
  %4229 = vmatpush1.msra.mxu0 0.0
  %4230 = vmatprep.subr.mxu0 0.0
  %4231 = vmatpush1.msra.mxu0 0.0
  %4232 = vmatprep.subr.mxu0 0.0
  %4233 = vmatpush1.msra.mxu0 0.0
  %4234 = vmatprep.subr.mxu0 0.0
  %4235 = vmatpush1.msra.mxu0 0.0
  %4236 = vmatprep.mubr.f32.mxu0 0.0
  %4237 = vmatmul.mubr.f32.gmra.mrb[0].mxu0 %v4099
  %v4238 = vpop.f32.mrb[0].mxu0
  %v4239 = vadd.f32 %v3599, %v4238
  %v4240 = vpop.f32.mrb[0].mxu0
  %4241 = vdwg.mxu0
  %v4242 = vadd.f32 %v2933, %v4168
  %v4243 = vadd.f32 %v2935, %v4170
  %v4244 = vxor.u32 %v4242, 2147483648
  %v4245 = vmul.f32 %v4244, 1.442695
  %v4246 = vpow.pop %v4245
  %v4247 = vadd.f32 %v4246, 1.0
  %v4248 = vrcp.pop %v4247
  %v4249 = vmul.f32 1.0, %v4248
  %v4250 = vxor.u32 %v4243, 2147483648
  %v4251 = vmul.f32 %v4250, 1.442695
  %v4252 = vpow.pop %v4251
  %v4253 = vadd.f32 %v4252, 1.0
  %v4254 = vrcp.pop %v4253
  %v4255 = vmul.f32 1.0, %v4254
  %v4256 = vmul.f32 %v4249, %v4239
  %v4257 = vadd.f32 %v3004, %v4256
  %v4258 = vtanh.pop %v4257
  %v4259 = vsub.f32 1.0, %v4255
  %v4260 = vmul.f32 %v4259, %v4258
  %v4261 = vmul.f32 %v4255, %v4097
  %v4262 = vadd.f32 %v4260, %v4261
  %v4264 = vsel %vm1986, %v4262, 0
  %4266 = vmatprep.subr.mxu0 %v2396
  %4267 = vmatpush1.msra.mxu0 %v2395
  %4268 = vmatprep.subr.mxu0 %v2399
  %4269 = vmatpush1.msra.mxu0 %v2398
  %4270 = vmatprep.subr.mxu0 0.0
  %4271 = vmatpush1.msra.mxu0 0.0
  %4272 = vmatprep.subr.mxu0 0.0
  %4273 = vmatpush1.msra.mxu0 0.0
  %4274 = vmatprep.subr.mxu0 0.0
  %4275 = vmatpush1.msra.mxu0 0.0
  %4276 = vmatprep.subr.mxu0 0.0
  %4277 = vmatpush1.msra.mxu0 0.0
  %4278 = vmatprep.subr.mxu0 0.0
  %4279 = vmatpush1.msra.mxu0 0.0
  %4280 = vmatprep.subr.mxu0 0.0
  %4281 = vmatpush1.msra.mxu0 0.0
  %4282 = vmatprep.subr.mxu0 0.0
  %4283 = vmatpush1.msra.mxu0 0.0
  %4284 = vmatprep.subr.mxu0 0.0
  %4285 = vmatpush1.msra.mxu0 0.0
  %4286 = vmatprep.subr.mxu0 0.0
  %4287 = vmatpush1.msra.mxu0 0.0
  %4288 = vmatprep.subr.mxu0 0.0
  %4289 = vmatpush1.msra.mxu0 0.0
  %4290 = vmatprep.subr.mxu0 0.0
  %4291 = vmatpush1.msra.mxu0 0.0
  %4292 = vmatprep.subr.mxu0 0.0
  %4293 = vmatpush1.msra.mxu0 0.0
  %4294 = vmatprep.subr.mxu0 0.0
  %4295 = vmatpush1.msra.mxu0 0.0
  %4296 = vmatprep.subr.mxu0 0.0
  %4297 = vmatpush1.msra.mxu0 0.0
  %4298 = vmatprep.subr.mxu0 0.0
  %4299 = vmatpush1.msra.mxu0 0.0
  %4300 = vmatprep.subr.mxu0 0.0
  %4301 = vmatpush1.msra.mxu0 0.0
  %4302 = vmatprep.subr.mxu0 0.0
  %4303 = vmatpush1.msra.mxu0 0.0
  %4304 = vmatprep.subr.mxu0 0.0
  %4305 = vmatpush1.msra.mxu0 0.0
  %4306 = vmatprep.subr.mxu0 0.0
  %4307 = vmatpush1.msra.mxu0 0.0
  %4308 = vmatprep.subr.mxu0 0.0
  %4309 = vmatpush1.msra.mxu0 0.0
  %4310 = vmatprep.subr.mxu0 0.0
  %4311 = vmatpush1.msra.mxu0 0.0
  %4312 = vmatprep.subr.mxu0 0.0
  %4313 = vmatpush1.msra.mxu0 0.0
  %4314 = vmatprep.subr.mxu0 0.0
  %4315 = vmatpush1.msra.mxu0 0.0
  %4316 = vmatprep.subr.mxu0 0.0
  %4317 = vmatpush1.msra.mxu0 0.0
  %4318 = vmatprep.subr.mxu0 0.0
  %4319 = vmatpush1.msra.mxu0 0.0
  %4320 = vmatprep.subr.mxu0 0.0
  %4321 = vmatpush1.msra.mxu0 0.0
  %4322 = vmatprep.subr.mxu0 0.0
  %4323 = vmatpush1.msra.mxu0 0.0
  %4324 = vmatprep.subr.mxu0 0.0
  %4325 = vmatpush1.msra.mxu0 0.0
  %4326 = vmatprep.subr.mxu0 0.0
  %4327 = vmatpush1.msra.mxu0 0.0
  %4328 = vmatprep.subr.mxu0 0.0
  %4329 = vmatpush1.msra.mxu0 0.0
  %4330 = vmatprep.mubr.f32.mxu0 0.0
  %4331 = vmatmul.mubr.f32.gmra.mrb[0].mxu0 %v4264
  %v4332 = vpop.f32.mrb[0].mxu0
  %v4333 = vadd.f32 %v3591, %v4332
  %v4334 = vpop.f32.mrb[0].mxu0
  %v4335 = vadd.f32 %v3595, %v4334
  %4336 = vdwg.mxu0
  %4337 = vmatprep.subr.mxu0 0.0
  %4338 = vmatpush1.msra.mxu0 %v2397
  %4339 = vmatprep.subr.mxu0 0.0
  %4340 = vmatpush1.msra.mxu0 %v2400
  %4341 = vmatprep.subr.mxu0 0.0
  %4342 = vmatpush1.msra.mxu0 0.0
  %4343 = vmatprep.subr.mxu0 0.0
  %4344 = vmatpush1.msra.mxu0 0.0
  %4345 = vmatprep.subr.mxu0 0.0
  %4346 = vmatpush1.msra.mxu0 0.0
  %4347 = vmatprep.subr.mxu0 0.0
  %4348 = vmatpush1.msra.mxu0 0.0
  %4349 = vmatprep.subr.mxu0 0.0
  %4350 = vmatpush1.msra.mxu0 0.0
  %4351 = vmatprep.subr.mxu0 0.0
  %4352 = vmatpush1.msra.mxu0 0.0
  %4353 = vmatprep.subr.mxu0 0.0
  %4354 = vmatpush1.msra.mxu0 0.0
  %4355 = vmatprep.subr.mxu0 0.0
  %4356 = vmatpush1.msra.mxu0 0.0
  %4357 = vmatprep.subr.mxu0 0.0
  %4358 = vmatpush1.msra.mxu0 0.0
  %4359 = vmatprep.subr.mxu0 0.0
  %4360 = vmatpush1.msra.mxu0 0.0
  %4361 = vmatprep.subr.mxu0 0.0
  %4362 = vmatpush1.msra.mxu0 0.0
  %4363 = vmatprep.subr.mxu0 0.0
  %4364 = vmatpush1.msra.mxu0 0.0
  %4365 = vmatprep.subr.mxu0 0.0
  %4366 = vmatpush1.msra.mxu0 0.0
  %4367 = vmatprep.subr.mxu0 0.0
  %4368 = vmatpush1.msra.mxu0 0.0
  %4369 = vmatprep.subr.mxu0 0.0
  %4370 = vmatpush1.msra.mxu0 0.0
  %4371 = vmatprep.subr.mxu0 0.0
  %4372 = vmatpush1.msra.mxu0 0.0
  %4373 = vmatprep.subr.mxu0 0.0
  %4374 = vmatpush1.msra.mxu0 0.0
  %4375 = vmatprep.subr.mxu0 0.0
  %4376 = vmatpush1.msra.mxu0 0.0
  %4377 = vmatprep.subr.mxu0 0.0
  %4378 = vmatpush1.msra.mxu0 0.0
  %4379 = vmatprep.subr.mxu0 0.0
  %4380 = vmatpush1.msra.mxu0 0.0
  %4381 = vmatprep.subr.mxu0 0.0
  %4382 = vmatpush1.msra.mxu0 0.0
  %4383 = vmatprep.subr.mxu0 0.0
  %4384 = vmatpush1.msra.mxu0 0.0
  %4385 = vmatprep.subr.mxu0 0.0
  %4386 = vmatpush1.msra.mxu0 0.0
  %4387 = vmatprep.subr.mxu0 0.0
  %4388 = vmatpush1.msra.mxu0 0.0
  %4389 = vmatprep.subr.mxu0 0.0
  %4390 = vmatpush1.msra.mxu0 0.0
  %4391 = vmatprep.subr.mxu0 0.0
  %4392 = vmatpush1.msra.mxu0 0.0
  %4393 = vmatprep.subr.mxu0 0.0
  %4394 = vmatpush1.msra.mxu0 0.0
  %4395 = vmatprep.subr.mxu0 0.0
  %4396 = vmatpush1.msra.mxu0 0.0
  %4397 = vmatprep.subr.mxu0 0.0
  %4398 = vmatpush1.msra.mxu0 0.0
  %4399 = vmatprep.subr.mxu0 0.0
  %4400 = vmatpush1.msra.mxu0 0.0
  %4401 = vmatprep.mubr.f32.mxu0 0.0
  %4402 = vmatmul.mubr.f32.gmra.mrb[0].mxu0 %v4264
  %v4403 = vpop.f32.mrb[0].mxu0
  %v4404 = vadd.f32 %v3599, %v4403
  %v4405 = vpop.f32.mrb[0].mxu0
  %4406 = vdwg.mxu0
  %v4407 = vadd.f32 %v3078, %v4333
  %v4408 = vadd.f32 %v3080, %v4335
  %v4409 = vxor.u32 %v4407, 2147483648
  %v4410 = vmul.f32 %v4409, 1.442695
  %v4411 = vpow.pop %v4410
  %v4412 = vadd.f32 %v4411, 1.0
  %v4413 = vrcp.pop %v4412
  %v4414 = vmul.f32 1.0, %v4413
  %v4415 = vxor.u32 %v4408, 2147483648
  %v4416 = vmul.f32 %v4415, 1.442695
  %v4417 = vpow.pop %v4416
  %v4418 = vadd.f32 %v4417, 1.0
  %v4419 = vrcp.pop %v4418
  %v4420 = vmul.f32 1.0, %v4419
  %v4421 = vmul.f32 %v4414, %v4404
  %v4422 = vadd.f32 %v3149, %v4421
  %v4423 = vtanh.pop %v4422
  %v4424 = vsub.f32 1.0, %v4420
  %v4425 = vmul.f32 %v4424, %v4423
  %v4426 = vmul.f32 %v4420, %v4262
  %v4427 = vadd.f32 %v4425, %v4426
  %v4429 = vsel %vm1986, %v4427, 0
  %4431 = vmatprep.subr.mxu0 %v2396
  %4432 = vmatpush1.msra.mxu0 %v2395
  %4433 = vmatprep.subr.mxu0 %v2399
  %4434 = vmatpush1.msra.mxu0 %v2398
  %4435 = vmatprep.subr.mxu0 0.0
  %4436 = vmatpush1.msra.mxu0 0.0
  %4437 = vmatprep.subr.mxu0 0.0
  %4438 = vmatpush1.msra.mxu0 0.0
  %4439 = vmatprep.subr.mxu0 0.0
  %4440 = vmatpush1.msra.mxu0 0.0
  %4441 = vmatprep.subr.mxu0 0.0
  %4442 = vmatpush1.msra.mxu0 0.0
  %4443 = vmatprep.subr.mxu0 0.0
  %4444 = vmatpush1.msra.mxu0 0.0
  %4445 = vmatprep.subr.mxu0 0.0
  %4446 = vmatpush1.msra.mxu0 0.0
  %4447 = vmatprep.subr.mxu0 0.0
  %4448 = vmatpush1.msra.mxu0 0.0
  %4449 = vmatprep.subr.mxu0 0.0
  %4450 = vmatpush1.msra.mxu0 0.0
  %4451 = vmatprep.subr.mxu0 0.0
  %4452 = vmatpush1.msra.mxu0 0.0
  %4453 = vmatprep.subr.mxu0 0.0
  %4454 = vmatpush1.msra.mxu0 0.0
  %4455 = vmatprep.subr.mxu0 0.0
  %4456 = vmatpush1.msra.mxu0 0.0
  %4457 = vmatprep.subr.mxu0 0.0
  %4458 = vmatpush1.msra.mxu0 0.0
  %4459 = vmatprep.subr.mxu0 0.0
  %4460 = vmatpush1.msra.mxu0 0.0
  %4461 = vmatprep.subr.mxu0 0.0
  %4462 = vmatpush1.msra.mxu0 0.0
  %4463 = vmatprep.subr.mxu0 0.0
  %4464 = vmatpush1.msra.mxu0 0.0
  %4465 = vmatprep.subr.mxu0 0.0
  %4466 = vmatpush1.msra.mxu0 0.0
  %4467 = vmatprep.subr.mxu0 0.0
  %4468 = vmatpush1.msra.mxu0 0.0
  %4469 = vmatprep.subr.mxu0 0.0
  %4470 = vmatpush1.msra.mxu0 0.0
  %4471 = vmatprep.subr.mxu0 0.0
  %4472 = vmatpush1.msra.mxu0 0.0
  %4473 = vmatprep.subr.mxu0 0.0
  %4474 = vmatpush1.msra.mxu0 0.0
  %4475 = vmatprep.subr.mxu0 0.0
  %4476 = vmatpush1.msra.mxu0 0.0
  %4477 = vmatprep.subr.mxu0 0.0
  %4478 = vmatpush1.msra.mxu0 0.0
  %4479 = vmatprep.subr.mxu0 0.0
  %4480 = vmatpush1.msra.mxu0 0.0
  %4481 = vmatprep.subr.mxu0 0.0
  %4482 = vmatpush1.msra.mxu0 0.0
  %4483 = vmatprep.subr.mxu0 0.0
  %4484 = vmatpush1.msra.mxu0 0.0
  %4485 = vmatprep.subr.mxu0 0.0
  %4486 = vmatpush1.msra.mxu0 0.0
  %4487 = vmatprep.subr.mxu0 0.0
  %4488 = vmatpush1.msra.mxu0 0.0
  %4489 = vmatprep.subr.mxu0 0.0
  %4490 = vmatpush1.msra.mxu0 0.0
  %4491 = vmatprep.subr.mxu0 0.0
  %4492 = vmatpush1.msra.mxu0 0.0
  %4493 = vmatprep.subr.mxu0 0.0
  %4494 = vmatpush1.msra.mxu0 0.0
  %4495 = vmatprep.mubr.f32.mxu0 0.0
  %4496 = vmatmul.mubr.f32.gmra.mrb[0].mxu0 %v4429
  %v4497 = vpop.f32.mrb[0].mxu0
  %v4498 = vadd.f32 %v3591, %v4497
  %v4499 = vpop.f32.mrb[0].mxu0
  %v4500 = vadd.f32 %v3595, %v4499
  %4501 = vdwg.mxu0
  %4502 = vmatprep.subr.mxu0 0.0
  %4503 = vmatpush1.msra.mxu0 %v2397
  %4504 = vmatprep.subr.mxu0 0.0
  %4505 = vmatpush1.msra.mxu0 %v2400
  %4506 = vmatprep.subr.mxu0 0.0
  %4507 = vmatpush1.msra.mxu0 0.0
  %4508 = vmatprep.subr.mxu0 0.0
  %4509 = vmatpush1.msra.mxu0 0.0
  %4510 = vmatprep.subr.mxu0 0.0
  %4511 = vmatpush1.msra.mxu0 0.0
  %4512 = vmatprep.subr.mxu0 0.0
  %4513 = vmatpush1.msra.mxu0 0.0
  %4514 = vmatprep.subr.mxu0 0.0
  %4515 = vmatpush1.msra.mxu0 0.0
  %4516 = vmatprep.subr.mxu0 0.0
  %4517 = vmatpush1.msra.mxu0 0.0
  %4518 = vmatprep.subr.mxu0 0.0
  %4519 = vmatpush1.msra.mxu0 0.0
  %4520 = vmatprep.subr.mxu0 0.0
  %4521 = vmatpush1.msra.mxu0 0.0
  %4522 = vmatprep.subr.mxu0 0.0
  %4523 = vmatpush1.msra.mxu0 0.0
  %4524 = vmatprep.subr.mxu0 0.0
  %4525 = vmatpush1.msra.mxu0 0.0
  %4526 = vmatprep.subr.mxu0 0.0
  %4527 = vmatpush1.msra.mxu0 0.0
  %4528 = vmatprep.subr.mxu0 0.0
  %4529 = vmatpush1.msra.mxu0 0.0
  %4530 = vmatprep.subr.mxu0 0.0
  %4531 = vmatpush1.msra.mxu0 0.0
  %4532 = vmatprep.subr.mxu0 0.0
  %4533 = vmatpush1.msra.mxu0 0.0
  %4534 = vmatprep.subr.mxu0 0.0
  %4535 = vmatpush1.msra.mxu0 0.0
  %4536 = vmatprep.subr.mxu0 0.0
  %4537 = vmatpush1.msra.mxu0 0.0
  %4538 = vmatprep.subr.mxu0 0.0
  %4539 = vmatpush1.msra.mxu0 0.0
  %4540 = vmatprep.subr.mxu0 0.0
  %4541 = vmatpush1.msra.mxu0 0.0
  %4542 = vmatprep.subr.mxu0 0.0
  %4543 = vmatpush1.msra.mxu0 0.0
  %4544 = vmatprep.subr.mxu0 0.0
  %4545 = vmatpush1.msra.mxu0 0.0
  %4546 = vmatprep.subr.mxu0 0.0
  %4547 = vmatpush1.msra.mxu0 0.0
  %4548 = vmatprep.subr.mxu0 0.0
  %4549 = vmatpush1.msra.mxu0 0.0
  %4550 = vmatprep.subr.mxu0 0.0
  %4551 = vmatpush1.msra.mxu0 0.0
  %4552 = vmatprep.subr.mxu0 0.0
  %4553 = vmatpush1.msra.mxu0 0.0
  %4554 = vmatprep.subr.mxu0 0.0
  %4555 = vmatpush1.msra.mxu0 0.0
  %4556 = vmatprep.subr.mxu0 0.0
  %4557 = vmatpush1.msra.mxu0 0.0
  %4558 = vmatprep.subr.mxu0 0.0
  %4559 = vmatpush1.msra.mxu0 0.0
  %4560 = vmatprep.subr.mxu0 0.0
  %4561 = vmatpush1.msra.mxu0 0.0
  %4562 = vmatprep.subr.mxu0 0.0
  %4563 = vmatpush1.msra.mxu0 0.0
  %4564 = vmatprep.subr.mxu0 0.0
  %4565 = vmatpush1.msra.mxu0 0.0
  %4566 = vmatprep.mubr.f32.mxu0 0.0
  %4567 = vmatmul.mubr.f32.gmra.mrb[0].mxu0 %v4429
  %v4568 = vpop.f32.mrb[0].mxu0
  %v4569 = vadd.f32 %v3599, %v4568
  %v4570 = vpop.f32.mrb[0].mxu0
  %4571 = vdwg.mxu0
  %v4572 = vadd.f32 %v3223, %v4498
  %v4573 = vadd.f32 %v3225, %v4500
  %v4574 = vxor.u32 %v4572, 2147483648
  %v4575 = vmul.f32 %v4574, 1.442695
  %v4576 = vpow.pop %v4575
  %v4577 = vadd.f32 %v4576, 1.0
  %v4578 = vrcp.pop %v4577
  %v4579 = vmul.f32 1.0, %v4578
  %v4580 = vxor.u32 %v4573, 2147483648
  %v4581 = vmul.f32 %v4580, 1.442695
  %v4582 = vpow.pop %v4581
  %v4583 = vadd.f32 %v4582, 1.0
  %v4584 = vrcp.pop %v4583
  %v4585 = vmul.f32 1.0, %v4584
  %v4586 = vmul.f32 %v4579, %v4569
  %v4587 = vadd.f32 %v3294, %v4586
  %v4588 = vtanh.pop %v4587
  %v4589 = vsub.f32 1.0, %v4585
  %v4590 = vmul.f32 %v4589, %v4588
  %v4591 = vmul.f32 %v4585, %v4427
  %v4592 = vadd.f32 %v4590, %v4591
  %v4594 = vsel %vm1986, %v4592, 0
  %4596 = vmatprep.subr.mxu0 %v2396
  %4597 = vmatpush1.msra.mxu0 %v2395
  %4598 = vmatprep.subr.mxu0 %v2399
  %4599 = vmatpush1.msra.mxu0 %v2398
  %4600 = vmatprep.subr.mxu0 0.0
  %4601 = vmatpush1.msra.mxu0 0.0
  %4602 = vmatprep.subr.mxu0 0.0
  %4603 = vmatpush1.msra.mxu0 0.0
  %4604 = vmatprep.subr.mxu0 0.0
  %4605 = vmatpush1.msra.mxu0 0.0
  %4606 = vmatprep.subr.mxu0 0.0
  %4607 = vmatpush1.msra.mxu0 0.0
  %4608 = vmatprep.subr.mxu0 0.0
  %4609 = vmatpush1.msra.mxu0 0.0
  %4610 = vmatprep.subr.mxu0 0.0
  %4611 = vmatpush1.msra.mxu0 0.0
  %4612 = vmatprep.subr.mxu0 0.0
  %4613 = vmatpush1.msra.mxu0 0.0
  %4614 = vmatprep.subr.mxu0 0.0
  %4615 = vmatpush1.msra.mxu0 0.0
  %4616 = vmatprep.subr.mxu0 0.0
  %4617 = vmatpush1.msra.mxu0 0.0
  %4618 = vmatprep.subr.mxu0 0.0
  %4619 = vmatpush1.msra.mxu0 0.0
  %4620 = vmatprep.subr.mxu0 0.0
  %4621 = vmatpush1.msra.mxu0 0.0
  %4622 = vmatprep.subr.mxu0 0.0
  %4623 = vmatpush1.msra.mxu0 0.0
  %4624 = vmatprep.subr.mxu0 0.0
  %4625 = vmatpush1.msra.mxu0 0.0
  %4626 = vmatprep.subr.mxu0 0.0
  %4627 = vmatpush1.msra.mxu0 0.0
  %4628 = vmatprep.subr.mxu0 0.0
  %4629 = vmatpush1.msra.mxu0 0.0
  %4630 = vmatprep.subr.mxu0 0.0
  %4631 = vmatpush1.msra.mxu0 0.0
  %4632 = vmatprep.subr.mxu0 0.0
  %4633 = vmatpush1.msra.mxu0 0.0
  %4634 = vmatprep.subr.mxu0 0.0
  %4635 = vmatpush1.msra.mxu0 0.0
  %4636 = vmatprep.subr.mxu0 0.0
  %4637 = vmatpush1.msra.mxu0 0.0
  %4638 = vmatprep.subr.mxu0 0.0
  %4639 = vmatpush1.msra.mxu0 0.0
  %4640 = vmatprep.subr.mxu0 0.0
  %4641 = vmatpush1.msra.mxu0 0.0
  %4642 = vmatprep.subr.mxu0 0.0
  %4643 = vmatpush1.msra.mxu0 0.0
  %4644 = vmatprep.subr.mxu0 0.0
  %4645 = vmatpush1.msra.mxu0 0.0
  %4646 = vmatprep.subr.mxu0 0.0
  %4647 = vmatpush1.msra.mxu0 0.0
  %4648 = vmatprep.subr.mxu0 0.0
  %4649 = vmatpush1.msra.mxu0 0.0
  %4650 = vmatprep.subr.mxu0 0.0
  %4651 = vmatpush1.msra.mxu0 0.0
  %4652 = vmatprep.subr.mxu0 0.0
  %4653 = vmatpush1.msra.mxu0 0.0
  %4654 = vmatprep.subr.mxu0 0.0
  %4655 = vmatpush1.msra.mxu0 0.0
  %4656 = vmatprep.subr.mxu0 0.0
  %4657 = vmatpush1.msra.mxu0 0.0
  %4658 = vmatprep.subr.mxu0 0.0
  %4659 = vmatpush1.msra.mxu0 0.0
  %4660 = vmatprep.mubr.f32.mxu0 0.0
  %4661 = vmatmul.mubr.f32.gmra.mrb[0].mxu0 %v4594
  %v4662 = vpop.f32.mrb[0].mxu0
  %v4663 = vadd.f32 %v3591, %v4662
  %v4664 = vpop.f32.mrb[0].mxu0
  %v4665 = vadd.f32 %v3595, %v4664
  %4666 = vdwg.mxu0
  %4667 = vmatprep.subr.mxu0 0.0
  %4668 = vmatpush1.msra.mxu0 %v2397
  %4669 = vmatprep.subr.mxu0 0.0
  %4670 = vmatpush1.msra.mxu0 %v2400
  %4671 = vmatprep.subr.mxu0 0.0
  %4672 = vmatpush1.msra.mxu0 0.0
  %4673 = vmatprep.subr.mxu0 0.0
  %4674 = vmatpush1.msra.mxu0 0.0
  %4675 = vmatprep.subr.mxu0 0.0
  %4676 = vmatpush1.msra.mxu0 0.0
  %4677 = vmatprep.subr.mxu0 0.0
  %4678 = vmatpush1.msra.mxu0 0.0
  %4679 = vmatprep.subr.mxu0 0.0
  %4680 = vmatpush1.msra.mxu0 0.0
  %4681 = vmatprep.subr.mxu0 0.0
  %4682 = vmatpush1.msra.mxu0 0.0
  %4683 = vmatprep.subr.mxu0 0.0
  %4684 = vmatpush1.msra.mxu0 0.0
  %4685 = vmatprep.subr.mxu0 0.0
  %4686 = vmatpush1.msra.mxu0 0.0
  %4687 = vmatprep.subr.mxu0 0.0
  %4688 = vmatpush1.msra.mxu0 0.0
  %4689 = vmatprep.subr.mxu0 0.0
  %4690 = vmatpush1.msra.mxu0 0.0
  %4691 = vmatprep.subr.mxu0 0.0
  %4692 = vmatpush1.msra.mxu0 0.0
  %4693 = vmatprep.subr.mxu0 0.0
  %4694 = vmatpush1.msra.mxu0 0.0
  %4695 = vmatprep.subr.mxu0 0.0
  %4696 = vmatpush1.msra.mxu0 0.0
  %4697 = vmatprep.subr.mxu0 0.0
  %4698 = vmatpush1.msra.mxu0 0.0
  %4699 = vmatprep.subr.mxu0 0.0
  %4700 = vmatpush1.msra.mxu0 0.0
  %4701 = vmatprep.subr.mxu0 0.0
  %4702 = vmatpush1.msra.mxu0 0.0
  %4703 = vmatprep.subr.mxu0 0.0
  %4704 = vmatpush1.msra.mxu0 0.0
  %4705 = vmatprep.subr.mxu0 0.0
  %4706 = vmatpush1.msra.mxu0 0.0
  %4707 = vmatprep.subr.mxu0 0.0
  %4708 = vmatpush1.msra.mxu0 0.0
  %4709 = vmatprep.subr.mxu0 0.0
  %4710 = vmatpush1.msra.mxu0 0.0
  %4711 = vmatprep.subr.mxu0 0.0
  %4712 = vmatpush1.msra.mxu0 0.0
  %4713 = vmatprep.subr.mxu0 0.0
  %4714 = vmatpush1.msra.mxu0 0.0
  %4715 = vmatprep.subr.mxu0 0.0
  %4716 = vmatpush1.msra.mxu0 0.0
  %4717 = vmatprep.subr.mxu0 0.0
  %4718 = vmatpush1.msra.mxu0 0.0
  %4719 = vmatprep.subr.mxu0 0.0
  %4720 = vmatpush1.msra.mxu0 0.0
  %4721 = vmatprep.subr.mxu0 0.0
  %4722 = vmatpush1.msra.mxu0 0.0
  %4723 = vmatprep.subr.mxu0 0.0
  %4724 = vmatpush1.msra.mxu0 0.0
  %4725 = vmatprep.subr.mxu0 0.0
  %4726 = vmatpush1.msra.mxu0 0.0
  %4727 = vmatprep.subr.mxu0 0.0
  %4728 = vmatpush1.msra.mxu0 0.0
  %4729 = vmatprep.subr.mxu0 0.0
  %4730 = vmatpush1.msra.mxu0 0.0
  %4731 = vmatprep.mubr.f32.mxu0 0.0
  %4732 = vmatmul.mubr.f32.gmra.mrb[0].mxu0 %v4594
  %v4733 = vpop.f32.mrb[0].mxu0
  %v4734 = vadd.f32 %v3599, %v4733
  %v4735 = vpop.f32.mrb[0].mxu0
  %4736 = vdwg.mxu0
  %v4737 = vadd.f32 %v3368, %v4663
  %v4738 = vadd.f32 %v3370, %v4665
  %v4739 = vxor.u32 %v4737, 2147483648
  %v4740 = vmul.f32 %v4739, 1.442695
  %v4741 = vpow.pop %v4740
  %v4742 = vadd.f32 %v4741, 1.0
  %v4743 = vrcp.pop %v4742
  %v4744 = vmul.f32 1.0, %v4743
  %v4745 = vxor.u32 %v4738, 2147483648
  %v4746 = vmul.f32 %v4745, 1.442695
  %v4747 = vpow.pop %v4746
  %v4748 = vadd.f32 %v4747, 1.0
  %v4749 = vrcp.pop %v4748
  %v4750 = vmul.f32 1.0, %v4749
  %v4751 = vmul.f32 %v4744, %v4734
  %v4752 = vadd.f32 %v3439, %v4751
  %v4753 = vtanh.pop %v4752
  %v4754 = vsub.f32 1.0, %v4750
  %v4755 = vmul.f32 %v4754, %v4753
  %v4756 = vmul.f32 %v4750, %v4592
  %v4757 = vadd.f32 %v4755, %v4756
  %v4759 = vsel %vm1986, %v4757, 0
  %4761 = vmatprep.subr.mxu0 %v2396
  %4762 = vmatpush1.msra.mxu0 %v2395
  %4763 = vmatprep.subr.mxu0 %v2399
  %4764 = vmatpush1.msra.mxu0 %v2398
  %4765 = vmatprep.subr.mxu0 0.0
  %4766 = vmatpush1.msra.mxu0 0.0
  %4767 = vmatprep.subr.mxu0 0.0
  %4768 = vmatpush1.msra.mxu0 0.0
  %4769 = vmatprep.subr.mxu0 0.0
  %4770 = vmatpush1.msra.mxu0 0.0
  %4771 = vmatprep.subr.mxu0 0.0
  %4772 = vmatpush1.msra.mxu0 0.0
  %4773 = vmatprep.subr.mxu0 0.0
  %4774 = vmatpush1.msra.mxu0 0.0
  %4775 = vmatprep.subr.mxu0 0.0
  %4776 = vmatpush1.msra.mxu0 0.0
  %4777 = vmatprep.subr.mxu0 0.0
  %4778 = vmatpush1.msra.mxu0 0.0
  %4779 = vmatprep.subr.mxu0 0.0
  %4780 = vmatpush1.msra.mxu0 0.0
  %4781 = vmatprep.subr.mxu0 0.0
  %4782 = vmatpush1.msra.mxu0 0.0
  %4783 = vmatprep.subr.mxu0 0.0
  %4784 = vmatpush1.msra.mxu0 0.0
  %4785 = vmatprep.subr.mxu0 0.0
  %4786 = vmatpush1.msra.mxu0 0.0
  %4787 = vmatprep.subr.mxu0 0.0
  %4788 = vmatpush1.msra.mxu0 0.0
  %4789 = vmatprep.subr.mxu0 0.0
  %4790 = vmatpush1.msra.mxu0 0.0
  %4791 = vmatprep.subr.mxu0 0.0
  %4792 = vmatpush1.msra.mxu0 0.0
  %4793 = vmatprep.subr.mxu0 0.0
  %4794 = vmatpush1.msra.mxu0 0.0
  %4795 = vmatprep.subr.mxu0 0.0
  %4796 = vmatpush1.msra.mxu0 0.0
  %4797 = vmatprep.subr.mxu0 0.0
  %4798 = vmatpush1.msra.mxu0 0.0
  %4799 = vmatprep.subr.mxu0 0.0
  %4800 = vmatpush1.msra.mxu0 0.0
  %4801 = vmatprep.subr.mxu0 0.0
  %4802 = vmatpush1.msra.mxu0 0.0
  %4803 = vmatprep.subr.mxu0 0.0
  %4804 = vmatpush1.msra.mxu0 0.0
  %4805 = vmatprep.subr.mxu0 0.0
  %4806 = vmatpush1.msra.mxu0 0.0
  %4807 = vmatprep.subr.mxu0 0.0
  %4808 = vmatpush1.msra.mxu0 0.0
  %4809 = vmatprep.subr.mxu0 0.0
  %4810 = vmatpush1.msra.mxu0 0.0
  %4811 = vmatprep.subr.mxu0 0.0
  %4812 = vmatpush1.msra.mxu0 0.0
  %4813 = vmatprep.subr.mxu0 0.0
  %4814 = vmatpush1.msra.mxu0 0.0
  %4815 = vmatprep.subr.mxu0 0.0
  %4816 = vmatpush1.msra.mxu0 0.0
  %4817 = vmatprep.subr.mxu0 0.0
  %4818 = vmatpush1.msra.mxu0 0.0
  %4819 = vmatprep.subr.mxu0 0.0
  %4820 = vmatpush1.msra.mxu0 0.0
  %4821 = vmatprep.subr.mxu0 0.0
  %4822 = vmatpush1.msra.mxu0 0.0
  %4823 = vmatprep.subr.mxu0 0.0
  %4824 = vmatpush1.msra.mxu0 0.0
  %4825 = vmatprep.mubr.f32.mxu0 0.0
  %4826 = vmatmul.mubr.f32.gmra.mrb[0].mxu0 %v4759
  %v4827 = vpop.f32.mrb[0].mxu0
  %v4828 = vadd.f32 %v3591, %v4827
  %v4829 = vpop.f32.mrb[0].mxu0
  %v4830 = vadd.f32 %v3595, %v4829
  %4831 = vdwg.mxu0
  %4832 = vmatprep.subr.mxu0 0.0
  %4833 = vmatpush1.msra.mxu0 %v2397
  %4834 = vmatprep.subr.mxu0 0.0
  %4835 = vmatpush1.msra.mxu0 %v2400
  %4836 = vmatprep.subr.mxu0 0.0
  %4837 = vmatpush1.msra.mxu0 0.0
  %4838 = vmatprep.subr.mxu0 0.0
  %4839 = vmatpush1.msra.mxu0 0.0
  %4840 = vmatprep.subr.mxu0 0.0
  %4841 = vmatpush1.msra.mxu0 0.0
  %4842 = vmatprep.subr.mxu0 0.0
  %4843 = vmatpush1.msra.mxu0 0.0
  %4844 = vmatprep.subr.mxu0 0.0
  %4845 = vmatpush1.msra.mxu0 0.0
  %4846 = vmatprep.subr.mxu0 0.0
  %4847 = vmatpush1.msra.mxu0 0.0
  %4848 = vmatprep.subr.mxu0 0.0
  %4849 = vmatpush1.msra.mxu0 0.0
  %4850 = vmatprep.subr.mxu0 0.0
  %4851 = vmatpush1.msra.mxu0 0.0
  %4852 = vmatprep.subr.mxu0 0.0
  %4853 = vmatpush1.msra.mxu0 0.0
  %4854 = vmatprep.subr.mxu0 0.0
  %4855 = vmatpush1.msra.mxu0 0.0
  %4856 = vmatprep.subr.mxu0 0.0
  %4857 = vmatpush1.msra.mxu0 0.0
  %4858 = vmatprep.subr.mxu0 0.0
  %4859 = vmatpush1.msra.mxu0 0.0
  %4860 = vmatprep.subr.mxu0 0.0
  %4861 = vmatpush1.msra.mxu0 0.0
  %4862 = vmatprep.subr.mxu0 0.0
  %4863 = vmatpush1.msra.mxu0 0.0
  %4864 = vmatprep.subr.mxu0 0.0
  %4865 = vmatpush1.msra.mxu0 0.0
  %4866 = vmatprep.subr.mxu0 0.0
  %4867 = vmatpush1.msra.mxu0 0.0
  %4868 = vmatprep.subr.mxu0 0.0
  %4869 = vmatpush1.msra.mxu0 0.0
  %4870 = vmatprep.subr.mxu0 0.0
  %4871 = vmatpush1.msra.mxu0 0.0
  %4872 = vmatprep.subr.mxu0 0.0
  %4873 = vmatpush1.msra.mxu0 0.0
  %4874 = vmatprep.subr.mxu0 0.0
  %4875 = vmatpush1.msra.mxu0 0.0
  %4876 = vmatprep.subr.mxu0 0.0
  %4877 = vmatpush1.msra.mxu0 0.0
  %4878 = vmatprep.subr.mxu0 0.0
  %4879 = vmatpush1.msra.mxu0 0.0
  %4880 = vmatprep.subr.mxu0 0.0
  %4881 = vmatpush1.msra.mxu0 0.0
  %4882 = vmatprep.subr.mxu0 0.0
  %4883 = vmatpush1.msra.mxu0 0.0
  %4884 = vmatprep.subr.mxu0 0.0
  %4885 = vmatpush1.msra.mxu0 0.0
  %4886 = vmatprep.subr.mxu0 0.0
  %4887 = vmatpush1.msra.mxu0 0.0
  %4888 = vmatprep.subr.mxu0 0.0
  %4889 = vmatpush1.msra.mxu0 0.0
  %4890 = vmatprep.subr.mxu0 0.0
  %4891 = vmatpush1.msra.mxu0 0.0
  %4892 = vmatprep.subr.mxu0 0.0
  %4893 = vmatpush1.msra.mxu0 0.0
  %4894 = vmatprep.subr.mxu0 0.0
  %4895 = vmatpush1.msra.mxu0 0.0
  %4896 = vmatprep.mubr.f32.mxu0 0.0
  %4897 = vmatmul.mubr.f32.gmra.mrb[0].mxu0 %v4759
  %v4898 = vpop.f32.mrb[0].mxu0
  %v4899 = vadd.f32 %v3599, %v4898
  %v4900 = vpop.f32.mrb[0].mxu0
  %4901 = vdwg.mxu0
  %v4902 = vadd.f32 %v3513, %v4828
  %v4903 = vadd.f32 %v3515, %v4830
  %v4904 = vxor.u32 %v4902, 2147483648
  %v4905 = vmul.f32 %v4904, 1.442695
  %v4906 = vpow.pop %v4905
  %v4907 = vadd.f32 %v4906, 1.0
  %v4908 = vrcp.pop %v4907
  %v4909 = vmul.f32 1.0, %v4908
  %v4910 = vxor.u32 %v4903, 2147483648
  %v4911 = vmul.f32 %v4910, 1.442695
  %v4912 = vpow.pop %v4911
  %v4913 = vadd.f32 %v4912, 1.0
  %v4914 = vrcp.pop %v4913
  %v4915 = vmul.f32 1.0, %v4914
  %v4916 = vmul.f32 %v4909, %v4899
  %v4917 = vadd.f32 %v3584, %v4916
  %v4918 = vtanh.pop %v4917
  %v4919 = vsub.f32 1.0, %v4915
  %v4920 = vmul.f32 %v4919, %v4918
  %v4921 = vmul.f32 %v4915, %v4757
  %v4922 = vadd.f32 %v4920, %v4921
  %v4923 = vld [vmem:[%s3 + $0xf0] sm:$0xff]
  %v4924 = vld [vmem:[%s3 + $0xf8] sm:$0xff]
  %v4925 = vlaneseq
  %v4926 = vshrl.u32 %v4925, 7
  %v4927 = vsub.s32 5, %v4926
  %v4928 = vrot.slane %v17, %v4927
  %v4930 = vsel %vm1986, %v4922, 0
  %4932 = vmatprep.subr.mxu0 0.0
  %4933 = vmatpush1.msra.mxu0 %v4923
  %4934 = vmatprep.subr.mxu0 0.0
  %4935 = vmatpush1.msra.mxu0 %v4924
  %4936 = vmatprep.subr.mxu0 0.0
  %4937 = vmatpush1.msra.mxu0 0.0
  %4938 = vmatprep.subr.mxu0 0.0
  %4939 = vmatpush1.msra.mxu0 0.0
  %4940 = vmatprep.subr.mxu0 0.0
  %4941 = vmatpush1.msra.mxu0 0.0
  %4942 = vmatprep.subr.mxu0 0.0
  %4943 = vmatpush1.msra.mxu0 0.0
  %4944 = vmatprep.subr.mxu0 0.0
  %4945 = vmatpush1.msra.mxu0 0.0
  %4946 = vmatprep.subr.mxu0 0.0
  %4947 = vmatpush1.msra.mxu0 0.0
  %4948 = vmatprep.subr.mxu0 0.0
  %4949 = vmatpush1.msra.mxu0 0.0
  %4950 = vmatprep.subr.mxu0 0.0
  %4951 = vmatpush1.msra.mxu0 0.0
  %4952 = vmatprep.subr.mxu0 0.0
  %4953 = vmatpush1.msra.mxu0 0.0
  %4954 = vmatprep.subr.mxu0 0.0
  %4955 = vmatpush1.msra.mxu0 0.0
  %4956 = vmatprep.subr.mxu0 0.0
  %4957 = vmatpush1.msra.mxu0 0.0
  %4958 = vmatprep.subr.mxu0 0.0
  %4959 = vmatpush1.msra.mxu0 0.0
  %4960 = vmatprep.subr.mxu0 0.0
  %4961 = vmatpush1.msra.mxu0 0.0
  %4962 = vmatprep.subr.mxu0 0.0
  %4963 = vmatpush1.msra.mxu0 0.0
  %4964 = vmatprep.subr.mxu0 0.0
  %4965 = vmatpush1.msra.mxu0 0.0
  %4966 = vmatprep.subr.mxu0 0.0
  %4967 = vmatpush1.msra.mxu0 0.0
  %4968 = vmatprep.subr.mxu0 0.0
  %4969 = vmatpush1.msra.mxu0 0.0
  %4970 = vmatprep.subr.mxu0 0.0
  %4971 = vmatpush1.msra.mxu0 0.0
  %4972 = vmatprep.subr.mxu0 0.0
  %4973 = vmatpush1.msra.mxu0 0.0
  %4974 = vmatprep.subr.mxu0 0.0
  %4975 = vmatpush1.msra.mxu0 0.0
  %4976 = vmatprep.subr.mxu0 0.0
  %4977 = vmatpush1.msra.mxu0 0.0
  %4978 = vmatprep.subr.mxu0 0.0
  %4979 = vmatpush1.msra.mxu0 0.0
  %4980 = vmatprep.subr.mxu0 0.0
  %4981 = vmatpush1.msra.mxu0 0.0
  %4982 = vmatprep.subr.mxu0 0.0
  %4983 = vmatpush1.msra.mxu0 0.0
  %4984 = vmatprep.subr.mxu0 0.0
  %4985 = vmatpush1.msra.mxu0 0.0
  %4986 = vmatprep.subr.mxu0 0.0
  %4987 = vmatpush1.msra.mxu0 0.0
  %4988 = vmatprep.subr.mxu0 0.0
  %4989 = vmatpush1.msra.mxu0 0.0
  %4990 = vmatprep.subr.mxu0 0.0
  %4991 = vmatpush1.msra.mxu0 0.0
  %4992 = vmatprep.subr.mxu0 0.0
  %4993 = vmatpush1.msra.mxu0 0.0
  %4994 = vmatprep.subr.mxu0 0.0
  %4995 = vmatpush1.msra.mxu0 0.0
  %4996 = vmatprep.mubr.f32.mxu0 0.0
  %4997 = vmatmul.mubr.f32.gmra.mrb[0].mxu0 %v4930
  %v4998 = vpop.f32.mrb[0].mxu0
  %v4999 = vadd.f32 %v4928, %v4998
  %v5000 = vpop.f32.mrb[0].mxu0
  %5001 = vdwg.mxu0
  %v5002 = vmax.f32 %v4999, 0.0
  %v5003 = vld [vmem:[%s3 + $0x100] sm:$0xff]
  %v5004 = vld [vmem:[%s3 + $0x108] sm:$0xff]
  %v5005 = vld [vmem:[%s3 + $0x110] sm:$0xff]
  %v5006 = vld [vmem:[%s3 + $0x118] sm:$0xff]
  %v5007 = vlaneseq
  %v5008 = vshrl.u32 %v5007, 7
  %v5009 = vsub.s32 6, %v5008
  %v5010 = vrot.slane %v17, %v5009
  %v5012 = vsel %vm1906, %v5002, 0
  %5014 = vmatprep.subr.mxu0 0.0
  %5015 = vmatpush1.msra.mxu0 %v5003
  %5016 = vmatprep.subr.mxu0 0.0
  %5017 = vmatpush1.msra.mxu0 %v5004
  %5018 = vmatprep.subr.mxu0 0.0
  %5019 = vmatpush1.msra.mxu0 %v5005
  %5020 = vmatprep.subr.mxu0 0.0
  %5021 = vmatpush1.msra.mxu0 %v5006
  %5022 = vmatprep.subr.mxu0 0.0
  %5023 = vmatpush1.msra.mxu0 0.0
  %5024 = vmatprep.subr.mxu0 0.0
  %5025 = vmatpush1.msra.mxu0 0.0
  %5026 = vmatprep.subr.mxu0 0.0
  %5027 = vmatpush1.msra.mxu0 0.0
  %5028 = vmatprep.subr.mxu0 0.0
  %5029 = vmatpush1.msra.mxu0 0.0
  %5030 = vmatprep.subr.mxu0 0.0
  %5031 = vmatpush1.msra.mxu0 0.0
  %5032 = vmatprep.subr.mxu0 0.0
  %5033 = vmatpush1.msra.mxu0 0.0
  %5034 = vmatprep.subr.mxu0 0.0
  %5035 = vmatpush1.msra.mxu0 0.0
  %5036 = vmatprep.subr.mxu0 0.0
  %5037 = vmatpush1.msra.mxu0 0.0
  %5038 = vmatprep.subr.mxu0 0.0
  %5039 = vmatpush1.msra.mxu0 0.0
  %5040 = vmatprep.subr.mxu0 0.0
  %5041 = vmatpush1.msra.mxu0 0.0
  %5042 = vmatprep.subr.mxu0 0.0
  %5043 = vmatpush1.msra.mxu0 0.0
  %5044 = vmatprep.subr.mxu0 0.0
  %5045 = vmatpush1.msra.mxu0 0.0
  %5046 = vmatprep.subr.mxu0 0.0
  %5047 = vmatpush1.msra.mxu0 0.0
  %5048 = vmatprep.subr.mxu0 0.0
  %5049 = vmatpush1.msra.mxu0 0.0
  %5050 = vmatprep.subr.mxu0 0.0
  %5051 = vmatpush1.msra.mxu0 0.0
  %5052 = vmatprep.subr.mxu0 0.0
  %5053 = vmatpush1.msra.mxu0 0.0
  %5054 = vmatprep.subr.mxu0 0.0
  %5055 = vmatpush1.msra.mxu0 0.0
  %5056 = vmatprep.subr.mxu0 0.0
  %5057 = vmatpush1.msra.mxu0 0.0
  %5058 = vmatprep.subr.mxu0 0.0
  %5059 = vmatpush1.msra.mxu0 0.0
  %5060 = vmatprep.subr.mxu0 0.0
  %5061 = vmatpush1.msra.mxu0 0.0
  %5062 = vmatprep.subr.mxu0 0.0
  %5063 = vmatpush1.msra.mxu0 0.0
  %5064 = vmatprep.subr.mxu0 0.0
  %5065 = vmatpush1.msra.mxu0 0.0
  %5066 = vmatprep.subr.mxu0 0.0
  %5067 = vmatpush1.msra.mxu0 0.0
  %5068 = vmatprep.subr.mxu0 0.0
  %5069 = vmatpush1.msra.mxu0 0.0
  %5070 = vmatprep.subr.mxu0 0.0
  %5071 = vmatpush1.msra.mxu0 0.0
  %5072 = vmatprep.subr.mxu0 0.0
  %5073 = vmatpush1.msra.mxu0 0.0
  %5074 = vmatprep.subr.mxu0 0.0
  %5075 = vmatpush1.msra.mxu0 0.0
  %5076 = vmatprep.subr.mxu0 0.0
  %5077 = vmatpush1.msra.mxu0 0.0
  %5078 = vmatprep.mubr.f32.mxu0 0.0
  %5079 = vmatmul.mubr.f32.gmra.mrb[0].mxu0 %v5012
  %v5080 = vpop.f32.mrb[0].mxu0
  %v5081 = vadd.f32 %v5010, %v5080
  %v5082 = vpop.f32.mrb[0].mxu0
  %5083 = vdwg.mxu0
  %v5084 = vld [vmem:[%s3 + $0x120] sm:$0xff]
  %v5085 = vld [vmem:[%s3 + $0x128] sm:$0xff]
  %v5086 = vld [vmem:[%s3 + $0x130] sm:$0xff]
  %v5087 = vld [vmem:[%s3 + $0x138] sm:$0xff]
  %5088 = vmatprep.subr.mxu0 0.0
  %5089 = vmatpush1.msra.mxu0 %v5084
  %5090 = vmatprep.subr.mxu0 0.0
  %5091 = vmatpush1.msra.mxu0 %v5085
  %5092 = vmatprep.subr.mxu0 0.0
  %5093 = vmatpush1.msra.mxu0 %v5086
  %5094 = vmatprep.subr.mxu0 0.0
  %5095 = vmatpush1.msra.mxu0 %v5087
  %5096 = vmatprep.subr.mxu0 0.0
  %5097 = vmatpush1.msra.mxu0 0.0
  %5098 = vmatprep.subr.mxu0 0.0
  %5099 = vmatpush1.msra.mxu0 0.0
  %5100 = vmatprep.subr.mxu0 0.0
  %5101 = vmatpush1.msra.mxu0 0.0
  %5102 = vmatprep.subr.mxu0 0.0
  %5103 = vmatpush1.msra.mxu0 0.0
  %5104 = vmatprep.subr.mxu0 0.0
  %5105 = vmatpush1.msra.mxu0 0.0
  %5106 = vmatprep.subr.mxu0 0.0
  %5107 = vmatpush1.msra.mxu0 0.0
  %5108 = vmatprep.subr.mxu0 0.0
  %5109 = vmatpush1.msra.mxu0 0.0
  %5110 = vmatprep.subr.mxu0 0.0
  %5111 = vmatpush1.msra.mxu0 0.0
  %5112 = vmatprep.subr.mxu0 0.0
  %5113 = vmatpush1.msra.mxu0 0.0
  %5114 = vmatprep.subr.mxu0 0.0
  %5115 = vmatpush1.msra.mxu0 0.0
  %5116 = vmatprep.subr.mxu0 0.0
  %5117 = vmatpush1.msra.mxu0 0.0
  %5118 = vmatprep.subr.mxu0 0.0
  %5119 = vmatpush1.msra.mxu0 0.0
  %5120 = vmatprep.subr.mxu0 0.0
  %5121 = vmatpush1.msra.mxu0 0.0
  %5122 = vmatprep.subr.mxu0 0.0
  %5123 = vmatpush1.msra.mxu0 0.0
  %5124 = vmatprep.subr.mxu0 0.0
  %5125 = vmatpush1.msra.mxu0 0.0
  %5126 = vmatprep.subr.mxu0 0.0
  %5127 = vmatpush1.msra.mxu0 0.0
  %5128 = vmatprep.subr.mxu0 0.0
  %5129 = vmatpush1.msra.mxu0 0.0
  %5130 = vmatprep.subr.mxu0 0.0
  %5131 = vmatpush1.msra.mxu0 0.0
  %5132 = vmatprep.subr.mxu0 0.0
  %5133 = vmatpush1.msra.mxu0 0.0
  %5134 = vmatprep.subr.mxu0 0.0
  %5135 = vmatpush1.msra.mxu0 0.0
  %5136 = vmatprep.subr.mxu0 0.0
  %5137 = vmatpush1.msra.mxu0 0.0
  %5138 = vmatprep.subr.mxu0 0.0
  %5139 = vmatpush1.msra.mxu0 0.0
  %5140 = vmatprep.subr.mxu0 0.0
  %5141 = vmatpush1.msra.mxu0 0.0
  %5142 = vmatprep.subr.mxu0 0.0
  %5143 = vmatpush1.msra.mxu0 0.0
  %5144 = vmatprep.subr.mxu0 0.0
  %5145 = vmatpush1.msra.mxu0 0.0
  %5146 = vmatprep.subr.mxu0 0.0
  %5147 = vmatpush1.msra.mxu0 0.0
  %5148 = vmatprep.subr.mxu0 0.0
  %5149 = vmatpush1.msra.mxu0 0.0
  %5150 = vmatprep.subr.mxu0 0.0
  %5151 = vmatpush1.msra.mxu0 0.0
  %5152 = vmatprep.mubr.f32.mxu0 0.0
  %5153 = vmatmul.mubr.f32.gmra.mrb[0].mxu0 %v2140
  %v5154 = vpop.f32.mrb[0].mxu0
  %v5155 = vadd.f32 0.0, %v5154
  %v5156 = vpop.f32.mrb[0].mxu0
  %5157 = vdwg.mxu0
  %v5158 = vld [vmem:[%s3 + $0x140] sm:$0xff]
  %v5159 = vld [vmem:[%s3 + $0x148] sm:$0xff]
  %v5160 = vld [vmem:[%s3 + $0x150] sm:$0xff]
  %v5161 = vld [vmem:[%s3 + $0x158] sm:$0xff]
  %v5162 = vld [vmem:[%s3 + $0x160] sm:$0xff]
  %v5163 = vld [vmem:[%s3 + $0x168] sm:$0xff]
  %v5164 = vld [vmem:[%s3 + $0x170] sm:$0xff]
  %v5165 = vld [vmem:[%s3 + $0x178] sm:$0xff]
  %v5166 = vld [vmem:[%s3 + $0x180] sm:$0xff]
  %v5167 = vld [vmem:[%s3 + $0x188] sm:$0xff]
  %v5169 = vsel %vm1986, %v5081, 0
  %5171 = vmatprep.subr.mxu0 0.0
  %5172 = vmatpush1.msra.mxu0 %v5158
  %5173 = vmatprep.subr.mxu0 0.0
  %5174 = vmatpush1.msra.mxu0 %v5159
  %5175 = vmatprep.subr.mxu0 0.0
  %5176 = vmatpush1.msra.mxu0 0.0
  %5177 = vmatprep.subr.mxu0 0.0
  %5178 = vmatpush1.msra.mxu0 0.0
  %5179 = vmatprep.subr.mxu0 0.0
  %5180 = vmatpush1.msra.mxu0 0.0
  %5181 = vmatprep.subr.mxu0 0.0
  %5182 = vmatpush1.msra.mxu0 0.0
  %5183 = vmatprep.subr.mxu0 0.0
  %5184 = vmatpush1.msra.mxu0 0.0
  %5185 = vmatprep.subr.mxu0 0.0
  %5186 = vmatpush1.msra.mxu0 0.0
  %5187 = vmatprep.subr.mxu0 0.0
  %5188 = vmatpush1.msra.mxu0 0.0
  %5189 = vmatprep.subr.mxu0 0.0
  %5190 = vmatpush1.msra.mxu0 0.0
  %5191 = vmatprep.subr.mxu0 0.0
  %5192 = vmatpush1.msra.mxu0 0.0
  %5193 = vmatprep.subr.mxu0 0.0
  %5194 = vmatpush1.msra.mxu0 0.0
  %5195 = vmatprep.subr.mxu0 0.0
  %5196 = vmatpush1.msra.mxu0 0.0
  %5197 = vmatprep.subr.mxu0 0.0
  %5198 = vmatpush1.msra.mxu0 0.0
  %5199 = vmatprep.subr.mxu0 0.0
  %5200 = vmatpush1.msra.mxu0 0.0
  %5201 = vmatprep.subr.mxu0 0.0
  %5202 = vmatpush1.msra.mxu0 0.0
  %5203 = vmatprep.subr.mxu0 0.0
  %5204 = vmatpush1.msra.mxu0 0.0
  %5205 = vmatprep.subr.mxu0 0.0
  %5206 = vmatpush1.msra.mxu0 0.0
  %5207 = vmatprep.subr.mxu0 0.0
  %5208 = vmatpush1.msra.mxu0 0.0
  %5209 = vmatprep.subr.mxu0 0.0
  %5210 = vmatpush1.msra.mxu0 0.0
  %5211 = vmatprep.subr.mxu0 0.0
  %5212 = vmatpush1.msra.mxu0 0.0
  %5213 = vmatprep.subr.mxu0 0.0
  %5214 = vmatpush1.msra.mxu0 0.0
  %5215 = vmatprep.subr.mxu0 0.0
  %5216 = vmatpush1.msra.mxu0 0.0
  %5217 = vmatprep.subr.mxu0 0.0
  %5218 = vmatpush1.msra.mxu0 0.0
  %5219 = vmatprep.subr.mxu0 0.0
  %5220 = vmatpush1.msra.mxu0 0.0
  %5221 = vmatprep.subr.mxu0 0.0
  %5222 = vmatpush1.msra.mxu0 0.0
  %5223 = vmatprep.subr.mxu0 0.0
  %5224 = vmatpush1.msra.mxu0 0.0
  %5225 = vmatprep.subr.mxu0 0.0
  %5226 = vmatpush1.msra.mxu0 0.0
  %5227 = vmatprep.subr.mxu0 0.0
  %5228 = vmatpush1.msra.mxu0 0.0
  %5229 = vmatprep.subr.mxu0 0.0
  %5230 = vmatpush1.msra.mxu0 0.0
  %5231 = vmatprep.subr.mxu0 0.0
  %5232 = vmatpush1.msra.mxu0 0.0
  %5233 = vmatprep.subr.mxu0 0.0
  %5234 = vmatpush1.msra.mxu0 0.0
  %5235 = vmatprep.mubr.f32.mxu0 0.0
  %5236 = vmatmul.mubr.f32.gmra.mrb[0].mxu0 %v5169
  %v5237 = vpop.f32.mrb[0].mxu0
  %v5238 = vadd.f32 0.0, %v5237
  %v5239 = vpop.f32.mrb[0].mxu0
  %5240 = vdwg.mxu0
  %v5241 = vadd.f32 %v5155, %v5238
  %v5242 = vlaneseq
  %v5243 = vshrl.u32 %v5242, 7
  %v5244 = vsub.s32 7, %v5243
  %v5245 = vrot.slane %v17, %v5244
  %v5246 = vadd.f32 %v5241, %v5245
  %v5247 = vmax.f32 %v5246, 0.0
  %v5248 = vlaneseq
  %v5249 = vshrl.u32 %v5248, 7
  %v5250 = vsub.s32 0, %v5249
  %v5251 = vrot.slane %v18, %v5250
  %v5253 = vsel %vm1906, %v5247, 0
  %5255 = vmatprep.subr.mxu0 0.0
  %5256 = vmatpush1.msra.mxu0 %v5160
  %5257 = vmatprep.subr.mxu0 0.0
  %5258 = vmatpush1.msra.mxu0 %v5161
  %5259 = vmatprep.subr.mxu0 0.0
  %5260 = vmatpush1.msra.mxu0 %v5162
  %5261 = vmatprep.subr.mxu0 0.0
  %5262 = vmatpush1.msra.mxu0 %v5163
  %5263 = vmatprep.subr.mxu0 0.0
  %5264 = vmatpush1.msra.mxu0 0.0
  %5265 = vmatprep.subr.mxu0 0.0
  %5266 = vmatpush1.msra.mxu0 0.0
  %5267 = vmatprep.subr.mxu0 0.0
  %5268 = vmatpush1.msra.mxu0 0.0
  %5269 = vmatprep.subr.mxu0 0.0
  %5270 = vmatpush1.msra.mxu0 0.0
  %5271 = vmatprep.subr.mxu0 0.0
  %5272 = vmatpush1.msra.mxu0 0.0
  %5273 = vmatprep.subr.mxu0 0.0
  %5274 = vmatpush1.msra.mxu0 0.0
  %5275 = vmatprep.subr.mxu0 0.0
  %5276 = vmatpush1.msra.mxu0 0.0
  %5277 = vmatprep.subr.mxu0 0.0
  %5278 = vmatpush1.msra.mxu0 0.0
  %5279 = vmatprep.subr.mxu0 0.0
  %5280 = vmatpush1.msra.mxu0 0.0
  %5281 = vmatprep.subr.mxu0 0.0
  %5282 = vmatpush1.msra.mxu0 0.0
  %5283 = vmatprep.subr.mxu0 0.0
  %5284 = vmatpush1.msra.mxu0 0.0
  %5285 = vmatprep.subr.mxu0 0.0
  %5286 = vmatpush1.msra.mxu0 0.0
  %5287 = vmatprep.subr.mxu0 0.0
  %5288 = vmatpush1.msra.mxu0 0.0
  %5289 = vmatprep.subr.mxu0 0.0
  %5290 = vmatpush1.msra.mxu0 0.0
  %5291 = vmatprep.subr.mxu0 0.0
  %5292 = vmatpush1.msra.mxu0 0.0
  %5293 = vmatprep.subr.mxu0 0.0
  %5294 = vmatpush1.msra.mxu0 0.0
  %5295 = vmatprep.subr.mxu0 0.0
  %5296 = vmatpush1.msra.mxu0 0.0
  %5297 = vmatprep.subr.mxu0 0.0
  %5298 = vmatpush1.msra.mxu0 0.0
  %5299 = vmatprep.subr.mxu0 0.0
  %5300 = vmatpush1.msra.mxu0 0.0
  %5301 = vmatprep.subr.mxu0 0.0
  %5302 = vmatpush1.msra.mxu0 0.0
  %5303 = vmatprep.subr.mxu0 0.0
  %5304 = vmatpush1.msra.mxu0 0.0
  %5305 = vmatprep.subr.mxu0 0.0
  %5306 = vmatpush1.msra.mxu0 0.0
  %5307 = vmatprep.subr.mxu0 0.0
  %5308 = vmatpush1.msra.mxu0 0.0
  %5309 = vmatprep.subr.mxu0 0.0
  %5310 = vmatpush1.msra.mxu0 0.0
  %5311 = vmatprep.subr.mxu0 0.0
  %5312 = vmatpush1.msra.mxu0 0.0
  %5313 = vmatprep.subr.mxu0 0.0
  %5314 = vmatpush1.msra.mxu0 0.0
  %5315 = vmatprep.subr.mxu0 0.0
  %5316 = vmatpush1.msra.mxu0 0.0
  %5317 = vmatprep.subr.mxu0 0.0
  %5318 = vmatpush1.msra.mxu0 0.0
  %5319 = vmatprep.mubr.f32.mxu0 0.0
  %5320 = vmatmul.mubr.f32.gmra.mrb[0].mxu0 %v5253
  %v5321 = vpop.f32.mrb[0].mxu0
  %v5322 = vadd.f32 %v5251, %v5321
  %v5323 = vpop.f32.mrb[0].mxu0
  %5324 = vdwg.mxu0
  %v5325 = vmax.f32 %v5322, 0.0
  %v5326 = vlaneseq
  %v5327 = vshrl.u32 %v5326, 7
  %v5328 = vsub.s32 1, %v5327
  %v5329 = vrot.slane %v18, %v5328
  %v5331 = vsel %vm1906, %v5325, 0
  %5333 = vmatprep.subr.mxu0 0.0
  %5334 = vmatpush1.msra.mxu0 %v5164
  %5335 = vmatprep.subr.mxu0 0.0
  %5336 = vmatpush1.msra.mxu0 %v5165
  %5337 = vmatprep.subr.mxu0 0.0
  %5338 = vmatpush1.msra.mxu0 %v5166
  %5339 = vmatprep.subr.mxu0 0.0
  %5340 = vmatpush1.msra.mxu0 %v5167
  %5341 = vmatprep.subr.mxu0 0.0
  %5342 = vmatpush1.msra.mxu0 0.0
  %5343 = vmatprep.subr.mxu0 0.0
  %5344 = vmatpush1.msra.mxu0 0.0
  %5345 = vmatprep.subr.mxu0 0.0
  %5346 = vmatpush1.msra.mxu0 0.0
  %5347 = vmatprep.subr.mxu0 0.0
  %5348 = vmatpush1.msra.mxu0 0.0
  %5349 = vmatprep.subr.mxu0 0.0
  %5350 = vmatpush1.msra.mxu0 0.0
  %5351 = vmatprep.subr.mxu0 0.0
  %5352 = vmatpush1.msra.mxu0 0.0
  %5353 = vmatprep.subr.mxu0 0.0
  %5354 = vmatpush1.msra.mxu0 0.0
  %5355 = vmatprep.subr.mxu0 0.0
  %5356 = vmatpush1.msra.mxu0 0.0
  %5357 = vmatprep.subr.mxu0 0.0
  %5358 = vmatpush1.msra.mxu0 0.0
  %5359 = vmatprep.subr.mxu0 0.0
  %5360 = vmatpush1.msra.mxu0 0.0
  %5361 = vmatprep.subr.mxu0 0.0
  %5362 = vmatpush1.msra.mxu0 0.0
  %5363 = vmatprep.subr.mxu0 0.0
  %5364 = vmatpush1.msra.mxu0 0.0
  %5365 = vmatprep.subr.mxu0 0.0
  %5366 = vmatpush1.msra.mxu0 0.0
  %5367 = vmatprep.subr.mxu0 0.0
  %5368 = vmatpush1.msra.mxu0 0.0
  %5369 = vmatprep.subr.mxu0 0.0
  %5370 = vmatpush1.msra.mxu0 0.0
  %5371 = vmatprep.subr.mxu0 0.0
  %5372 = vmatpush1.msra.mxu0 0.0
  %5373 = vmatprep.subr.mxu0 0.0
  %5374 = vmatpush1.msra.mxu0 0.0
  %5375 = vmatprep.subr.mxu0 0.0
  %5376 = vmatpush1.msra.mxu0 0.0
  %5377 = vmatprep.subr.mxu0 0.0
  %5378 = vmatpush1.msra.mxu0 0.0
  %5379 = vmatprep.subr.mxu0 0.0
  %5380 = vmatpush1.msra.mxu0 0.0
  %5381 = vmatprep.subr.mxu0 0.0
  %5382 = vmatpush1.msra.mxu0 0.0
  %5383 = vmatprep.subr.mxu0 0.0
  %5384 = vmatpush1.msra.mxu0 0.0
  %5385 = vmatprep.subr.mxu0 0.0
  %5386 = vmatpush1.msra.mxu0 0.0
  %5387 = vmatprep.subr.mxu0 0.0
  %5388 = vmatpush1.msra.mxu0 0.0
  %5389 = vmatprep.subr.mxu0 0.0
  %5390 = vmatpush1.msra.mxu0 0.0
  %5391 = vmatprep.subr.mxu0 0.0
  %5392 = vmatpush1.msra.mxu0 0.0
  %5393 = vmatprep.subr.mxu0 0.0
  %5394 = vmatpush1.msra.mxu0 0.0
  %5395 = vmatprep.subr.mxu0 0.0
  %5396 = vmatpush1.msra.mxu0 0.0
  %5397 = vmatprep.mubr.f32.mxu0 0.0
  %5398 = vmatmul.mubr.f32.gmra.mrb[0].mxu0 %v5331
  %v5399 = vpop.f32.mrb[0].mxu0
  %v5400 = vadd.f32 %v5329, %v5399
  %v5401 = vpop.f32.mrb[0].mxu0
  %5402 = vdwg.mxu0
  %v5403 = vxor.u32 %v5400, 2147483648
  %v5404 = vmul.f32 %v5403, 1.442695
  %v5405 = vpow.pop %v5404
  %v5406 = vadd.f32 %v5405, 1.0
  %v5407 = vrcp.pop %v5406
  %v5408 = vmul.f32 1.0, %v5407
  %v5409 = vrot.slane %v5081, 2
  %v5410 = vsel %vm1986, %v5409, 0
  %5412 = vmatprep.subr.mxu0 0.0
  %5413 = vmatpush1.msra.mxu0 %v5158
  %5414 = vmatprep.subr.mxu0 0.0
  %5415 = vmatpush1.msra.mxu0 %v5159
  %5416 = vmatprep.subr.mxu0 0.0
  %5417 = vmatpush1.msra.mxu0 0.0
  %5418 = vmatprep.subr.mxu0 0.0
  %5419 = vmatpush1.msra.mxu0 0.0
  %5420 = vmatprep.subr.mxu0 0.0
  %5421 = vmatpush1.msra.mxu0 0.0
  %5422 = vmatprep.subr.mxu0 0.0
  %5423 = vmatpush1.msra.mxu0 0.0
  %5424 = vmatprep.subr.mxu0 0.0
  %5425 = vmatpush1.msra.mxu0 0.0
  %5426 = vmatprep.subr.mxu0 0.0
  %5427 = vmatpush1.msra.mxu0 0.0
  %5428 = vmatprep.subr.mxu0 0.0
  %5429 = vmatpush1.msra.mxu0 0.0
  %5430 = vmatprep.subr.mxu0 0.0
  %5431 = vmatpush1.msra.mxu0 0.0
  %5432 = vmatprep.subr.mxu0 0.0
  %5433 = vmatpush1.msra.mxu0 0.0
  %5434 = vmatprep.subr.mxu0 0.0
  %5435 = vmatpush1.msra.mxu0 0.0
  %5436 = vmatprep.subr.mxu0 0.0
  %5437 = vmatpush1.msra.mxu0 0.0
  %5438 = vmatprep.subr.mxu0 0.0
  %5439 = vmatpush1.msra.mxu0 0.0
  %5440 = vmatprep.subr.mxu0 0.0
  %5441 = vmatpush1.msra.mxu0 0.0
  %5442 = vmatprep.subr.mxu0 0.0
  %5443 = vmatpush1.msra.mxu0 0.0
  %5444 = vmatprep.subr.mxu0 0.0
  %5445 = vmatpush1.msra.mxu0 0.0
  %5446 = vmatprep.subr.mxu0 0.0
  %5447 = vmatpush1.msra.mxu0 0.0
  %5448 = vmatprep.subr.mxu0 0.0
  %5449 = vmatpush1.msra.mxu0 0.0
  %5450 = vmatprep.subr.mxu0 0.0
  %5451 = vmatpush1.msra.mxu0 0.0
  %5452 = vmatprep.subr.mxu0 0.0
  %5453 = vmatpush1.msra.mxu0 0.0
  %5454 = vmatprep.subr.mxu0 0.0
  %5455 = vmatpush1.msra.mxu0 0.0
  %5456 = vmatprep.subr.mxu0 0.0
  %5457 = vmatpush1.msra.mxu0 0.0
  %5458 = vmatprep.subr.mxu0 0.0
  %5459 = vmatpush1.msra.mxu0 0.0
  %5460 = vmatprep.subr.mxu0 0.0
  %5461 = vmatpush1.msra.mxu0 0.0
  %5462 = vmatprep.subr.mxu0 0.0
  %5463 = vmatpush1.msra.mxu0 0.0
  %5464 = vmatprep.subr.mxu0 0.0
  %5465 = vmatpush1.msra.mxu0 0.0
  %5466 = vmatprep.subr.mxu0 0.0
  %5467 = vmatpush1.msra.mxu0 0.0
  %5468 = vmatprep.subr.mxu0 0.0
  %5469 = vmatpush1.msra.mxu0 0.0
  %5470 = vmatprep.subr.mxu0 0.0
  %5471 = vmatpush1.msra.mxu0 0.0
  %5472 = vmatprep.subr.mxu0 0.0
  %5473 = vmatpush1.msra.mxu0 0.0
  %5474 = vmatprep.subr.mxu0 0.0
  %5475 = vmatpush1.msra.mxu0 0.0
  %5476 = vmatprep.mubr.f32.mxu0 0.0
  %5477 = vmatmul.mubr.f32.gmra.mrb[0].mxu0 %v5410
  %v5478 = vpop.f32.mrb[0].mxu0
  %v5479 = vadd.f32 0.0, %v5478
  %v5480 = vpop.f32.mrb[0].mxu0
  %5481 = vdwg.mxu0
  %v5482 = vadd.f32 %v5155, %v5479
  %v5483 = vadd.f32 %v5482, %v5245
  %v5484 = vmax.f32 %v5483, 0.0
  %v5486 = vsel %vm1906, %v5484, 0
  %5488 = vmatprep.subr.mxu0 0.0
  %5489 = vmatpush1.msra.mxu0 %v5160
  %5490 = vmatprep.subr.mxu0 0.0
  %5491 = vmatpush1.msra.mxu0 %v5161
  %5492 = vmatprep.subr.mxu0 0.0
  %5493 = vmatpush1.msra.mxu0 %v5162
  %5494 = vmatprep.subr.mxu0 0.0
  %5495 = vmatpush1.msra.mxu0 %v5163
  %5496 = vmatprep.subr.mxu0 0.0
  %5497 = vmatpush1.msra.mxu0 0.0
  %5498 = vmatprep.subr.mxu0 0.0
  %5499 = vmatpush1.msra.mxu0 0.0
  %5500 = vmatprep.subr.mxu0 0.0
  %5501 = vmatpush1.msra.mxu0 0.0
  %5502 = vmatprep.subr.mxu0 0.0
  %5503 = vmatpush1.msra.mxu0 0.0
  %5504 = vmatprep.subr.mxu0 0.0
  %5505 = vmatpush1.msra.mxu0 0.0
  %5506 = vmatprep.subr.mxu0 0.0
  %5507 = vmatpush1.msra.mxu0 0.0
  %5508 = vmatprep.subr.mxu0 0.0
  %5509 = vmatpush1.msra.mxu0 0.0
  %5510 = vmatprep.subr.mxu0 0.0
  %5511 = vmatpush1.msra.mxu0 0.0
  %5512 = vmatprep.subr.mxu0 0.0
  %5513 = vmatpush1.msra.mxu0 0.0
  %5514 = vmatprep.subr.mxu0 0.0
  %5515 = vmatpush1.msra.mxu0 0.0
  %5516 = vmatprep.subr.mxu0 0.0
  %5517 = vmatpush1.msra.mxu0 0.0
  %5518 = vmatprep.subr.mxu0 0.0
  %5519 = vmatpush1.msra.mxu0 0.0
  %5520 = vmatprep.subr.mxu0 0.0
  %5521 = vmatpush1.msra.mxu0 0.0
  %5522 = vmatprep.subr.mxu0 0.0
  %5523 = vmatpush1.msra.mxu0 0.0
  %5524 = vmatprep.subr.mxu0 0.0
  %5525 = vmatpush1.msra.mxu0 0.0
  %5526 = vmatprep.subr.mxu0 0.0
  %5527 = vmatpush1.msra.mxu0 0.0
  %5528 = vmatprep.subr.mxu0 0.0
  %5529 = vmatpush1.msra.mxu0 0.0
  %5530 = vmatprep.subr.mxu0 0.0
  %5531 = vmatpush1.msra.mxu0 0.0
  %5532 = vmatprep.subr.mxu0 0.0
  %5533 = vmatpush1.msra.mxu0 0.0
  %5534 = vmatprep.subr.mxu0 0.0
  %5535 = vmatpush1.msra.mxu0 0.0
  %5536 = vmatprep.subr.mxu0 0.0
  %5537 = vmatpush1.msra.mxu0 0.0
  %5538 = vmatprep.subr.mxu0 0.0
  %5539 = vmatpush1.msra.mxu0 0.0
  %5540 = vmatprep.subr.mxu0 0.0
  %5541 = vmatpush1.msra.mxu0 0.0
  %5542 = vmatprep.subr.mxu0 0.0
  %5543 = vmatpush1.msra.mxu0 0.0
  %5544 = vmatprep.subr.mxu0 0.0
  %5545 = vmatpush1.msra.mxu0 0.0
  %5546 = vmatprep.subr.mxu0 0.0
  %5547 = vmatpush1.msra.mxu0 0.0
  %5548 = vmatprep.subr.mxu0 0.0
  %5549 = vmatpush1.msra.mxu0 0.0
  %5550 = vmatprep.subr.mxu0 0.0
  %5551 = vmatpush1.msra.mxu0 0.0
  %5552 = vmatprep.mubr.f32.mxu0 0.0
  %5553 = vmatmul.mubr.f32.gmra.mrb[0].mxu0 %v5486
  %v5554 = vpop.f32.mrb[0].mxu0
  %v5555 = vadd.f32 %v5251, %v5554
  %v5556 = vpop.f32.mrb[0].mxu0
  %5557 = vdwg.mxu0
  %v5558 = vmax.f32 %v5555, 0.0
  %v5560 = vsel %vm1906, %v5558, 0
  %5562 = vmatprep.subr.mxu0 0.0
  %5563 = vmatpush1.msra.mxu0 %v5164
  %5564 = vmatprep.subr.mxu0 0.0
  %5565 = vmatpush1.msra.mxu0 %v5165
  %5566 = vmatprep.subr.mxu0 0.0
  %5567 = vmatpush1.msra.mxu0 %v5166
  %5568 = vmatprep.subr.mxu0 0.0
  %5569 = vmatpush1.msra.mxu0 %v5167
  %5570 = vmatprep.subr.mxu0 0.0
  %5571 = vmatpush1.msra.mxu0 0.0
  %5572 = vmatprep.subr.mxu0 0.0
  %5573 = vmatpush1.msra.mxu0 0.0
  %5574 = vmatprep.subr.mxu0 0.0
  %5575 = vmatpush1.msra.mxu0 0.0
  %5576 = vmatprep.subr.mxu0 0.0
  %5577 = vmatpush1.msra.mxu0 0.0
  %5578 = vmatprep.subr.mxu0 0.0
  %5579 = vmatpush1.msra.mxu0 0.0
  %5580 = vmatprep.subr.mxu0 0.0
  %5581 = vmatpush1.msra.mxu0 0.0
  %5582 = vmatprep.subr.mxu0 0.0
  %5583 = vmatpush1.msra.mxu0 0.0
  %5584 = vmatprep.subr.mxu0 0.0
  %5585 = vmatpush1.msra.mxu0 0.0
  %5586 = vmatprep.subr.mxu0 0.0
  %5587 = vmatpush1.msra.mxu0 0.0
  %5588 = vmatprep.subr.mxu0 0.0
  %5589 = vmatpush1.msra.mxu0 0.0
  %5590 = vmatprep.subr.mxu0 0.0
  %5591 = vmatpush1.msra.mxu0 0.0
  %5592 = vmatprep.subr.mxu0 0.0
  %5593 = vmatpush1.msra.mxu0 0.0
  %5594 = vmatprep.subr.mxu0 0.0
  %5595 = vmatpush1.msra.mxu0 0.0
  %5596 = vmatprep.subr.mxu0 0.0
  %5597 = vmatpush1.msra.mxu0 0.0
  %5598 = vmatprep.subr.mxu0 0.0
  %5599 = vmatpush1.msra.mxu0 0.0
  %5600 = vmatprep.subr.mxu0 0.0
  %5601 = vmatpush1.msra.mxu0 0.0
  %5602 = vmatprep.subr.mxu0 0.0
  %5603 = vmatpush1.msra.mxu0 0.0
  %5604 = vmatprep.subr.mxu0 0.0
  %5605 = vmatpush1.msra.mxu0 0.0
  %5606 = vmatprep.subr.mxu0 0.0
  %5607 = vmatpush1.msra.mxu0 0.0
  %5608 = vmatprep.subr.mxu0 0.0
  %5609 = vmatpush1.msra.mxu0 0.0
  %5610 = vmatprep.subr.mxu0 0.0
  %5611 = vmatpush1.msra.mxu0 0.0
  %5612 = vmatprep.subr.mxu0 0.0
  %5613 = vmatpush1.msra.mxu0 0.0
  %5614 = vmatprep.subr.mxu0 0.0
  %5615 = vmatpush1.msra.mxu0 0.0
  %5616 = vmatprep.subr.mxu0 0.0
  %5617 = vmatpush1.msra.mxu0 0.0
  %5618 = vmatprep.subr.mxu0 0.0
  %5619 = vmatpush1.msra.mxu0 0.0
  %5620 = vmatprep.subr.mxu0 0.0
  %5621 = vmatpush1.msra.mxu0 0.0
  %5622 = vmatprep.subr.mxu0 0.0
  %5623 = vmatpush1.msra.mxu0 0.0
  %5624 = vmatprep.subr.mxu0 0.0
  %5625 = vmatpush1.msra.mxu0 0.0
  %5626 = vmatprep.mubr.f32.mxu0 0.0
  %5627 = vmatmul.mubr.f32.gmra.mrb[0].mxu0 %v5560
  %v5628 = vpop.f32.mrb[0].mxu0
  %v5629 = vadd.f32 %v5329, %v5628
  %v5630 = vpop.f32.mrb[0].mxu0
  %5631 = vdwg.mxu0
  %v5632 = vxor.u32 %v5629, 2147483648
  %v5633 = vmul.f32 %v5632, 1.442695
  %v5634 = vpow.pop %v5633
  %v5635 = vadd.f32 %v5634, 1.0
  %v5636 = vrcp.pop %v5635
  %v5637 = vmul.f32 1.0, %v5636
  %5638 = vst [vmem:[%s4] sm:$0x3] 0.0
  %5639 = vst.msk [vmem:[%s4] sm:$0x3] %vm2381, %v2378
  %5641 = vrot.lane.b32.xlu0 %v5408, 24
  %v5642 = vpop.permute.xlu0 %5641
  %vm5644 = vcmask 197824
  %5645 = vst.msk [vmem:[%s4] sm:$0x3] %vm5644, %v5642
  %5646 = vrot.lane.b32.xlu0 %v5408, 25
  %v5647 = vpop.permute.xlu0 %5646
  %vm5649 = vcmask 206024
  %5650 = vst.msk [vmem:[%s4] sm:$0x3] %vm5649, %v5647
  %5652 = vrot.lane.b32.xlu0 %v5637, 26
  %v5653 = vpop.permute.xlu0 %5652
  %vm5655 = vcmask 214224
  %5656 = vst.msk [vmem:[%s4] sm:$0x3] %vm5655, %v5653
  // Predicated region
  $region18: #{forward.1} parent=0 // pred_check
    _
  $region19: #{forward.1} parent=0 // pred_check_branch
    %5658 = sbr.rel (0) target = $region21
  $region20: #{forward.1} parent=0 // pred_region
    _
  $region21: #{forward.1} parent=0 // pred_fallthru
    _
  // Predicated region
  $region22: #{forward.1} parent=0 // pred_check
    _
  $region23: #{forward.1} parent=0 // pred_check_branch
    %5660 = sbr.rel (0) target = $region25
  $region24: #{forward.1} parent=0 // pred_region
    _
  $region25: #{forward.1} parent=0 // pred_fallthru
    _

</llo_original>
